<compile_context>
chip_gen: v7x
topology: tpu7x:2x2x1
jax: 0.10.0
libtpu: 0.0.40
codegen_flags: <defaults>
</compile_context>

<pallas_src>
import functools

import jax
import jax.numpy as jnp
import numpy as np
from jax.experimental import pallas as pl
from jax.experimental.pallas import tpu as pltpu
from jax.scipy.linalg import block_diag


# ----------------------------------------------------------------------------
# small math helpers (pure jnp -> usable both inside the kernel and in the ref)
# ----------------------------------------------------------------------------
def _erf(x):
    # Abramowitz & Stegun 7.1.26 rational approximation (|err| < 1.5e-7),
    # matches PyTorch's exact-GELU to ~float32 precision.
    a1, a2, a3, a4, a5 = 0.254829592, -0.284496736, 1.421413741, -1.453152027, 1.061405429
    p = 0.3275911
    s = jnp.where(x >= 0, 1.0, -1.0)
    ax = jnp.abs(x)
    t = 1.0 / (1.0 + p * ax)
    y = 1.0 - (((((a5 * t + a4) * t) + a3) * t + a2) * t + a1) * t * jnp.exp(-ax * ax)
    return s * y


def _gelu(x, fast):
    if fast:
        # tanh-GELU: the transcendental runs on the otherwise-idle EUP instead
        # of ~12 VALU ops/element of the rational erf (review item, esp. v5e).
        c = 0.7978845608028654
        return 0.5 * x * (1.0 + jnp.tanh(c * (x + 0.044715 * x * x * x)))
    # PyTorch nn.GELU() default = exact (erf) GELU.
    return 0.5 * x * (1.0 + _erf(x * 0.7071067811865476))


def _layernorm(x, gamma, beta, eps=1e-5):
    mean = jnp.mean(x, axis=-1, keepdims=True)
    var = jnp.mean((x - mean) ** 2, axis=-1, keepdims=True)
    return (x - mean) * jax.lax.rsqrt(var + eps) * gamma + beta


def _recip(x, fast):
    # approx reciprocal runs in the free EUP slot (review item); exact divide
    # in precise mode keeps the tight reference check.
    if fast:
        return pl.reciprocal(x, approx=True)
    return 1.0 / x


def _softmax_last(x, fast):
    m = jnp.max(x, axis=-1, keepdims=True)
    e = jnp.exp(x - m)
    return e * _recip(jnp.sum(e, axis=-1, keepdims=True), fast)


def _make_gumbel_bf16(u):
    # gumbel noise precomputed outside the kernel (frees the kernel's single
    # EUP slot from two logs per element) and stored bf16 (halves the largest
    # input DMA).  Shape (B, H, N, G), mirroring torch.rand_like(logits).
    g = -jnp.log(-jnp.log(u.astype(jnp.float32) + 1e-8) + 1e-8)
    return g.astype(jnp.bfloat16)


# ----------------------------------------------------------------------------
# Pallas kernel: one batch element per grid step, all heads handled via
# block-diagonal weights / masks -- no head-major relayouts of N-sized data.
# ----------------------------------------------------------------------------
def _block_kernel(fx_ref, g_ref,
                  ln1g_ref, ln1b_ref,
                  wpx_ref, bpx_ref,
                  wt1_ref, bt1_ref, wt2_ref, bt2_ref, tbias_ref,
                  wsl_ref, bsl_ref,
                  wqkv_ref, smask_ref, amask_ref,
                  wo_ref, bo_ref,
                  ln2g_ref, ln2b_ref,
                  wpre_ref, bpre_ref, wpost_ref, bpost_ref,
                  out_ref, *, heads, dim_head, slice_num, fast):
    H, D, G = heads, dim_head, slice_num
    C, HG = H * D, H * G
    f32 = jnp.float32
    mmdt = jnp.bfloat16 if fast else jnp.float32      # operand dtype for N-sized GEMMs
    BB, N, _ = fx_ref.shape                           # static block shape
    R = BB * N

    x = fx_ref[...].reshape(R, C)                     # token rows, head-minor lanes

    # ---------------- ln_1 + in_project_x ------------------------------------
    xn = _layernorm(x, ln1g_ref[...], ln1b_ref[...])
    xm = jnp.dot(xn.astype(mmdt), wpx_ref[...], preferred_element_type=f32) + bpx_ref[...]   # (R, C)
    xm_mm = xm.astype(mmdt)

    # ---------------- temperature MLP (block-diag over heads) ----------------
    t1 = _gelu(jnp.dot(xm_mm, wt1_ref[...], preferred_element_type=f32) + bt1_ref[...], fast)   # (R, HG)
    t2 = _gelu(jnp.dot(t1, wt2_ref[...], preferred_element_type=f32) + bt2_ref[...], fast)      # (R, H)
    temp = jnp.maximum(t2 + tbias_ref[...], 0.01)                                               # (R, H)

    # ---------------- slice logits + per-head gumbel softmax -----------------
    logits = jnp.dot(xm_mm, wsl_ref[...], preferred_element_type=f32) + bsl_ref[...]            # (R, HG)
    y = logits + g_ref[...].astype(f32).reshape(R, HG)
    # grouped softmax over each head's G lanes; these (R,HG)<->(R,H,G) reshapes
    # are the only N-sized relayouts left in the kernel.
    y3 = y.reshape(R, H, G) * _recip(temp, fast).reshape(R, H, 1)
    sw = _softmax_last(y3, fast).reshape(R, HG)                                                 # (R, HG)

    # ---------------- slice tokens (one block-matrix contraction) ------------
    # TODO(synk): dist_nn.all_reduce on slice_norm / slice_token is a cross-
    # device SUM; single-device here, so it is the identity.
    sw_b = sw.reshape(BB, N, HG)
    xm_b = xm.reshape(BB, N, C)
    norm = jnp.sum(sw_b, axis=1)                                                                # (BB, HG)
    st_full = jax.lax.dot_general(sw_b.astype(mmdt), xm_b.astype(mmdt),
                                  (((1,), (1,)), ((0,), (0,))),
                                  preferred_element_type=f32)                                   # (BB, HG, C)
    # normalize by slice_norm and zero the cross-head blocks (exact block-diag).
    st = st_full * _recip(norm + 1e-5, fast)[:, :, None] * smask_ref[...][None]                 # (BB, HG, C)

    # ---------------- q/k/v (fused) + per-head attention ---------------------
    qkv = jax.lax.dot_general(st, wqkv_ref[...], (((2,), (0,)), ((), ())),
                              preferred_element_type=f32)                                       # (BB, HG, 3C)
    q, k, v = qkv[:, :, :C], qkv[:, :, C:2 * C], qkv[:, :, 2 * C:]
    scores = jax.lax.dot_general(q, k, (((2,), (2,)), ((0,), (0,))),
                                 preferred_element_type=f32)
    scores = scores * (1.0 / float(D) ** 0.5) + amask_ref[...][None]                            # (BB, HG, HG)
    attn = _softmax_last(scores, fast)
    out_st = jax.lax.dot_general(attn, v, (((2,), (1,)), ((0,), (0,))),
                                 preferred_element_type=f32)                                    # (BB, HG, C)

    # ---------------- de-slice + output projection, folded -------------------
    # Fold wo into the (G-sized) slice tokens, then contract straight back to
    # head-minor token space: out already (BB, N, C), no head concat needed.
    proj = jax.lax.dot_general(out_st, wo_ref[...], (((2,), (0,)), ((), ())),
                               preferred_element_type=f32)                                      # (BB, HG, C)
    out_tok = jax.lax.dot_general(sw_b.astype(mmdt), proj.astype(mmdt),
                                  (((2,), (1,)), ((0,), (0,))),
                                  preferred_element_type=f32)                                   # (BB, N, C)
    fx1 = x + out_tok.reshape(R, C) + bo_ref[...]                                               # residual #1

    # ---------------- ln_2 + MLP (n_layers=0, res=False) ---------------------
    xn2 = _layernorm(fx1, ln2g_ref[...], ln2b_ref[...])
    hid = _gelu(jnp.dot(xn2.astype(mmdt), wpre_ref[...], preferred_element_type=f32)
                + bpre_ref[...], fast)                                                          # (R, 4C)
    mlp = jnp.dot(hid.astype(mmdt), wpost_ref[...], preferred_element_type=f32) + bpost_ref[...]

    # TODO(synk): for production C < 128, present the output lane-dense
    # ((B, N*C/128, 128) view) to avoid masked vst.msk stores; C>=128 is moot.
    out_ref[...] = (mlp + fx1).reshape(BB, N, C).astype(out_ref.dtype)                          # residual #2


# ----------------------------------------------------------------------------
# wrapper: host-side (free) weight re-packing + pallas_call
# ----------------------------------------------------------------------------
def transolver_plus_block(fx, u, params, *, heads, dim_head, slice_num,
                          batch_block=1, fast=False,
                          vmem_limit_bytes=32 * 1024 * 1024):
    B, N, C = fx.shape
    H, D, G = heads, dim_head, slice_num
    HG = H * G
    assert C == H * D
    assert B % batch_block == 0, "batch_block must divide the batch size"

    mmdt = jnp.bfloat16 if fast else jnp.float32

    # gumbel noise, precomputed + bf16 (see _make_gumbel_bf16), reordered to the
    # kernel's token-major / head-minor lane layout (B, N, H*G).
    g = jnp.transpose(_make_gumbel_bf16(u), (0, 2, 1, 3)).reshape(B, N, HG)

    # ---- wrapper-side weight re-packing (free, host/XLA side) ---------------
    def bd(w):                                   # per-head (din,dout) -> (H*din, H*dout)
        return block_diag(*([w] * H))

    wt1_bd = bd(params["wt1"]).astype(mmdt)      # (C, HG)
    wsl_bd = bd(params["wsl"]).astype(mmdt)      # (C, HG)
    wt2_bd = bd(params["wt2"])                   # (HG, H), f32
    wqkv_bd = jnp.concatenate([bd(params["wq"]), bd(params["wk"]), bd(params["wv"])],
                              axis=1)            # (C, 3C) fused q|k|v
    bt1_t = jnp.tile(params["bt1"], (1, H))      # (1, HG)
    bsl_t = jnp.tile(params["bsl"], (1, H))      # (1, HG)
    bt2_t = jnp.tile(params["bt2"], (1, H))      # (1, H)
    tbias = params["abias"].reshape(1, H)

    # block masks used to run all heads as one (HG, C)/(HG, HG) problem.
    head_of_slice = jnp.repeat(jnp.arange(H), G)                                   # (HG,)
    head_of_chan = jnp.repeat(jnp.arange(H), D)                                    # (C,)
    smask = (head_of_slice[:, None] == head_of_chan[None, :]).astype(jnp.float32)  # (HG, C)
    amask = jnp.where(head_of_slice[:, None] == head_of_slice[None, :],
                      0.0, -1e9).astype(jnp.float32)                               # (HG, HG)

    plist = [
        params["ln1g"], params["ln1b"],
        params["wpx"].astype(mmdt), params["bpx"],
        wt1_bd, bt1_t, wt2_bd, bt2_t, tbias,
        wsl_bd, bsl_t,
        wqkv_bd, smask, amask,
        params["wo"], params["bo"],
        params["ln2g"], params["ln2b"],
        params["wpre"].astype(mmdt), params["bpre"],
        params["wpost"].astype(mmdt), params["bpost"],
    ]

    kern = functools.partial(_block_kernel, heads=H, dim_head=D, slice_num=G, fast=fast)

    in_specs = [pl.BlockSpec((batch_block, N, C), lambda b: (b, 0, 0)),
                pl.BlockSpec((batch_block, N, HG), lambda b: (b, 0, 0))]
    for p in plist:
        in_specs.append(pl.BlockSpec(p.shape, (lambda b, _nd=p.ndim: (0,) * _nd)))

    return pl.pallas_call(
        kern,
        out_shape=jax.ShapeDtypeStruct((B, N, C), fx.dtype),
        grid_spec=pltpu.PrefetchScalarGridSpec(
            num_scalar_prefetch=0,
            grid=(B // batch_block,),
            in_specs=in_specs,
            out_specs=pl.BlockSpec((batch_block, N, C), lambda b: (b, 0, 0)),
        ),
        compiler_params=pltpu.CompilerParams(
            dimension_semantics=("parallel",),
            vmem_limit_bytes=vmem_limit_bytes,
        ),
    )(fx, g, *plist)


# ----------------------------------------------------------------------------
# deterministic parameter init (shapes from the module's __init__)
# ----------------------------------------------------------------------------
def init_params(key, C, H, D, G, mlp_ratio=4):
    ks = iter(jax.random.split(key, 32))

    def lin_w(shape):
        return jax.random.normal(next(ks), shape, jnp.float32) / np.sqrt(shape[0])

    def lin_b(n):
        return jax.random.normal(next(ks), (1, n), jnp.float32) * 0.05

    p = {}
    p["ln1g"] = jnp.ones((1, C), jnp.float32)
    p["ln1b"] = jnp.zeros((1, C), jnp.float32)
    p["wpx"], p["bpx"] = lin_w((C, C)), lin_b(C)
    p["wt1"], p["bt1"] = lin_w((D, G)), lin_b(G)
    p["wt2"], p["bt2"] = lin_w((G, 1)), lin_b(1)
    p["abias"] = jnp.ones((1, H), jnp.float32) * 0.5
    # orthogonal init for in_project_slice (torch.nn.init.orthogonal_)
    q_mat, _ = jnp.linalg.qr(jax.random.normal(next(ks), (G, D), jnp.float32))
    p["wsl"] = q_mat.T                                    # stored (in=D, out=G)
    p["bsl"] = lin_b(G)
    p["wq"], p["wk"], p["wv"] = lin_w((D, D)), lin_w((D, D)), lin_w((D, D))
    p["wo"], p["bo"] = lin_w((C, C)), lin_b(C)
    p["ln2g"] = jnp.ones((1, C), jnp.float32)
    p["ln2b"] = jnp.zeros((1, C), jnp.float32)
    p["wpre"], p["bpre"] = lin_w((C, mlp_ratio * C)), lin_b(mlp_ratio * C)
    p["wpost"], p["bpost"] = lin_w((mlp_ratio * C, C)), lin_b(C)
    return p


# ----------------------------------------------------------------------------
# pure-JAX reference mirroring the PyTorch module (per-head structure)
# ----------------------------------------------------------------------------
def reference(fx, u, p, H, D, G):
    B, N, C = fx.shape
    xn = _layernorm(fx, p["ln1g"][0], p["ln1b"][0])
    xmid = xn @ p["wpx"] + p["bpx"][0]
    xmid = xmid.reshape(B, N, H, D).transpose(0, 2, 1, 3)                   # (B,H,N,D)
    t = _gelu(xmid @ p["wt1"] + p["bt1"][0], fast=False)
    t = _gelu(t @ p["wt2"] + p["bt2"][0], fast=False)                       # (B,H,N,1)
    temp = jnp.maximum(t + p["abias"][0][None, :, None, None], 0.01)
    logits = xmid @ p["wsl"] + p["bsl"][0]
    gumbel = _make_gumbel_bf16(u).astype(jnp.float32)
    sw = jax.nn.softmax((logits + gumbel) / temp, axis=-1)                  # (B,H,N,G)
    snorm = sw.sum(2)
    st = jnp.einsum("bhnc,bhng->bhgc", xmid, sw)
    st = st / (snorm + 1e-5)[..., None]
    q, k, v = st @ p["wq"], st @ p["wk"], st @ p["wv"]
    attn = jax.nn.softmax(q @ jnp.swapaxes(k, -1, -2) / np.sqrt(D), axis=-1)
    out_st = attn @ v
    out_x = jnp.einsum("bhgc,bhng->bhnc", out_st, sw)
    out_x = out_x.transpose(0, 2, 1, 3).reshape(B, N, C)
    fx1 = fx + out_x @ p["wo"] + p["bo"][0]
    xn2 = _layernorm(fx1, p["ln2g"][0], p["ln2b"][0])
    mlp = _gelu(xn2 @ p["wpre"] + p["bpre"][0], fast=False) @ p["wpost"] + p["bpost"][0]
    return mlp + fx1


if __name__ == "__main__":
    B, N, C = 2, 64, 32          # batch, tokens, hidden_dim
    H, G = 4, 16                 # num_heads, slice_num
    D = C // H                   # dim_head

    key = jax.random.PRNGKey(0)
    kx, ku, kp = jax.random.split(key, 3)
    fx = jax.random.normal(kx, (B, N, C), jnp.float32)
    # torch.rand_like gumbel-noise uniform, generated host-side for determinism
    u = jax.random.uniform(ku, (B, H, N, G), jnp.float32, minval=1e-6, maxval=1.0 - 1e-6)
    params = init_params(kp, C, H, D, G)

    ref = reference(fx, u, params, H, D, G)

    # precise path: f32 operands, exact GELU / divides -> tight check.
    out = transolver_plus_block(fx, u, params, heads=H, dim_head=D, slice_num=G)
    out = jax.block_until_ready(out)
    np.testing.assert_allclose(np.asarray(out), np.asarray(ref), rtol=2e-3, atol=2e-3)

    # fast (production) path: bf16 matmul operands + approx reciprocals +
    # tanh-GELU.  The sharp gumbel-softmax amplifies bf16 rounding of the
    # temperature/logit path (inherent to the module), so the check vs the
    # f32 reference uses a correspondingly looser tolerance.
    out_fast = transolver_plus_block(fx, u, params, heads=H, dim_head=D, slice_num=G, fast=True)
    out_fast = jax.block_until_ready(out_fast)
    np.testing.assert_allclose(np.asarray(out_fast), np.asarray(ref), rtol=1e-1, atol=1e-1)

    print("KERNEL_OK")
</pallas_src>

<mosaic_0001>
module attributes {stable_mosaic.version = 11 : i64} {
  func.func @_block_kernel(%arg0: i32, %arg1: memref<1x64x32xf32, #tpu.memory_space<vmem>>, %arg2: memref<1x64x64xbf16, #tpu.memory_space<vmem>>, %arg3: memref<1x32xf32, #tpu.memory_space<vmem>>, %arg4: memref<1x32xf32, #tpu.memory_space<vmem>>, %arg5: memref<32x32xf32, #tpu.memory_space<vmem>>, %arg6: memref<1x32xf32, #tpu.memory_space<vmem>>, %arg7: memref<32x64xf32, #tpu.memory_space<vmem>>, %arg8: memref<1x64xf32, #tpu.memory_space<vmem>>, %arg9: memref<64x4xf32, #tpu.memory_space<vmem>>, %arg10: memref<1x4xf32, #tpu.memory_space<vmem>>, %arg11: memref<1x4xf32, #tpu.memory_space<vmem>>, %arg12: memref<32x64xf32, #tpu.memory_space<vmem>>, %arg13: memref<1x64xf32, #tpu.memory_space<vmem>>, %arg14: memref<32x96xf32, #tpu.memory_space<vmem>>, %arg15: memref<64x32xf32, #tpu.memory_space<vmem>>, %arg16: memref<64x64xf32, #tpu.memory_space<vmem>>, %arg17: memref<32x32xf32, #tpu.memory_space<vmem>>, %arg18: memref<1x32xf32, #tpu.memory_space<vmem>>, %arg19: memref<1x32xf32, #tpu.memory_space<vmem>>, %arg20: memref<1x32xf32, #tpu.memory_space<vmem>>, %arg21: memref<32x128xf32, #tpu.memory_space<vmem>>, %arg22: memref<1x128xf32, #tpu.memory_space<vmem>>, %arg23: memref<128x32xf32, #tpu.memory_space<vmem>>, %arg24: memref<1x32xf32, #tpu.memory_space<vmem>>, %arg25: memref<1x64x32xf32, #tpu.memory_space<vmem>>) attributes {dimension_semantics = [#tpu.dimension_semantics<parallel>], iteration_bounds = array<i64: 2>, scalar_prefetch = 0 : i64, scratch_operands = 0 : i64, tpu.core_type = #tpu.core_type<tc>, window_params = [{transform_indices = @transform_0, window_bounds = array<i64: 1, 64, 32>}, {transform_indices = @transform_1, window_bounds = array<i64: 1, 64, 64>}, {pipeline_mode = #tpu.pipeline_mode<synchronous>, transform_indices = @transform_2, window_bounds = array<i64: 1, 32>}, {pipeline_mode = #tpu.pipeline_mode<synchronous>, transform_indices = @transform_3, window_bounds = array<i64: 1, 32>}, {pipeline_mode = #tpu.pipeline_mode<synchronous>, transform_indices = @transform_4, window_bounds = array<i64: 32, 32>}, {pipeline_mode = #tpu.pipeline_mode<synchronous>, transform_indices = @transform_5, window_bounds = array<i64: 1, 32>}, {pipeline_mode = #tpu.pipeline_mode<synchronous>, transform_indices = @transform_6, window_bounds = array<i64: 32, 64>}, {pipeline_mode = #tpu.pipeline_mode<synchronous>, transform_indices = @transform_7, window_bounds = array<i64: 1, 64>}, {pipeline_mode = #tpu.pipeline_mode<synchronous>, transform_indices = @transform_8, window_bounds = array<i64: 64, 4>}, {pipeline_mode = #tpu.pipeline_mode<synchronous>, transform_indices = @transform_9, window_bounds = array<i64: 1, 4>}, {pipeline_mode = #tpu.pipeline_mode<synchronous>, transform_indices = @transform_10, window_bounds = array<i64: 1, 4>}, {pipeline_mode = #tpu.pipeline_mode<synchronous>, transform_indices = @transform_11, window_bounds = array<i64: 32, 64>}, {pipeline_mode = #tpu.pipeline_mode<synchronous>, transform_indices = @transform_12, window_bounds = array<i64: 1, 64>}, {pipeline_mode = #tpu.pipeline_mode<synchronous>, transform_indices = @transform_13, window_bounds = array<i64: 32, 96>}, {pipeline_mode = #tpu.pipeline_mode<synchronous>, transform_indices = @transform_14, window_bounds = array<i64: 64, 32>}, {pipeline_mode = #tpu.pipeline_mode<synchronous>, transform_indices = @transform_15, window_bounds = array<i64: 64, 64>}, {pipeline_mode = #tpu.pipeline_mode<synchronous>, transform_indices = @transform_16, window_bounds = array<i64: 32, 32>}, {pipeline_mode = #tpu.pipeline_mode<synchronous>, transform_indices = @transform_17, window_bounds = array<i64: 1, 32>}, {pipeline_mode = #tpu.pipeline_mode<synchronous>, transform_indices = @transform_18, window_bounds = array<i64: 1, 32>}, {pipeline_mode = #tpu.pipeline_mode<synchronous>, transform_indices = @transform_19, window_bounds = array<i64: 1, 32>}, {pipeline_mode = #tpu.pipeline_mode<synchronous>, transform_indices = @transform_20, window_bounds = array<i64: 32, 128>}, {pipeline_mode = #tpu.pipeline_mode<synchronous>, transform_indices = @transform_21, window_bounds = array<i64: 1, 128>}, {pipeline_mode = #tpu.pipeline_mode<synchronous>, transform_indices = @transform_22, window_bounds = array<i64: 128, 32>}, {pipeline_mode = #tpu.pipeline_mode<synchronous>, transform_indices = @transform_23, window_bounds = array<i64: 1, 32>}, {transform_indices = @transform_24, window_bounds = array<i64: 1, 64, 32>}]} {
    %c0 = arith.constant 0 : index
    %c0_0 = arith.constant 0 : index
    %c0_1 = arith.constant 0 : index
    %0 = vector.load %arg1[%c0, %c0_0, %c0_1] : memref<1x64x32xf32, #tpu.memory_space<vmem>>, vector<1x64x32xf32>
    %1 = vector.shape_cast %0 : vector<1x64x32xf32> to vector<64x32xf32>
    %c0_2 = arith.constant 0 : index
    %c0_3 = arith.constant 0 : index
    %2 = vector.load %arg3[%c0_2, %c0_3] : memref<1x32xf32, #tpu.memory_space<vmem>>, vector<1x32xf32>
    %c0_4 = arith.constant 0 : index
    %c0_5 = arith.constant 0 : index
    %3 = vector.load %arg4[%c0_4, %c0_5] : memref<1x32xf32, #tpu.memory_space<vmem>>, vector<1x32xf32>
    %cst = arith.constant dense<0.000000e+00> : vector<64xf32>
    %4 = vector.multi_reduction <add>, %1, %cst [1] : vector<64x32xf32> to vector<64xf32>
    %5 = vector.shape_cast %4 : vector<64xf32> to vector<64x1xf32>
    %cst_6 = arith.constant 3.200000e+01 : f32
    %6 = vector.broadcast %cst_6 : f32 to vector<64x1xf32>
    %7 = arith.divf %5, %6 : vector<64x1xf32>
    %8 = vector.broadcast %7 : vector<64x1xf32> to vector<64x32xf32>
    %9 = arith.subf %1, %8 : vector<64x32xf32>
    %10 = arith.mulf %9, %9 : vector<64x32xf32>
    %cst_7 = arith.constant dense<0.000000e+00> : vector<64xf32>
    %11 = vector.multi_reduction <add>, %10, %cst_7 [1] : vector<64x32xf32> to vector<64xf32>
    %12 = vector.shape_cast %11 : vector<64xf32> to vector<64x1xf32>
    %cst_8 = arith.constant 3.200000e+01 : f32
    %13 = vector.broadcast %cst_8 : f32 to vector<64x1xf32>
    %14 = arith.divf %12, %13 : vector<64x1xf32>
    %15 = vector.broadcast %7 : vector<64x1xf32> to vector<64x32xf32>
    %16 = arith.subf %1, %15 : vector<64x32xf32>
    %cst_9 = arith.constant 9.99999974E-6 : f32
    %17 = vector.broadcast %cst_9 : f32 to vector<64x1xf32>
    %18 = arith.addf %14, %17 : vector<64x1xf32>
    %19 = math.rsqrt %18 : vector<64x1xf32>
    %20 = vector.broadcast %19 : vector<64x1xf32> to vector<64x32xf32>
    %21 = arith.mulf %16, %20 : vector<64x32xf32>
    %22 = vector.broadcast %2 : vector<1x32xf32> to vector<64x32xf32>
    %23 = arith.mulf %21, %22 : vector<64x32xf32>
    %24 = vector.broadcast %3 : vector<1x32xf32> to vector<64x32xf32>
    %25 = arith.addf %23, %24 : vector<64x32xf32>
    %c0_10 = arith.constant 0 : index
    %c0_11 = arith.constant 0 : index
    %26 = vector.load %arg5[%c0_10, %c0_11] : memref<32x32xf32, #tpu.memory_space<vmem>>, vector<32x32xf32>
    %cst_12 = arith.constant dense<0.000000e+00> : vector<64x32xf32>
    %27 = tpu.matmul %25, %26, %cst_12 {dimension_numbers = #tpu.dot_dimension_numbers<[1], [0], [0], [1], [0, 0, 1, 1], [], []>} : vector<64x32xf32>, vector<32x32xf32>, vector<64x32xf32> -> vector<64x32xf32>
    %c0_13 = arith.constant 0 : index
    %c0_14 = arith.constant 0 : index
    %28 = vector.load %arg6[%c0_13, %c0_14] : memref<1x32xf32, #tpu.memory_space<vmem>>, vector<1x32xf32>
    %29 = vector.broadcast %28 : vector<1x32xf32> to vector<64x32xf32>
    %30 = arith.addf %27, %29 : vector<64x32xf32>
    %c0_15 = arith.constant 0 : index
    %c0_16 = arith.constant 0 : index
    %31 = vector.load %arg7[%c0_15, %c0_16] : memref<32x64xf32, #tpu.memory_space<vmem>>, vector<32x64xf32>
    %cst_17 = arith.constant dense<0.000000e+00> : vector<64x64xf32>
    %32 = tpu.matmul %30, %31, %cst_17 {dimension_numbers = #tpu.dot_dimension_numbers<[1], [0], [0], [1], [0, 0, 1, 1], [], []>} : vector<64x32xf32>, vector<32x64xf32>, vector<64x64xf32> -> vector<64x64xf32>
    %c0_18 = arith.constant 0 : index
    %c0_19 = arith.constant 0 : index
    %33 = vector.load %arg8[%c0_18, %c0_19] : memref<1x64xf32, #tpu.memory_space<vmem>>, vector<1x64xf32>
    %34 = vector.broadcast %33 : vector<1x64xf32> to vector<64x64xf32>
    %35 = arith.addf %32, %34 : vector<64x64xf32>
    %cst_20 = arith.constant 5.000000e-01 : f32
    %36 = vector.broadcast %cst_20 : f32 to vector<64x64xf32>
    %37 = arith.mulf %36, %35 : vector<64x64xf32>
    %cst_21 = arith.constant 0.707106769 : f32
    %38 = vector.broadcast %cst_21 : f32 to vector<64x64xf32>
    %39 = arith.mulf %35, %38 : vector<64x64xf32>
    %cst_22 = arith.constant 0.000000e+00 : f32
    %40 = vector.broadcast %cst_22 : f32 to vector<64x64xf32>
    %41 = arith.cmpf oge, %39, %40 : vector<64x64xf32>
    %cst_23 = arith.constant 1.000000e+00 : f32
    %cst_24 = arith.constant -1.000000e+00 : f32
    %42 = vector.broadcast %cst_23 : f32 to vector<64x64xf32>
    %43 = vector.broadcast %cst_24 : f32 to vector<64x64xf32>
    %44 = arith.select %41, %42, %43 : vector<64x64xi1>, vector<64x64xf32>
    %45 = math.absf %39 : vector<64x64xf32>
    %cst_25 = arith.constant 0.327591091 : f32
    %46 = vector.broadcast %cst_25 : f32 to vector<64x64xf32>
    %47 = arith.mulf %46, %45 : vector<64x64xf32>
    %cst_26 = arith.constant 1.000000e+00 : f32
    %48 = vector.broadcast %cst_26 : f32 to vector<64x64xf32>
    %49 = arith.addf %48, %47 : vector<64x64xf32>
    %cst_27 = arith.constant 1.000000e+00 : f32
    %50 = vector.broadcast %cst_27 : f32 to vector<64x64xf32>
    %51 = arith.divf %50, %49 : vector<64x64xf32>
    %cst_28 = arith.constant 1.06140542 : f32
    %52 = vector.broadcast %cst_28 : f32 to vector<64x64xf32>
    %53 = arith.mulf %52, %51 : vector<64x64xf32>
    %cst_29 = arith.constant -1.45315206 : f32
    %54 = vector.broadcast %cst_29 : f32 to vector<64x64xf32>
    %55 = arith.addf %53, %54 : vector<64x64xf32>
    %56 = arith.mulf %55, %51 : vector<64x64xf32>
    %cst_30 = arith.constant 1.42141378 : f32
    %57 = vector.broadcast %cst_30 : f32 to vector<64x64xf32>
    %58 = arith.addf %56, %57 : vector<64x64xf32>
    %59 = arith.mulf %58, %51 : vector<64x64xf32>
    %cst_31 = arith.constant -0.284496725 : f32
    %60 = vector.broadcast %cst_31 : f32 to vector<64x64xf32>
    %61 = arith.addf %59, %60 : vector<64x64xf32>
    %62 = arith.mulf %61, %51 : vector<64x64xf32>
    %cst_32 = arith.constant 0.254829586 : f32
    %63 = vector.broadcast %cst_32 : f32 to vector<64x64xf32>
    %64 = arith.addf %62, %63 : vector<64x64xf32>
    %65 = arith.mulf %64, %51 : vector<64x64xf32>
    %cst_33 = arith.constant 0.000000e+00 : f32
    %66 = vector.broadcast %cst_33 : f32 to vector<64x64xf32>
    %67 = arith.subf %66, %45 : vector<64x64xf32>
    %68 = arith.mulf %67, %45 : vector<64x64xf32>
    %69 = math.exp %68 : vector<64x64xf32>
    %70 = arith.mulf %65, %69 : vector<64x64xf32>
    %cst_34 = arith.constant 1.000000e+00 : f32
    %71 = vector.broadcast %cst_34 : f32 to vector<64x64xf32>
    %72 = arith.subf %71, %70 : vector<64x64xf32>
    %73 = arith.mulf %44, %72 : vector<64x64xf32>
    %cst_35 = arith.constant 1.000000e+00 : f32
    %74 = vector.broadcast %cst_35 : f32 to vector<64x64xf32>
    %75 = arith.addf %74, %73 : vector<64x64xf32>
    %76 = arith.mulf %37, %75 : vector<64x64xf32>
    %c0_36 = arith.constant 0 : index
    %c0_37 = arith.constant 0 : index
    %77 = vector.load %arg9[%c0_36, %c0_37] : memref<64x4xf32, #tpu.memory_space<vmem>>, vector<64x4xf32>
    %cst_38 = arith.constant dense<0.000000e+00> : vector<64x4xf32>
    %78 = tpu.matmul %76, %77, %cst_38 {dimension_numbers = #tpu.dot_dimension_numbers<[1], [0], [0], [1], [0, 0, 1, 1], [], []>} : vector<64x64xf32>, vector<64x4xf32>, vector<64x4xf32> -> vector<64x4xf32>
    %c0_39 = arith.constant 0 : index
    %c0_40 = arith.constant 0 : index
    %79 = vector.load %arg10[%c0_39, %c0_40] : memref<1x4xf32, #tpu.memory_space<vmem>>, vector<1x4xf32>
    %80 = vector.broadcast %79 : vector<1x4xf32> to vector<64x4xf32>
    %81 = arith.addf %78, %80 : vector<64x4xf32>
    %cst_41 = arith.constant 5.000000e-01 : f32
    %82 = vector.broadcast %cst_41 : f32 to vector<64x4xf32>
    %83 = arith.mulf %82, %81 : vector<64x4xf32>
    %cst_42 = arith.constant 0.707106769 : f32
    %84 = vector.broadcast %cst_42 : f32 to vector<64x4xf32>
    %85 = arith.mulf %81, %84 : vector<64x4xf32>
    %cst_43 = arith.constant 0.000000e+00 : f32
    %86 = vector.broadcast %cst_43 : f32 to vector<64x4xf32>
    %87 = arith.cmpf oge, %85, %86 : vector<64x4xf32>
    %cst_44 = arith.constant 1.000000e+00 : f32
    %cst_45 = arith.constant -1.000000e+00 : f32
    %88 = vector.broadcast %cst_44 : f32 to vector<64x4xf32>
    %89 = vector.broadcast %cst_45 : f32 to vector<64x4xf32>
    %90 = arith.select %87, %88, %89 : vector<64x4xi1>, vector<64x4xf32>
    %91 = math.absf %85 : vector<64x4xf32>
    %cst_46 = arith.constant 0.327591091 : f32
    %92 = vector.broadcast %cst_46 : f32 to vector<64x4xf32>
    %93 = arith.mulf %92, %91 : vector<64x4xf32>
    %cst_47 = arith.constant 1.000000e+00 : f32
    %94 = vector.broadcast %cst_47 : f32 to vector<64x4xf32>
    %95 = arith.addf %94, %93 : vector<64x4xf32>
    %cst_48 = arith.constant 1.000000e+00 : f32
    %96 = vector.broadcast %cst_48 : f32 to vector<64x4xf32>
    %97 = arith.divf %96, %95 : vector<64x4xf32>
    %cst_49 = arith.constant 1.06140542 : f32
    %98 = vector.broadcast %cst_49 : f32 to vector<64x4xf32>
    %99 = arith.mulf %98, %97 : vector<64x4xf32>
    %cst_50 = arith.constant -1.45315206 : f32
    %100 = vector.broadcast %cst_50 : f32 to vector<64x4xf32>
    %101 = arith.addf %99, %100 : vector<64x4xf32>
    %102 = arith.mulf %101, %97 : vector<64x4xf32>
    %cst_51 = arith.constant 1.42141378 : f32
    %103 = vector.broadcast %cst_51 : f32 to vector<64x4xf32>
    %104 = arith.addf %102, %103 : vector<64x4xf32>
    %105 = arith.mulf %104, %97 : vector<64x4xf32>
    %cst_52 = arith.constant -0.284496725 : f32
    %106 = vector.broadcast %cst_52 : f32 to vector<64x4xf32>
    %107 = arith.addf %105, %106 : vector<64x4xf32>
    %108 = arith.mulf %107, %97 : vector<64x4xf32>
    %cst_53 = arith.constant 0.254829586 : f32
    %109 = vector.broadcast %cst_53 : f32 to vector<64x4xf32>
    %110 = arith.addf %108, %109 : vector<64x4xf32>
    %111 = arith.mulf %110, %97 : vector<64x4xf32>
    %cst_54 = arith.constant 0.000000e+00 : f32
    %112 = vector.broadcast %cst_54 : f32 to vector<64x4xf32>
    %113 = arith.subf %112, %91 : vector<64x4xf32>
    %114 = arith.mulf %113, %91 : vector<64x4xf32>
    %115 = math.exp %114 : vector<64x4xf32>
    %116 = arith.mulf %111, %115 : vector<64x4xf32>
    %cst_55 = arith.constant 1.000000e+00 : f32
    %117 = vector.broadcast %cst_55 : f32 to vector<64x4xf32>
    %118 = arith.subf %117, %116 : vector<64x4xf32>
    %119 = arith.mulf %90, %118 : vector<64x4xf32>
    %cst_56 = arith.constant 1.000000e+00 : f32
    %120 = vector.broadcast %cst_56 : f32 to vector<64x4xf32>
    %121 = arith.addf %120, %119 : vector<64x4xf32>
    %122 = arith.mulf %83, %121 : vector<64x4xf32>
    %c0_57 = arith.constant 0 : index
    %c0_58 = arith.constant 0 : index
    %123 = vector.load %arg11[%c0_57, %c0_58] : memref<1x4xf32, #tpu.memory_space<vmem>>, vector<1x4xf32>
    %124 = vector.broadcast %123 : vector<1x4xf32> to vector<64x4xf32>
    %125 = arith.addf %122, %124 : vector<64x4xf32>
    %cst_59 = arith.constant 0.00999999977 : f32
    %126 = vector.broadcast %cst_59 : f32 to vector<64x4xf32>
    %127 = arith.maximumf %125, %126 : vector<64x4xf32>
    %c0_60 = arith.constant 0 : index
    %c0_61 = arith.constant 0 : index
    %128 = vector.load %arg12[%c0_60, %c0_61] : memref<32x64xf32, #tpu.memory_space<vmem>>, vector<32x64xf32>
    %cst_62 = arith.constant dense<0.000000e+00> : vector<64x64xf32>
    %129 = tpu.matmul %30, %128, %cst_62 {dimension_numbers = #tpu.dot_dimension_numbers<[1], [0], [0], [1], [0, 0, 1, 1], [], []>} : vector<64x32xf32>, vector<32x64xf32>, vector<64x64xf32> -> vector<64x64xf32>
    %c0_63 = arith.constant 0 : index
    %c0_64 = arith.constant 0 : index
    %130 = vector.load %arg13[%c0_63, %c0_64] : memref<1x64xf32, #tpu.memory_space<vmem>>, vector<1x64xf32>
    %131 = vector.broadcast %130 : vector<1x64xf32> to vector<64x64xf32>
    %132 = arith.addf %129, %131 : vector<64x64xf32>
    %c0_65 = arith.constant 0 : index
    %c0_66 = arith.constant 0 : index
    %c0_67 = arith.constant 0 : index
    %133 = vector.load %arg2[%c0_65, %c0_66, %c0_67] : memref<1x64x64xbf16, #tpu.memory_space<vmem>>, vector<1x64x64xbf16>
    %134 = arith.extf %133 : vector<1x64x64xbf16> to vector<1x64x64xf32>
    %135 = vector.shape_cast %134 : vector<1x64x64xf32> to vector<64x64xf32>
    %136 = arith.addf %132, %135 : vector<64x64xf32>
    %137 = vector.shape_cast %136 : vector<64x64xf32> to vector<64x4x16xf32>
    %cst_68 = arith.constant 1.000000e+00 : f32
    %138 = vector.broadcast %cst_68 : f32 to vector<64x4xf32>
    %139 = arith.divf %138, %127 : vector<64x4xf32>
    %140 = vector.shape_cast %139 : vector<64x4xf32> to vector<64x4x1xf32>
    %141 = vector.broadcast %140 : vector<64x4x1xf32> to vector<64x4x16xf32>
    %142 = arith.mulf %137, %141 : vector<64x4x16xf32>
    %cst_69 = arith.constant dense<0xFF800000> : vector<64x4xf32>
    %143 = vector.multi_reduction <maximumf>, %142, %cst_69 [2] : vector<64x4x16xf32> to vector<64x4xf32>
    %144 = vector.shape_cast %143 : vector<64x4xf32> to vector<64x4x1xf32>
    %145 = vector.broadcast %144 : vector<64x4x1xf32> to vector<64x4x16xf32>
    %146 = arith.subf %142, %145 : vector<64x4x16xf32>
    %147 = math.exp %146 : vector<64x4x16xf32>
    %cst_70 = arith.constant dense<0.000000e+00> : vector<64x4xf32>
    %148 = vector.multi_reduction <add>, %147, %cst_70 [2] : vector<64x4x16xf32> to vector<64x4xf32>
    %149 = vector.shape_cast %148 : vector<64x4xf32> to vector<64x4x1xf32>
    %cst_71 = arith.constant 1.000000e+00 : f32
    %150 = vector.broadcast %cst_71 : f32 to vector<64x4x1xf32>
    %151 = arith.divf %150, %149 : vector<64x4x1xf32>
    %152 = vector.broadcast %151 : vector<64x4x1xf32> to vector<64x4x16xf32>
    %153 = arith.mulf %147, %152 : vector<64x4x16xf32>
    %154 = vector.shape_cast %153 : vector<64x4x16xf32> to vector<64x64xf32>
    %155 = vector.shape_cast %154 : vector<64x64xf32> to vector<1x64x64xf32>
    %156 = vector.shape_cast %30 : vector<64x32xf32> to vector<1x64x32xf32>
    %cst_72 = arith.constant dense<0.000000e+00> : vector<1x64xf32>
    %157 = vector.multi_reduction <add>, %155, %cst_72 [1] : vector<1x64x64xf32> to vector<1x64xf32>
    %cst_73 = arith.constant dense<0.000000e+00> : vector<1x64x32xf32>
    %158 = tpu.matmul %155, %156, %cst_73 {dimension_numbers = #tpu.dot_dimension_numbers<[1], [1], [2], [2], [0, 0, 0, 2, 1, 2], [0], [0]>} : vector<1x64x64xf32>, vector<1x64x32xf32>, vector<1x64x32xf32> -> vector<1x64x32xf32>
    %cst_74 = arith.constant 9.99999974E-6 : f32
    %159 = vector.broadcast %cst_74 : f32 to vector<1x64xf32>
    %160 = arith.addf %157, %159 : vector<1x64xf32>
    %cst_75 = arith.constant 1.000000e+00 : f32
    %161 = vector.broadcast %cst_75 : f32 to vector<1x64xf32>
    %162 = arith.divf %161, %160 : vector<1x64xf32>
    %163 = vector.shape_cast %162 : vector<1x64xf32> to vector<1x64x1xf32>
    %164 = vector.broadcast %163 : vector<1x64x1xf32> to vector<1x64x32xf32>
    %165 = arith.mulf %158, %164 : vector<1x64x32xf32>
    %c0_76 = arith.constant 0 : index
    %c0_77 = arith.constant 0 : index
    %166 = vector.load %arg15[%c0_76, %c0_77] : memref<64x32xf32, #tpu.memory_space<vmem>>, vector<64x32xf32>
    %167 = vector.shape_cast %166 : vector<64x32xf32> to vector<1x64x32xf32>
    %168 = arith.mulf %165, %167 : vector<1x64x32xf32>
    %c0_78 = arith.constant 0 : index
    %c0_79 = arith.constant 0 : index
    %169 = vector.load %arg14[%c0_78, %c0_79] : memref<32x96xf32, #tpu.memory_space<vmem>>, vector<32x96xf32>
    %cst_80 = arith.constant dense<0.000000e+00> : vector<1x64x96xf32>
    %170 = tpu.matmul %168, %169, %cst_80 {dimension_numbers = #tpu.dot_dimension_numbers<[2], [0], [0, 1], [1], [0, 0, 0, 1, 1, 1], [], []>} : vector<1x64x32xf32>, vector<32x96xf32>, vector<1x64x96xf32> -> vector<1x64x96xf32>
    %171 = vector.extract_strided_slice %170 {offsets = [0, 0, 0], sizes = [1, 64, 32], strides = [1, 1, 1]} : vector<1x64x96xf32> to vector<1x64x32xf32>
    %172 = vector.extract_strided_slice %170 {offsets = [0, 0, 32], sizes = [1, 64, 32], strides = [1, 1, 1]} : vector<1x64x96xf32> to vector<1x64x32xf32>
    %173 = vector.extract_strided_slice %170 {offsets = [0, 0, 64], sizes = [1, 64, 32], strides = [1, 1, 1]} : vector<1x64x96xf32> to vector<1x64x32xf32>
    %cst_81 = arith.constant dense<0.000000e+00> : vector<1x64x64xf32>
    %174 = tpu.matmul %171, %172, %cst_81 {dimension_numbers = #tpu.dot_dimension_numbers<[2], [2], [1], [1], [0, 0, 0, 1, 1, 1], [0], [0]>} : vector<1x64x32xf32>, vector<1x64x32xf32>, vector<1x64x64xf32> -> vector<1x64x64xf32>
    %cst_82 = arith.constant 0.353553385 : f32
    %175 = vector.broadcast %cst_82 : f32 to vector<1x64x64xf32>
    %176 = arith.mulf %174, %175 : vector<1x64x64xf32>
    %c0_83 = arith.constant 0 : index
    %c0_84 = arith.constant 0 : index
    %177 = vector.load %arg16[%c0_83, %c0_84] : memref<64x64xf32, #tpu.memory_space<vmem>>, vector<64x64xf32>
    %178 = vector.shape_cast %177 : vector<64x64xf32> to vector<1x64x64xf32>
    %179 = arith.addf %176, %178 : vector<1x64x64xf32>
    %cst_85 = arith.constant dense<0xFF800000> : vector<1x64xf32>
    %180 = vector.multi_reduction <maximumf>, %179, %cst_85 [2] : vector<1x64x64xf32> to vector<1x64xf32>
    %181 = vector.shape_cast %180 : vector<1x64xf32> to vector<1x64x1xf32>
    %182 = vector.broadcast %181 : vector<1x64x1xf32> to vector<1x64x64xf32>
    %183 = arith.subf %179, %182 : vector<1x64x64xf32>
    %184 = math.exp %183 : vector<1x64x64xf32>
    %cst_86 = arith.constant dense<0.000000e+00> : vector<1x64xf32>
    %185 = vector.multi_reduction <add>, %184, %cst_86 [2] : vector<1x64x64xf32> to vector<1x64xf32>
    %186 = vector.shape_cast %185 : vector<1x64xf32> to vector<1x64x1xf32>
    %cst_87 = arith.constant 1.000000e+00 : f32
    %187 = vector.broadcast %cst_87 : f32 to vector<1x64x1xf32>
    %188 = arith.divf %187, %186 : vector<1x64x1xf32>
    %189 = vector.broadcast %188 : vector<1x64x1xf32> to vector<1x64x64xf32>
    %190 = arith.mulf %184, %189 : vector<1x64x64xf32>
    %cst_88 = arith.constant dense<0.000000e+00> : vector<1x64x32xf32>
    %191 = tpu.matmul %190, %173, %cst_88 {dimension_numbers = #tpu.dot_dimension_numbers<[2], [1], [1], [2], [0, 0, 0, 1, 1, 2], [0], [0]>} : vector<1x64x64xf32>, vector<1x64x32xf32>, vector<1x64x32xf32> -> vector<1x64x32xf32>
    %c0_89 = arith.constant 0 : index
    %c0_90 = arith.constant 0 : index
    %192 = vector.load %arg17[%c0_89, %c0_90] : memref<32x32xf32, #tpu.memory_space<vmem>>, vector<32x32xf32>
    %cst_91 = arith.constant dense<0.000000e+00> : vector<1x64x32xf32>
    %193 = tpu.matmul %191, %192, %cst_91 {dimension_numbers = #tpu.dot_dimension_numbers<[2], [0], [0, 1], [1], [0, 0, 0, 1, 1, 1], [], []>} : vector<1x64x32xf32>, vector<32x32xf32>, vector<1x64x32xf32> -> vector<1x64x32xf32>
    %cst_92 = arith.constant dense<0.000000e+00> : vector<1x64x32xf32>
    %194 = tpu.matmul %155, %193, %cst_92 {dimension_numbers = #tpu.dot_dimension_numbers<[2], [1], [1], [2], [0, 0, 0, 1, 1, 2], [0], [0]>} : vector<1x64x64xf32>, vector<1x64x32xf32>, vector<1x64x32xf32> -> vector<1x64x32xf32>
    %195 = vector.shape_cast %194 : vector<1x64x32xf32> to vector<64x32xf32>
    %196 = arith.addf %1, %195 : vector<64x32xf32>
    %c0_93 = arith.constant 0 : index
    %c0_94 = arith.constant 0 : index
    %197 = vector.load %arg18[%c0_93, %c0_94] : memref<1x32xf32, #tpu.memory_space<vmem>>, vector<1x32xf32>
    %198 = vector.broadcast %197 : vector<1x32xf32> to vector<64x32xf32>
    %199 = arith.addf %196, %198 : vector<64x32xf32>
    %c0_95 = arith.constant 0 : index
    %c0_96 = arith.constant 0 : index
    %200 = vector.load %arg19[%c0_95, %c0_96] : memref<1x32xf32, #tpu.memory_space<vmem>>, vector<1x32xf32>
    %c0_97 = arith.constant 0 : index
    %c0_98 = arith.constant 0 : index
    %201 = vector.load %arg20[%c0_97, %c0_98] : memref<1x32xf32, #tpu.memory_space<vmem>>, vector<1x32xf32>
    %cst_99 = arith.constant dense<0.000000e+00> : vector<64xf32>
    %202 = vector.multi_reduction <add>, %199, %cst_99 [1] : vector<64x32xf32> to vector<64xf32>
    %203 = vector.shape_cast %202 : vector<64xf32> to vector<64x1xf32>
    %cst_100 = arith.constant 3.200000e+01 : f32
    %204 = vector.broadcast %cst_100 : f32 to vector<64x1xf32>
    %205 = arith.divf %203, %204 : vector<64x1xf32>
    %206 = vector.broadcast %205 : vector<64x1xf32> to vector<64x32xf32>
    %207 = arith.subf %199, %206 : vector<64x32xf32>
    %208 = arith.mulf %207, %207 : vector<64x32xf32>
    %cst_101 = arith.constant dense<0.000000e+00> : vector<64xf32>
    %209 = vector.multi_reduction <add>, %208, %cst_101 [1] : vector<64x32xf32> to vector<64xf32>
    %210 = vector.shape_cast %209 : vector<64xf32> to vector<64x1xf32>
    %cst_102 = arith.constant 3.200000e+01 : f32
    %211 = vector.broadcast %cst_102 : f32 to vector<64x1xf32>
    %212 = arith.divf %210, %211 : vector<64x1xf32>
    %213 = vector.broadcast %205 : vector<64x1xf32> to vector<64x32xf32>
    %214 = arith.subf %199, %213 : vector<64x32xf32>
    %cst_103 = arith.constant 9.99999974E-6 : f32
    %215 = vector.broadcast %cst_103 : f32 to vector<64x1xf32>
    %216 = arith.addf %212, %215 : vector<64x1xf32>
    %217 = math.rsqrt %216 : vector<64x1xf32>
    %218 = vector.broadcast %217 : vector<64x1xf32> to vector<64x32xf32>
    %219 = arith.mulf %214, %218 : vector<64x32xf32>
    %220 = vector.broadcast %200 : vector<1x32xf32> to vector<64x32xf32>
    %221 = arith.mulf %219, %220 : vector<64x32xf32>
    %222 = vector.broadcast %201 : vector<1x32xf32> to vector<64x32xf32>
    %223 = arith.addf %221, %222 : vector<64x32xf32>
    %c0_104 = arith.constant 0 : index
    %c0_105 = arith.constant 0 : index
    %224 = vector.load %arg21[%c0_104, %c0_105] : memref<32x128xf32, #tpu.memory_space<vmem>>, vector<32x128xf32>
    %cst_106 = arith.constant dense<0.000000e+00> : vector<64x128xf32>
    %225 = tpu.matmul %223, %224, %cst_106 {dimension_numbers = #tpu.dot_dimension_numbers<[1], [0], [0], [1], [0, 0, 1, 1], [], []>} : vector<64x32xf32>, vector<32x128xf32>, vector<64x128xf32> -> vector<64x128xf32>
    %c0_107 = arith.constant 0 : index
    %c0_108 = arith.constant 0 : index
    %226 = vector.load %arg22[%c0_107, %c0_108] : memref<1x128xf32, #tpu.memory_space<vmem>>, vector<1x128xf32>
    %227 = vector.broadcast %226 : vector<1x128xf32> to vector<64x128xf32>
    %228 = arith.addf %225, %227 : vector<64x128xf32>
    %cst_109 = arith.constant 5.000000e-01 : f32
    %229 = vector.broadcast %cst_109 : f32 to vector<64x128xf32>
    %230 = arith.mulf %229, %228 : vector<64x128xf32>
    %cst_110 = arith.constant 0.707106769 : f32
    %231 = vector.broadcast %cst_110 : f32 to vector<64x128xf32>
    %232 = arith.mulf %228, %231 : vector<64x128xf32>
    %cst_111 = arith.constant 0.000000e+00 : f32
    %233 = vector.broadcast %cst_111 : f32 to vector<64x128xf32>
    %234 = arith.cmpf oge, %232, %233 : vector<64x128xf32>
    %cst_112 = arith.constant 1.000000e+00 : f32
    %cst_113 = arith.constant -1.000000e+00 : f32
    %235 = vector.broadcast %cst_112 : f32 to vector<64x128xf32>
    %236 = vector.broadcast %cst_113 : f32 to vector<64x128xf32>
    %237 = arith.select %234, %235, %236 : vector<64x128xi1>, vector<64x128xf32>
    %238 = math.absf %232 : vector<64x128xf32>
    %cst_114 = arith.constant 0.327591091 : f32
    %239 = vector.broadcast %cst_114 : f32 to vector<64x128xf32>
    %240 = arith.mulf %239, %238 : vector<64x128xf32>
    %cst_115 = arith.constant 1.000000e+00 : f32
    %241 = vector.broadcast %cst_115 : f32 to vector<64x128xf32>
    %242 = arith.addf %241, %240 : vector<64x128xf32>
    %cst_116 = arith.constant 1.000000e+00 : f32
    %243 = vector.broadcast %cst_116 : f32 to vector<64x128xf32>
    %244 = arith.divf %243, %242 : vector<64x128xf32>
    %cst_117 = arith.constant 1.06140542 : f32
    %245 = vector.broadcast %cst_117 : f32 to vector<64x128xf32>
    %246 = arith.mulf %245, %244 : vector<64x128xf32>
    %cst_118 = arith.constant -1.45315206 : f32
    %247 = vector.broadcast %cst_118 : f32 to vector<64x128xf32>
    %248 = arith.addf %246, %247 : vector<64x128xf32>
    %249 = arith.mulf %248, %244 : vector<64x128xf32>
    %cst_119 = arith.constant 1.42141378 : f32
    %250 = vector.broadcast %cst_119 : f32 to vector<64x128xf32>
    %251 = arith.addf %249, %250 : vector<64x128xf32>
    %252 = arith.mulf %251, %244 : vector<64x128xf32>
    %cst_120 = arith.constant -0.284496725 : f32
    %253 = vector.broadcast %cst_120 : f32 to vector<64x128xf32>
    %254 = arith.addf %252, %253 : vector<64x128xf32>
    %255 = arith.mulf %254, %244 : vector<64x128xf32>
    %cst_121 = arith.constant 0.254829586 : f32
    %256 = vector.broadcast %cst_121 : f32 to vector<64x128xf32>
    %257 = arith.addf %255, %256 : vector<64x128xf32>
    %258 = arith.mulf %257, %244 : vector<64x128xf32>
    %cst_122 = arith.constant 0.000000e+00 : f32
    %259 = vector.broadcast %cst_122 : f32 to vector<64x128xf32>
    %260 = arith.subf %259, %238 : vector<64x128xf32>
    %261 = arith.mulf %260, %238 : vector<64x128xf32>
    %262 = math.exp %261 : vector<64x128xf32>
    %263 = arith.mulf %258, %262 : vector<64x128xf32>
    %cst_123 = arith.constant 1.000000e+00 : f32
    %264 = vector.broadcast %cst_123 : f32 to vector<64x128xf32>
    %265 = arith.subf %264, %263 : vector<64x128xf32>
    %266 = arith.mulf %237, %265 : vector<64x128xf32>
    %cst_124 = arith.constant 1.000000e+00 : f32
    %267 = vector.broadcast %cst_124 : f32 to vector<64x128xf32>
    %268 = arith.addf %267, %266 : vector<64x128xf32>
    %269 = arith.mulf %230, %268 : vector<64x128xf32>
    %c0_125 = arith.constant 0 : index
    %c0_126 = arith.constant 0 : index
    %270 = vector.load %arg23[%c0_125, %c0_126] : memref<128x32xf32, #tpu.memory_space<vmem>>, vector<128x32xf32>
    %cst_127 = arith.constant dense<0.000000e+00> : vector<64x32xf32>
    %271 = tpu.matmul %269, %270, %cst_127 {dimension_numbers = #tpu.dot_dimension_numbers<[1], [0], [0], [1], [0, 0, 1, 1], [], []>} : vector<64x128xf32>, vector<128x32xf32>, vector<64x32xf32> -> vector<64x32xf32>
    %c0_128 = arith.constant 0 : index
    %c0_129 = arith.constant 0 : index
    %272 = vector.load %arg24[%c0_128, %c0_129] : memref<1x32xf32, #tpu.memory_space<vmem>>, vector<1x32xf32>
    %273 = vector.broadcast %272 : vector<1x32xf32> to vector<64x32xf32>
    %274 = arith.addf %271, %273 : vector<64x32xf32>
    %275 = arith.addf %274, %199 : vector<64x32xf32>
    %276 = vector.shape_cast %275 : vector<64x32xf32> to vector<1x64x32xf32>
    %c0_130 = arith.constant 0 : index
    %c0_131 = arith.constant 0 : index
    %c0_132 = arith.constant 0 : index
    %277 = vector.load %arg25[%c0_130, %c0_131, %c0_132] : memref<1x64x32xf32, #tpu.memory_space<vmem>>, vector<1x64x32xf32>
    tpu.vector_store %arg25[%c0_130, %c0_131, %c0_132], %276 {strides = array<i32>} : memref<1x64x32xf32, #tpu.memory_space<vmem>>, vector<1x64x32xf32>,
    return
  }
  func.func @transform_0(%arg0: i32) -> (i32, i32, i32) {
    %c0_i32 = arith.constant 0 : i32
    %c0_i32_0 = arith.constant 0 : i32
    %c0_i32_1 = arith.constant 0 : i32
    return %arg0, %c0_i32, %c0_i32_0 : i32, i32, i32
  }
  func.func @transform_1(%arg0: i32) -> (i32, i32, i32) {
    %c0_i32 = arith.constant 0 : i32
    %c0_i32_0 = arith.constant 0 : i32
    %c0_i32_1 = arith.constant 0 : i32
    return %arg0, %c0_i32, %c0_i32_0 : i32, i32, i32
  }
  func.func @transform_2(%arg0: i32) -> (i32, i32) {
    %c0_i32 = arith.constant 0 : i32
    %c0_i32_0 = arith.constant 0 : i32
    %c0_i32_1 = arith.constant 0 : i32
    return %c0_i32, %c0_i32_0 : i32, i32
  }
  func.func @transform_3(%arg0: i32) -> (i32, i32) {
    %c0_i32 = arith.constant 0 : i32
    %c0_i32_0 = arith.constant 0 : i32
    %c0_i32_1 = arith.constant 0 : i32
    return %c0_i32, %c0_i32_0 : i32, i32
  }
  func.func @transform_4(%arg0: i32) -> (i32, i32) {
    %c0_i32 = arith.constant 0 : i32
    %c0_i32_0 = arith.constant 0 : i32
    %c0_i32_1 = arith.constant 0 : i32
    return %c0_i32, %c0_i32_0 : i32, i32
  }
  func.func @transform_5(%arg0: i32) -> (i32, i32) {
    %c0_i32 = arith.constant 0 : i32
    %c0_i32_0 = arith.constant 0 : i32
    %c0_i32_1 = arith.constant 0 : i32
    return %c0_i32, %c0_i32_0 : i32, i32
  }
  func.func @transform_6(%arg0: i32) -> (i32, i32) {
    %c0_i32 = arith.constant 0 : i32
    %c0_i32_0 = arith.constant 0 : i32
    %c0_i32_1 = arith.constant 0 : i32
    return %c0_i32, %c0_i32_0 : i32, i32
  }
  func.func @transform_7(%arg0: i32) -> (i32, i32) {
    %c0_i32 = arith.constant 0 : i32
    %c0_i32_0 = arith.constant 0 : i32
    %c0_i32_1 = arith.constant 0 : i32
    return %c0_i32, %c0_i32_0 : i32, i32
  }
  func.func @transform_8(%arg0: i32) -> (i32, i32) {
    %c0_i32 = arith.constant 0 : i32
    %c0_i32_0 = arith.constant 0 : i32
    %c0_i32_1 = arith.constant 0 : i32
    return %c0_i32, %c0_i32_0 : i32, i32
  }
  func.func @transform_9(%arg0: i32) -> (i32, i32) {
    %c0_i32 = arith.constant 0 : i32
    %c0_i32_0 = arith.constant 0 : i32
    %c0_i32_1 = arith.constant 0 : i32
    return %c0_i32, %c0_i32_0 : i32, i32
  }
  func.func @transform_10(%arg0: i32) -> (i32, i32) {
    %c0_i32 = arith.constant 0 : i32
    %c0_i32_0 = arith.constant 0 : i32
    %c0_i32_1 = arith.constant 0 : i32
    return %c0_i32, %c0_i32_0 : i32, i32
  }
  func.func @transform_11(%arg0: i32) -> (i32, i32) {
    %c0_i32 = arith.constant 0 : i32
    %c0_i32_0 = arith.constant 0 : i32
    %c0_i32_1 = arith.constant 0 : i32
    return %c0_i32, %c0_i32_0 : i32, i32
  }
  func.func @transform_12(%arg0: i32) -> (i32, i32) {
    %c0_i32 = arith.constant 0 : i32
    %c0_i32_0 = arith.constant 0 : i32
    %c0_i32_1 = arith.constant 0 : i32
    return %c0_i32, %c0_i32_0 : i32, i32
  }
  func.func @transform_13(%arg0: i32) -> (i32, i32) {
    %c0_i32 = arith.constant 0 : i32
    %c0_i32_0 = arith.constant 0 : i32
    %c0_i32_1 = arith.constant 0 : i32
    return %c0_i32, %c0_i32_0 : i32, i32
  }
  func.func @transform_14(%arg0: i32) -> (i32, i32) {
    %c0_i32 = arith.constant 0 : i32
    %c0_i32_0 = arith.constant 0 : i32
    %c0_i32_1 = arith.constant 0 : i32
    return %c0_i32, %c0_i32_0 : i32, i32
  }
  func.func @transform_15(%arg0: i32) -> (i32, i32) {
    %c0_i32 = arith.constant 0 : i32
    %c0_i32_0 = arith.constant 0 : i32
    %c0_i32_1 = arith.constant 0 : i32
    return %c0_i32, %c0_i32_0 : i32, i32
  }
  func.func @transform_16(%arg0: i32) -> (i32, i32) {
    %c0_i32 = arith.constant 0 : i32
    %c0_i32_0 = arith.constant 0 : i32
    %c0_i32_1 = arith.constant 0 : i32
    return %c0_i32, %c0_i32_0 : i32, i32
  }
  func.func @transform_17(%arg0: i32) -> (i32, i32) {
    %c0_i32 = arith.constant 0 : i32
    %c0_i32_0 = arith.constant 0 : i32
    %c0_i32_1 = arith.constant 0 : i32
    return %c0_i32, %c0_i32_0 : i32, i32
  }
  func.func @transform_18(%arg0: i32) -> (i32, i32) {
    %c0_i32 = arith.constant 0 : i32
    %c0_i32_0 = arith.constant 0 : i32
    %c0_i32_1 = arith.constant 0 : i32
    return %c0_i32, %c0_i32_0 : i32, i32
  }
  func.func @transform_19(%arg0: i32) -> (i32, i32) {
    %c0_i32 = arith.constant 0 : i32
    %c0_i32_0 = arith.constant 0 : i32
    %c0_i32_1 = arith.constant 0 : i32
    return %c0_i32, %c0_i32_0 : i32, i32
  }
  func.func @transform_20(%arg0: i32) -> (i32, i32) {
    %c0_i32 = arith.constant 0 : i32
    %c0_i32_0 = arith.constant 0 : i32
    %c0_i32_1 = arith.constant 0 : i32
    return %c0_i32, %c0_i32_0 : i32, i32
  }
  func.func @transform_21(%arg0: i32) -> (i32, i32) {
    %c0_i32 = arith.constant 0 : i32
    %c0_i32_0 = arith.constant 0 : i32
    %c0_i32_1 = arith.constant 0 : i32
    return %c0_i32, %c0_i32_0 : i32, i32
  }
  func.func @transform_22(%arg0: i32) -> (i32, i32) {
    %c0_i32 = arith.constant 0 : i32
    %c0_i32_0 = arith.constant 0 : i32
    %c0_i32_1 = arith.constant 0 : i32
    return %c0_i32, %c0_i32_0 : i32, i32
  }
  func.func @transform_23(%arg0: i32) -> (i32, i32) {
    %c0_i32 = arith.constant 0 : i32
    %c0_i32_0 = arith.constant 0 : i32
    %c0_i32_1 = arith.constant 0 : i32
    return %c0_i32, %c0_i32_0 : i32, i32
  }
  func.func @transform_24(%arg0: i32) -> (i32, i32, i32) {
    %c0_i32 = arith.constant 0 : i32
    %c0_i32_0 = arith.constant 0 : i32
    %c0_i32_1 = arith.constant 0 : i32
    return %arg0, %c0_i32, %c0_i32_0 : i32, i32, i32
  }
}

</mosaic_0001>

<llo_original>
// kernel: tpu_custom_call.1
$region0: #{tpu_custom_call.1}
  #allocation0 [shape = 'u32[]', space=smem, size = 0x4, offset = 0x4, fixed_abs, tag = 'smem constant byte address 0x4 - core index']
  #allocation1 [shape = 'u32[144,128]{1,0:T(1,128)}', space=vmem, size = 0x12000, scoped, tag = 'internal scratch']
  %s0 = inlined_call_operand.vmem [shape: f32[2,64,32], index: 0, kind: input, shape index: {}]
  %s1 = inlined_call_operand.vmem [shape: bf16[2,64,64], index: 1, kind: input, shape index: {}]
  %s2 = inlined_call_operand.vmem [shape: f32[1,32], index: 2, kind: input, shape index: {}]
  %s3 = inlined_call_operand.vmem [shape: f32[1,32], index: 3, kind: input, shape index: {}]
  %s4 = inlined_call_operand.vmem [shape: f32[32,32], index: 4, kind: input, shape index: {}]
  %s5 = inlined_call_operand.vmem [shape: f32[1,32], index: 5, kind: input, shape index: {}]
  %s6 = inlined_call_operand.vmem [shape: f32[32,64], index: 6, kind: input, shape index: {}]
  %s7 = inlined_call_operand.vmem [shape: f32[1,64], index: 7, kind: input, shape index: {}]
  %s8 = inlined_call_operand.vmem [shape: f32[64,4], index: 8, kind: input, shape index: {}]
  %s9 = inlined_call_operand.vmem [shape: f32[1,4], index: 9, kind: input, shape index: {}]
  %s10 = inlined_call_operand.vmem [shape: f32[1,4], index: 10, kind: input, shape index: {}]
  %s11 = inlined_call_operand.vmem [shape: f32[32,64], index: 11, kind: input, shape index: {}]
  %s12 = inlined_call_operand.vmem [shape: f32[1,64], index: 12, kind: input, shape index: {}]
  %s13 = inlined_call_operand.vmem [shape: f32[32,96], index: 13, kind: input, shape index: {}]
  %s14 = inlined_call_operand.vmem [shape: f32[64,32], index: 14, kind: input, shape index: {}]
  %s15 = inlined_call_operand.vmem [shape: f32[64,64], index: 15, kind: input, shape index: {}]
  %s16 = inlined_call_operand.vmem [shape: f32[32,32], index: 16, kind: input, shape index: {}]
  %s17 = inlined_call_operand.vmem [shape: f32[1,32], index: 17, kind: input, shape index: {}]
  %s18 = inlined_call_operand.vmem [shape: f32[1,32], index: 18, kind: input, shape index: {}]
  %s19 = inlined_call_operand.vmem [shape: f32[1,32], index: 19, kind: input, shape index: {}]
  %s20 = inlined_call_operand.vmem [shape: f32[32,128], index: 20, kind: input, shape index: {}]
  %s21 = inlined_call_operand.vmem [shape: f32[1,128], index: 21, kind: input, shape index: {}]
  %s22 = inlined_call_operand.vmem [shape: f32[128,32], index: 22, kind: input, shape index: {}]
  %s23 = inlined_call_operand.vmem [shape: f32[1,32], index: 23, kind: input, shape index: {}]
  %s24 = inlined_call_operand.vmem [shape: f32[2,64,32], index: 24, kind: output, shape index: {}]
  %s25 = sld [smem:[#allocation0]]
  $region129: #{tpu_custom_call.1} parent=0
    _
  %s27 = ssub.s32 1, %s25
  %s28 = scalar_select 0, %s27, %s25
  loop: start=0, step=1, limit=4
  $region2: #{tpu_custom_call.1} parent=0 // loop_pre_header
    _
  $region3: #{tpu_custom_call.1} parent=0 // loop_header
    %s30 = sphi 0, %s34
    %p31 = scmp.ge.s32.totalorder %s30, 4
    %s40 = sphi 0, %s42
    %s43 = sphi 0, %s40
    %s44 = sphi 0, %s43
    %s60 = sphi 0, %s44
    %s66 = sphi 0, %s68
    %s69 = sphi 0, %s66
    %s70 = sphi 0, %s69
    %s86 = sphi 0, %s70
    %s90 = sphi 0, %s90
    %s92 = sphi 0, %s90
    %s93 = sphi 0, %s92
    %s107 = sphi 0, %s93
    %s111 = sphi 0, %s111
    %s113 = sphi 0, %s111
    %s114 = sphi 0, %s113
    %s128 = sphi 0, %s114
    %s132 = sphi 0, %s132
    %s134 = sphi 0, %s132
    %s135 = sphi 0, %s134
    %s149 = sphi 0, %s135
    %s153 = sphi 0, %s153
    %s155 = sphi 0, %s153
    %s156 = sphi 0, %s155
    %s170 = sphi 0, %s156
    %s174 = sphi 0, %s174
    %s176 = sphi 0, %s174
    %s177 = sphi 0, %s176
    %s191 = sphi 0, %s177
    %s195 = sphi 0, %s195
    %s197 = sphi 0, %s195
    %s198 = sphi 0, %s197
    %s212 = sphi 0, %s198
    %s216 = sphi 0, %s216
    %s218 = sphi 0, %s216
    %s219 = sphi 0, %s218
    %s233 = sphi 0, %s219
    %s237 = sphi 0, %s237
    %s239 = sphi 0, %s237
    %s240 = sphi 0, %s239
    %s254 = sphi 0, %s240
    %s258 = sphi 0, %s258
    %s260 = sphi 0, %s258
    %s261 = sphi 0, %s260
    %s275 = sphi 0, %s261
    %s279 = sphi 0, %s279
    %s281 = sphi 0, %s279
    %s282 = sphi 0, %s281
    %s296 = sphi 0, %s282
    %s300 = sphi 0, %s300
    %s302 = sphi 0, %s300
    %s303 = sphi 0, %s302
    %s317 = sphi 0, %s303
    %s321 = sphi 0, %s321
    %s323 = sphi 0, %s321
    %s324 = sphi 0, %s323
    %s338 = sphi 0, %s324
    %s342 = sphi 0, %s342
    %s344 = sphi 0, %s342
    %s345 = sphi 0, %s344
    %s359 = sphi 0, %s345
    %s363 = sphi 0, %s363
    %s365 = sphi 0, %s363
    %s366 = sphi 0, %s365
    %s380 = sphi 0, %s366
    %s384 = sphi 0, %s384
    %s386 = sphi 0, %s384
    %s387 = sphi 0, %s386
    %s401 = sphi 0, %s387
    %s405 = sphi 0, %s405
    %s407 = sphi 0, %s405
    %s408 = sphi 0, %s407
    %s422 = sphi 0, %s408
    %s426 = sphi 0, %s426
    %s428 = sphi 0, %s426
    %s429 = sphi 0, %s428
    %s443 = sphi 0, %s429
    %s447 = sphi 0, %s447
    %s449 = sphi 0, %s447
    %s450 = sphi 0, %s449
    %s464 = sphi 0, %s450
    %s468 = sphi 0, %s468
    %s470 = sphi 0, %s468
    %s471 = sphi 0, %s470
    %s485 = sphi 0, %s471
    %s489 = sphi 0, %s489
    %s491 = sphi 0, %s489
    %s492 = sphi 0, %s491
    %s506 = sphi 0, %s492
    %s510 = sphi 0, %s510
    %s512 = sphi 0, %s510
    %s513 = sphi 0, %s512
    %s527 = sphi 0, %s513
    %s531 = sphi 0, %s531
    %s533 = sphi 0, %s531
    %s534 = sphi 0, %s533
    %s548 = sphi 0, %s534
    %s554 = sphi 0, %s556
    %s557 = sphi 0, %s554
    %s558 = sphi 0, %s557
    %s574 = sphi 0, %s558
  $region4: #{tpu_custom_call.1} parent=0 // loop_header_branch
    %33 = sbr.rel (%p31) target = $region8
  $region5: #{tpu_custom_call.1} parent=0 // loop_body
    %s35 = ssub.s32 %s30, 1
    %s36 = ssub.s32 %s30, 2
    %s37 = sadd.s32 %s30, 1
    %s38 = ssub.s32 %s30, %s37
    %p39 = scmp.eq.s32.totalorder %s38, 0
    %s41 = sadd.s32 %s40, 1
    %s42 = scalar_select %p39, %s40, %s41
    %p45 = pneg %p39
    %p46 = scmp.eq.s32.totalorder %s30, 1
    %p47 = por %p45, %p46
    %p48 = scmp.ne.s32.totalorder %s40, %s43
    %p49 = scmp.eq.s32.totalorder %s30, 0
    %p50 = por %p48, %p49
    %p51 = scmp.ne.s32.totalorder %s40, %s43
    %p52 = scmp.eq.s32.totalorder %s35, 1
    %p53 = por %p51, %p52
    %p54 = scmp.ne.s32.totalorder %s43, %s44
    %p55 = scmp.eq.s32.totalorder %s35, 0
    %p56 = por %p54, %p55
    %p57 = scmp.ne.s32.totalorder %s43, %s44
    %p58 = scmp.eq.s32.totalorder %s36, 1
    %p59 = por %p57, %p58
    %p61 = scmp.ne.s32.totalorder %s44, %s60
    %p62 = scmp.eq.s32.totalorder %s36, 0
    %p63 = por %p61, %p62
    %s64 = ssub.s32 %s30, %s37
    %p65 = scmp.eq.s32.totalorder %s64, 0
    %s67 = sadd.s32 %s66, 1
    %s68 = scalar_select %p65, %s66, %s67
    %p71 = pneg %p65
    %p72 = scmp.eq.s32.totalorder %s30, 1
    %p73 = por %p71, %p72
    %p74 = scmp.ne.s32.totalorder %s66, %s69
    %p75 = scmp.eq.s32.totalorder %s30, 0
    %p76 = por %p74, %p75
    %p77 = scmp.ne.s32.totalorder %s66, %s69
    %p78 = scmp.eq.s32.totalorder %s35, 1
    %p79 = por %p77, %p78
    %p80 = scmp.ne.s32.totalorder %s69, %s70
    %p81 = scmp.eq.s32.totalorder %s35, 0
    %p82 = por %p80, %p81
    %p83 = scmp.ne.s32.totalorder %s69, %s70
    %p84 = scmp.eq.s32.totalorder %s36, 1
    %p85 = por %p83, %p84
    %p87 = scmp.ne.s32.totalorder %s70, %s86
    %p88 = scmp.eq.s32.totalorder %s36, 0
    %p89 = por %p87, %p88
    %s91 = sadd.s32 %s90, 1
    %p94 = scmp.eq.s32.totalorder %s30, 1
    %p95 = scmp.ne.s32.totalorder %s90, %s92
    %p96 = scmp.eq.s32.totalorder %s30, 0
    %p97 = por %p95, %p96
    %p98 = scmp.ne.s32.totalorder %s90, %s92
    %p99 = scmp.eq.s32.totalorder %s35, 1
    %p100 = por %p98, %p99
    %p101 = scmp.ne.s32.totalorder %s92, %s93
    %p102 = scmp.eq.s32.totalorder %s35, 0
    %p103 = por %p101, %p102
    %p104 = scmp.ne.s32.totalorder %s92, %s93
    %p105 = scmp.eq.s32.totalorder %s36, 1
    %p106 = por %p104, %p105
    %p108 = scmp.ne.s32.totalorder %s93, %s107
    %p109 = scmp.eq.s32.totalorder %s36, 0
    %p110 = por %p108, %p109
    %s112 = sadd.s32 %s111, 1
    %p115 = scmp.eq.s32.totalorder %s30, 1
    %p116 = scmp.ne.s32.totalorder %s111, %s113
    %p117 = scmp.eq.s32.totalorder %s30, 0
    %p118 = por %p116, %p117
    %p119 = scmp.ne.s32.totalorder %s111, %s113
    %p120 = scmp.eq.s32.totalorder %s35, 1
    %p121 = por %p119, %p120
    %p122 = scmp.ne.s32.totalorder %s113, %s114
    %p123 = scmp.eq.s32.totalorder %s35, 0
    %p124 = por %p122, %p123
    %p125 = scmp.ne.s32.totalorder %s113, %s114
    %p126 = scmp.eq.s32.totalorder %s36, 1
    %p127 = por %p125, %p126
    %p129 = scmp.ne.s32.totalorder %s114, %s128
    %p130 = scmp.eq.s32.totalorder %s36, 0
    %p131 = por %p129, %p130
    %s133 = sadd.s32 %s132, 1
    %p136 = scmp.eq.s32.totalorder %s30, 1
    %p137 = scmp.ne.s32.totalorder %s132, %s134
    %p138 = scmp.eq.s32.totalorder %s30, 0
    %p139 = por %p137, %p138
    %p140 = scmp.ne.s32.totalorder %s132, %s134
    %p141 = scmp.eq.s32.totalorder %s35, 1
    %p142 = por %p140, %p141
    %p143 = scmp.ne.s32.totalorder %s134, %s135
    %p144 = scmp.eq.s32.totalorder %s35, 0
    %p145 = por %p143, %p144
    %p146 = scmp.ne.s32.totalorder %s134, %s135
    %p147 = scmp.eq.s32.totalorder %s36, 1
    %p148 = por %p146, %p147
    %p150 = scmp.ne.s32.totalorder %s135, %s149
    %p151 = scmp.eq.s32.totalorder %s36, 0
    %p152 = por %p150, %p151
    %s154 = sadd.s32 %s153, 1
    %p157 = scmp.eq.s32.totalorder %s30, 1
    %p158 = scmp.ne.s32.totalorder %s153, %s155
    %p159 = scmp.eq.s32.totalorder %s30, 0
    %p160 = por %p158, %p159
    %p161 = scmp.ne.s32.totalorder %s153, %s155
    %p162 = scmp.eq.s32.totalorder %s35, 1
    %p163 = por %p161, %p162
    %p164 = scmp.ne.s32.totalorder %s155, %s156
    %p165 = scmp.eq.s32.totalorder %s35, 0
    %p166 = por %p164, %p165
    %p167 = scmp.ne.s32.totalorder %s155, %s156
    %p168 = scmp.eq.s32.totalorder %s36, 1
    %p169 = por %p167, %p168
    %p171 = scmp.ne.s32.totalorder %s156, %s170
    %p172 = scmp.eq.s32.totalorder %s36, 0
    %p173 = por %p171, %p172
    %s175 = sadd.s32 %s174, 1
    %p178 = scmp.eq.s32.totalorder %s30, 1
    %p179 = scmp.ne.s32.totalorder %s174, %s176
    %p180 = scmp.eq.s32.totalorder %s30, 0
    %p181 = por %p179, %p180
    %p182 = scmp.ne.s32.totalorder %s174, %s176
    %p183 = scmp.eq.s32.totalorder %s35, 1
    %p184 = por %p182, %p183
    %p185 = scmp.ne.s32.totalorder %s176, %s177
    %p186 = scmp.eq.s32.totalorder %s35, 0
    %p187 = por %p185, %p186
    %p188 = scmp.ne.s32.totalorder %s176, %s177
    %p189 = scmp.eq.s32.totalorder %s36, 1
    %p190 = por %p188, %p189
    %p192 = scmp.ne.s32.totalorder %s177, %s191
    %p193 = scmp.eq.s32.totalorder %s36, 0
    %p194 = por %p192, %p193
    %s196 = sadd.s32 %s195, 1
    %p199 = scmp.eq.s32.totalorder %s30, 1
    %p200 = scmp.ne.s32.totalorder %s195, %s197
    %p201 = scmp.eq.s32.totalorder %s30, 0
    %p202 = por %p200, %p201
    %p203 = scmp.ne.s32.totalorder %s195, %s197
    %p204 = scmp.eq.s32.totalorder %s35, 1
    %p205 = por %p203, %p204
    %p206 = scmp.ne.s32.totalorder %s197, %s198
    %p207 = scmp.eq.s32.totalorder %s35, 0
    %p208 = por %p206, %p207
    %p209 = scmp.ne.s32.totalorder %s197, %s198
    %p210 = scmp.eq.s32.totalorder %s36, 1
    %p211 = por %p209, %p210
    %p213 = scmp.ne.s32.totalorder %s198, %s212
    %p214 = scmp.eq.s32.totalorder %s36, 0
    %p215 = por %p213, %p214
    %s217 = sadd.s32 %s216, 1
    %p220 = scmp.eq.s32.totalorder %s30, 1
    %p221 = scmp.ne.s32.totalorder %s216, %s218
    %p222 = scmp.eq.s32.totalorder %s30, 0
    %p223 = por %p221, %p222
    %p224 = scmp.ne.s32.totalorder %s216, %s218
    %p225 = scmp.eq.s32.totalorder %s35, 1
    %p226 = por %p224, %p225
    %p227 = scmp.ne.s32.totalorder %s218, %s219
    %p228 = scmp.eq.s32.totalorder %s35, 0
    %p229 = por %p227, %p228
    %p230 = scmp.ne.s32.totalorder %s218, %s219
    %p231 = scmp.eq.s32.totalorder %s36, 1
    %p232 = por %p230, %p231
    %p234 = scmp.ne.s32.totalorder %s219, %s233
    %p235 = scmp.eq.s32.totalorder %s36, 0
    %p236 = por %p234, %p235
    %s238 = sadd.s32 %s237, 1
    %p241 = scmp.eq.s32.totalorder %s30, 1
    %p242 = scmp.ne.s32.totalorder %s237, %s239
    %p243 = scmp.eq.s32.totalorder %s30, 0
    %p244 = por %p242, %p243
    %p245 = scmp.ne.s32.totalorder %s237, %s239
    %p246 = scmp.eq.s32.totalorder %s35, 1
    %p247 = por %p245, %p246
    %p248 = scmp.ne.s32.totalorder %s239, %s240
    %p249 = scmp.eq.s32.totalorder %s35, 0
    %p250 = por %p248, %p249
    %p251 = scmp.ne.s32.totalorder %s239, %s240
    %p252 = scmp.eq.s32.totalorder %s36, 1
    %p253 = por %p251, %p252
    %p255 = scmp.ne.s32.totalorder %s240, %s254
    %p256 = scmp.eq.s32.totalorder %s36, 0
    %p257 = por %p255, %p256
    %s259 = sadd.s32 %s258, 1
    %p262 = scmp.eq.s32.totalorder %s30, 1
    %p263 = scmp.ne.s32.totalorder %s258, %s260
    %p264 = scmp.eq.s32.totalorder %s30, 0
    %p265 = por %p263, %p264
    %p266 = scmp.ne.s32.totalorder %s258, %s260
    %p267 = scmp.eq.s32.totalorder %s35, 1
    %p268 = por %p266, %p267
    %p269 = scmp.ne.s32.totalorder %s260, %s261
    %p270 = scmp.eq.s32.totalorder %s35, 0
    %p271 = por %p269, %p270
    %p272 = scmp.ne.s32.totalorder %s260, %s261
    %p273 = scmp.eq.s32.totalorder %s36, 1
    %p274 = por %p272, %p273
    %p276 = scmp.ne.s32.totalorder %s261, %s275
    %p277 = scmp.eq.s32.totalorder %s36, 0
    %p278 = por %p276, %p277
    %s280 = sadd.s32 %s279, 1
    %p283 = scmp.eq.s32.totalorder %s30, 1
    %p284 = scmp.ne.s32.totalorder %s279, %s281
    %p285 = scmp.eq.s32.totalorder %s30, 0
    %p286 = por %p284, %p285
    %p287 = scmp.ne.s32.totalorder %s279, %s281
    %p288 = scmp.eq.s32.totalorder %s35, 1
    %p289 = por %p287, %p288
    %p290 = scmp.ne.s32.totalorder %s281, %s282
    %p291 = scmp.eq.s32.totalorder %s35, 0
    %p292 = por %p290, %p291
    %p293 = scmp.ne.s32.totalorder %s281, %s282
    %p294 = scmp.eq.s32.totalorder %s36, 1
    %p295 = por %p293, %p294
    %p297 = scmp.ne.s32.totalorder %s282, %s296
    %p298 = scmp.eq.s32.totalorder %s36, 0
    %p299 = por %p297, %p298
    %s301 = sadd.s32 %s300, 1
    %p304 = scmp.eq.s32.totalorder %s30, 1
    %p305 = scmp.ne.s32.totalorder %s300, %s302
    %p306 = scmp.eq.s32.totalorder %s30, 0
    %p307 = por %p305, %p306
    %p308 = scmp.ne.s32.totalorder %s300, %s302
    %p309 = scmp.eq.s32.totalorder %s35, 1
    %p310 = por %p308, %p309
    %p311 = scmp.ne.s32.totalorder %s302, %s303
    %p312 = scmp.eq.s32.totalorder %s35, 0
    %p313 = por %p311, %p312
    %p314 = scmp.ne.s32.totalorder %s302, %s303
    %p315 = scmp.eq.s32.totalorder %s36, 1
    %p316 = por %p314, %p315
    %p318 = scmp.ne.s32.totalorder %s303, %s317
    %p319 = scmp.eq.s32.totalorder %s36, 0
    %p320 = por %p318, %p319
    %s322 = sadd.s32 %s321, 1
    %p325 = scmp.eq.s32.totalorder %s30, 1
    %p326 = scmp.ne.s32.totalorder %s321, %s323
    %p327 = scmp.eq.s32.totalorder %s30, 0
    %p328 = por %p326, %p327
    %p329 = scmp.ne.s32.totalorder %s321, %s323
    %p330 = scmp.eq.s32.totalorder %s35, 1
    %p331 = por %p329, %p330
    %p332 = scmp.ne.s32.totalorder %s323, %s324
    %p333 = scmp.eq.s32.totalorder %s35, 0
    %p334 = por %p332, %p333
    %p335 = scmp.ne.s32.totalorder %s323, %s324
    %p336 = scmp.eq.s32.totalorder %s36, 1
    %p337 = por %p335, %p336
    %p339 = scmp.ne.s32.totalorder %s324, %s338
    %p340 = scmp.eq.s32.totalorder %s36, 0
    %p341 = por %p339, %p340
    %s343 = sadd.s32 %s342, 1
    %p346 = scmp.eq.s32.totalorder %s30, 1
    %p347 = scmp.ne.s32.totalorder %s342, %s344
    %p348 = scmp.eq.s32.totalorder %s30, 0
    %p349 = por %p347, %p348
    %p350 = scmp.ne.s32.totalorder %s342, %s344
    %p351 = scmp.eq.s32.totalorder %s35, 1
    %p352 = por %p350, %p351
    %p353 = scmp.ne.s32.totalorder %s344, %s345
    %p354 = scmp.eq.s32.totalorder %s35, 0
    %p355 = por %p353, %p354
    %p356 = scmp.ne.s32.totalorder %s344, %s345
    %p357 = scmp.eq.s32.totalorder %s36, 1
    %p358 = por %p356, %p357
    %p360 = scmp.ne.s32.totalorder %s345, %s359
    %p361 = scmp.eq.s32.totalorder %s36, 0
    %p362 = por %p360, %p361
    %s364 = sadd.s32 %s363, 1
    %p367 = scmp.eq.s32.totalorder %s30, 1
    %p368 = scmp.ne.s32.totalorder %s363, %s365
    %p369 = scmp.eq.s32.totalorder %s30, 0
    %p370 = por %p368, %p369
    %p371 = scmp.ne.s32.totalorder %s363, %s365
    %p372 = scmp.eq.s32.totalorder %s35, 1
    %p373 = por %p371, %p372
    %p374 = scmp.ne.s32.totalorder %s365, %s366
    %p375 = scmp.eq.s32.totalorder %s35, 0
    %p376 = por %p374, %p375
    %p377 = scmp.ne.s32.totalorder %s365, %s366
    %p378 = scmp.eq.s32.totalorder %s36, 1
    %p379 = por %p377, %p378
    %p381 = scmp.ne.s32.totalorder %s366, %s380
    %p382 = scmp.eq.s32.totalorder %s36, 0
    %p383 = por %p381, %p382
    %s385 = sadd.s32 %s384, 1
    %p388 = scmp.eq.s32.totalorder %s30, 1
    %p389 = scmp.ne.s32.totalorder %s384, %s386
    %p390 = scmp.eq.s32.totalorder %s30, 0
    %p391 = por %p389, %p390
    %p392 = scmp.ne.s32.totalorder %s384, %s386
    %p393 = scmp.eq.s32.totalorder %s35, 1
    %p394 = por %p392, %p393
    %p395 = scmp.ne.s32.totalorder %s386, %s387
    %p396 = scmp.eq.s32.totalorder %s35, 0
    %p397 = por %p395, %p396
    %p398 = scmp.ne.s32.totalorder %s386, %s387
    %p399 = scmp.eq.s32.totalorder %s36, 1
    %p400 = por %p398, %p399
    %p402 = scmp.ne.s32.totalorder %s387, %s401
    %p403 = scmp.eq.s32.totalorder %s36, 0
    %p404 = por %p402, %p403
    %s406 = sadd.s32 %s405, 1
    %p409 = scmp.eq.s32.totalorder %s30, 1
    %p410 = scmp.ne.s32.totalorder %s405, %s407
    %p411 = scmp.eq.s32.totalorder %s30, 0
    %p412 = por %p410, %p411
    %p413 = scmp.ne.s32.totalorder %s405, %s407
    %p414 = scmp.eq.s32.totalorder %s35, 1
    %p415 = por %p413, %p414
    %p416 = scmp.ne.s32.totalorder %s407, %s408
    %p417 = scmp.eq.s32.totalorder %s35, 0
    %p418 = por %p416, %p417
    %p419 = scmp.ne.s32.totalorder %s407, %s408
    %p420 = scmp.eq.s32.totalorder %s36, 1
    %p421 = por %p419, %p420
    %p423 = scmp.ne.s32.totalorder %s408, %s422
    %p424 = scmp.eq.s32.totalorder %s36, 0
    %p425 = por %p423, %p424
    %s427 = sadd.s32 %s426, 1
    %p430 = scmp.eq.s32.totalorder %s30, 1
    %p431 = scmp.ne.s32.totalorder %s426, %s428
    %p432 = scmp.eq.s32.totalorder %s30, 0
    %p433 = por %p431, %p432
    %p434 = scmp.ne.s32.totalorder %s426, %s428
    %p435 = scmp.eq.s32.totalorder %s35, 1
    %p436 = por %p434, %p435
    %p437 = scmp.ne.s32.totalorder %s428, %s429
    %p438 = scmp.eq.s32.totalorder %s35, 0
    %p439 = por %p437, %p438
    %p440 = scmp.ne.s32.totalorder %s428, %s429
    %p441 = scmp.eq.s32.totalorder %s36, 1
    %p442 = por %p440, %p441
    %p444 = scmp.ne.s32.totalorder %s429, %s443
    %p445 = scmp.eq.s32.totalorder %s36, 0
    %p446 = por %p444, %p445
    %s448 = sadd.s32 %s447, 1
    %p451 = scmp.eq.s32.totalorder %s30, 1
    %p452 = scmp.ne.s32.totalorder %s447, %s449
    %p453 = scmp.eq.s32.totalorder %s30, 0
    %p454 = por %p452, %p453
    %p455 = scmp.ne.s32.totalorder %s447, %s449
    %p456 = scmp.eq.s32.totalorder %s35, 1
    %p457 = por %p455, %p456
    %p458 = scmp.ne.s32.totalorder %s449, %s450
    %p459 = scmp.eq.s32.totalorder %s35, 0
    %p460 = por %p458, %p459
    %p461 = scmp.ne.s32.totalorder %s449, %s450
    %p462 = scmp.eq.s32.totalorder %s36, 1
    %p463 = por %p461, %p462
    %p465 = scmp.ne.s32.totalorder %s450, %s464
    %p466 = scmp.eq.s32.totalorder %s36, 0
    %p467 = por %p465, %p466
    %s469 = sadd.s32 %s468, 1
    %p472 = scmp.eq.s32.totalorder %s30, 1
    %p473 = scmp.ne.s32.totalorder %s468, %s470
    %p474 = scmp.eq.s32.totalorder %s30, 0
    %p475 = por %p473, %p474
    %p476 = scmp.ne.s32.totalorder %s468, %s470
    %p477 = scmp.eq.s32.totalorder %s35, 1
    %p478 = por %p476, %p477
    %p479 = scmp.ne.s32.totalorder %s470, %s471
    %p480 = scmp.eq.s32.totalorder %s35, 0
    %p481 = por %p479, %p480
    %p482 = scmp.ne.s32.totalorder %s470, %s471
    %p483 = scmp.eq.s32.totalorder %s36, 1
    %p484 = por %p482, %p483
    %p486 = scmp.ne.s32.totalorder %s471, %s485
    %p487 = scmp.eq.s32.totalorder %s36, 0
    %p488 = por %p486, %p487
    %s490 = sadd.s32 %s489, 1
    %p493 = scmp.eq.s32.totalorder %s30, 1
    %p494 = scmp.ne.s32.totalorder %s489, %s491
    %p495 = scmp.eq.s32.totalorder %s30, 0
    %p496 = por %p494, %p495
    %p497 = scmp.ne.s32.totalorder %s489, %s491
    %p498 = scmp.eq.s32.totalorder %s35, 1
    %p499 = por %p497, %p498
    %p500 = scmp.ne.s32.totalorder %s491, %s492
    %p501 = scmp.eq.s32.totalorder %s35, 0
    %p502 = por %p500, %p501
    %p503 = scmp.ne.s32.totalorder %s491, %s492
    %p504 = scmp.eq.s32.totalorder %s36, 1
    %p505 = por %p503, %p504
    %p507 = scmp.ne.s32.totalorder %s492, %s506
    %p508 = scmp.eq.s32.totalorder %s36, 0
    %p509 = por %p507, %p508
    %s511 = sadd.s32 %s510, 1
    %p514 = scmp.eq.s32.totalorder %s30, 1
    %p515 = scmp.ne.s32.totalorder %s510, %s512
    %p516 = scmp.eq.s32.totalorder %s30, 0
    %p517 = por %p515, %p516
    %p518 = scmp.ne.s32.totalorder %s510, %s512
    %p519 = scmp.eq.s32.totalorder %s35, 1
    %p520 = por %p518, %p519
    %p521 = scmp.ne.s32.totalorder %s512, %s513
    %p522 = scmp.eq.s32.totalorder %s35, 0
    %p523 = por %p521, %p522
    %p524 = scmp.ne.s32.totalorder %s512, %s513
    %p525 = scmp.eq.s32.totalorder %s36, 1
    %p526 = por %p524, %p525
    %p528 = scmp.ne.s32.totalorder %s513, %s527
    %p529 = scmp.eq.s32.totalorder %s36, 0
    %p530 = por %p528, %p529
    %s532 = sadd.s32 %s531, 1
    %p535 = scmp.eq.s32.totalorder %s30, 1
    %p536 = scmp.ne.s32.totalorder %s531, %s533
    %p537 = scmp.eq.s32.totalorder %s30, 0
    %p538 = por %p536, %p537
    %p539 = scmp.ne.s32.totalorder %s531, %s533
    %p540 = scmp.eq.s32.totalorder %s35, 1
    %p541 = por %p539, %p540
    %p542 = scmp.ne.s32.totalorder %s533, %s534
    %p543 = scmp.eq.s32.totalorder %s35, 0
    %p544 = por %p542, %p543
    %p545 = scmp.ne.s32.totalorder %s533, %s534
    %p546 = scmp.eq.s32.totalorder %s36, 1
    %p547 = por %p545, %p546
    %p549 = scmp.ne.s32.totalorder %s534, %s548
    %p550 = scmp.eq.s32.totalorder %s36, 0
    %p551 = por %p549, %p550
    %s552 = ssub.s32 %s30, %s37
    %p553 = scmp.eq.s32.totalorder %s552, 0
    %s555 = sadd.s32 %s554, 1
    %s556 = scalar_select %p553, %s554, %s555
    %p559 = pneg %p553
    %p560 = scmp.eq.s32.totalorder %s30, 1
    %p561 = por %p559, %p560
    %p562 = scmp.ne.s32.totalorder %s554, %s557
    %p563 = scmp.eq.s32.totalorder %s30, 0
    %p564 = por %p562, %p563
    %p565 = scmp.ne.s32.totalorder %s554, %s557
    %p566 = scmp.eq.s32.totalorder %s35, 1
    %p567 = por %p565, %p566
    %p568 = scmp.ne.s32.totalorder %s557, %s558
    %p569 = scmp.eq.s32.totalorder %s35, 0
    %p570 = por %p568, %p569
    %p571 = scmp.ne.s32.totalorder %s557, %s558
    %p572 = scmp.eq.s32.totalorder %s36, 1
    %p573 = por %p571, %p572
    %p575 = scmp.ne.s32.totalorder %s558, %s574
    %p576 = scmp.eq.s32.totalorder %s36, 0
    %p577 = por %p575, %p576
    %p578 = scmp.le.s32.totalorder 1, %s30
    %p579 = scmp.lt.s32.totalorder %s30, 3
    %p580 = pnand %p578, %p579
    %p581 = pneg %p580
    // Predicated region
    $region9: #{tpu_custom_call.1} parent=5 // pred_check
      _
    $region10: #{tpu_custom_call.1} parent=5 // pred_check_branch
      %583 = sbr.rel (%p580) target = $region12
    $region11: #{tpu_custom_call.1} parent=5 // pred_region
      %s584 = ssub.s32 %s30, 1
      // Predicated region
      $region13: #{tpu_custom_call.1} parent=11 // pred_check
        %p585 = pneg %p103
      $region14: #{tpu_custom_call.1} parent=11 // pred_check_branch
        %587 = sbr.rel (%p585) target = $region16
      $region15: #{tpu_custom_call.1} parent=11 // pred_region
        _
      $region16: #{tpu_custom_call.1} parent=11 // pred_fallthru
        _
      // Predicated region
      $region17: #{tpu_custom_call.1} parent=11 // pred_check
        %p588 = pneg %p124
      $region18: #{tpu_custom_call.1} parent=11 // pred_check_branch
        %590 = sbr.rel (%p588) target = $region20
      $region19: #{tpu_custom_call.1} parent=11 // pred_region
        _
      $region20: #{tpu_custom_call.1} parent=11 // pred_fallthru
        _
      // Predicated region
      $region21: #{tpu_custom_call.1} parent=11 // pred_check
        %p591 = pneg %p145
      $region22: #{tpu_custom_call.1} parent=11 // pred_check_branch
        %593 = sbr.rel (%p591) target = $region24
      $region23: #{tpu_custom_call.1} parent=11 // pred_region
        _
      $region24: #{tpu_custom_call.1} parent=11 // pred_fallthru
        _
      // Predicated region
      $region25: #{tpu_custom_call.1} parent=11 // pred_check
        %p594 = pneg %p166
      $region26: #{tpu_custom_call.1} parent=11 // pred_check_branch
        %596 = sbr.rel (%p594) target = $region28
      $region27: #{tpu_custom_call.1} parent=11 // pred_region
        _
      $region28: #{tpu_custom_call.1} parent=11 // pred_fallthru
        _
      // Predicated region
      $region29: #{tpu_custom_call.1} parent=11 // pred_check
        %p597 = pneg %p187
      $region30: #{tpu_custom_call.1} parent=11 // pred_check_branch
        %599 = sbr.rel (%p597) target = $region32
      $region31: #{tpu_custom_call.1} parent=11 // pred_region
        _
      $region32: #{tpu_custom_call.1} parent=11 // pred_fallthru
        _
      // Predicated region
      $region33: #{tpu_custom_call.1} parent=11 // pred_check
        %p600 = pneg %p208
      $region34: #{tpu_custom_call.1} parent=11 // pred_check_branch
        %602 = sbr.rel (%p600) target = $region36
      $region35: #{tpu_custom_call.1} parent=11 // pred_region
        _
      $region36: #{tpu_custom_call.1} parent=11 // pred_fallthru
        _
      // Predicated region
      $region37: #{tpu_custom_call.1} parent=11 // pred_check
        %p603 = pneg %p229
      $region38: #{tpu_custom_call.1} parent=11 // pred_check_branch
        %605 = sbr.rel (%p603) target = $region40
      $region39: #{tpu_custom_call.1} parent=11 // pred_region
        _
      $region40: #{tpu_custom_call.1} parent=11 // pred_fallthru
        _
      // Predicated region
      $region41: #{tpu_custom_call.1} parent=11 // pred_check
        %p606 = pneg %p250
      $region42: #{tpu_custom_call.1} parent=11 // pred_check_branch
        %608 = sbr.rel (%p606) target = $region44
      $region43: #{tpu_custom_call.1} parent=11 // pred_region
        _
      $region44: #{tpu_custom_call.1} parent=11 // pred_fallthru
        _
      // Predicated region
      $region45: #{tpu_custom_call.1} parent=11 // pred_check
        %p609 = pneg %p271
      $region46: #{tpu_custom_call.1} parent=11 // pred_check_branch
        %611 = sbr.rel (%p609) target = $region48
      $region47: #{tpu_custom_call.1} parent=11 // pred_region
        _
      $region48: #{tpu_custom_call.1} parent=11 // pred_fallthru
        _
      // Predicated region
      $region49: #{tpu_custom_call.1} parent=11 // pred_check
        %p612 = pneg %p292
      $region50: #{tpu_custom_call.1} parent=11 // pred_check_branch
        %614 = sbr.rel (%p612) target = $region52
      $region51: #{tpu_custom_call.1} parent=11 // pred_region
        _
      $region52: #{tpu_custom_call.1} parent=11 // pred_fallthru
        _
      // Predicated region
      $region53: #{tpu_custom_call.1} parent=11 // pred_check
        %p615 = pneg %p313
      $region54: #{tpu_custom_call.1} parent=11 // pred_check_branch
        %617 = sbr.rel (%p615) target = $region56
      $region55: #{tpu_custom_call.1} parent=11 // pred_region
        _
      $region56: #{tpu_custom_call.1} parent=11 // pred_fallthru
        _
      // Predicated region
      $region57: #{tpu_custom_call.1} parent=11 // pred_check
        %p618 = pneg %p334
      $region58: #{tpu_custom_call.1} parent=11 // pred_check_branch
        %620 = sbr.rel (%p618) target = $region60
      $region59: #{tpu_custom_call.1} parent=11 // pred_region
        _
      $region60: #{tpu_custom_call.1} parent=11 // pred_fallthru
        _
      // Predicated region
      $region61: #{tpu_custom_call.1} parent=11 // pred_check
        %p621 = pneg %p355
      $region62: #{tpu_custom_call.1} parent=11 // pred_check_branch
        %623 = sbr.rel (%p621) target = $region64
      $region63: #{tpu_custom_call.1} parent=11 // pred_region
        _
      $region64: #{tpu_custom_call.1} parent=11 // pred_fallthru
        _
      // Predicated region
      $region65: #{tpu_custom_call.1} parent=11 // pred_check
        %p624 = pneg %p376
      $region66: #{tpu_custom_call.1} parent=11 // pred_check_branch
        %626 = sbr.rel (%p624) target = $region68
      $region67: #{tpu_custom_call.1} parent=11 // pred_region
        _
      $region68: #{tpu_custom_call.1} parent=11 // pred_fallthru
        _
      // Predicated region
      $region69: #{tpu_custom_call.1} parent=11 // pred_check
        %p627 = pneg %p397
      $region70: #{tpu_custom_call.1} parent=11 // pred_check_branch
        %629 = sbr.rel (%p627) target = $region72
      $region71: #{tpu_custom_call.1} parent=11 // pred_region
        _
      $region72: #{tpu_custom_call.1} parent=11 // pred_fallthru
        _
      // Predicated region
      $region73: #{tpu_custom_call.1} parent=11 // pred_check
        %p630 = pneg %p418
      $region74: #{tpu_custom_call.1} parent=11 // pred_check_branch
        %632 = sbr.rel (%p630) target = $region76
      $region75: #{tpu_custom_call.1} parent=11 // pred_region
        _
      $region76: #{tpu_custom_call.1} parent=11 // pred_fallthru
        _
      // Predicated region
      $region77: #{tpu_custom_call.1} parent=11 // pred_check
        %p633 = pneg %p439
      $region78: #{tpu_custom_call.1} parent=11 // pred_check_branch
        %635 = sbr.rel (%p633) target = $region80
      $region79: #{tpu_custom_call.1} parent=11 // pred_region
        _
      $region80: #{tpu_custom_call.1} parent=11 // pred_fallthru
        _
      // Predicated region
      $region81: #{tpu_custom_call.1} parent=11 // pred_check
        %p636 = pneg %p460
      $region82: #{tpu_custom_call.1} parent=11 // pred_check_branch
        %638 = sbr.rel (%p636) target = $region84
      $region83: #{tpu_custom_call.1} parent=11 // pred_region
        _
      $region84: #{tpu_custom_call.1} parent=11 // pred_fallthru
        _
      // Predicated region
      $region85: #{tpu_custom_call.1} parent=11 // pred_check
        %p639 = pneg %p481
      $region86: #{tpu_custom_call.1} parent=11 // pred_check_branch
        %641 = sbr.rel (%p639) target = $region88
      $region87: #{tpu_custom_call.1} parent=11 // pred_region
        _
      $region88: #{tpu_custom_call.1} parent=11 // pred_fallthru
        _
      // Predicated region
      $region89: #{tpu_custom_call.1} parent=11 // pred_check
        %p642 = pneg %p502
      $region90: #{tpu_custom_call.1} parent=11 // pred_check_branch
        %644 = sbr.rel (%p642) target = $region92
      $region91: #{tpu_custom_call.1} parent=11 // pred_region
        _
      $region92: #{tpu_custom_call.1} parent=11 // pred_fallthru
        _
      // Predicated region
      $region93: #{tpu_custom_call.1} parent=11 // pred_check
        %p645 = pneg %p523
      $region94: #{tpu_custom_call.1} parent=11 // pred_check_branch
        %647 = sbr.rel (%p645) target = $region96
      $region95: #{tpu_custom_call.1} parent=11 // pred_region
        _
      $region96: #{tpu_custom_call.1} parent=11 // pred_fallthru
        _
      // Predicated region
      $region97: #{tpu_custom_call.1} parent=11 // pred_check
        %p648 = pneg %p544
      $region98: #{tpu_custom_call.1} parent=11 // pred_check_branch
        %650 = sbr.rel (%p648) target = $region100
      $region99: #{tpu_custom_call.1} parent=11 // pred_region
        _
      $region100: #{tpu_custom_call.1} parent=11 // pred_fallthru
        _
    $region12: #{tpu_custom_call.1} parent=5 // pred_fallthru
      _
    %p651 = scmp.lt.s32.totalorder %s30, 2
    // Predicated region
    $region101: #{tpu_custom_call.1} parent=5 // pred_check
      %p652 = pneg %p651
    $region102: #{tpu_custom_call.1} parent=5 // pred_check_branch
      %654 = sbr.rel (%p652) target = $region104
    $region103: #{tpu_custom_call.1} parent=5 // pred_region
      // Predicated region
      $region105: #{tpu_custom_call.1} parent=103 // pred_check
        %p655 = pneg %p50
      $region106: #{tpu_custom_call.1} parent=103 // pred_check_branch
        %657 = sbr.rel (%p655) target = $region108
      $region107: #{tpu_custom_call.1} parent=103 // pred_region
        %p658 = scmp.lt.s32.totalorder %s30, 1
        %s659 = scalar_select %p658, %s30, 1
        %s660 = smul.addr %s659, 8
        %s661 = smul.addr %s660, 8
        %s662 = scalar_lea.vmem %s0, %s661
      $region108: #{tpu_custom_call.1} parent=103 // pred_fallthru
        _
      // Predicated region
      $region109: #{tpu_custom_call.1} parent=103 // pred_check
        %p663 = pneg %p76
      $region110: #{tpu_custom_call.1} parent=103 // pred_check_branch
        %665 = sbr.rel (%p663) target = $region112
      $region111: #{tpu_custom_call.1} parent=103 // pred_region
        %p666 = scmp.lt.s32.totalorder %s30, 1
        %s667 = scalar_select %p666, %s30, 1
        %s668 = smul.addr %s667, 8
        %s669 = smul.addr %s668, 4
        %s670 = scalar_lea.vmem %s1, %s669
      $region112: #{tpu_custom_call.1} parent=103 // pred_fallthru
        _
    $region104: #{tpu_custom_call.1} parent=5 // pred_fallthru
      _
    %p671 = scmp.le.s32.totalorder 1, %s30
    %p672 = scmp.lt.s32.totalorder %s30, 3
    %p673 = pnand %p671, %p672
    %p674 = pneg %p673
    // Predicated region
    $region113: #{tpu_custom_call.1} parent=5 // pred_check
      _
    $region114: #{tpu_custom_call.1} parent=5 // pred_check_branch
      %676 = sbr.rel (%p673) target = $region116
    $region115: #{tpu_custom_call.1} parent=5 // pred_region
      %s677 = ssub.s32 %s30, 1
      %p678 = scmp.lt.s32.totalorder %s35, 1
      %s679 = scalar_select %p678, %s35, 1
      %s680 = smul.addr %s679, 8
      %s681 = smul.addr %s680, 8
      %s682 = scalar_lea.vmem %s0, %s681
      %p683 = pneg %p56
      %p684 = pneg %p53
      %p685 = scmp.lt.s32.totalorder %s35, 1
      %s686 = scalar_select %p685, %s35, 1
      %s687 = smul.addr %s686, 8
      %s688 = smul.addr %s687, 4
      %s689 = scalar_lea.vmem %s1, %s688
      %p690 = pneg %p82
      %p691 = pneg %p79
      %p692 = pneg %p103
      %p693 = pneg %p100
      %p694 = pneg %p124
      %p695 = pneg %p121
      %p696 = pneg %p145
      %p697 = pneg %p142
      %p698 = pneg %p166
      %p699 = pneg %p163
      %p700 = pneg %p187
      %p701 = pneg %p184
      %p702 = pneg %p208
      %p703 = pneg %p205
      %p704 = pneg %p229
      %p705 = pneg %p226
      %p706 = pneg %p250
      %p707 = pneg %p247
      %p708 = pneg %p271
      %p709 = pneg %p268
      %p710 = pneg %p292
      %p711 = pneg %p289
      %p712 = pneg %p313
      %p713 = pneg %p310
      %p714 = pneg %p334
      %p715 = pneg %p331
      %p716 = pneg %p355
      %p717 = pneg %p352
      %p718 = pneg %p376
      %p719 = pneg %p373
      %p720 = pneg %p397
      %p721 = pneg %p394
      %p722 = pneg %p418
      %p723 = pneg %p415
      %p724 = pneg %p439
      %p725 = pneg %p436
      %p726 = pneg %p460
      %p727 = pneg %p457
      %p728 = pneg %p481
      %p729 = pneg %p478
      %p730 = pneg %p502
      %p731 = pneg %p499
      %p732 = pneg %p523
      %p733 = pneg %p520
      %p734 = pneg %p544
      %p735 = pneg %p541
      %p736 = pneg %p570
      %p737 = pneg %p567
      %p738 = scmp.lt.s32.totalorder %s35, 1
      %s739 = scalar_select %p738, %s35, 1
      %s740 = smul.addr %s739, 8
      %s741 = smul.addr %s740, 8
      %s742 = scalar_lea.vmem %s24, %s741
      %p743 = scmp.lt.s32.totalorder %s35, 1
      %s744 = scalar_select %p743, %s35, 1
      %s745 = smul.addr %s744, 8
      %s746 = smul.addr %s745, 8
      %s747 = scalar_lea.vmem %s0, %s746
      %p748 = scmp.lt.s32.totalorder %s35, 1
      %s749 = scalar_select %p748, %s35, 1
      %s750 = smul.addr %s749, 8
      %s751 = smul.addr %s750, 4
      %s752 = scalar_lea.vmem %s1, %s751
      %p753 = scmp.lt.s32.totalorder %s35, 1
      %s754 = scalar_select %p753, %s35, 1
      %s755 = smul.addr %s754, 8
      %s756 = smul.addr %s755, 8
      %s757 = scalar_lea.vmem %s24, %s756
      %v758 = vld [vmem:[%s747] sm:$0xff]
      %v759 = vld [vmem:[%s747 + $0x8] sm:$0xff]
      %v760 = vld [vmem:[%s747 + $0x10] sm:$0xff]
      %v761 = vld [vmem:[%s747 + $0x18] sm:$0xff]
      %v762 = vld [vmem:[%s747 + $0x20] sm:$0xff]
      %v763 = vld [vmem:[%s747 + $0x28] sm:$0xff]
      %v764 = vld [vmem:[%s747 + $0x30] sm:$0xff]
      %v765 = vld [vmem:[%s747 + $0x38] sm:$0xff]
      %v766 = vld [vmem:[%s2] sm:$0x1]
      %v767 = vld [vmem:[%s3] sm:$0x1]
      %vm768 = vcmask 261120
      %v769 = vsel %vm768, %v758, 0.0
      %770 = vadd.xlane.f32.xlu0 %v769
      %v771 = vpop.xlane.xlu0 %770
      %v772 = vsel %vm768, %v759, 0.0
      %773 = vadd.xlane.f32.xlu0 %v772
      %v774 = vpop.xlane.xlu0 %773
      %v775 = vsel %vm768, %v760, 0.0
      %776 = vadd.xlane.f32.xlu0 %v775
      %v777 = vpop.xlane.xlu0 %776
      %v778 = vsel %vm768, %v761, 0.0
      %779 = vadd.xlane.f32.xlu0 %v778
      %v780 = vpop.xlane.xlu0 %779
      %v781 = vsel %vm768, %v762, 0.0
      %782 = vadd.xlane.f32.xlu0 %v781
      %v783 = vpop.xlane.xlu0 %782
      %v784 = vsel %vm768, %v763, 0.0
      %785 = vadd.xlane.f32.xlu0 %v784
      %v786 = vpop.xlane.xlu0 %785
      %v787 = vsel %vm768, %v764, 0.0
      %788 = vadd.xlane.f32.xlu0 %v787
      %v789 = vpop.xlane.xlu0 %788
      %v790 = vsel %vm768, %v765, 0.0
      %791 = vadd.xlane.f32.xlu0 %v790
      %v792 = vpop.xlane.xlu0 %791
      %v793 = vrcp.pop 32.0
      %v794 = vmul.f32 %v771, %v793
      %v795 = vmul.f32 %v774, %v793
      %v796 = vmul.f32 %v777, %v793
      %v797 = vmul.f32 %v780, %v793
      %v798 = vmul.f32 %v783, %v793
      %v799 = vmul.f32 %v786, %v793
      %v800 = vmul.f32 %v789, %v793
      %v801 = vmul.f32 %v792, %v793
      %v802 = vsub.f32 %v758, %v794
      %v803 = vsub.f32 %v759, %v795
      %v804 = vsub.f32 %v760, %v796
      %v805 = vsub.f32 %v761, %v797
      %v806 = vsub.f32 %v762, %v798
      %v807 = vsub.f32 %v763, %v799
      %v808 = vsub.f32 %v764, %v800
      %v809 = vsub.f32 %v765, %v801
      %v810 = vmul.f32 %v802, %v802
      %v811 = vmul.f32 %v803, %v803
      %v812 = vmul.f32 %v804, %v804
      %v813 = vmul.f32 %v805, %v805
      %v814 = vmul.f32 %v806, %v806
      %v815 = vmul.f32 %v807, %v807
      %v816 = vmul.f32 %v808, %v808
      %v817 = vmul.f32 %v809, %v809
      %v818 = vsel %vm768, %v810, 0.0
      %819 = vadd.xlane.f32.xlu0 %v818
      %v820 = vpop.xlane.xlu0 %819
      %v821 = vsel %vm768, %v811, 0.0
      %822 = vadd.xlane.f32.xlu0 %v821
      %v823 = vpop.xlane.xlu0 %822
      %v824 = vsel %vm768, %v812, 0.0
      %825 = vadd.xlane.f32.xlu0 %v824
      %v826 = vpop.xlane.xlu0 %825
      %v827 = vsel %vm768, %v813, 0.0
      %828 = vadd.xlane.f32.xlu0 %v827
      %v829 = vpop.xlane.xlu0 %828
      %v830 = vsel %vm768, %v814, 0.0
      %831 = vadd.xlane.f32.xlu0 %v830
      %v832 = vpop.xlane.xlu0 %831
      %v833 = vsel %vm768, %v815, 0.0
      %834 = vadd.xlane.f32.xlu0 %v833
      %v835 = vpop.xlane.xlu0 %834
      %v836 = vsel %vm768, %v816, 0.0
      %837 = vadd.xlane.f32.xlu0 %v836
      %v838 = vpop.xlane.xlu0 %837
      %v839 = vsel %vm768, %v817, 0.0
      %840 = vadd.xlane.f32.xlu0 %v839
      %v841 = vpop.xlane.xlu0 %840
      %v842 = vmul.f32 %v820, %v793
      %v843 = vmul.f32 %v823, %v793
      %v844 = vmul.f32 %v826, %v793
      %v845 = vmul.f32 %v829, %v793
      %v846 = vmul.f32 %v832, %v793
      %v847 = vmul.f32 %v835, %v793
      %v848 = vmul.f32 %v838, %v793
      %v849 = vmul.f32 %v841, %v793
      %v850 = vadd.f32 %v842, 1e-05
      %v851 = vadd.f32 %v843, 1e-05
      %v852 = vadd.f32 %v844, 1e-05
      %v853 = vadd.f32 %v845, 1e-05
      %v854 = vadd.f32 %v846, 1e-05
      %v855 = vadd.f32 %v847, 1e-05
      %v856 = vadd.f32 %v848, 1e-05
      %v857 = vadd.f32 %v849, 1e-05
      %v858 = vrsqrt.pop %v850
      %v859 = vrsqrt.pop %v851
      %v860 = vrsqrt.pop %v852
      %v861 = vrsqrt.pop %v853
      %v862 = vrsqrt.pop %v854
      %v863 = vrsqrt.pop %v855
      %v864 = vrsqrt.pop %v856
      %v865 = vrsqrt.pop %v857
      %v866 = vmul.f32 %v802, %v858
      %v867 = vmul.f32 %v803, %v859
      %v868 = vmul.f32 %v804, %v860
      %v869 = vmul.f32 %v805, %v861
      %v870 = vmul.f32 %v806, %v862
      %v871 = vmul.f32 %v807, %v863
      %v872 = vmul.f32 %v808, %v864
      %v873 = vmul.f32 %v809, %v865
      %v875 = vlaneseq
      %v876 = vshrl.u32 %v875, 7
      %v877 = vsub.s32 0, %v876
      %v878 = vrot.slane %v766, %v877
      %v880 = vmul.f32 %v866, %v878
      %v881 = vmul.f32 %v867, %v878
      %v882 = vmul.f32 %v868, %v878
      %v883 = vmul.f32 %v869, %v878
      %v884 = vmul.f32 %v870, %v878
      %v885 = vmul.f32 %v871, %v878
      %v886 = vmul.f32 %v872, %v878
      %v887 = vmul.f32 %v873, %v878
      %v889 = vlaneseq
      %v890 = vshrl.u32 %v889, 7
      %v891 = vsub.s32 0, %v890
      %v892 = vrot.slane %v767, %v891
      %v894 = vadd.f32 %v880, %v892
      %v895 = vadd.f32 %v881, %v892
      %v896 = vadd.f32 %v882, %v892
      %v897 = vadd.f32 %v883, %v892
      %v898 = vadd.f32 %v884, %v892
      %v899 = vadd.f32 %v885, %v892
      %v900 = vadd.f32 %v886, %v892
      %v901 = vadd.f32 %v887, %v892
      %v902 = vld [vmem:[%s4] sm:$0xff]
      %v903 = vld [vmem:[%s4 + $0x8] sm:$0xff]
      %v904 = vld [vmem:[%s4 + $0x10] sm:$0xff]
      %v905 = vld [vmem:[%s4 + $0x18] sm:$0xff]
      %v906 = vld [vmem:[%s5] sm:$0x1]
      %v908 = vlaneseq
      %v909 = vshrl.u32 %v908, 7
      %v910 = vsub.s32 0, %v909
      %v911 = vrot.slane %v906, %v910
      %v914 = vsel %vm768, %v894, 0
      %v917 = vsel %vm768, %v895, 0
      %v920 = vsel %vm768, %v896, 0
      %v923 = vsel %vm768, %v897, 0
      %v926 = vsel %vm768, %v898, 0
      %v929 = vsel %vm768, %v899, 0
      %v932 = vsel %vm768, %v900, 0
      %v935 = vsel %vm768, %v901, 0
      %937 = vmatprep.subr.mxu0 0.0
      %938 = vmatpush1.msra.mxu0 %v902
      %939 = vmatprep.subr.mxu0 0.0
      %940 = vmatpush1.msra.mxu0 %v903
      %941 = vmatprep.subr.mxu0 0.0
      %942 = vmatpush1.msra.mxu0 %v904
      %943 = vmatprep.subr.mxu0 0.0
      %944 = vmatpush1.msra.mxu0 %v905
      %945 = vmatprep.subr.mxu0 0.0
      %946 = vmatpush1.msra.mxu0 0.0
      %947 = vmatprep.subr.mxu0 0.0
      %948 = vmatpush1.msra.mxu0 0.0
      %949 = vmatprep.subr.mxu0 0.0
      %950 = vmatpush1.msra.mxu0 0.0
      %951 = vmatprep.subr.mxu0 0.0
      %952 = vmatpush1.msra.mxu0 0.0
      %953 = vmatprep.subr.mxu0 0.0
      %954 = vmatpush1.msra.mxu0 0.0
      %955 = vmatprep.subr.mxu0 0.0
      %956 = vmatpush1.msra.mxu0 0.0
      %957 = vmatprep.subr.mxu0 0.0
      %958 = vmatpush1.msra.mxu0 0.0
      %959 = vmatprep.subr.mxu0 0.0
      %960 = vmatpush1.msra.mxu0 0.0
      %961 = vmatprep.subr.mxu0 0.0
      %962 = vmatpush1.msra.mxu0 0.0
      %963 = vmatprep.subr.mxu0 0.0
      %964 = vmatpush1.msra.mxu0 0.0
      %965 = vmatprep.subr.mxu0 0.0
      %966 = vmatpush1.msra.mxu0 0.0
      %967 = vmatprep.subr.mxu0 0.0
      %968 = vmatpush1.msra.mxu0 0.0
      %969 = vmatprep.subr.mxu0 0.0
      %970 = vmatpush1.msra.mxu0 0.0
      %971 = vmatprep.subr.mxu0 0.0
      %972 = vmatpush1.msra.mxu0 0.0
      %973 = vmatprep.subr.mxu0 0.0
      %974 = vmatpush1.msra.mxu0 0.0
      %975 = vmatprep.subr.mxu0 0.0
      %976 = vmatpush1.msra.mxu0 0.0
      %977 = vmatprep.subr.mxu0 0.0
      %978 = vmatpush1.msra.mxu0 0.0
      %979 = vmatprep.subr.mxu0 0.0
      %980 = vmatpush1.msra.mxu0 0.0
      %981 = vmatprep.subr.mxu0 0.0
      %982 = vmatpush1.msra.mxu0 0.0
      %983 = vmatprep.subr.mxu0 0.0
      %984 = vmatpush1.msra.mxu0 0.0
      %985 = vmatprep.subr.mxu0 0.0
      %986 = vmatpush1.msra.mxu0 0.0
      %987 = vmatprep.subr.mxu0 0.0
      %988 = vmatpush1.msra.mxu0 0.0
      %989 = vmatprep.subr.mxu0 0.0
      %990 = vmatpush1.msra.mxu0 0.0
      %991 = vmatprep.subr.mxu0 0.0
      %992 = vmatpush1.msra.mxu0 0.0
      %993 = vmatprep.subr.mxu0 0.0
      %994 = vmatpush1.msra.mxu0 0.0
      %995 = vmatprep.subr.mxu0 0.0
      %996 = vmatpush1.msra.mxu0 0.0
      %997 = vmatprep.subr.mxu0 0.0
      %998 = vmatpush1.msra.mxu0 0.0
      %999 = vmatprep.subr.mxu0 0.0
      %1000 = vmatpush1.msra.mxu0 0.0
      %1001 = vmatprep.mubr.f32.mxu0 0.0
      %1002 = vmatmul.mubr.f32.gmra.mrb[0].mxu0 %v914
      %v1003 = vpop.f32.mrb[0].mxu0
      %v1004 = vadd.f32 %v911, %v1003
      %v1005 = vpop.f32.mrb[0].mxu0
      %1006 = vmatprep.mubr.f32.mxu0 0.0
      %1007 = vmatmul.mubr.f32.gmra.mrb[0].mxu0 %v917
      %v1008 = vpop.f32.mrb[0].mxu0
      %v1009 = vadd.f32 %v911, %v1008
      %v1010 = vpop.f32.mrb[0].mxu0
      %1011 = vmatprep.mubr.f32.mxu0 0.0
      %1012 = vmatmul.mubr.f32.gmra.mrb[0].mxu0 %v920
      %v1013 = vpop.f32.mrb[0].mxu0
      %v1014 = vadd.f32 %v911, %v1013
      %v1015 = vpop.f32.mrb[0].mxu0
      %1016 = vmatprep.mubr.f32.mxu0 0.0
      %1017 = vmatmul.mubr.f32.gmra.mrb[0].mxu0 %v923
      %v1018 = vpop.f32.mrb[0].mxu0
      %v1019 = vadd.f32 %v911, %v1018
      %v1020 = vpop.f32.mrb[0].mxu0
      %1021 = vmatprep.mubr.f32.mxu0 0.0
      %1022 = vmatmul.mubr.f32.gmra.mrb[0].mxu0 %v926
      %v1023 = vpop.f32.mrb[0].mxu0
      %v1024 = vadd.f32 %v911, %v1023
      %v1025 = vpop.f32.mrb[0].mxu0
      %1026 = vmatprep.mubr.f32.mxu0 0.0
      %1027 = vmatmul.mubr.f32.gmra.mrb[0].mxu0 %v929
      %v1028 = vpop.f32.mrb[0].mxu0
      %v1029 = vadd.f32 %v911, %v1028
      %v1030 = vpop.f32.mrb[0].mxu0
      %1031 = vmatprep.mubr.f32.mxu0 0.0
      %1032 = vmatmul.mubr.f32.gmra.mrb[0].mxu0 %v932
      %v1033 = vpop.f32.mrb[0].mxu0
      %v1034 = vadd.f32 %v911, %v1033
      %v1035 = vpop.f32.mrb[0].mxu0
      %1036 = vmatprep.mubr.f32.mxu0 0.0
      %1037 = vmatmul.mubr.f32.gmra.mrb[0].mxu0 %v935
      %v1038 = vpop.f32.mrb[0].mxu0
      %v1039 = vadd.f32 %v911, %v1038
      %v1040 = vpop.f32.mrb[0].mxu0
      %1041 = vdwg.mxu0
      %v1042 = vld [vmem:[%s6] sm:$0xff]
      %v1043 = vld [vmem:[%s6 + $0x8] sm:$0xff]
      %v1044 = vld [vmem:[%s6 + $0x10] sm:$0xff]
      %v1045 = vld [vmem:[%s6 + $0x18] sm:$0xff]
      %v1046 = vld [vmem:[%s7] sm:$0x1]
      %v1048 = vlaneseq
      %v1049 = vshrl.u32 %v1048, 7
      %v1050 = vsub.s32 0, %v1049
      %v1051 = vrot.slane %v1046, %v1050
      %v1054 = vsel %vm768, %v1004, 0
      %v1057 = vsel %vm768, %v1009, 0
      %v1060 = vsel %vm768, %v1014, 0
      %v1063 = vsel %vm768, %v1019, 0
      %v1066 = vsel %vm768, %v1024, 0
      %v1069 = vsel %vm768, %v1029, 0
      %v1072 = vsel %vm768, %v1034, 0
      %v1075 = vsel %vm768, %v1039, 0
      %1077 = vmatprep.subr.mxu0 0.0
      %1078 = vmatpush1.msra.mxu0 %v1042
      %1079 = vmatprep.subr.mxu0 0.0
      %1080 = vmatpush1.msra.mxu0 %v1043
      %1081 = vmatprep.subr.mxu0 0.0
      %1082 = vmatpush1.msra.mxu0 %v1044
      %1083 = vmatprep.subr.mxu0 0.0
      %1084 = vmatpush1.msra.mxu0 %v1045
      %1085 = vmatprep.subr.mxu0 0.0
      %1086 = vmatpush1.msra.mxu0 0.0
      %1087 = vmatprep.subr.mxu0 0.0
      %1088 = vmatpush1.msra.mxu0 0.0
      %1089 = vmatprep.subr.mxu0 0.0
      %1090 = vmatpush1.msra.mxu0 0.0
      %1091 = vmatprep.subr.mxu0 0.0
      %1092 = vmatpush1.msra.mxu0 0.0
      %1093 = vmatprep.subr.mxu0 0.0
      %1094 = vmatpush1.msra.mxu0 0.0
      %1095 = vmatprep.subr.mxu0 0.0
      %1096 = vmatpush1.msra.mxu0 0.0
      %1097 = vmatprep.subr.mxu0 0.0
      %1098 = vmatpush1.msra.mxu0 0.0
      %1099 = vmatprep.subr.mxu0 0.0
      %1100 = vmatpush1.msra.mxu0 0.0
      %1101 = vmatprep.subr.mxu0 0.0
      %1102 = vmatpush1.msra.mxu0 0.0
      %1103 = vmatprep.subr.mxu0 0.0
      %1104 = vmatpush1.msra.mxu0 0.0
      %1105 = vmatprep.subr.mxu0 0.0
      %1106 = vmatpush1.msra.mxu0 0.0
      %1107 = vmatprep.subr.mxu0 0.0
      %1108 = vmatpush1.msra.mxu0 0.0
      %1109 = vmatprep.subr.mxu0 0.0
      %1110 = vmatpush1.msra.mxu0 0.0
      %1111 = vmatprep.subr.mxu0 0.0
      %1112 = vmatpush1.msra.mxu0 0.0
      %1113 = vmatprep.subr.mxu0 0.0
      %1114 = vmatpush1.msra.mxu0 0.0
      %1115 = vmatprep.subr.mxu0 0.0
      %1116 = vmatpush1.msra.mxu0 0.0
      %1117 = vmatprep.subr.mxu0 0.0
      %1118 = vmatpush1.msra.mxu0 0.0
      %1119 = vmatprep.subr.mxu0 0.0
      %1120 = vmatpush1.msra.mxu0 0.0
      %1121 = vmatprep.subr.mxu0 0.0
      %1122 = vmatpush1.msra.mxu0 0.0
      %1123 = vmatprep.subr.mxu0 0.0
      %1124 = vmatpush1.msra.mxu0 0.0
      %1125 = vmatprep.subr.mxu0 0.0
      %1126 = vmatpush1.msra.mxu0 0.0
      %1127 = vmatprep.subr.mxu0 0.0
      %1128 = vmatpush1.msra.mxu0 0.0
      %1129 = vmatprep.subr.mxu0 0.0
      %1130 = vmatpush1.msra.mxu0 0.0
      %1131 = vmatprep.subr.mxu0 0.0
      %1132 = vmatpush1.msra.mxu0 0.0
      %1133 = vmatprep.subr.mxu0 0.0
      %1134 = vmatpush1.msra.mxu0 0.0
      %1135 = vmatprep.subr.mxu0 0.0
      %1136 = vmatpush1.msra.mxu0 0.0
      %1137 = vmatprep.subr.mxu0 0.0
      %1138 = vmatpush1.msra.mxu0 0.0
      %1139 = vmatprep.subr.mxu0 0.0
      %1140 = vmatpush1.msra.mxu0 0.0
      %1141 = vmatprep.mubr.f32.mxu0 0.0
      %1142 = vmatmul.mubr.f32.gmra.mrb[0].mxu0 %v1054
      %v1143 = vpop.f32.mrb[0].mxu0
      %v1144 = vadd.f32 %v1051, %v1143
      %v1145 = vpop.f32.mrb[0].mxu0
      %1146 = vmatprep.mubr.f32.mxu0 0.0
      %1147 = vmatmul.mubr.f32.gmra.mrb[0].mxu0 %v1057
      %v1148 = vpop.f32.mrb[0].mxu0
      %v1149 = vadd.f32 %v1051, %v1148
      %v1150 = vpop.f32.mrb[0].mxu0
      %1151 = vmatprep.mubr.f32.mxu0 0.0
      %1152 = vmatmul.mubr.f32.gmra.mrb[0].mxu0 %v1060
      %v1153 = vpop.f32.mrb[0].mxu0
      %v1154 = vadd.f32 %v1051, %v1153
      %v1155 = vpop.f32.mrb[0].mxu0
      %1156 = vmatprep.mubr.f32.mxu0 0.0
      %1157 = vmatmul.mubr.f32.gmra.mrb[0].mxu0 %v1063
      %v1158 = vpop.f32.mrb[0].mxu0
      %v1159 = vadd.f32 %v1051, %v1158
      %v1160 = vpop.f32.mrb[0].mxu0
      %1161 = vmatprep.mubr.f32.mxu0 0.0
      %1162 = vmatmul.mubr.f32.gmra.mrb[0].mxu0 %v1066
      %v1163 = vpop.f32.mrb[0].mxu0
      %v1164 = vadd.f32 %v1051, %v1163
      %v1165 = vpop.f32.mrb[0].mxu0
      %1166 = vmatprep.mubr.f32.mxu0 0.0
      %1167 = vmatmul.mubr.f32.gmra.mrb[0].mxu0 %v1069
      %v1168 = vpop.f32.mrb[0].mxu0
      %v1169 = vadd.f32 %v1051, %v1168
      %v1170 = vpop.f32.mrb[0].mxu0
      %1171 = vmatprep.mubr.f32.mxu0 0.0
      %1172 = vmatmul.mubr.f32.gmra.mrb[0].mxu0 %v1072
      %v1173 = vpop.f32.mrb[0].mxu0
      %v1174 = vadd.f32 %v1051, %v1173
      %v1175 = vpop.f32.mrb[0].mxu0
      %1176 = vmatprep.mubr.f32.mxu0 0.0
      %1177 = vmatmul.mubr.f32.gmra.mrb[0].mxu0 %v1075
      %v1178 = vpop.f32.mrb[0].mxu0
      %v1179 = vadd.f32 %v1051, %v1178
      %v1180 = vpop.f32.mrb[0].mxu0
      %1181 = vdwg.mxu0
      %v1182 = vmul.f32 %v1144, 0.5
      %v1183 = vmul.f32 %v1149, 0.5
      %v1184 = vmul.f32 %v1154, 0.5
      %v1185 = vmul.f32 %v1159, 0.5
      %v1186 = vmul.f32 %v1164, 0.5
      %v1187 = vmul.f32 %v1169, 0.5
      %v1188 = vmul.f32 %v1174, 0.5
      %v1189 = vmul.f32 %v1179, 0.5
      %v1190 = vmul.f32 %v1144, 0.70710677
      %v1191 = vmul.f32 %v1149, 0.70710677
      %v1192 = vmul.f32 %v1154, 0.70710677
      %v1193 = vmul.f32 %v1159, 0.70710677
      %v1194 = vmul.f32 %v1164, 0.70710677
      %v1195 = vmul.f32 %v1169, 0.70710677
      %v1196 = vmul.f32 %v1174, 0.70710677
      %v1197 = vmul.f32 %v1179, 0.70710677
      %vm1198 = vcmp.ge.f32.partialorder %v1190, 0.0
      %vm1199 = vcmp.ge.f32.partialorder %v1191, 0.0
      %vm1200 = vcmp.ge.f32.partialorder %v1192, 0.0
      %vm1201 = vcmp.ge.f32.partialorder %v1193, 0.0
      %vm1202 = vcmp.ge.f32.partialorder %v1194, 0.0
      %vm1203 = vcmp.ge.f32.partialorder %v1195, 0.0
      %vm1204 = vcmp.ge.f32.partialorder %v1196, 0.0
      %vm1205 = vcmp.ge.f32.partialorder %v1197, 0.0
      %v1206 = vsel %vm1198, 1.0, -1.0
      %v1207 = vsel %vm1199, 1.0, -1.0
      %v1208 = vsel %vm1200, 1.0, -1.0
      %v1209 = vsel %vm1201, 1.0, -1.0
      %v1210 = vsel %vm1202, 1.0, -1.0
      %v1211 = vsel %vm1203, 1.0, -1.0
      %v1212 = vsel %vm1204, 1.0, -1.0
      %v1213 = vsel %vm1205, 1.0, -1.0
      %v1214 = vand.u32 2147483647, %v1190
      %v1215 = vand.u32 2147483647, %v1191
      %v1216 = vand.u32 2147483647, %v1192
      %v1217 = vand.u32 2147483647, %v1193
      %v1218 = vand.u32 2147483647, %v1194
      %v1219 = vand.u32 2147483647, %v1195
      %v1220 = vand.u32 2147483647, %v1196
      %v1221 = vand.u32 2147483647, %v1197
      %v1222 = vmul.f32 %v1214, 0.3275911
      %v1223 = vmul.f32 %v1215, 0.3275911
      %v1224 = vmul.f32 %v1216, 0.3275911
      %v1225 = vmul.f32 %v1217, 0.3275911
      %v1226 = vmul.f32 %v1218, 0.3275911
      %v1227 = vmul.f32 %v1219, 0.3275911
      %v1228 = vmul.f32 %v1220, 0.3275911
      %v1229 = vmul.f32 %v1221, 0.3275911
      %v1230 = vadd.f32 %v1222, 1.0
      %v1231 = vadd.f32 %v1223, 1.0
      %v1232 = vadd.f32 %v1224, 1.0
      %v1233 = vadd.f32 %v1225, 1.0
      %v1234 = vadd.f32 %v1226, 1.0
      %v1235 = vadd.f32 %v1227, 1.0
      %v1236 = vadd.f32 %v1228, 1.0
      %v1237 = vadd.f32 %v1229, 1.0
      %v1238 = vrcp.pop %v1230
      %v1239 = vmul.f32 1.0, %v1238
      %v1240 = vrcp.pop %v1231
      %v1241 = vmul.f32 1.0, %v1240
      %v1242 = vrcp.pop %v1232
      %v1243 = vmul.f32 1.0, %v1242
      %v1244 = vrcp.pop %v1233
      %v1245 = vmul.f32 1.0, %v1244
      %v1246 = vrcp.pop %v1234
      %v1247 = vmul.f32 1.0, %v1246
      %v1248 = vrcp.pop %v1235
      %v1249 = vmul.f32 1.0, %v1248
      %v1250 = vrcp.pop %v1236
      %v1251 = vmul.f32 1.0, %v1250
      %v1252 = vrcp.pop %v1237
      %v1253 = vmul.f32 1.0, %v1252
      %v1254 = vmul.f32 %v1239, 1.0614054
      %v1255 = vmul.f32 %v1241, 1.0614054
      %v1256 = vmul.f32 %v1243, 1.0614054
      %v1257 = vmul.f32 %v1245, 1.0614054
      %v1258 = vmul.f32 %v1247, 1.0614054
      %v1259 = vmul.f32 %v1249, 1.0614054
      %v1260 = vmul.f32 %v1251, 1.0614054
      %v1261 = vmul.f32 %v1253, 1.0614054
      %v1262 = vadd.f32 %v1254, -1.4531521
      %v1263 = vadd.f32 %v1255, -1.4531521
      %v1264 = vadd.f32 %v1256, -1.4531521
      %v1265 = vadd.f32 %v1257, -1.4531521
      %v1266 = vadd.f32 %v1258, -1.4531521
      %v1267 = vadd.f32 %v1259, -1.4531521
      %v1268 = vadd.f32 %v1260, -1.4531521
      %v1269 = vadd.f32 %v1261, -1.4531521
      %v1270 = vmul.f32 %v1262, %v1239
      %v1271 = vmul.f32 %v1263, %v1241
      %v1272 = vmul.f32 %v1264, %v1243
      %v1273 = vmul.f32 %v1265, %v1245
      %v1274 = vmul.f32 %v1266, %v1247
      %v1275 = vmul.f32 %v1267, %v1249
      %v1276 = vmul.f32 %v1268, %v1251
      %v1277 = vmul.f32 %v1269, %v1253
      %v1278 = vadd.f32 %v1270, 1.4214138
      %v1279 = vadd.f32 %v1271, 1.4214138
      %v1280 = vadd.f32 %v1272, 1.4214138
      %v1281 = vadd.f32 %v1273, 1.4214138
      %v1282 = vadd.f32 %v1274, 1.4214138
      %v1283 = vadd.f32 %v1275, 1.4214138
      %v1284 = vadd.f32 %v1276, 1.4214138
      %v1285 = vadd.f32 %v1277, 1.4214138
      %v1286 = vmul.f32 %v1278, %v1239
      %v1287 = vmul.f32 %v1279, %v1241
      %v1288 = vmul.f32 %v1280, %v1243
      %v1289 = vmul.f32 %v1281, %v1245
      %v1290 = vmul.f32 %v1282, %v1247
      %v1291 = vmul.f32 %v1283, %v1249
      %v1292 = vmul.f32 %v1284, %v1251
      %v1293 = vmul.f32 %v1285, %v1253
      %v1294 = vadd.f32 %v1286, -0.28449672
      %v1295 = vadd.f32 %v1287, -0.28449672
      %v1296 = vadd.f32 %v1288, -0.28449672
      %v1297 = vadd.f32 %v1289, -0.28449672
      %v1298 = vadd.f32 %v1290, -0.28449672
      %v1299 = vadd.f32 %v1291, -0.28449672
      %v1300 = vadd.f32 %v1292, -0.28449672
      %v1301 = vadd.f32 %v1293, -0.28449672
      %v1302 = vmul.f32 %v1294, %v1239
      %v1303 = vmul.f32 %v1295, %v1241
      %v1304 = vmul.f32 %v1296, %v1243
      %v1305 = vmul.f32 %v1297, %v1245
      %v1306 = vmul.f32 %v1298, %v1247
      %v1307 = vmul.f32 %v1299, %v1249
      %v1308 = vmul.f32 %v1300, %v1251
      %v1309 = vmul.f32 %v1301, %v1253
      %v1310 = vadd.f32 %v1302, 0.2548296
      %v1311 = vadd.f32 %v1303, 0.2548296
      %v1312 = vadd.f32 %v1304, 0.2548296
      %v1313 = vadd.f32 %v1305, 0.2548296
      %v1314 = vadd.f32 %v1306, 0.2548296
      %v1315 = vadd.f32 %v1307, 0.2548296
      %v1316 = vadd.f32 %v1308, 0.2548296
      %v1317 = vadd.f32 %v1309, 0.2548296
      %v1318 = vmul.f32 %v1310, %v1239
      %v1319 = vmul.f32 %v1311, %v1241
      %v1320 = vmul.f32 %v1312, %v1243
      %v1321 = vmul.f32 %v1313, %v1245
      %v1322 = vmul.f32 %v1314, %v1247
      %v1323 = vmul.f32 %v1315, %v1249
      %v1324 = vmul.f32 %v1316, %v1251
      %v1325 = vmul.f32 %v1317, %v1253
      %v1326 = vsub.f32 0.0, %v1214
      %v1327 = vsub.f32 0.0, %v1215
      %v1328 = vsub.f32 0.0, %v1216
      %v1329 = vsub.f32 0.0, %v1217
      %v1330 = vsub.f32 0.0, %v1218
      %v1331 = vsub.f32 0.0, %v1219
      %v1332 = vsub.f32 0.0, %v1220
      %v1333 = vsub.f32 0.0, %v1221
      %v1334 = vmul.f32 %v1326, %v1214
      %v1335 = vmul.f32 %v1327, %v1215
      %v1336 = vmul.f32 %v1328, %v1216
      %v1337 = vmul.f32 %v1329, %v1217
      %v1338 = vmul.f32 %v1330, %v1218
      %v1339 = vmul.f32 %v1331, %v1219
      %v1340 = vmul.f32 %v1332, %v1220
      %v1341 = vmul.f32 %v1333, %v1221
      %v1342 = vmul.f32 %v1334, 1.442695
      %v1343 = vpow.pop %v1342
      %v1344 = vmul.f32 %v1335, 1.442695
      %v1345 = vpow.pop %v1344
      %v1346 = vmul.f32 %v1336, 1.442695
      %v1347 = vpow.pop %v1346
      %v1348 = vmul.f32 %v1337, 1.442695
      %v1349 = vpow.pop %v1348
      %v1350 = vmul.f32 %v1338, 1.442695
      %v1351 = vpow.pop %v1350
      %v1352 = vmul.f32 %v1339, 1.442695
      %v1353 = vpow.pop %v1352
      %v1354 = vmul.f32 %v1340, 1.442695
      %v1355 = vpow.pop %v1354
      %v1356 = vmul.f32 %v1341, 1.442695
      %v1357 = vpow.pop %v1356
      %v1358 = vmul.f32 %v1318, %v1343
      %v1359 = vmul.f32 %v1319, %v1345
      %v1360 = vmul.f32 %v1320, %v1347
      %v1361 = vmul.f32 %v1321, %v1349
      %v1362 = vmul.f32 %v1322, %v1351
      %v1363 = vmul.f32 %v1323, %v1353
      %v1364 = vmul.f32 %v1324, %v1355
      %v1365 = vmul.f32 %v1325, %v1357
      %v1366 = vsub.f32 1.0, %v1358
      %v1367 = vsub.f32 1.0, %v1359
      %v1368 = vsub.f32 1.0, %v1360
      %v1369 = vsub.f32 1.0, %v1361
      %v1370 = vsub.f32 1.0, %v1362
      %v1371 = vsub.f32 1.0, %v1363
      %v1372 = vsub.f32 1.0, %v1364
      %v1373 = vsub.f32 1.0, %v1365
      %v1374 = vmul.f32 %v1206, %v1366
      %v1375 = vmul.f32 %v1207, %v1367
      %v1376 = vmul.f32 %v1208, %v1368
      %v1377 = vmul.f32 %v1209, %v1369
      %v1378 = vmul.f32 %v1210, %v1370
      %v1379 = vmul.f32 %v1211, %v1371
      %v1380 = vmul.f32 %v1212, %v1372
      %v1381 = vmul.f32 %v1213, %v1373
      %v1382 = vadd.f32 %v1374, 1.0
      %v1383 = vadd.f32 %v1375, 1.0
      %v1384 = vadd.f32 %v1376, 1.0
      %v1385 = vadd.f32 %v1377, 1.0
      %v1386 = vadd.f32 %v1378, 1.0
      %v1387 = vadd.f32 %v1379, 1.0
      %v1388 = vadd.f32 %v1380, 1.0
      %v1389 = vadd.f32 %v1381, 1.0
      %v1390 = vmul.f32 %v1182, %v1382
      %v1391 = vmul.f32 %v1183, %v1383
      %v1392 = vmul.f32 %v1184, %v1384
      %v1393 = vmul.f32 %v1185, %v1385
      %v1394 = vmul.f32 %v1186, %v1386
      %v1395 = vmul.f32 %v1187, %v1387
      %v1396 = vmul.f32 %v1188, %v1388
      %v1397 = vmul.f32 %v1189, %v1389
      %v1398 = vld [vmem:[%s8] sm:$0xff]
      %v1399 = vld [vmem:[%s8 + $0x8] sm:$0xff]
      %v1400 = vld [vmem:[%s8 + $0x10] sm:$0xff]
      %v1401 = vld [vmem:[%s8 + $0x18] sm:$0xff]
      %v1402 = vld [vmem:[%s8 + $0x20] sm:$0xff]
      %v1403 = vld [vmem:[%s8 + $0x28] sm:$0xff]
      %v1404 = vld [vmem:[%s8 + $0x30] sm:$0xff]
      %v1405 = vld [vmem:[%s8 + $0x38] sm:$0xff]
      %v1406 = vld [vmem:[%s9] sm:$0x1]
      %v1408 = vlaneseq
      %v1409 = vshrl.u32 %v1408, 7
      %v1410 = vsub.s32 0, %v1409
      %v1411 = vrot.slane %v1406, %v1410
      %vm1413 = vcmask 523264
      %v1415 = vsel %vm1413, %v1390, 0
      %v1418 = vsel %vm1413, %v1391, 0
      %v1421 = vsel %vm1413, %v1392, 0
      %v1424 = vsel %vm1413, %v1393, 0
      %v1427 = vsel %vm1413, %v1394, 0
      %v1430 = vsel %vm1413, %v1395, 0
      %v1433 = vsel %vm1413, %v1396, 0
      %v1436 = vsel %vm1413, %v1397, 0
      %1438 = vmatprep.subr.mxu0 0.0
      %1439 = vmatpush1.msra.mxu0 %v1398
      %1440 = vmatprep.subr.mxu0 0.0
      %1441 = vmatpush1.msra.mxu0 %v1399
      %1442 = vmatprep.subr.mxu0 0.0
      %1443 = vmatpush1.msra.mxu0 %v1400
      %1444 = vmatprep.subr.mxu0 0.0
      %1445 = vmatpush1.msra.mxu0 %v1401
      %1446 = vmatprep.subr.mxu0 0.0
      %1447 = vmatpush1.msra.mxu0 %v1402
      %1448 = vmatprep.subr.mxu0 0.0
      %1449 = vmatpush1.msra.mxu0 %v1403
      %1450 = vmatprep.subr.mxu0 0.0
      %1451 = vmatpush1.msra.mxu0 %v1404
      %1452 = vmatprep.subr.mxu0 0.0
      %1453 = vmatpush1.msra.mxu0 %v1405
      %1454 = vmatprep.subr.mxu0 0.0
      %1455 = vmatpush1.msra.mxu0 0.0
      %1456 = vmatprep.subr.mxu0 0.0
      %1457 = vmatpush1.msra.mxu0 0.0
      %1458 = vmatprep.subr.mxu0 0.0
      %1459 = vmatpush1.msra.mxu0 0.0
      %1460 = vmatprep.subr.mxu0 0.0
      %1461 = vmatpush1.msra.mxu0 0.0
      %1462 = vmatprep.subr.mxu0 0.0
      %1463 = vmatpush1.msra.mxu0 0.0
      %1464 = vmatprep.subr.mxu0 0.0
      %1465 = vmatpush1.msra.mxu0 0.0
      %1466 = vmatprep.subr.mxu0 0.0
      %1467 = vmatpush1.msra.mxu0 0.0
      %1468 = vmatprep.subr.mxu0 0.0
      %1469 = vmatpush1.msra.mxu0 0.0
      %1470 = vmatprep.subr.mxu0 0.0
      %1471 = vmatpush1.msra.mxu0 0.0
      %1472 = vmatprep.subr.mxu0 0.0
      %1473 = vmatpush1.msra.mxu0 0.0
      %1474 = vmatprep.subr.mxu0 0.0
      %1475 = vmatpush1.msra.mxu0 0.0
      %1476 = vmatprep.subr.mxu0 0.0
      %1477 = vmatpush1.msra.mxu0 0.0
      %1478 = vmatprep.subr.mxu0 0.0
      %1479 = vmatpush1.msra.mxu0 0.0
      %1480 = vmatprep.subr.mxu0 0.0
      %1481 = vmatpush1.msra.mxu0 0.0
      %1482 = vmatprep.subr.mxu0 0.0
      %1483 = vmatpush1.msra.mxu0 0.0
      %1484 = vmatprep.subr.mxu0 0.0
      %1485 = vmatpush1.msra.mxu0 0.0
      %1486 = vmatprep.subr.mxu0 0.0
      %1487 = vmatpush1.msra.mxu0 0.0
      %1488 = vmatprep.subr.mxu0 0.0
      %1489 = vmatpush1.msra.mxu0 0.0
      %1490 = vmatprep.subr.mxu0 0.0
      %1491 = vmatpush1.msra.mxu0 0.0
      %1492 = vmatprep.subr.mxu0 0.0
      %1493 = vmatpush1.msra.mxu0 0.0
      %1494 = vmatprep.subr.mxu0 0.0
      %1495 = vmatpush1.msra.mxu0 0.0
      %1496 = vmatprep.subr.mxu0 0.0
      %1497 = vmatpush1.msra.mxu0 0.0
      %1498 = vmatprep.subr.mxu0 0.0
      %1499 = vmatpush1.msra.mxu0 0.0
      %1500 = vmatprep.subr.mxu0 0.0
      %1501 = vmatpush1.msra.mxu0 0.0
      %1502 = vmatprep.mubr.f32.mxu0 0.0
      %1503 = vmatmul.mubr.f32.gmra.mrb[0].mxu0 %v1415
      %v1504 = vpop.f32.mrb[0].mxu0
      %v1505 = vadd.f32 %v1411, %v1504
      %v1506 = vpop.f32.mrb[0].mxu0
      %1507 = vmatprep.mubr.f32.mxu0 0.0
      %1508 = vmatmul.mubr.f32.gmra.mrb[0].mxu0 %v1418
      %v1509 = vpop.f32.mrb[0].mxu0
      %v1510 = vadd.f32 %v1411, %v1509
      %v1511 = vpop.f32.mrb[0].mxu0
      %1512 = vmatprep.mubr.f32.mxu0 0.0
      %1513 = vmatmul.mubr.f32.gmra.mrb[0].mxu0 %v1421
      %v1514 = vpop.f32.mrb[0].mxu0
      %v1515 = vadd.f32 %v1411, %v1514
      %v1516 = vpop.f32.mrb[0].mxu0
      %1517 = vmatprep.mubr.f32.mxu0 0.0
      %1518 = vmatmul.mubr.f32.gmra.mrb[0].mxu0 %v1424
      %v1519 = vpop.f32.mrb[0].mxu0
      %v1520 = vadd.f32 %v1411, %v1519
      %v1521 = vpop.f32.mrb[0].mxu0
      %1522 = vmatprep.mubr.f32.mxu0 0.0
      %1523 = vmatmul.mubr.f32.gmra.mrb[0].mxu0 %v1427
      %v1524 = vpop.f32.mrb[0].mxu0
      %v1525 = vadd.f32 %v1411, %v1524
      %v1526 = vpop.f32.mrb[0].mxu0
      %1527 = vmatprep.mubr.f32.mxu0 0.0
      %1528 = vmatmul.mubr.f32.gmra.mrb[0].mxu0 %v1430
      %v1529 = vpop.f32.mrb[0].mxu0
      %v1530 = vadd.f32 %v1411, %v1529
      %v1531 = vpop.f32.mrb[0].mxu0
      %1532 = vmatprep.mubr.f32.mxu0 0.0
      %1533 = vmatmul.mubr.f32.gmra.mrb[0].mxu0 %v1433
      %v1534 = vpop.f32.mrb[0].mxu0
      %v1535 = vadd.f32 %v1411, %v1534
      %v1536 = vpop.f32.mrb[0].mxu0
      %1537 = vmatprep.mubr.f32.mxu0 0.0
      %1538 = vmatmul.mubr.f32.gmra.mrb[0].mxu0 %v1436
      %v1539 = vpop.f32.mrb[0].mxu0
      %v1540 = vadd.f32 %v1411, %v1539
      %v1541 = vpop.f32.mrb[0].mxu0
      %1542 = vdwg.mxu0
      %v1543 = vmul.f32 %v1505, 0.5
      %v1544 = vmul.f32 %v1510, 0.5
      %v1545 = vmul.f32 %v1515, 0.5
      %v1546 = vmul.f32 %v1520, 0.5
      %v1547 = vmul.f32 %v1525, 0.5
      %v1548 = vmul.f32 %v1530, 0.5
      %v1549 = vmul.f32 %v1535, 0.5
      %v1550 = vmul.f32 %v1540, 0.5
      %v1551 = vmul.f32 %v1505, 0.70710677
      %v1552 = vmul.f32 %v1510, 0.70710677
      %v1553 = vmul.f32 %v1515, 0.70710677
      %v1554 = vmul.f32 %v1520, 0.70710677
      %v1555 = vmul.f32 %v1525, 0.70710677
      %v1556 = vmul.f32 %v1530, 0.70710677
      %v1557 = vmul.f32 %v1535, 0.70710677
      %v1558 = vmul.f32 %v1540, 0.70710677
      %vm1559 = vcmp.ge.f32.partialorder %v1551, 0.0
      %vm1560 = vcmp.ge.f32.partialorder %v1552, 0.0
      %vm1561 = vcmp.ge.f32.partialorder %v1553, 0.0
      %vm1562 = vcmp.ge.f32.partialorder %v1554, 0.0
      %vm1563 = vcmp.ge.f32.partialorder %v1555, 0.0
      %vm1564 = vcmp.ge.f32.partialorder %v1556, 0.0
      %vm1565 = vcmp.ge.f32.partialorder %v1557, 0.0
      %vm1566 = vcmp.ge.f32.partialorder %v1558, 0.0
      %v1567 = vsel %vm1559, 1.0, -1.0
      %v1568 = vsel %vm1560, 1.0, -1.0
      %v1569 = vsel %vm1561, 1.0, -1.0
      %v1570 = vsel %vm1562, 1.0, -1.0
      %v1571 = vsel %vm1563, 1.0, -1.0
      %v1572 = vsel %vm1564, 1.0, -1.0
      %v1573 = vsel %vm1565, 1.0, -1.0
      %v1574 = vsel %vm1566, 1.0, -1.0
      %v1575 = vand.u32 2147483647, %v1551
      %v1576 = vand.u32 2147483647, %v1552
      %v1577 = vand.u32 2147483647, %v1553
      %v1578 = vand.u32 2147483647, %v1554
      %v1579 = vand.u32 2147483647, %v1555
      %v1580 = vand.u32 2147483647, %v1556
      %v1581 = vand.u32 2147483647, %v1557
      %v1582 = vand.u32 2147483647, %v1558
      %v1583 = vmul.f32 %v1575, 0.3275911
      %v1584 = vmul.f32 %v1576, 0.3275911
      %v1585 = vmul.f32 %v1577, 0.3275911
      %v1586 = vmul.f32 %v1578, 0.3275911
      %v1587 = vmul.f32 %v1579, 0.3275911
      %v1588 = vmul.f32 %v1580, 0.3275911
      %v1589 = vmul.f32 %v1581, 0.3275911
      %v1590 = vmul.f32 %v1582, 0.3275911
      %v1591 = vadd.f32 %v1583, 1.0
      %v1592 = vadd.f32 %v1584, 1.0
      %v1593 = vadd.f32 %v1585, 1.0
      %v1594 = vadd.f32 %v1586, 1.0
      %v1595 = vadd.f32 %v1587, 1.0
      %v1596 = vadd.f32 %v1588, 1.0
      %v1597 = vadd.f32 %v1589, 1.0
      %v1598 = vadd.f32 %v1590, 1.0
      %v1599 = vrcp.pop %v1591
      %v1600 = vmul.f32 1.0, %v1599
      %v1601 = vrcp.pop %v1592
      %v1602 = vmul.f32 1.0, %v1601
      %v1603 = vrcp.pop %v1593
      %v1604 = vmul.f32 1.0, %v1603
      %v1605 = vrcp.pop %v1594
      %v1606 = vmul.f32 1.0, %v1605
      %v1607 = vrcp.pop %v1595
      %v1608 = vmul.f32 1.0, %v1607
      %v1609 = vrcp.pop %v1596
      %v1610 = vmul.f32 1.0, %v1609
      %v1611 = vrcp.pop %v1597
      %v1612 = vmul.f32 1.0, %v1611
      %v1613 = vrcp.pop %v1598
      %v1614 = vmul.f32 1.0, %v1613
      %v1615 = vmul.f32 %v1600, 1.0614054
      %v1616 = vmul.f32 %v1602, 1.0614054
      %v1617 = vmul.f32 %v1604, 1.0614054
      %v1618 = vmul.f32 %v1606, 1.0614054
      %v1619 = vmul.f32 %v1608, 1.0614054
      %v1620 = vmul.f32 %v1610, 1.0614054
      %v1621 = vmul.f32 %v1612, 1.0614054
      %v1622 = vmul.f32 %v1614, 1.0614054
      %v1623 = vadd.f32 %v1615, -1.4531521
      %v1624 = vadd.f32 %v1616, -1.4531521
      %v1625 = vadd.f32 %v1617, -1.4531521
      %v1626 = vadd.f32 %v1618, -1.4531521
      %v1627 = vadd.f32 %v1619, -1.4531521
      %v1628 = vadd.f32 %v1620, -1.4531521
      %v1629 = vadd.f32 %v1621, -1.4531521
      %v1630 = vadd.f32 %v1622, -1.4531521
      %v1631 = vmul.f32 %v1623, %v1600
      %v1632 = vmul.f32 %v1624, %v1602
      %v1633 = vmul.f32 %v1625, %v1604
      %v1634 = vmul.f32 %v1626, %v1606
      %v1635 = vmul.f32 %v1627, %v1608
      %v1636 = vmul.f32 %v1628, %v1610
      %v1637 = vmul.f32 %v1629, %v1612
      %v1638 = vmul.f32 %v1630, %v1614
      %v1639 = vadd.f32 %v1631, 1.4214138
      %v1640 = vadd.f32 %v1632, 1.4214138
      %v1641 = vadd.f32 %v1633, 1.4214138
      %v1642 = vadd.f32 %v1634, 1.4214138
      %v1643 = vadd.f32 %v1635, 1.4214138
      %v1644 = vadd.f32 %v1636, 1.4214138
      %v1645 = vadd.f32 %v1637, 1.4214138
      %v1646 = vadd.f32 %v1638, 1.4214138
      %v1647 = vmul.f32 %v1639, %v1600
      %v1648 = vmul.f32 %v1640, %v1602
      %v1649 = vmul.f32 %v1641, %v1604
      %v1650 = vmul.f32 %v1642, %v1606
      %v1651 = vmul.f32 %v1643, %v1608
      %v1652 = vmul.f32 %v1644, %v1610
      %v1653 = vmul.f32 %v1645, %v1612
      %v1654 = vmul.f32 %v1646, %v1614
      %v1655 = vadd.f32 %v1647, -0.28449672
      %v1656 = vadd.f32 %v1648, -0.28449672
      %v1657 = vadd.f32 %v1649, -0.28449672
      %v1658 = vadd.f32 %v1650, -0.28449672
      %v1659 = vadd.f32 %v1651, -0.28449672
      %v1660 = vadd.f32 %v1652, -0.28449672
      %v1661 = vadd.f32 %v1653, -0.28449672
      %v1662 = vadd.f32 %v1654, -0.28449672
      %v1663 = vmul.f32 %v1655, %v1600
      %v1664 = vmul.f32 %v1656, %v1602
      %v1665 = vmul.f32 %v1657, %v1604
      %v1666 = vmul.f32 %v1658, %v1606
      %v1667 = vmul.f32 %v1659, %v1608
      %v1668 = vmul.f32 %v1660, %v1610
      %v1669 = vmul.f32 %v1661, %v1612
      %v1670 = vmul.f32 %v1662, %v1614
      %v1671 = vadd.f32 %v1663, 0.2548296
      %v1672 = vadd.f32 %v1664, 0.2548296
      %v1673 = vadd.f32 %v1665, 0.2548296
      %v1674 = vadd.f32 %v1666, 0.2548296
      %v1675 = vadd.f32 %v1667, 0.2548296
      %v1676 = vadd.f32 %v1668, 0.2548296
      %v1677 = vadd.f32 %v1669, 0.2548296
      %v1678 = vadd.f32 %v1670, 0.2548296
      %v1679 = vmul.f32 %v1671, %v1600
      %v1680 = vmul.f32 %v1672, %v1602
      %v1681 = vmul.f32 %v1673, %v1604
      %v1682 = vmul.f32 %v1674, %v1606
      %v1683 = vmul.f32 %v1675, %v1608
      %v1684 = vmul.f32 %v1676, %v1610
      %v1685 = vmul.f32 %v1677, %v1612
      %v1686 = vmul.f32 %v1678, %v1614
      %v1687 = vsub.f32 0.0, %v1575
      %v1688 = vsub.f32 0.0, %v1576
      %v1689 = vsub.f32 0.0, %v1577
      %v1690 = vsub.f32 0.0, %v1578
      %v1691 = vsub.f32 0.0, %v1579
      %v1692 = vsub.f32 0.0, %v1580
      %v1693 = vsub.f32 0.0, %v1581
      %v1694 = vsub.f32 0.0, %v1582
      %v1695 = vmul.f32 %v1687, %v1575
      %v1696 = vmul.f32 %v1688, %v1576
      %v1697 = vmul.f32 %v1689, %v1577
      %v1698 = vmul.f32 %v1690, %v1578
      %v1699 = vmul.f32 %v1691, %v1579
      %v1700 = vmul.f32 %v1692, %v1580
      %v1701 = vmul.f32 %v1693, %v1581
      %v1702 = vmul.f32 %v1694, %v1582
      %v1703 = vmul.f32 %v1695, 1.442695
      %v1704 = vpow.pop %v1703
      %v1705 = vmul.f32 %v1696, 1.442695
      %v1706 = vpow.pop %v1705
      %v1707 = vmul.f32 %v1697, 1.442695
      %v1708 = vpow.pop %v1707
      %v1709 = vmul.f32 %v1698, 1.442695
      %v1710 = vpow.pop %v1709
      %v1711 = vmul.f32 %v1699, 1.442695
      %v1712 = vpow.pop %v1711
      %v1713 = vmul.f32 %v1700, 1.442695
      %v1714 = vpow.pop %v1713
      %v1715 = vmul.f32 %v1701, 1.442695
      %v1716 = vpow.pop %v1715
      %v1717 = vmul.f32 %v1702, 1.442695
      %v1718 = vpow.pop %v1717
      %v1719 = vmul.f32 %v1679, %v1704
      %v1720 = vmul.f32 %v1680, %v1706
      %v1721 = vmul.f32 %v1681, %v1708
      %v1722 = vmul.f32 %v1682, %v1710
      %v1723 = vmul.f32 %v1683, %v1712
      %v1724 = vmul.f32 %v1684, %v1714
      %v1725 = vmul.f32 %v1685, %v1716
      %v1726 = vmul.f32 %v1686, %v1718
      %v1727 = vsub.f32 1.0, %v1719
      %v1728 = vsub.f32 1.0, %v1720
      %v1729 = vsub.f32 1.0, %v1721
      %v1730 = vsub.f32 1.0, %v1722
      %v1731 = vsub.f32 1.0, %v1723
      %v1732 = vsub.f32 1.0, %v1724
      %v1733 = vsub.f32 1.0, %v1725
      %v1734 = vsub.f32 1.0, %v1726
      %v1735 = vmul.f32 %v1567, %v1727
      %v1736 = vmul.f32 %v1568, %v1728
      %v1737 = vmul.f32 %v1569, %v1729
      %v1738 = vmul.f32 %v1570, %v1730
      %v1739 = vmul.f32 %v1571, %v1731
      %v1740 = vmul.f32 %v1572, %v1732
      %v1741 = vmul.f32 %v1573, %v1733
      %v1742 = vmul.f32 %v1574, %v1734
      %v1743 = vadd.f32 %v1735, 1.0
      %v1744 = vadd.f32 %v1736, 1.0
      %v1745 = vadd.f32 %v1737, 1.0
      %v1746 = vadd.f32 %v1738, 1.0
      %v1747 = vadd.f32 %v1739, 1.0
      %v1748 = vadd.f32 %v1740, 1.0
      %v1749 = vadd.f32 %v1741, 1.0
      %v1750 = vadd.f32 %v1742, 1.0
      %v1751 = vmul.f32 %v1543, %v1743
      %v1752 = vmul.f32 %v1544, %v1744
      %v1753 = vmul.f32 %v1545, %v1745
      %v1754 = vmul.f32 %v1546, %v1746
      %v1755 = vmul.f32 %v1547, %v1747
      %v1756 = vmul.f32 %v1548, %v1748
      %v1757 = vmul.f32 %v1549, %v1749
      %v1758 = vmul.f32 %v1550, %v1750
      %v1759 = vld [vmem:[%s10] sm:$0x1]
      %v1761 = vlaneseq
      %v1762 = vshrl.u32 %v1761, 7
      %v1763 = vsub.s32 0, %v1762
      %v1764 = vrot.slane %v1759, %v1763
      %v1766 = vadd.f32 %v1751, %v1764
      %v1767 = vadd.f32 %v1752, %v1764
      %v1768 = vadd.f32 %v1753, %v1764
      %v1769 = vadd.f32 %v1754, %v1764
      %v1770 = vadd.f32 %v1755, %v1764
      %v1771 = vadd.f32 %v1756, %v1764
      %v1772 = vadd.f32 %v1757, %v1764
      %v1773 = vadd.f32 %v1758, %v1764
      %v1774 = vmax.f32 %v1766, 0.01
      %v1775 = vmax.f32 %v1767, 0.01
      %v1776 = vmax.f32 %v1768, 0.01
      %v1777 = vmax.f32 %v1769, 0.01
      %v1778 = vmax.f32 %v1770, 0.01
      %v1779 = vmax.f32 %v1771, 0.01
      %v1780 = vmax.f32 %v1772, 0.01
      %v1781 = vmax.f32 %v1773, 0.01
      %v1782 = vld [vmem:[%s11] sm:$0xff]
      %v1783 = vld [vmem:[%s11 + $0x8] sm:$0xff]
      %v1784 = vld [vmem:[%s11 + $0x10] sm:$0xff]
      %v1785 = vld [vmem:[%s11 + $0x18] sm:$0xff]
      %v1786 = vld [vmem:[%s12] sm:$0x1]
      %v1788 = vlaneseq
      %v1789 = vshrl.u32 %v1788, 7
      %v1790 = vsub.s32 0, %v1789
      %v1791 = vrot.slane %v1786, %v1790
      %1793 = vmatprep.subr.mxu0 0.0
      %1794 = vmatpush1.msra.mxu0 %v1782
      %1795 = vmatprep.subr.mxu0 0.0
      %1796 = vmatpush1.msra.mxu0 %v1783
      %1797 = vmatprep.subr.mxu0 0.0
      %1798 = vmatpush1.msra.mxu0 %v1784
      %1799 = vmatprep.subr.mxu0 0.0
      %1800 = vmatpush1.msra.mxu0 %v1785
      %1801 = vmatprep.subr.mxu0 0.0
      %1802 = vmatpush1.msra.mxu0 0.0
      %1803 = vmatprep.subr.mxu0 0.0
      %1804 = vmatpush1.msra.mxu0 0.0
      %1805 = vmatprep.subr.mxu0 0.0
      %1806 = vmatpush1.msra.mxu0 0.0
      %1807 = vmatprep.subr.mxu0 0.0
      %1808 = vmatpush1.msra.mxu0 0.0
      %1809 = vmatprep.subr.mxu0 0.0
      %1810 = vmatpush1.msra.mxu0 0.0
      %1811 = vmatprep.subr.mxu0 0.0
      %1812 = vmatpush1.msra.mxu0 0.0
      %1813 = vmatprep.subr.mxu0 0.0
      %1814 = vmatpush1.msra.mxu0 0.0
      %1815 = vmatprep.subr.mxu0 0.0
      %1816 = vmatpush1.msra.mxu0 0.0
      %1817 = vmatprep.subr.mxu0 0.0
      %1818 = vmatpush1.msra.mxu0 0.0
      %1819 = vmatprep.subr.mxu0 0.0
      %1820 = vmatpush1.msra.mxu0 0.0
      %1821 = vmatprep.subr.mxu0 0.0
      %1822 = vmatpush1.msra.mxu0 0.0
      %1823 = vmatprep.subr.mxu0 0.0
      %1824 = vmatpush1.msra.mxu0 0.0
      %1825 = vmatprep.subr.mxu0 0.0
      %1826 = vmatpush1.msra.mxu0 0.0
      %1827 = vmatprep.subr.mxu0 0.0
      %1828 = vmatpush1.msra.mxu0 0.0
      %1829 = vmatprep.subr.mxu0 0.0
      %1830 = vmatpush1.msra.mxu0 0.0
      %1831 = vmatprep.subr.mxu0 0.0
      %1832 = vmatpush1.msra.mxu0 0.0
      %1833 = vmatprep.subr.mxu0 0.0
      %1834 = vmatpush1.msra.mxu0 0.0
      %1835 = vmatprep.subr.mxu0 0.0
      %1836 = vmatpush1.msra.mxu0 0.0
      %1837 = vmatprep.subr.mxu0 0.0
      %1838 = vmatpush1.msra.mxu0 0.0
      %1839 = vmatprep.subr.mxu0 0.0
      %1840 = vmatpush1.msra.mxu0 0.0
      %1841 = vmatprep.subr.mxu0 0.0
      %1842 = vmatpush1.msra.mxu0 0.0
      %1843 = vmatprep.subr.mxu0 0.0
      %1844 = vmatpush1.msra.mxu0 0.0
      %1845 = vmatprep.subr.mxu0 0.0
      %1846 = vmatpush1.msra.mxu0 0.0
      %1847 = vmatprep.subr.mxu0 0.0
      %1848 = vmatpush1.msra.mxu0 0.0
      %1849 = vmatprep.subr.mxu0 0.0
      %1850 = vmatpush1.msra.mxu0 0.0
      %1851 = vmatprep.subr.mxu0 0.0
      %1852 = vmatpush1.msra.mxu0 0.0
      %1853 = vmatprep.subr.mxu0 0.0
      %1854 = vmatpush1.msra.mxu0 0.0
      %1855 = vmatprep.subr.mxu0 0.0
      %1856 = vmatpush1.msra.mxu0 0.0
      %1857 = vmatprep.mubr.f32.mxu0 0.0
      %1858 = vmatmul.mubr.f32.gmra.mrb[0].mxu0 %v1054
      %v1859 = vpop.f32.mrb[0].mxu0
      %v1860 = vadd.f32 %v1791, %v1859
      %v1861 = vpop.f32.mrb[0].mxu0
      %1862 = vmatprep.mubr.f32.mxu0 0.0
      %1863 = vmatmul.mubr.f32.gmra.mrb[0].mxu0 %v1057
      %v1864 = vpop.f32.mrb[0].mxu0
      %v1865 = vadd.f32 %v1791, %v1864
      %v1866 = vpop.f32.mrb[0].mxu0
      %1867 = vmatprep.mubr.f32.mxu0 0.0
      %1868 = vmatmul.mubr.f32.gmra.mrb[0].mxu0 %v1060
      %v1869 = vpop.f32.mrb[0].mxu0
      %v1870 = vadd.f32 %v1791, %v1869
      %v1871 = vpop.f32.mrb[0].mxu0
      %1872 = vmatprep.mubr.f32.mxu0 0.0
      %1873 = vmatmul.mubr.f32.gmra.mrb[0].mxu0 %v1063
      %v1874 = vpop.f32.mrb[0].mxu0
      %v1875 = vadd.f32 %v1791, %v1874
      %v1876 = vpop.f32.mrb[0].mxu0
      %1877 = vmatprep.mubr.f32.mxu0 0.0
      %1878 = vmatmul.mubr.f32.gmra.mrb[0].mxu0 %v1066
      %v1879 = vpop.f32.mrb[0].mxu0
      %v1880 = vadd.f32 %v1791, %v1879
      %v1881 = vpop.f32.mrb[0].mxu0
      %1882 = vmatprep.mubr.f32.mxu0 0.0
      %1883 = vmatmul.mubr.f32.gmra.mrb[0].mxu0 %v1069
      %v1884 = vpop.f32.mrb[0].mxu0
      %v1885 = vadd.f32 %v1791, %v1884
      %v1886 = vpop.f32.mrb[0].mxu0
      %1887 = vmatprep.mubr.f32.mxu0 0.0
      %1888 = vmatmul.mubr.f32.gmra.mrb[0].mxu0 %v1072
      %v1889 = vpop.f32.mrb[0].mxu0
      %v1890 = vadd.f32 %v1791, %v1889
      %v1891 = vpop.f32.mrb[0].mxu0
      %1892 = vmatprep.mubr.f32.mxu0 0.0
      %1893 = vmatmul.mubr.f32.gmra.mrb[0].mxu0 %v1075
      %v1894 = vpop.f32.mrb[0].mxu0
      %v1895 = vadd.f32 %v1791, %v1894
      %v1896 = vpop.f32.mrb[0].mxu0
      %1897 = vdwg.mxu0
      %v1898 = vld [vmem:[%s752] sm:$0xf]
      %v1899 = vld [vmem:[%s752 + $0x4] sm:$0xf]
      %v1900 = vld [vmem:[%s752 + $0x8] sm:$0xf]
      %v1901 = vld [vmem:[%s752 + $0xc] sm:$0xf]
      %v1902 = vld [vmem:[%s752 + $0x10] sm:$0xf]
      %v1903 = vld [vmem:[%s752 + $0x14] sm:$0xf]
      %v1904 = vld [vmem:[%s752 + $0x18] sm:$0xf]
      %v1905 = vld [vmem:[%s752 + $0x1c] sm:$0xf]
      %v1906 = vunpack.c.l.bf16 %v1898
      %v1907 = vunpack.c.l.bf16 %v1899
      %v1908 = vunpack.c.l.bf16 %v1900
      %v1909 = vunpack.c.l.bf16 %v1901
      %v1910 = vunpack.c.l.bf16 %v1902
      %v1911 = vunpack.c.l.bf16 %v1903
      %v1912 = vunpack.c.l.bf16 %v1904
      %v1913 = vunpack.c.l.bf16 %v1905
      %v1914 = vadd.f32 %v1860, %v1906
      %v1915 = vadd.f32 %v1865, %v1907
      %v1916 = vadd.f32 %v1870, %v1908
      %v1917 = vadd.f32 %v1875, %v1909
      %v1918 = vadd.f32 %v1880, %v1910
      %v1919 = vadd.f32 %v1885, %v1911
      %v1920 = vadd.f32 %v1890, %v1912
      %v1921 = vadd.f32 %v1895, %v1913
      %1930 = vrot.lane.b32.xlu0 %v1914, 112
      %v1931 = vpop.permute.xlu0 %1930
      %1932 = vrot.lane.b32.xlu0 %v1915, 112
      %v1933 = vpop.permute.xlu0 %1932
      %1934 = vrot.lane.b32.xlu0 %v1916, 112
      %v1935 = vpop.permute.xlu0 %1934
      %1936 = vrot.lane.b32.xlu0 %v1917, 112
      %v1937 = vpop.permute.xlu0 %1936
      %1938 = vrot.lane.b32.xlu0 %v1918, 112
      %v1939 = vpop.permute.xlu0 %1938
      %1940 = vrot.lane.b32.xlu0 %v1919, 112
      %v1941 = vpop.permute.xlu0 %1940
      %1942 = vrot.lane.b32.xlu0 %v1920, 112
      %v1943 = vpop.permute.xlu0 %1942
      %1944 = vrot.lane.b32.xlu0 %v1921, 112
      %v1945 = vpop.permute.xlu0 %1944
      %1954 = vrot.lane.b32.xlu0 %v1914, 96
      %v1955 = vpop.permute.xlu0 %1954
      %1956 = vrot.lane.b32.xlu0 %v1915, 96
      %v1957 = vpop.permute.xlu0 %1956
      %1958 = vrot.lane.b32.xlu0 %v1916, 96
      %v1959 = vpop.permute.xlu0 %1958
      %1960 = vrot.lane.b32.xlu0 %v1917, 96
      %v1961 = vpop.permute.xlu0 %1960
      %1962 = vrot.lane.b32.xlu0 %v1918, 96
      %v1963 = vpop.permute.xlu0 %1962
      %1964 = vrot.lane.b32.xlu0 %v1919, 96
      %v1965 = vpop.permute.xlu0 %1964
      %1966 = vrot.lane.b32.xlu0 %v1920, 96
      %v1967 = vpop.permute.xlu0 %1966
      %1968 = vrot.lane.b32.xlu0 %v1921, 96
      %v1969 = vpop.permute.xlu0 %1968
      %1978 = vrot.lane.b32.xlu0 %v1914, 80
      %v1979 = vpop.permute.xlu0 %1978
      %1980 = vrot.lane.b32.xlu0 %v1915, 80
      %v1981 = vpop.permute.xlu0 %1980
      %1982 = vrot.lane.b32.xlu0 %v1916, 80
      %v1983 = vpop.permute.xlu0 %1982
      %1984 = vrot.lane.b32.xlu0 %v1917, 80
      %v1985 = vpop.permute.xlu0 %1984
      %1986 = vrot.lane.b32.xlu0 %v1918, 80
      %v1987 = vpop.permute.xlu0 %1986
      %1988 = vrot.lane.b32.xlu0 %v1919, 80
      %v1989 = vpop.permute.xlu0 %1988
      %1990 = vrot.lane.b32.xlu0 %v1920, 80
      %v1991 = vpop.permute.xlu0 %1990
      %1992 = vrot.lane.b32.xlu0 %v1921, 80
      %v1993 = vpop.permute.xlu0 %1992
      %v2002 = vcombine.low %v1914, %v1955
      %v2003 = vcombine.high %v1914, %v1955
      %v2005 = vunpack.c.l.s4 1983009808
      %v2006 = vunpack.c.0.s8 %v2005
      %v2007 = vlaneseq
      %v2008 = vshrl.u32 %v2007, 7
      %v2009 = vsub.s32 %v2006, %v2008
      %v2010 = vrot.slane %v2002, %v2009
      %v2012 = vunpack.c.l.s4 1983009808
      %v2013 = vunpack.c.0.s8 %v2012
      %v2014 = vlaneseq
      %v2015 = vshrl.u32 %v2014, 7
      %v2016 = vsub.s32 %v2013, %v2015
      %v2017 = vrot.slane %v2003, %v2016
      %v2018 = vcombine.low %v1931, %v1979
      %v2019 = vcombine.high %v1931, %v1979
      %v2021 = vunpack.c.l.s4 1983009808
      %v2022 = vunpack.c.0.s8 %v2021
      %v2023 = vlaneseq
      %v2024 = vshrl.u32 %v2023, 7
      %v2025 = vsub.s32 %v2022, %v2024
      %v2026 = vrot.slane %v2018, %v2025
      %v2028 = vunpack.c.l.s4 1983009808
      %v2029 = vunpack.c.0.s8 %v2028
      %v2030 = vlaneseq
      %v2031 = vshrl.u32 %v2030, 7
      %v2032 = vsub.s32 %v2029, %v2031
      %v2033 = vrot.slane %v2019, %v2032
      %v2034 = vcombine.low %v2010, %v2026
      %v2035 = vcombine.high %v2010, %v2026
      %v2037 = vunpack.c.l.s4 1934713408
      %v2038 = vunpack.c.0.s8 %v2037
      %v2039 = vlaneseq
      %v2040 = vshrl.u32 %v2039, 7
      %v2041 = vsub.s32 %v2038, %v2040
      %v2042 = vrot.slane %v2034, %v2041
      %v2044 = vunpack.c.l.s4 1934713408
      %v2045 = vunpack.c.0.s8 %v2044
      %v2046 = vlaneseq
      %v2047 = vshrl.u32 %v2046, 7
      %v2048 = vsub.s32 %v2045, %v2047
      %v2049 = vrot.slane %v2035, %v2048
      %v2050 = vcombine.low %v2017, %v2033
      %v2051 = vcombine.high %v2017, %v2033
      %v2053 = vunpack.c.l.s4 1934713408
      %v2054 = vunpack.c.0.s8 %v2053
      %v2055 = vlaneseq
      %v2056 = vshrl.u32 %v2055, 7
      %v2057 = vsub.s32 %v2054, %v2056
      %v2058 = vrot.slane %v2050, %v2057
      %v2060 = vunpack.c.l.s4 1934713408
      %v2061 = vunpack.c.0.s8 %v2060
      %v2062 = vlaneseq
      %v2063 = vshrl.u32 %v2062, 7
      %v2064 = vsub.s32 %v2061, %v2063
      %v2065 = vrot.slane %v2051, %v2064
      %v2066 = vcombine.high %v2042, 0.0
      %v2067 = vcombine.high %v2049, 0.0
      %v2068 = vcombine.high %v2058, 0.0
      %v2069 = vcombine.high %v2065, 0.0
      %v2070 = vcombine.low %v1915, %v1957
      %v2071 = vcombine.high %v1915, %v1957
      %v2073 = vunpack.c.l.s4 1983009808
      %v2074 = vunpack.c.0.s8 %v2073
      %v2075 = vlaneseq
      %v2076 = vshrl.u32 %v2075, 7
      %v2077 = vsub.s32 %v2074, %v2076
      %v2078 = vrot.slane %v2070, %v2077
      %v2080 = vunpack.c.l.s4 1983009808
      %v2081 = vunpack.c.0.s8 %v2080
      %v2082 = vlaneseq
      %v2083 = vshrl.u32 %v2082, 7
      %v2084 = vsub.s32 %v2081, %v2083
      %v2085 = vrot.slane %v2071, %v2084
      %v2086 = vcombine.low %v1933, %v1981
      %v2087 = vcombine.high %v1933, %v1981
      %v2089 = vunpack.c.l.s4 1983009808
      %v2090 = vunpack.c.0.s8 %v2089
      %v2091 = vlaneseq
      %v2092 = vshrl.u32 %v2091, 7
      %v2093 = vsub.s32 %v2090, %v2092
      %v2094 = vrot.slane %v2086, %v2093
      %v2096 = vunpack.c.l.s4 1983009808
      %v2097 = vunpack.c.0.s8 %v2096
      %v2098 = vlaneseq
      %v2099 = vshrl.u32 %v2098, 7
      %v2100 = vsub.s32 %v2097, %v2099
      %v2101 = vrot.slane %v2087, %v2100
      %v2102 = vcombine.low %v2078, %v2094
      %v2103 = vcombine.high %v2078, %v2094
      %v2105 = vunpack.c.l.s4 1934713408
      %v2106 = vunpack.c.0.s8 %v2105
      %v2107 = vlaneseq
      %v2108 = vshrl.u32 %v2107, 7
      %v2109 = vsub.s32 %v2106, %v2108
      %v2110 = vrot.slane %v2102, %v2109
      %v2112 = vunpack.c.l.s4 1934713408
      %v2113 = vunpack.c.0.s8 %v2112
      %v2114 = vlaneseq
      %v2115 = vshrl.u32 %v2114, 7
      %v2116 = vsub.s32 %v2113, %v2115
      %v2117 = vrot.slane %v2103, %v2116
      %v2118 = vcombine.low %v2085, %v2101
      %v2119 = vcombine.high %v2085, %v2101
      %v2121 = vunpack.c.l.s4 1934713408
      %v2122 = vunpack.c.0.s8 %v2121
      %v2123 = vlaneseq
      %v2124 = vshrl.u32 %v2123, 7
      %v2125 = vsub.s32 %v2122, %v2124
      %v2126 = vrot.slane %v2118, %v2125
      %v2128 = vunpack.c.l.s4 1934713408
      %v2129 = vunpack.c.0.s8 %v2128
      %v2130 = vlaneseq
      %v2131 = vshrl.u32 %v2130, 7
      %v2132 = vsub.s32 %v2129, %v2131
      %v2133 = vrot.slane %v2119, %v2132
      %v2134 = vcombine.high %v2110, 0.0
      %v2135 = vcombine.high %v2117, 0.0
      %v2136 = vcombine.high %v2126, 0.0
      %v2137 = vcombine.high %v2133, 0.0
      %v2138 = vcombine.low %v1916, %v1959
      %v2139 = vcombine.high %v1916, %v1959
      %v2141 = vunpack.c.l.s4 1983009808
      %v2142 = vunpack.c.0.s8 %v2141
      %v2143 = vlaneseq
      %v2144 = vshrl.u32 %v2143, 7
      %v2145 = vsub.s32 %v2142, %v2144
      %v2146 = vrot.slane %v2138, %v2145
      %v2148 = vunpack.c.l.s4 1983009808
      %v2149 = vunpack.c.0.s8 %v2148
      %v2150 = vlaneseq
      %v2151 = vshrl.u32 %v2150, 7
      %v2152 = vsub.s32 %v2149, %v2151
      %v2153 = vrot.slane %v2139, %v2152
      %v2154 = vcombine.low %v1935, %v1983
      %v2155 = vcombine.high %v1935, %v1983
      %v2157 = vunpack.c.l.s4 1983009808
      %v2158 = vunpack.c.0.s8 %v2157
      %v2159 = vlaneseq
      %v2160 = vshrl.u32 %v2159, 7
      %v2161 = vsub.s32 %v2158, %v2160
      %v2162 = vrot.slane %v2154, %v2161
      %v2164 = vunpack.c.l.s4 1983009808
      %v2165 = vunpack.c.0.s8 %v2164
      %v2166 = vlaneseq
      %v2167 = vshrl.u32 %v2166, 7
      %v2168 = vsub.s32 %v2165, %v2167
      %v2169 = vrot.slane %v2155, %v2168
      %v2170 = vcombine.low %v2146, %v2162
      %v2171 = vcombine.high %v2146, %v2162
      %v2173 = vunpack.c.l.s4 1934713408
      %v2174 = vunpack.c.0.s8 %v2173
      %v2175 = vlaneseq
      %v2176 = vshrl.u32 %v2175, 7
      %v2177 = vsub.s32 %v2174, %v2176
      %v2178 = vrot.slane %v2170, %v2177
      %v2180 = vunpack.c.l.s4 1934713408
      %v2181 = vunpack.c.0.s8 %v2180
      %v2182 = vlaneseq
      %v2183 = vshrl.u32 %v2182, 7
      %v2184 = vsub.s32 %v2181, %v2183
      %v2185 = vrot.slane %v2171, %v2184
      %v2186 = vcombine.low %v2153, %v2169
      %v2187 = vcombine.high %v2153, %v2169
      %v2189 = vunpack.c.l.s4 1934713408
      %v2190 = vunpack.c.0.s8 %v2189
      %v2191 = vlaneseq
      %v2192 = vshrl.u32 %v2191, 7
      %v2193 = vsub.s32 %v2190, %v2192
      %v2194 = vrot.slane %v2186, %v2193
      %v2196 = vunpack.c.l.s4 1934713408
      %v2197 = vunpack.c.0.s8 %v2196
      %v2198 = vlaneseq
      %v2199 = vshrl.u32 %v2198, 7
      %v2200 = vsub.s32 %v2197, %v2199
      %v2201 = vrot.slane %v2187, %v2200
      %v2202 = vcombine.high %v2178, 0.0
      %v2203 = vcombine.high %v2185, 0.0
      %v2204 = vcombine.high %v2194, 0.0
      %v2205 = vcombine.high %v2201, 0.0
      %v2206 = vcombine.low %v1917, %v1961
      %v2207 = vcombine.high %v1917, %v1961
      %v2209 = vunpack.c.l.s4 1983009808
      %v2210 = vunpack.c.0.s8 %v2209
      %v2211 = vlaneseq
      %v2212 = vshrl.u32 %v2211, 7
      %v2213 = vsub.s32 %v2210, %v2212
      %v2214 = vrot.slane %v2206, %v2213
      %v2216 = vunpack.c.l.s4 1983009808
      %v2217 = vunpack.c.0.s8 %v2216
      %v2218 = vlaneseq
      %v2219 = vshrl.u32 %v2218, 7
      %v2220 = vsub.s32 %v2217, %v2219
      %v2221 = vrot.slane %v2207, %v2220
      %v2222 = vcombine.low %v1937, %v1985
      %v2223 = vcombine.high %v1937, %v1985
      %v2225 = vunpack.c.l.s4 1983009808
      %v2226 = vunpack.c.0.s8 %v2225
      %v2227 = vlaneseq
      %v2228 = vshrl.u32 %v2227, 7
      %v2229 = vsub.s32 %v2226, %v2228
      %v2230 = vrot.slane %v2222, %v2229
      %v2232 = vunpack.c.l.s4 1983009808
      %v2233 = vunpack.c.0.s8 %v2232
      %v2234 = vlaneseq
      %v2235 = vshrl.u32 %v2234, 7
      %v2236 = vsub.s32 %v2233, %v2235
      %v2237 = vrot.slane %v2223, %v2236
      %v2238 = vcombine.low %v2214, %v2230
      %v2239 = vcombine.high %v2214, %v2230
      %v2241 = vunpack.c.l.s4 1934713408
      %v2242 = vunpack.c.0.s8 %v2241
      %v2243 = vlaneseq
      %v2244 = vshrl.u32 %v2243, 7
      %v2245 = vsub.s32 %v2242, %v2244
      %v2246 = vrot.slane %v2238, %v2245
      %v2248 = vunpack.c.l.s4 1934713408
      %v2249 = vunpack.c.0.s8 %v2248
      %v2250 = vlaneseq
      %v2251 = vshrl.u32 %v2250, 7
      %v2252 = vsub.s32 %v2249, %v2251
      %v2253 = vrot.slane %v2239, %v2252
      %v2254 = vcombine.low %v2221, %v2237
      %v2255 = vcombine.high %v2221, %v2237
      %v2257 = vunpack.c.l.s4 1934713408
      %v2258 = vunpack.c.0.s8 %v2257
      %v2259 = vlaneseq
      %v2260 = vshrl.u32 %v2259, 7
      %v2261 = vsub.s32 %v2258, %v2260
      %v2262 = vrot.slane %v2254, %v2261
      %v2264 = vunpack.c.l.s4 1934713408
      %v2265 = vunpack.c.0.s8 %v2264
      %v2266 = vlaneseq
      %v2267 = vshrl.u32 %v2266, 7
      %v2268 = vsub.s32 %v2265, %v2267
      %v2269 = vrot.slane %v2255, %v2268
      %v2270 = vcombine.high %v2246, 0.0
      %v2271 = vcombine.high %v2253, 0.0
      %v2272 = vcombine.high %v2262, 0.0
      %v2273 = vcombine.high %v2269, 0.0
      %v2274 = vcombine.low %v1918, %v1963
      %v2275 = vcombine.high %v1918, %v1963
      %v2277 = vunpack.c.l.s4 1983009808
      %v2278 = vunpack.c.0.s8 %v2277
      %v2279 = vlaneseq
      %v2280 = vshrl.u32 %v2279, 7
      %v2281 = vsub.s32 %v2278, %v2280
      %v2282 = vrot.slane %v2274, %v2281
      %v2284 = vunpack.c.l.s4 1983009808
      %v2285 = vunpack.c.0.s8 %v2284
      %v2286 = vlaneseq
      %v2287 = vshrl.u32 %v2286, 7
      %v2288 = vsub.s32 %v2285, %v2287
      %v2289 = vrot.slane %v2275, %v2288
      %v2290 = vcombine.low %v1939, %v1987
      %v2291 = vcombine.high %v1939, %v1987
      %v2293 = vunpack.c.l.s4 1983009808
      %v2294 = vunpack.c.0.s8 %v2293
      %v2295 = vlaneseq
      %v2296 = vshrl.u32 %v2295, 7
      %v2297 = vsub.s32 %v2294, %v2296
      %v2298 = vrot.slane %v2290, %v2297
      %v2300 = vunpack.c.l.s4 1983009808
      %v2301 = vunpack.c.0.s8 %v2300
      %v2302 = vlaneseq
      %v2303 = vshrl.u32 %v2302, 7
      %v2304 = vsub.s32 %v2301, %v2303
      %v2305 = vrot.slane %v2291, %v2304
      %v2306 = vcombine.low %v2282, %v2298
      %v2307 = vcombine.high %v2282, %v2298
      %v2309 = vunpack.c.l.s4 1934713408
      %v2310 = vunpack.c.0.s8 %v2309
      %v2311 = vlaneseq
      %v2312 = vshrl.u32 %v2311, 7
      %v2313 = vsub.s32 %v2310, %v2312
      %v2314 = vrot.slane %v2306, %v2313
      %v2316 = vunpack.c.l.s4 1934713408
      %v2317 = vunpack.c.0.s8 %v2316
      %v2318 = vlaneseq
      %v2319 = vshrl.u32 %v2318, 7
      %v2320 = vsub.s32 %v2317, %v2319
      %v2321 = vrot.slane %v2307, %v2320
      %v2322 = vcombine.low %v2289, %v2305
      %v2323 = vcombine.high %v2289, %v2305
      %v2325 = vunpack.c.l.s4 1934713408
      %v2326 = vunpack.c.0.s8 %v2325
      %v2327 = vlaneseq
      %v2328 = vshrl.u32 %v2327, 7
      %v2329 = vsub.s32 %v2326, %v2328
      %v2330 = vrot.slane %v2322, %v2329
      %v2332 = vunpack.c.l.s4 1934713408
      %v2333 = vunpack.c.0.s8 %v2332
      %v2334 = vlaneseq
      %v2335 = vshrl.u32 %v2334, 7
      %v2336 = vsub.s32 %v2333, %v2335
      %v2337 = vrot.slane %v2323, %v2336
      %v2338 = vcombine.high %v2314, 0.0
      %v2339 = vcombine.high %v2321, 0.0
      %v2340 = vcombine.high %v2330, 0.0
      %v2341 = vcombine.high %v2337, 0.0
      %v2342 = vcombine.low %v1919, %v1965
      %v2343 = vcombine.high %v1919, %v1965
      %v2345 = vunpack.c.l.s4 1983009808
      %v2346 = vunpack.c.0.s8 %v2345
      %v2347 = vlaneseq
      %v2348 = vshrl.u32 %v2347, 7
      %v2349 = vsub.s32 %v2346, %v2348
      %v2350 = vrot.slane %v2342, %v2349
      %v2352 = vunpack.c.l.s4 1983009808
      %v2353 = vunpack.c.0.s8 %v2352
      %v2354 = vlaneseq
      %v2355 = vshrl.u32 %v2354, 7
      %v2356 = vsub.s32 %v2353, %v2355
      %v2357 = vrot.slane %v2343, %v2356
      %v2358 = vcombine.low %v1941, %v1989
      %v2359 = vcombine.high %v1941, %v1989
      %v2361 = vunpack.c.l.s4 1983009808
      %v2362 = vunpack.c.0.s8 %v2361
      %v2363 = vlaneseq
      %v2364 = vshrl.u32 %v2363, 7
      %v2365 = vsub.s32 %v2362, %v2364
      %v2366 = vrot.slane %v2358, %v2365
      %v2368 = vunpack.c.l.s4 1983009808
      %v2369 = vunpack.c.0.s8 %v2368
      %v2370 = vlaneseq
      %v2371 = vshrl.u32 %v2370, 7
      %v2372 = vsub.s32 %v2369, %v2371
      %v2373 = vrot.slane %v2359, %v2372
      %v2374 = vcombine.low %v2350, %v2366
      %v2375 = vcombine.high %v2350, %v2366
      %v2377 = vunpack.c.l.s4 1934713408
      %v2378 = vunpack.c.0.s8 %v2377
      %v2379 = vlaneseq
      %v2380 = vshrl.u32 %v2379, 7
      %v2381 = vsub.s32 %v2378, %v2380
      %v2382 = vrot.slane %v2374, %v2381
      %v2384 = vunpack.c.l.s4 1934713408
      %v2385 = vunpack.c.0.s8 %v2384
      %v2386 = vlaneseq
      %v2387 = vshrl.u32 %v2386, 7
      %v2388 = vsub.s32 %v2385, %v2387
      %v2389 = vrot.slane %v2375, %v2388
      %v2390 = vcombine.low %v2357, %v2373
      %v2391 = vcombine.high %v2357, %v2373
      %v2393 = vunpack.c.l.s4 1934713408
      %v2394 = vunpack.c.0.s8 %v2393
      %v2395 = vlaneseq
      %v2396 = vshrl.u32 %v2395, 7
      %v2397 = vsub.s32 %v2394, %v2396
      %v2398 = vrot.slane %v2390, %v2397
      %v2400 = vunpack.c.l.s4 1934713408
      %v2401 = vunpack.c.0.s8 %v2400
      %v2402 = vlaneseq
      %v2403 = vshrl.u32 %v2402, 7
      %v2404 = vsub.s32 %v2401, %v2403
      %v2405 = vrot.slane %v2391, %v2404
      %v2406 = vcombine.high %v2382, 0.0
      %v2407 = vcombine.high %v2389, 0.0
      %v2408 = vcombine.high %v2398, 0.0
      %v2409 = vcombine.high %v2405, 0.0
      %v2410 = vcombine.low %v1920, %v1967
      %v2411 = vcombine.high %v1920, %v1967
      %v2413 = vunpack.c.l.s4 1983009808
      %v2414 = vunpack.c.0.s8 %v2413
      %v2415 = vlaneseq
      %v2416 = vshrl.u32 %v2415, 7
      %v2417 = vsub.s32 %v2414, %v2416
      %v2418 = vrot.slane %v2410, %v2417
      %v2420 = vunpack.c.l.s4 1983009808
      %v2421 = vunpack.c.0.s8 %v2420
      %v2422 = vlaneseq
      %v2423 = vshrl.u32 %v2422, 7
      %v2424 = vsub.s32 %v2421, %v2423
      %v2425 = vrot.slane %v2411, %v2424
      %v2426 = vcombine.low %v1943, %v1991
      %v2427 = vcombine.high %v1943, %v1991
      %v2429 = vunpack.c.l.s4 1983009808
      %v2430 = vunpack.c.0.s8 %v2429
      %v2431 = vlaneseq
      %v2432 = vshrl.u32 %v2431, 7
      %v2433 = vsub.s32 %v2430, %v2432
      %v2434 = vrot.slane %v2426, %v2433
      %v2436 = vunpack.c.l.s4 1983009808
      %v2437 = vunpack.c.0.s8 %v2436
      %v2438 = vlaneseq
      %v2439 = vshrl.u32 %v2438, 7
      %v2440 = vsub.s32 %v2437, %v2439
      %v2441 = vrot.slane %v2427, %v2440
      %v2442 = vcombine.low %v2418, %v2434
      %v2443 = vcombine.high %v2418, %v2434
      %v2445 = vunpack.c.l.s4 1934713408
      %v2446 = vunpack.c.0.s8 %v2445
      %v2447 = vlaneseq
      %v2448 = vshrl.u32 %v2447, 7
      %v2449 = vsub.s32 %v2446, %v2448
      %v2450 = vrot.slane %v2442, %v2449
      %v2452 = vunpack.c.l.s4 1934713408
      %v2453 = vunpack.c.0.s8 %v2452
      %v2454 = vlaneseq
      %v2455 = vshrl.u32 %v2454, 7
      %v2456 = vsub.s32 %v2453, %v2455
      %v2457 = vrot.slane %v2443, %v2456
      %v2458 = vcombine.low %v2425, %v2441
      %v2459 = vcombine.high %v2425, %v2441
      %v2461 = vunpack.c.l.s4 1934713408
      %v2462 = vunpack.c.0.s8 %v2461
      %v2463 = vlaneseq
      %v2464 = vshrl.u32 %v2463, 7
      %v2465 = vsub.s32 %v2462, %v2464
      %v2466 = vrot.slane %v2458, %v2465
      %v2468 = vunpack.c.l.s4 1934713408
      %v2469 = vunpack.c.0.s8 %v2468
      %v2470 = vlaneseq
      %v2471 = vshrl.u32 %v2470, 7
      %v2472 = vsub.s32 %v2469, %v2471
      %v2473 = vrot.slane %v2459, %v2472
      %v2474 = vcombine.high %v2450, 0.0
      %v2475 = vcombine.high %v2457, 0.0
      %v2476 = vcombine.high %v2466, 0.0
      %v2477 = vcombine.high %v2473, 0.0
      %v2478 = vcombine.low %v1921, %v1969
      %v2479 = vcombine.high %v1921, %v1969
      %v2481 = vunpack.c.l.s4 1983009808
      %v2482 = vunpack.c.0.s8 %v2481
      %v2483 = vlaneseq
      %v2484 = vshrl.u32 %v2483, 7
      %v2485 = vsub.s32 %v2482, %v2484
      %v2486 = vrot.slane %v2478, %v2485
      %v2488 = vunpack.c.l.s4 1983009808
      %v2489 = vunpack.c.0.s8 %v2488
      %v2490 = vlaneseq
      %v2491 = vshrl.u32 %v2490, 7
      %v2492 = vsub.s32 %v2489, %v2491
      %v2493 = vrot.slane %v2479, %v2492
      %v2494 = vcombine.low %v1945, %v1993
      %v2495 = vcombine.high %v1945, %v1993
      %v2497 = vunpack.c.l.s4 1983009808
      %v2498 = vunpack.c.0.s8 %v2497
      %v2499 = vlaneseq
      %v2500 = vshrl.u32 %v2499, 7
      %v2501 = vsub.s32 %v2498, %v2500
      %v2502 = vrot.slane %v2494, %v2501
      %v2504 = vunpack.c.l.s4 1983009808
      %v2505 = vunpack.c.0.s8 %v2504
      %v2506 = vlaneseq
      %v2507 = vshrl.u32 %v2506, 7
      %v2508 = vsub.s32 %v2505, %v2507
      %v2509 = vrot.slane %v2495, %v2508
      %v2510 = vcombine.low %v2486, %v2502
      %v2511 = vcombine.high %v2486, %v2502
      %v2513 = vunpack.c.l.s4 1934713408
      %v2514 = vunpack.c.0.s8 %v2513
      %v2515 = vlaneseq
      %v2516 = vshrl.u32 %v2515, 7
      %v2517 = vsub.s32 %v2514, %v2516
      %v2518 = vrot.slane %v2510, %v2517
      %v2520 = vunpack.c.l.s4 1934713408
      %v2521 = vunpack.c.0.s8 %v2520
      %v2522 = vlaneseq
      %v2523 = vshrl.u32 %v2522, 7
      %v2524 = vsub.s32 %v2521, %v2523
      %v2525 = vrot.slane %v2511, %v2524
      %v2526 = vcombine.low %v2493, %v2509
      %v2527 = vcombine.high %v2493, %v2509
      %v2529 = vunpack.c.l.s4 1934713408
      %v2530 = vunpack.c.0.s8 %v2529
      %v2531 = vlaneseq
      %v2532 = vshrl.u32 %v2531, 7
      %v2533 = vsub.s32 %v2530, %v2532
      %v2534 = vrot.slane %v2526, %v2533
      %v2536 = vunpack.c.l.s4 1934713408
      %v2537 = vunpack.c.0.s8 %v2536
      %v2538 = vlaneseq
      %v2539 = vshrl.u32 %v2538, 7
      %v2540 = vsub.s32 %v2537, %v2539
      %v2541 = vrot.slane %v2527, %v2540
      %v2542 = vcombine.high %v2518, 0.0
      %v2543 = vcombine.high %v2525, 0.0
      %v2544 = vcombine.high %v2534, 0.0
      %v2545 = vcombine.high %v2541, 0.0
      %v2546 = vrcp.pop %v1774
      %v2547 = vmul.f32 1.0, %v2546
      %v2548 = vrcp.pop %v1775
      %v2549 = vmul.f32 1.0, %v2548
      %v2550 = vrcp.pop %v1776
      %v2551 = vmul.f32 1.0, %v2550
      %v2552 = vrcp.pop %v1777
      %v2553 = vmul.f32 1.0, %v2552
      %v2554 = vrcp.pop %v1778
      %v2555 = vmul.f32 1.0, %v2554
      %v2556 = vrcp.pop %v1779
      %v2557 = vmul.f32 1.0, %v2556
      %v2558 = vrcp.pop %v1780
      %v2559 = vmul.f32 1.0, %v2558
      %v2560 = vrcp.pop %v1781
      %v2561 = vmul.f32 1.0, %v2560
      %v2562 = vlaneseq
      %v2563 = vshrl.u32 %v2562, 7
      %v2564 = vsub.s32 0, %v2563
      %v2565 = vrot.slane %v2547, %v2564
      %2567 = vbcast.lane.b32.xlu0 %v2565, 256
      %v2568 = vpop.permute.xlu0 %2567
      %v2569 = vlaneseq
      %v2570 = vshrl.u32 %v2569, 7
      %v2571 = vsub.s32 1, %v2570
      %v2572 = vrot.slane %v2547, %v2571
      %2574 = vbcast.lane.b32.xlu0 %v2572, 256
      %v2575 = vpop.permute.xlu0 %2574
      %v2576 = vlaneseq
      %v2577 = vshrl.u32 %v2576, 7
      %v2578 = vsub.s32 2, %v2577
      %v2579 = vrot.slane %v2547, %v2578
      %2581 = vbcast.lane.b32.xlu0 %v2579, 256
      %v2582 = vpop.permute.xlu0 %2581
      %v2583 = vlaneseq
      %v2584 = vshrl.u32 %v2583, 7
      %v2585 = vsub.s32 3, %v2584
      %v2586 = vrot.slane %v2547, %v2585
      %2588 = vbcast.lane.b32.xlu0 %v2586, 256
      %v2589 = vpop.permute.xlu0 %2588
      %v2590 = vlaneseq
      %v2591 = vshrl.u32 %v2590, 7
      %v2592 = vsub.s32 4, %v2591
      %v2593 = vrot.slane %v2547, %v2592
      %2595 = vbcast.lane.b32.xlu0 %v2593, 256
      %v2596 = vpop.permute.xlu0 %2595
      %v2597 = vlaneseq
      %v2598 = vshrl.u32 %v2597, 7
      %v2599 = vsub.s32 5, %v2598
      %v2600 = vrot.slane %v2547, %v2599
      %2602 = vbcast.lane.b32.xlu0 %v2600, 256
      %v2603 = vpop.permute.xlu0 %2602
      %v2604 = vlaneseq
      %v2605 = vshrl.u32 %v2604, 7
      %v2606 = vsub.s32 6, %v2605
      %v2607 = vrot.slane %v2547, %v2606
      %2609 = vbcast.lane.b32.xlu0 %v2607, 256
      %v2610 = vpop.permute.xlu0 %2609
      %v2611 = vlaneseq
      %v2612 = vshrl.u32 %v2611, 7
      %v2613 = vsub.s32 7, %v2612
      %v2614 = vrot.slane %v2547, %v2613
      %2616 = vbcast.lane.b32.xlu0 %v2614, 256
      %v2617 = vpop.permute.xlu0 %2616
      %v2618 = vlaneseq
      %v2619 = vshrl.u32 %v2618, 7
      %v2620 = vsub.s32 0, %v2619
      %v2621 = vrot.slane %v2549, %v2620
      %2623 = vbcast.lane.b32.xlu0 %v2621, 256
      %v2624 = vpop.permute.xlu0 %2623
      %v2625 = vlaneseq
      %v2626 = vshrl.u32 %v2625, 7
      %v2627 = vsub.s32 1, %v2626
      %v2628 = vrot.slane %v2549, %v2627
      %2630 = vbcast.lane.b32.xlu0 %v2628, 256
      %v2631 = vpop.permute.xlu0 %2630
      %v2632 = vlaneseq
      %v2633 = vshrl.u32 %v2632, 7
      %v2634 = vsub.s32 2, %v2633
      %v2635 = vrot.slane %v2549, %v2634
      %2637 = vbcast.lane.b32.xlu0 %v2635, 256
      %v2638 = vpop.permute.xlu0 %2637
      %v2639 = vlaneseq
      %v2640 = vshrl.u32 %v2639, 7
      %v2641 = vsub.s32 3, %v2640
      %v2642 = vrot.slane %v2549, %v2641
      %2644 = vbcast.lane.b32.xlu0 %v2642, 256
      %v2645 = vpop.permute.xlu0 %2644
      %v2646 = vlaneseq
      %v2647 = vshrl.u32 %v2646, 7
      %v2648 = vsub.s32 4, %v2647
      %v2649 = vrot.slane %v2549, %v2648
      %2651 = vbcast.lane.b32.xlu0 %v2649, 256
      %v2652 = vpop.permute.xlu0 %2651
      %v2653 = vlaneseq
      %v2654 = vshrl.u32 %v2653, 7
      %v2655 = vsub.s32 5, %v2654
      %v2656 = vrot.slane %v2549, %v2655
      %2658 = vbcast.lane.b32.xlu0 %v2656, 256
      %v2659 = vpop.permute.xlu0 %2658
      %v2660 = vlaneseq
      %v2661 = vshrl.u32 %v2660, 7
      %v2662 = vsub.s32 6, %v2661
      %v2663 = vrot.slane %v2549, %v2662
      %2665 = vbcast.lane.b32.xlu0 %v2663, 256
      %v2666 = vpop.permute.xlu0 %2665
      %v2667 = vlaneseq
      %v2668 = vshrl.u32 %v2667, 7
      %v2669 = vsub.s32 7, %v2668
      %v2670 = vrot.slane %v2549, %v2669
      %2672 = vbcast.lane.b32.xlu0 %v2670, 256
      %v2673 = vpop.permute.xlu0 %2672
      %v2674 = vlaneseq
      %v2675 = vshrl.u32 %v2674, 7
      %v2676 = vsub.s32 0, %v2675
      %v2677 = vrot.slane %v2551, %v2676
      %2679 = vbcast.lane.b32.xlu0 %v2677, 256
      %v2680 = vpop.permute.xlu0 %2679
      %v2681 = vlaneseq
      %v2682 = vshrl.u32 %v2681, 7
      %v2683 = vsub.s32 1, %v2682
      %v2684 = vrot.slane %v2551, %v2683
      %2686 = vbcast.lane.b32.xlu0 %v2684, 256
      %v2687 = vpop.permute.xlu0 %2686
      %v2688 = vlaneseq
      %v2689 = vshrl.u32 %v2688, 7
      %v2690 = vsub.s32 2, %v2689
      %v2691 = vrot.slane %v2551, %v2690
      %2693 = vbcast.lane.b32.xlu0 %v2691, 256
      %v2694 = vpop.permute.xlu0 %2693
      %v2695 = vlaneseq
      %v2696 = vshrl.u32 %v2695, 7
      %v2697 = vsub.s32 3, %v2696
      %v2698 = vrot.slane %v2551, %v2697
      %2700 = vbcast.lane.b32.xlu0 %v2698, 256
      %v2701 = vpop.permute.xlu0 %2700
      %v2702 = vlaneseq
      %v2703 = vshrl.u32 %v2702, 7
      %v2704 = vsub.s32 4, %v2703
      %v2705 = vrot.slane %v2551, %v2704
      %2707 = vbcast.lane.b32.xlu0 %v2705, 256
      %v2708 = vpop.permute.xlu0 %2707
      %v2709 = vlaneseq
      %v2710 = vshrl.u32 %v2709, 7
      %v2711 = vsub.s32 5, %v2710
      %v2712 = vrot.slane %v2551, %v2711
      %2714 = vbcast.lane.b32.xlu0 %v2712, 256
      %v2715 = vpop.permute.xlu0 %2714
      %v2716 = vlaneseq
      %v2717 = vshrl.u32 %v2716, 7
      %v2718 = vsub.s32 6, %v2717
      %v2719 = vrot.slane %v2551, %v2718
      %2721 = vbcast.lane.b32.xlu0 %v2719, 256
      %v2722 = vpop.permute.xlu0 %2721
      %v2723 = vlaneseq
      %v2724 = vshrl.u32 %v2723, 7
      %v2725 = vsub.s32 7, %v2724
      %v2726 = vrot.slane %v2551, %v2725
      %2728 = vbcast.lane.b32.xlu0 %v2726, 256
      %v2729 = vpop.permute.xlu0 %2728
      %v2730 = vlaneseq
      %v2731 = vshrl.u32 %v2730, 7
      %v2732 = vsub.s32 0, %v2731
      %v2733 = vrot.slane %v2553, %v2732
      %2735 = vbcast.lane.b32.xlu0 %v2733, 256
      %v2736 = vpop.permute.xlu0 %2735
      %v2737 = vlaneseq
      %v2738 = vshrl.u32 %v2737, 7
      %v2739 = vsub.s32 1, %v2738
      %v2740 = vrot.slane %v2553, %v2739
      %2742 = vbcast.lane.b32.xlu0 %v2740, 256
      %v2743 = vpop.permute.xlu0 %2742
      %v2744 = vlaneseq
      %v2745 = vshrl.u32 %v2744, 7
      %v2746 = vsub.s32 2, %v2745
      %v2747 = vrot.slane %v2553, %v2746
      %2749 = vbcast.lane.b32.xlu0 %v2747, 256
      %v2750 = vpop.permute.xlu0 %2749
      %v2751 = vlaneseq
      %v2752 = vshrl.u32 %v2751, 7
      %v2753 = vsub.s32 3, %v2752
      %v2754 = vrot.slane %v2553, %v2753
      %2756 = vbcast.lane.b32.xlu0 %v2754, 256
      %v2757 = vpop.permute.xlu0 %2756
      %v2758 = vlaneseq
      %v2759 = vshrl.u32 %v2758, 7
      %v2760 = vsub.s32 4, %v2759
      %v2761 = vrot.slane %v2553, %v2760
      %2763 = vbcast.lane.b32.xlu0 %v2761, 256
      %v2764 = vpop.permute.xlu0 %2763
      %v2765 = vlaneseq
      %v2766 = vshrl.u32 %v2765, 7
      %v2767 = vsub.s32 5, %v2766
      %v2768 = vrot.slane %v2553, %v2767
      %2770 = vbcast.lane.b32.xlu0 %v2768, 256
      %v2771 = vpop.permute.xlu0 %2770
      %v2772 = vlaneseq
      %v2773 = vshrl.u32 %v2772, 7
      %v2774 = vsub.s32 6, %v2773
      %v2775 = vrot.slane %v2553, %v2774
      %2777 = vbcast.lane.b32.xlu0 %v2775, 256
      %v2778 = vpop.permute.xlu0 %2777
      %v2779 = vlaneseq
      %v2780 = vshrl.u32 %v2779, 7
      %v2781 = vsub.s32 7, %v2780
      %v2782 = vrot.slane %v2553, %v2781
      %2784 = vbcast.lane.b32.xlu0 %v2782, 256
      %v2785 = vpop.permute.xlu0 %2784
      %v2786 = vlaneseq
      %v2787 = vshrl.u32 %v2786, 7
      %v2788 = vsub.s32 0, %v2787
      %v2789 = vrot.slane %v2555, %v2788
      %2791 = vbcast.lane.b32.xlu0 %v2789, 256
      %v2792 = vpop.permute.xlu0 %2791
      %v2793 = vlaneseq
      %v2794 = vshrl.u32 %v2793, 7
      %v2795 = vsub.s32 1, %v2794
      %v2796 = vrot.slane %v2555, %v2795
      %2798 = vbcast.lane.b32.xlu0 %v2796, 256
      %v2799 = vpop.permute.xlu0 %2798
      %v2800 = vlaneseq
      %v2801 = vshrl.u32 %v2800, 7
      %v2802 = vsub.s32 2, %v2801
      %v2803 = vrot.slane %v2555, %v2802
      %2805 = vbcast.lane.b32.xlu0 %v2803, 256
      %v2806 = vpop.permute.xlu0 %2805
      %v2807 = vlaneseq
      %v2808 = vshrl.u32 %v2807, 7
      %v2809 = vsub.s32 3, %v2808
      %v2810 = vrot.slane %v2555, %v2809
      %2812 = vbcast.lane.b32.xlu0 %v2810, 256
      %v2813 = vpop.permute.xlu0 %2812
      %v2814 = vlaneseq
      %v2815 = vshrl.u32 %v2814, 7
      %v2816 = vsub.s32 4, %v2815
      %v2817 = vrot.slane %v2555, %v2816
      %2819 = vbcast.lane.b32.xlu0 %v2817, 256
      %v2820 = vpop.permute.xlu0 %2819
      %v2821 = vlaneseq
      %v2822 = vshrl.u32 %v2821, 7
      %v2823 = vsub.s32 5, %v2822
      %v2824 = vrot.slane %v2555, %v2823
      %2826 = vbcast.lane.b32.xlu0 %v2824, 256
      %v2827 = vpop.permute.xlu0 %2826
      %v2828 = vlaneseq
      %v2829 = vshrl.u32 %v2828, 7
      %v2830 = vsub.s32 6, %v2829
      %v2831 = vrot.slane %v2555, %v2830
      %2833 = vbcast.lane.b32.xlu0 %v2831, 256
      %v2834 = vpop.permute.xlu0 %2833
      %v2835 = vlaneseq
      %v2836 = vshrl.u32 %v2835, 7
      %v2837 = vsub.s32 7, %v2836
      %v2838 = vrot.slane %v2555, %v2837
      %2840 = vbcast.lane.b32.xlu0 %v2838, 256
      %v2841 = vpop.permute.xlu0 %2840
      %v2842 = vlaneseq
      %v2843 = vshrl.u32 %v2842, 7
      %v2844 = vsub.s32 0, %v2843
      %v2845 = vrot.slane %v2557, %v2844
      %2847 = vbcast.lane.b32.xlu0 %v2845, 256
      %v2848 = vpop.permute.xlu0 %2847
      %v2849 = vlaneseq
      %v2850 = vshrl.u32 %v2849, 7
      %v2851 = vsub.s32 1, %v2850
      %v2852 = vrot.slane %v2557, %v2851
      %2854 = vbcast.lane.b32.xlu0 %v2852, 256
      %v2855 = vpop.permute.xlu0 %2854
      %v2856 = vlaneseq
      %v2857 = vshrl.u32 %v2856, 7
      %v2858 = vsub.s32 2, %v2857
      %v2859 = vrot.slane %v2557, %v2858
      %2861 = vbcast.lane.b32.xlu0 %v2859, 256
      %v2862 = vpop.permute.xlu0 %2861
      %v2863 = vlaneseq
      %v2864 = vshrl.u32 %v2863, 7
      %v2865 = vsub.s32 3, %v2864
      %v2866 = vrot.slane %v2557, %v2865
      %2868 = vbcast.lane.b32.xlu0 %v2866, 256
      %v2869 = vpop.permute.xlu0 %2868
      %v2870 = vlaneseq
      %v2871 = vshrl.u32 %v2870, 7
      %v2872 = vsub.s32 4, %v2871
      %v2873 = vrot.slane %v2557, %v2872
      %2875 = vbcast.lane.b32.xlu0 %v2873, 256
      %v2876 = vpop.permute.xlu0 %2875
      %v2877 = vlaneseq
      %v2878 = vshrl.u32 %v2877, 7
      %v2879 = vsub.s32 5, %v2878
      %v2880 = vrot.slane %v2557, %v2879
      %2882 = vbcast.lane.b32.xlu0 %v2880, 256
      %v2883 = vpop.permute.xlu0 %2882
      %v2884 = vlaneseq
      %v2885 = vshrl.u32 %v2884, 7
      %v2886 = vsub.s32 6, %v2885
      %v2887 = vrot.slane %v2557, %v2886
      %2889 = vbcast.lane.b32.xlu0 %v2887, 256
      %v2890 = vpop.permute.xlu0 %2889
      %v2891 = vlaneseq
      %v2892 = vshrl.u32 %v2891, 7
      %v2893 = vsub.s32 7, %v2892
      %v2894 = vrot.slane %v2557, %v2893
      %2896 = vbcast.lane.b32.xlu0 %v2894, 256
      %v2897 = vpop.permute.xlu0 %2896
      %v2898 = vlaneseq
      %v2899 = vshrl.u32 %v2898, 7
      %v2900 = vsub.s32 0, %v2899
      %v2901 = vrot.slane %v2559, %v2900
      %2903 = vbcast.lane.b32.xlu0 %v2901, 256
      %v2904 = vpop.permute.xlu0 %2903
      %v2905 = vlaneseq
      %v2906 = vshrl.u32 %v2905, 7
      %v2907 = vsub.s32 1, %v2906
      %v2908 = vrot.slane %v2559, %v2907
      %2910 = vbcast.lane.b32.xlu0 %v2908, 256
      %v2911 = vpop.permute.xlu0 %2910
      %v2912 = vlaneseq
      %v2913 = vshrl.u32 %v2912, 7
      %v2914 = vsub.s32 2, %v2913
      %v2915 = vrot.slane %v2559, %v2914
      %2917 = vbcast.lane.b32.xlu0 %v2915, 256
      %v2918 = vpop.permute.xlu0 %2917
      %v2919 = vlaneseq
      %v2920 = vshrl.u32 %v2919, 7
      %v2921 = vsub.s32 3, %v2920
      %v2922 = vrot.slane %v2559, %v2921
      %2924 = vbcast.lane.b32.xlu0 %v2922, 256
      %v2925 = vpop.permute.xlu0 %2924
      %v2926 = vlaneseq
      %v2927 = vshrl.u32 %v2926, 7
      %v2928 = vsub.s32 4, %v2927
      %v2929 = vrot.slane %v2559, %v2928
      %2931 = vbcast.lane.b32.xlu0 %v2929, 256
      %v2932 = vpop.permute.xlu0 %2931
      %v2933 = vlaneseq
      %v2934 = vshrl.u32 %v2933, 7
      %v2935 = vsub.s32 5, %v2934
      %v2936 = vrot.slane %v2559, %v2935
      %2938 = vbcast.lane.b32.xlu0 %v2936, 256
      %v2939 = vpop.permute.xlu0 %2938
      %v2940 = vlaneseq
      %v2941 = vshrl.u32 %v2940, 7
      %v2942 = vsub.s32 6, %v2941
      %v2943 = vrot.slane %v2559, %v2942
      %2945 = vbcast.lane.b32.xlu0 %v2943, 256
      %v2946 = vpop.permute.xlu0 %2945
      %v2947 = vlaneseq
      %v2948 = vshrl.u32 %v2947, 7
      %v2949 = vsub.s32 7, %v2948
      %v2950 = vrot.slane %v2559, %v2949
      %2952 = vbcast.lane.b32.xlu0 %v2950, 256
      %v2953 = vpop.permute.xlu0 %2952
      %v2954 = vlaneseq
      %v2955 = vshrl.u32 %v2954, 7
      %v2956 = vsub.s32 0, %v2955
      %v2957 = vrot.slane %v2561, %v2956
      %2959 = vbcast.lane.b32.xlu0 %v2957, 256
      %v2960 = vpop.permute.xlu0 %2959
      %v2961 = vlaneseq
      %v2962 = vshrl.u32 %v2961, 7
      %v2963 = vsub.s32 1, %v2962
      %v2964 = vrot.slane %v2561, %v2963
      %2966 = vbcast.lane.b32.xlu0 %v2964, 256
      %v2967 = vpop.permute.xlu0 %2966
      %v2968 = vlaneseq
      %v2969 = vshrl.u32 %v2968, 7
      %v2970 = vsub.s32 2, %v2969
      %v2971 = vrot.slane %v2561, %v2970
      %2973 = vbcast.lane.b32.xlu0 %v2971, 256
      %v2974 = vpop.permute.xlu0 %2973
      %v2975 = vlaneseq
      %v2976 = vshrl.u32 %v2975, 7
      %v2977 = vsub.s32 3, %v2976
      %v2978 = vrot.slane %v2561, %v2977
      %2980 = vbcast.lane.b32.xlu0 %v2978, 256
      %v2981 = vpop.permute.xlu0 %2980
      %v2982 = vlaneseq
      %v2983 = vshrl.u32 %v2982, 7
      %v2984 = vsub.s32 4, %v2983
      %v2985 = vrot.slane %v2561, %v2984
      %2987 = vbcast.lane.b32.xlu0 %v2985, 256
      %v2988 = vpop.permute.xlu0 %2987
      %v2989 = vlaneseq
      %v2990 = vshrl.u32 %v2989, 7
      %v2991 = vsub.s32 5, %v2990
      %v2992 = vrot.slane %v2561, %v2991
      %2994 = vbcast.lane.b32.xlu0 %v2992, 256
      %v2995 = vpop.permute.xlu0 %2994
      %v2996 = vlaneseq
      %v2997 = vshrl.u32 %v2996, 7
      %v2998 = vsub.s32 6, %v2997
      %v2999 = vrot.slane %v2561, %v2998
      %3001 = vbcast.lane.b32.xlu0 %v2999, 256
      %v3002 = vpop.permute.xlu0 %3001
      %v3003 = vlaneseq
      %v3004 = vshrl.u32 %v3003, 7
      %v3005 = vsub.s32 7, %v3004
      %v3006 = vrot.slane %v2561, %v3005
      %3008 = vbcast.lane.b32.xlu0 %v3006, 256
      %v3009 = vpop.permute.xlu0 %3008
      %v3010 = vmul.f32 %v2042, %v2568
      %v3011 = vmul.f32 %v2066, %v2575
      %v3012 = vmul.f32 %v2049, %v2582
      %v3013 = vmul.f32 %v2067, %v2589
      %v3014 = vmul.f32 %v2058, %v2596
      %v3015 = vmul.f32 %v2068, %v2603
      %v3016 = vmul.f32 %v2065, %v2610
      %v3017 = vmul.f32 %v2069, %v2617
      %v3018 = vmul.f32 %v2110, %v2624
      %v3019 = vmul.f32 %v2134, %v2631
      %v3020 = vmul.f32 %v2117, %v2638
      %v3021 = vmul.f32 %v2135, %v2645
      %v3022 = vmul.f32 %v2126, %v2652
      %v3023 = vmul.f32 %v2136, %v2659
      %v3024 = vmul.f32 %v2133, %v2666
      %v3025 = vmul.f32 %v2137, %v2673
      %v3026 = vmul.f32 %v2178, %v2680
      %v3027 = vmul.f32 %v2202, %v2687
      %v3028 = vmul.f32 %v2185, %v2694
      %v3029 = vmul.f32 %v2203, %v2701
      %v3030 = vmul.f32 %v2194, %v2708
      %v3031 = vmul.f32 %v2204, %v2715
      %v3032 = vmul.f32 %v2201, %v2722
      %v3033 = vmul.f32 %v2205, %v2729
      %v3034 = vmul.f32 %v2246, %v2736
      %v3035 = vmul.f32 %v2270, %v2743
      %v3036 = vmul.f32 %v2253, %v2750
      %v3037 = vmul.f32 %v2271, %v2757
      %v3038 = vmul.f32 %v2262, %v2764
      %v3039 = vmul.f32 %v2272, %v2771
      %v3040 = vmul.f32 %v2269, %v2778
      %v3041 = vmul.f32 %v2273, %v2785
      %v3042 = vmul.f32 %v2314, %v2792
      %v3043 = vmul.f32 %v2338, %v2799
      %v3044 = vmul.f32 %v2321, %v2806
      %v3045 = vmul.f32 %v2339, %v2813
      %v3046 = vmul.f32 %v2330, %v2820
      %v3047 = vmul.f32 %v2340, %v2827
      %v3048 = vmul.f32 %v2337, %v2834
      %v3049 = vmul.f32 %v2341, %v2841
      %v3050 = vmul.f32 %v2382, %v2848
      %v3051 = vmul.f32 %v2406, %v2855
      %v3052 = vmul.f32 %v2389, %v2862
      %v3053 = vmul.f32 %v2407, %v2869
      %v3054 = vmul.f32 %v2398, %v2876
      %v3055 = vmul.f32 %v2408, %v2883
      %v3056 = vmul.f32 %v2405, %v2890
      %v3057 = vmul.f32 %v2409, %v2897
      %v3058 = vmul.f32 %v2450, %v2904
      %v3059 = vmul.f32 %v2474, %v2911
      %v3060 = vmul.f32 %v2457, %v2918
      %v3061 = vmul.f32 %v2475, %v2925
      %v3062 = vmul.f32 %v2466, %v2932
      %v3063 = vmul.f32 %v2476, %v2939
      %v3064 = vmul.f32 %v2473, %v2946
      %v3065 = vmul.f32 %v2477, %v2953
      %v3066 = vmul.f32 %v2518, %v2960
      %v3067 = vmul.f32 %v2542, %v2967
      %v3068 = vmul.f32 %v2525, %v2974
      %v3069 = vmul.f32 %v2543, %v2981
      %v3070 = vmul.f32 %v2534, %v2988
      %v3071 = vmul.f32 %v2544, %v2995
      %v3072 = vmul.f32 %v2541, %v3002
      %v3073 = vmul.f32 %v2545, %v3009
      %vm3074 = vcmask 125952
      %v3075 = vsel %vm3074, %v3010, -inf
      %3076 = vmax.xlane.f32.xlu0 %v3075
      %v3077 = vpop.xlane.xlu0 %3076
      %v3078 = vsel %vm3074, %v3011, -inf
      %3079 = vmax.xlane.f32.xlu0 %v3078
      %v3080 = vpop.xlane.xlu0 %3079
      %v3081 = vsel %vm3074, %v3012, -inf
      %3082 = vmax.xlane.f32.xlu0 %v3081
      %v3083 = vpop.xlane.xlu0 %3082
      %v3084 = vsel %vm3074, %v3013, -inf
      %3085 = vmax.xlane.f32.xlu0 %v3084
      %v3086 = vpop.xlane.xlu0 %3085
      %v3087 = vsel %vm3074, %v3014, -inf
      %3088 = vmax.xlane.f32.xlu0 %v3087
      %v3089 = vpop.xlane.xlu0 %3088
      %v3090 = vsel %vm3074, %v3015, -inf
      %3091 = vmax.xlane.f32.xlu0 %v3090
      %v3092 = vpop.xlane.xlu0 %3091
      %v3093 = vsel %vm3074, %v3016, -inf
      %3094 = vmax.xlane.f32.xlu0 %v3093
      %v3095 = vpop.xlane.xlu0 %3094
      %v3096 = vsel %vm3074, %v3017, -inf
      %3097 = vmax.xlane.f32.xlu0 %v3096
      %v3098 = vpop.xlane.xlu0 %3097
      %v3099 = vsel %vm3074, %v3018, -inf
      %3100 = vmax.xlane.f32.xlu0 %v3099
      %v3101 = vpop.xlane.xlu0 %3100
      %v3102 = vsel %vm3074, %v3019, -inf
      %3103 = vmax.xlane.f32.xlu0 %v3102
      %v3104 = vpop.xlane.xlu0 %3103
      %v3105 = vsel %vm3074, %v3020, -inf
      %3106 = vmax.xlane.f32.xlu0 %v3105
      %v3107 = vpop.xlane.xlu0 %3106
      %v3108 = vsel %vm3074, %v3021, -inf
      %3109 = vmax.xlane.f32.xlu0 %v3108
      %v3110 = vpop.xlane.xlu0 %3109
      %v3111 = vsel %vm3074, %v3022, -inf
      %3112 = vmax.xlane.f32.xlu0 %v3111
      %v3113 = vpop.xlane.xlu0 %3112
      %v3114 = vsel %vm3074, %v3023, -inf
      %3115 = vmax.xlane.f32.xlu0 %v3114
      %v3116 = vpop.xlane.xlu0 %3115
      %v3117 = vsel %vm3074, %v3024, -inf
      %3118 = vmax.xlane.f32.xlu0 %v3117
      %v3119 = vpop.xlane.xlu0 %3118
      %v3120 = vsel %vm3074, %v3025, -inf
      %3121 = vmax.xlane.f32.xlu0 %v3120
      %v3122 = vpop.xlane.xlu0 %3121
      %v3123 = vsel %vm3074, %v3026, -inf
      %3124 = vmax.xlane.f32.xlu0 %v3123
      %v3125 = vpop.xlane.xlu0 %3124
      %v3126 = vsel %vm3074, %v3027, -inf
      %3127 = vmax.xlane.f32.xlu0 %v3126
      %v3128 = vpop.xlane.xlu0 %3127
      %v3129 = vsel %vm3074, %v3028, -inf
      %3130 = vmax.xlane.f32.xlu0 %v3129
      %v3131 = vpop.xlane.xlu0 %3130
      %v3132 = vsel %vm3074, %v3029, -inf
      %3133 = vmax.xlane.f32.xlu0 %v3132
      %v3134 = vpop.xlane.xlu0 %3133
      %v3135 = vsel %vm3074, %v3030, -inf
      %3136 = vmax.xlane.f32.xlu0 %v3135
      %v3137 = vpop.xlane.xlu0 %3136
      %v3138 = vsel %vm3074, %v3031, -inf
      %3139 = vmax.xlane.f32.xlu0 %v3138
      %v3140 = vpop.xlane.xlu0 %3139
      %v3141 = vsel %vm3074, %v3032, -inf
      %3142 = vmax.xlane.f32.xlu0 %v3141
      %v3143 = vpop.xlane.xlu0 %3142
      %v3144 = vsel %vm3074, %v3033, -inf
      %3145 = vmax.xlane.f32.xlu0 %v3144
      %v3146 = vpop.xlane.xlu0 %3145
      %v3147 = vsel %vm3074, %v3034, -inf
      %3148 = vmax.xlane.f32.xlu0 %v3147
      %v3149 = vpop.xlane.xlu0 %3148
      %v3150 = vsel %vm3074, %v3035, -inf
      %3151 = vmax.xlane.f32.xlu0 %v3150
      %v3152 = vpop.xlane.xlu0 %3151
      %v3153 = vsel %vm3074, %v3036, -inf
      %3154 = vmax.xlane.f32.xlu0 %v3153
      %v3155 = vpop.xlane.xlu0 %3154
      %v3156 = vsel %vm3074, %v3037, -inf
      %3157 = vmax.xlane.f32.xlu0 %v3156
      %v3158 = vpop.xlane.xlu0 %3157
      %v3159 = vsel %vm3074, %v3038, -inf
      %3160 = vmax.xlane.f32.xlu0 %v3159
      %v3161 = vpop.xlane.xlu0 %3160
      %v3162 = vsel %vm3074, %v3039, -inf
      %3163 = vmax.xlane.f32.xlu0 %v3162
      %v3164 = vpop.xlane.xlu0 %3163
      %v3165 = vsel %vm3074, %v3040, -inf
      %3166 = vmax.xlane.f32.xlu0 %v3165
      %v3167 = vpop.xlane.xlu0 %3166
      %v3168 = vsel %vm3074, %v3041, -inf
      %3169 = vmax.xlane.f32.xlu0 %v3168
      %v3170 = vpop.xlane.xlu0 %3169
      %v3171 = vsel %vm3074, %v3042, -inf
      %3172 = vmax.xlane.f32.xlu0 %v3171
      %v3173 = vpop.xlane.xlu0 %3172
      %v3174 = vsel %vm3074, %v3043, -inf
      %3175 = vmax.xlane.f32.xlu0 %v3174
      %v3176 = vpop.xlane.xlu0 %3175
      %v3177 = vsel %vm3074, %v3044, -inf
      %3178 = vmax.xlane.f32.xlu0 %v3177
      %v3179 = vpop.xlane.xlu0 %3178
      %v3180 = vsel %vm3074, %v3045, -inf
      %3181 = vmax.xlane.f32.xlu0 %v3180
      %v3182 = vpop.xlane.xlu0 %3181
      %v3183 = vsel %vm3074, %v3046, -inf
      %3184 = vmax.xlane.f32.xlu0 %v3183
      %v3185 = vpop.xlane.xlu0 %3184
      %v3186 = vsel %vm3074, %v3047, -inf
      %3187 = vmax.xlane.f32.xlu0 %v3186
      %v3188 = vpop.xlane.xlu0 %3187
      %v3189 = vsel %vm3074, %v3048, -inf
      %3190 = vmax.xlane.f32.xlu0 %v3189
      %v3191 = vpop.xlane.xlu0 %3190
      %v3192 = vsel %vm3074, %v3049, -inf
      %3193 = vmax.xlane.f32.xlu0 %v3192
      %v3194 = vpop.xlane.xlu0 %3193
      %v3195 = vsel %vm3074, %v3050, -inf
      %3196 = vmax.xlane.f32.xlu0 %v3195
      %v3197 = vpop.xlane.xlu0 %3196
      %v3198 = vsel %vm3074, %v3051, -inf
      %3199 = vmax.xlane.f32.xlu0 %v3198
      %v3200 = vpop.xlane.xlu0 %3199
      %v3201 = vsel %vm3074, %v3052, -inf
      %3202 = vmax.xlane.f32.xlu0 %v3201
      %v3203 = vpop.xlane.xlu0 %3202
      %v3204 = vsel %vm3074, %v3053, -inf
      %3205 = vmax.xlane.f32.xlu0 %v3204
      %v3206 = vpop.xlane.xlu0 %3205
      %v3207 = vsel %vm3074, %v3054, -inf
      %3208 = vmax.xlane.f32.xlu0 %v3207
      %v3209 = vpop.xlane.xlu0 %3208
      %v3210 = vsel %vm3074, %v3055, -inf
      %3211 = vmax.xlane.f32.xlu0 %v3210
      %v3212 = vpop.xlane.xlu0 %3211
      %v3213 = vsel %vm3074, %v3056, -inf
      %3214 = vmax.xlane.f32.xlu0 %v3213
      %v3215 = vpop.xlane.xlu0 %3214
      %v3216 = vsel %vm3074, %v3057, -inf
      %3217 = vmax.xlane.f32.xlu0 %v3216
      %v3218 = vpop.xlane.xlu0 %3217
      %v3219 = vsel %vm3074, %v3058, -inf
      %3220 = vmax.xlane.f32.xlu0 %v3219
      %v3221 = vpop.xlane.xlu0 %3220
      %v3222 = vsel %vm3074, %v3059, -inf
      %3223 = vmax.xlane.f32.xlu0 %v3222
      %v3224 = vpop.xlane.xlu0 %3223
      %v3225 = vsel %vm3074, %v3060, -inf
      %3226 = vmax.xlane.f32.xlu0 %v3225
      %v3227 = vpop.xlane.xlu0 %3226
      %v3228 = vsel %vm3074, %v3061, -inf
      %3229 = vmax.xlane.f32.xlu0 %v3228
      %v3230 = vpop.xlane.xlu0 %3229
      %v3231 = vsel %vm3074, %v3062, -inf
      %3232 = vmax.xlane.f32.xlu0 %v3231
      %v3233 = vpop.xlane.xlu0 %3232
      %v3234 = vsel %vm3074, %v3063, -inf
      %3235 = vmax.xlane.f32.xlu0 %v3234
      %v3236 = vpop.xlane.xlu0 %3235
      %v3237 = vsel %vm3074, %v3064, -inf
      %3238 = vmax.xlane.f32.xlu0 %v3237
      %v3239 = vpop.xlane.xlu0 %3238
      %v3240 = vsel %vm3074, %v3065, -inf
      %3241 = vmax.xlane.f32.xlu0 %v3240
      %v3242 = vpop.xlane.xlu0 %3241
      %v3243 = vsel %vm3074, %v3066, -inf
      %3244 = vmax.xlane.f32.xlu0 %v3243
      %v3245 = vpop.xlane.xlu0 %3244
      %v3246 = vsel %vm3074, %v3067, -inf
      %3247 = vmax.xlane.f32.xlu0 %v3246
      %v3248 = vpop.xlane.xlu0 %3247
      %v3249 = vsel %vm3074, %v3068, -inf
      %3250 = vmax.xlane.f32.xlu0 %v3249
      %v3251 = vpop.xlane.xlu0 %3250
      %v3252 = vsel %vm3074, %v3069, -inf
      %3253 = vmax.xlane.f32.xlu0 %v3252
      %v3254 = vpop.xlane.xlu0 %3253
      %v3255 = vsel %vm3074, %v3070, -inf
      %3256 = vmax.xlane.f32.xlu0 %v3255
      %v3257 = vpop.xlane.xlu0 %3256
      %v3258 = vsel %vm3074, %v3071, -inf
      %3259 = vmax.xlane.f32.xlu0 %v3258
      %v3260 = vpop.xlane.xlu0 %3259
      %v3261 = vsel %vm3074, %v3072, -inf
      %3262 = vmax.xlane.f32.xlu0 %v3261
      %v3263 = vpop.xlane.xlu0 %3262
      %v3264 = vsel %vm3074, %v3073, -inf
      %3265 = vmax.xlane.f32.xlu0 %v3264
      %v3266 = vpop.xlane.xlu0 %3265
      %v3267 = vsub.f32 %v3010, %v3077
      %v3268 = vsub.f32 %v3011, %v3080
      %v3269 = vsub.f32 %v3012, %v3083
      %v3270 = vsub.f32 %v3013, %v3086
      %v3271 = vsub.f32 %v3014, %v3089
      %v3272 = vsub.f32 %v3015, %v3092
      %v3273 = vsub.f32 %v3016, %v3095
      %v3274 = vsub.f32 %v3017, %v3098
      %v3275 = vsub.f32 %v3018, %v3101
      %v3276 = vsub.f32 %v3019, %v3104
      %v3277 = vsub.f32 %v3020, %v3107
      %v3278 = vsub.f32 %v3021, %v3110
      %v3279 = vsub.f32 %v3022, %v3113
      %v3280 = vsub.f32 %v3023, %v3116
      %v3281 = vsub.f32 %v3024, %v3119
      %v3282 = vsub.f32 %v3025, %v3122
      %v3283 = vsub.f32 %v3026, %v3125
      %v3284 = vsub.f32 %v3027, %v3128
      %v3285 = vsub.f32 %v3028, %v3131
      %v3286 = vsub.f32 %v3029, %v3134
      %v3287 = vsub.f32 %v3030, %v3137
      %v3288 = vsub.f32 %v3031, %v3140
      %v3289 = vsub.f32 %v3032, %v3143
      %v3290 = vsub.f32 %v3033, %v3146
      %v3291 = vsub.f32 %v3034, %v3149
      %v3292 = vsub.f32 %v3035, %v3152
      %v3293 = vsub.f32 %v3036, %v3155
      %v3294 = vsub.f32 %v3037, %v3158
      %v3295 = vsub.f32 %v3038, %v3161
      %v3296 = vsub.f32 %v3039, %v3164
      %v3297 = vsub.f32 %v3040, %v3167
      %v3298 = vsub.f32 %v3041, %v3170
      %v3299 = vsub.f32 %v3042, %v3173
      %v3300 = vsub.f32 %v3043, %v3176
      %v3301 = vsub.f32 %v3044, %v3179
      %v3302 = vsub.f32 %v3045, %v3182
      %v3303 = vsub.f32 %v3046, %v3185
      %v3304 = vsub.f32 %v3047, %v3188
      %v3305 = vsub.f32 %v3048, %v3191
      %v3306 = vsub.f32 %v3049, %v3194
      %v3307 = vsub.f32 %v3050, %v3197
      %v3308 = vsub.f32 %v3051, %v3200
      %v3309 = vsub.f32 %v3052, %v3203
      %v3310 = vsub.f32 %v3053, %v3206
      %v3311 = vsub.f32 %v3054, %v3209
      %v3312 = vsub.f32 %v3055, %v3212
      %v3313 = vsub.f32 %v3056, %v3215
      %v3314 = vsub.f32 %v3057, %v3218
      %v3315 = vsub.f32 %v3058, %v3221
      %v3316 = vsub.f32 %v3059, %v3224
      %v3317 = vsub.f32 %v3060, %v3227
      %v3318 = vsub.f32 %v3061, %v3230
      %v3319 = vsub.f32 %v3062, %v3233
      %v3320 = vsub.f32 %v3063, %v3236
      %v3321 = vsub.f32 %v3064, %v3239
      %v3322 = vsub.f32 %v3065, %v3242
      %v3323 = vsub.f32 %v3066, %v3245
      %v3324 = vsub.f32 %v3067, %v3248
      %v3325 = vsub.f32 %v3068, %v3251
      %v3326 = vsub.f32 %v3069, %v3254
      %v3327 = vsub.f32 %v3070, %v3257
      %v3328 = vsub.f32 %v3071, %v3260
      %v3329 = vsub.f32 %v3072, %v3263
      %v3330 = vsub.f32 %v3073, %v3266
      %v3331 = vmul.f32 %v3267, 1.442695
      %v3332 = vpow.pop %v3331
      %v3333 = vmul.f32 %v3268, 1.442695
      %v3334 = vpow.pop %v3333
      %v3335 = vmul.f32 %v3269, 1.442695
      %v3336 = vpow.pop %v3335
      %v3337 = vmul.f32 %v3270, 1.442695
      %v3338 = vpow.pop %v3337
      %v3339 = vmul.f32 %v3271, 1.442695
      %v3340 = vpow.pop %v3339
      %v3341 = vmul.f32 %v3272, 1.442695
      %v3342 = vpow.pop %v3341
      %v3343 = vmul.f32 %v3273, 1.442695
      %v3344 = vpow.pop %v3343
      %v3345 = vmul.f32 %v3274, 1.442695
      %v3346 = vpow.pop %v3345
      %v3347 = vmul.f32 %v3275, 1.442695
      %v3348 = vpow.pop %v3347
      %v3349 = vmul.f32 %v3276, 1.442695
      %v3350 = vpow.pop %v3349
      %v3351 = vmul.f32 %v3277, 1.442695
      %v3352 = vpow.pop %v3351
      %v3353 = vmul.f32 %v3278, 1.442695
      %v3354 = vpow.pop %v3353
      %v3355 = vmul.f32 %v3279, 1.442695
      %v3356 = vpow.pop %v3355
      %v3357 = vmul.f32 %v3280, 1.442695
      %v3358 = vpow.pop %v3357
      %v3359 = vmul.f32 %v3281, 1.442695
      %v3360 = vpow.pop %v3359
      %v3361 = vmul.f32 %v3282, 1.442695
      %v3362 = vpow.pop %v3361
      %v3363 = vmul.f32 %v3283, 1.442695
      %v3364 = vpow.pop %v3363
      %v3365 = vmul.f32 %v3284, 1.442695
      %v3366 = vpow.pop %v3365
      %v3367 = vmul.f32 %v3285, 1.442695
      %v3368 = vpow.pop %v3367
      %v3369 = vmul.f32 %v3286, 1.442695
      %v3370 = vpow.pop %v3369
      %v3371 = vmul.f32 %v3287, 1.442695
      %v3372 = vpow.pop %v3371
      %v3373 = vmul.f32 %v3288, 1.442695
      %v3374 = vpow.pop %v3373
      %v3375 = vmul.f32 %v3289, 1.442695
      %v3376 = vpow.pop %v3375
      %v3377 = vmul.f32 %v3290, 1.442695
      %v3378 = vpow.pop %v3377
      %v3379 = vmul.f32 %v3291, 1.442695
      %v3380 = vpow.pop %v3379
      %v3381 = vmul.f32 %v3292, 1.442695
      %v3382 = vpow.pop %v3381
      %v3383 = vmul.f32 %v3293, 1.442695
      %v3384 = vpow.pop %v3383
      %v3385 = vmul.f32 %v3294, 1.442695
      %v3386 = vpow.pop %v3385
      %v3387 = vmul.f32 %v3295, 1.442695
      %v3388 = vpow.pop %v3387
      %v3389 = vmul.f32 %v3296, 1.442695
      %v3390 = vpow.pop %v3389
      %v3391 = vmul.f32 %v3297, 1.442695
      %v3392 = vpow.pop %v3391
      %v3393 = vmul.f32 %v3298, 1.442695
      %v3394 = vpow.pop %v3393
      %v3395 = vmul.f32 %v3299, 1.442695
      %v3396 = vpow.pop %v3395
      %v3397 = vmul.f32 %v3300, 1.442695
      %v3398 = vpow.pop %v3397
      %v3399 = vmul.f32 %v3301, 1.442695
      %v3400 = vpow.pop %v3399
      %v3401 = vmul.f32 %v3302, 1.442695
      %v3402 = vpow.pop %v3401
      %v3403 = vmul.f32 %v3303, 1.442695
      %v3404 = vpow.pop %v3403
      %v3405 = vmul.f32 %v3304, 1.442695
      %v3406 = vpow.pop %v3405
      %v3407 = vmul.f32 %v3305, 1.442695
      %v3408 = vpow.pop %v3407
      %v3409 = vmul.f32 %v3306, 1.442695
      %v3410 = vpow.pop %v3409
      %v3411 = vmul.f32 %v3307, 1.442695
      %v3412 = vpow.pop %v3411
      %v3413 = vmul.f32 %v3308, 1.442695
      %v3414 = vpow.pop %v3413
      %v3415 = vmul.f32 %v3309, 1.442695
      %v3416 = vpow.pop %v3415
      %v3417 = vmul.f32 %v3310, 1.442695
      %v3418 = vpow.pop %v3417
      %v3419 = vmul.f32 %v3311, 1.442695
      %v3420 = vpow.pop %v3419
      %v3421 = vmul.f32 %v3312, 1.442695
      %v3422 = vpow.pop %v3421
      %v3423 = vmul.f32 %v3313, 1.442695
      %v3424 = vpow.pop %v3423
      %v3425 = vmul.f32 %v3314, 1.442695
      %v3426 = vpow.pop %v3425
      %v3427 = vmul.f32 %v3315, 1.442695
      %v3428 = vpow.pop %v3427
      %v3429 = vmul.f32 %v3316, 1.442695
      %v3430 = vpow.pop %v3429
      %v3431 = vmul.f32 %v3317, 1.442695
      %v3432 = vpow.pop %v3431
      %v3433 = vmul.f32 %v3318, 1.442695
      %v3434 = vpow.pop %v3433
      %v3435 = vmul.f32 %v3319, 1.442695
      %v3436 = vpow.pop %v3435
      %v3437 = vmul.f32 %v3320, 1.442695
      %v3438 = vpow.pop %v3437
      %v3439 = vmul.f32 %v3321, 1.442695
      %v3440 = vpow.pop %v3439
      %v3441 = vmul.f32 %v3322, 1.442695
      %v3442 = vpow.pop %v3441
      %v3443 = vmul.f32 %v3323, 1.442695
      %v3444 = vpow.pop %v3443
      %v3445 = vmul.f32 %v3324, 1.442695
      %v3446 = vpow.pop %v3445
      %v3447 = vmul.f32 %v3325, 1.442695
      %v3448 = vpow.pop %v3447
      %v3449 = vmul.f32 %v3326, 1.442695
      %v3450 = vpow.pop %v3449
      %v3451 = vmul.f32 %v3327, 1.442695
      %v3452 = vpow.pop %v3451
      %v3453 = vmul.f32 %v3328, 1.442695
      %v3454 = vpow.pop %v3453
      %v3455 = vmul.f32 %v3329, 1.442695
      %v3456 = vpow.pop %v3455
      %v3457 = vmul.f32 %v3330, 1.442695
      %v3458 = vpow.pop %v3457
      %v3459 = vsel %vm3074, %v3332, 0.0
      %3460 = vadd.xlane.f32.xlu0 %v3459
      %v3461 = vpop.xlane.xlu0 %3460
      %v3462 = vsel %vm3074, %v3334, 0.0
      %3463 = vadd.xlane.f32.xlu0 %v3462
      %v3464 = vpop.xlane.xlu0 %3463
      %v3465 = vsel %vm3074, %v3336, 0.0
      %3466 = vadd.xlane.f32.xlu0 %v3465
      %v3467 = vpop.xlane.xlu0 %3466
      %v3468 = vsel %vm3074, %v3338, 0.0
      %3469 = vadd.xlane.f32.xlu0 %v3468
      %v3470 = vpop.xlane.xlu0 %3469
      %v3471 = vsel %vm3074, %v3340, 0.0
      %3472 = vadd.xlane.f32.xlu0 %v3471
      %v3473 = vpop.xlane.xlu0 %3472
      %v3474 = vsel %vm3074, %v3342, 0.0
      %3475 = vadd.xlane.f32.xlu0 %v3474
      %v3476 = vpop.xlane.xlu0 %3475
      %v3477 = vsel %vm3074, %v3344, 0.0
      %3478 = vadd.xlane.f32.xlu0 %v3477
      %v3479 = vpop.xlane.xlu0 %3478
      %v3480 = vsel %vm3074, %v3346, 0.0
      %3481 = vadd.xlane.f32.xlu0 %v3480
      %v3482 = vpop.xlane.xlu0 %3481
      %v3483 = vsel %vm3074, %v3348, 0.0
      %3484 = vadd.xlane.f32.xlu0 %v3483
      %v3485 = vpop.xlane.xlu0 %3484
      %v3486 = vsel %vm3074, %v3350, 0.0
      %3487 = vadd.xlane.f32.xlu0 %v3486
      %v3488 = vpop.xlane.xlu0 %3487
      %v3489 = vsel %vm3074, %v3352, 0.0
      %3490 = vadd.xlane.f32.xlu0 %v3489
      %v3491 = vpop.xlane.xlu0 %3490
      %v3492 = vsel %vm3074, %v3354, 0.0
      %3493 = vadd.xlane.f32.xlu0 %v3492
      %v3494 = vpop.xlane.xlu0 %3493
      %v3495 = vsel %vm3074, %v3356, 0.0
      %3496 = vadd.xlane.f32.xlu0 %v3495
      %v3497 = vpop.xlane.xlu0 %3496
      %v3498 = vsel %vm3074, %v3358, 0.0
      %3499 = vadd.xlane.f32.xlu0 %v3498
      %v3500 = vpop.xlane.xlu0 %3499
      %v3501 = vsel %vm3074, %v3360, 0.0
      %3502 = vadd.xlane.f32.xlu0 %v3501
      %v3503 = vpop.xlane.xlu0 %3502
      %v3504 = vsel %vm3074, %v3362, 0.0
      %3505 = vadd.xlane.f32.xlu0 %v3504
      %v3506 = vpop.xlane.xlu0 %3505
      %v3507 = vsel %vm3074, %v3364, 0.0
      %3508 = vadd.xlane.f32.xlu0 %v3507
      %v3509 = vpop.xlane.xlu0 %3508
      %v3510 = vsel %vm3074, %v3366, 0.0
      %3511 = vadd.xlane.f32.xlu0 %v3510
      %v3512 = vpop.xlane.xlu0 %3511
      %v3513 = vsel %vm3074, %v3368, 0.0
      %3514 = vadd.xlane.f32.xlu0 %v3513
      %v3515 = vpop.xlane.xlu0 %3514
      %v3516 = vsel %vm3074, %v3370, 0.0
      %3517 = vadd.xlane.f32.xlu0 %v3516
      %v3518 = vpop.xlane.xlu0 %3517
      %v3519 = vsel %vm3074, %v3372, 0.0
      %3520 = vadd.xlane.f32.xlu0 %v3519
      %v3521 = vpop.xlane.xlu0 %3520
      %v3522 = vsel %vm3074, %v3374, 0.0
      %3523 = vadd.xlane.f32.xlu0 %v3522
      %v3524 = vpop.xlane.xlu0 %3523
      %v3525 = vsel %vm3074, %v3376, 0.0
      %3526 = vadd.xlane.f32.xlu0 %v3525
      %v3527 = vpop.xlane.xlu0 %3526
      %v3528 = vsel %vm3074, %v3378, 0.0
      %3529 = vadd.xlane.f32.xlu0 %v3528
      %v3530 = vpop.xlane.xlu0 %3529
      %v3531 = vsel %vm3074, %v3380, 0.0
      %3532 = vadd.xlane.f32.xlu0 %v3531
      %v3533 = vpop.xlane.xlu0 %3532
      %v3534 = vsel %vm3074, %v3382, 0.0
      %3535 = vadd.xlane.f32.xlu0 %v3534
      %v3536 = vpop.xlane.xlu0 %3535
      %v3537 = vsel %vm3074, %v3384, 0.0
      %3538 = vadd.xlane.f32.xlu0 %v3537
      %v3539 = vpop.xlane.xlu0 %3538
      %v3540 = vsel %vm3074, %v3386, 0.0
      %3541 = vadd.xlane.f32.xlu0 %v3540
      %v3542 = vpop.xlane.xlu0 %3541
      %v3543 = vsel %vm3074, %v3388, 0.0
      %3544 = vadd.xlane.f32.xlu0 %v3543
      %v3545 = vpop.xlane.xlu0 %3544
      %v3546 = vsel %vm3074, %v3390, 0.0
      %3547 = vadd.xlane.f32.xlu0 %v3546
      %v3548 = vpop.xlane.xlu0 %3547
      %v3549 = vsel %vm3074, %v3392, 0.0
      %3550 = vadd.xlane.f32.xlu0 %v3549
      %v3551 = vpop.xlane.xlu0 %3550
      %v3552 = vsel %vm3074, %v3394, 0.0
      %3553 = vadd.xlane.f32.xlu0 %v3552
      %v3554 = vpop.xlane.xlu0 %3553
      %v3555 = vsel %vm3074, %v3396, 0.0
      %3556 = vadd.xlane.f32.xlu0 %v3555
      %v3557 = vpop.xlane.xlu0 %3556
      %v3558 = vsel %vm3074, %v3398, 0.0
      %3559 = vadd.xlane.f32.xlu0 %v3558
      %v3560 = vpop.xlane.xlu0 %3559
      %v3561 = vsel %vm3074, %v3400, 0.0
      %3562 = vadd.xlane.f32.xlu0 %v3561
      %v3563 = vpop.xlane.xlu0 %3562
      %v3564 = vsel %vm3074, %v3402, 0.0
      %3565 = vadd.xlane.f32.xlu0 %v3564
      %v3566 = vpop.xlane.xlu0 %3565
      %v3567 = vsel %vm3074, %v3404, 0.0
      %3568 = vadd.xlane.f32.xlu0 %v3567
      %v3569 = vpop.xlane.xlu0 %3568
      %v3570 = vsel %vm3074, %v3406, 0.0
      %3571 = vadd.xlane.f32.xlu0 %v3570
      %v3572 = vpop.xlane.xlu0 %3571
      %v3573 = vsel %vm3074, %v3408, 0.0
      %3574 = vadd.xlane.f32.xlu0 %v3573
      %v3575 = vpop.xlane.xlu0 %3574
      %v3576 = vsel %vm3074, %v3410, 0.0
      %3577 = vadd.xlane.f32.xlu0 %v3576
      %v3578 = vpop.xlane.xlu0 %3577
      %v3579 = vsel %vm3074, %v3412, 0.0
      %3580 = vadd.xlane.f32.xlu0 %v3579
      %v3581 = vpop.xlane.xlu0 %3580
      %v3582 = vsel %vm3074, %v3414, 0.0
      %3583 = vadd.xlane.f32.xlu0 %v3582
      %v3584 = vpop.xlane.xlu0 %3583
      %v3585 = vsel %vm3074, %v3416, 0.0
      %3586 = vadd.xlane.f32.xlu0 %v3585
      %v3587 = vpop.xlane.xlu0 %3586
      %v3588 = vsel %vm3074, %v3418, 0.0
      %3589 = vadd.xlane.f32.xlu0 %v3588
      %v3590 = vpop.xlane.xlu0 %3589
      %v3591 = vsel %vm3074, %v3420, 0.0
      %3592 = vadd.xlane.f32.xlu0 %v3591
      %v3593 = vpop.xlane.xlu0 %3592
      %v3594 = vsel %vm3074, %v3422, 0.0
      %3595 = vadd.xlane.f32.xlu0 %v3594
      %v3596 = vpop.xlane.xlu0 %3595
      %v3597 = vsel %vm3074, %v3424, 0.0
      %3598 = vadd.xlane.f32.xlu0 %v3597
      %v3599 = vpop.xlane.xlu0 %3598
      %v3600 = vsel %vm3074, %v3426, 0.0
      %3601 = vadd.xlane.f32.xlu0 %v3600
      %v3602 = vpop.xlane.xlu0 %3601
      %v3603 = vsel %vm3074, %v3428, 0.0
      %3604 = vadd.xlane.f32.xlu0 %v3603
      %v3605 = vpop.xlane.xlu0 %3604
      %v3606 = vsel %vm3074, %v3430, 0.0
      %3607 = vadd.xlane.f32.xlu0 %v3606
      %v3608 = vpop.xlane.xlu0 %3607
      %v3609 = vsel %vm3074, %v3432, 0.0
      %3610 = vadd.xlane.f32.xlu0 %v3609
      %v3611 = vpop.xlane.xlu0 %3610
      %v3612 = vsel %vm3074, %v3434, 0.0
      %3613 = vadd.xlane.f32.xlu0 %v3612
      %v3614 = vpop.xlane.xlu0 %3613
      %v3615 = vsel %vm3074, %v3436, 0.0
      %3616 = vadd.xlane.f32.xlu0 %v3615
      %v3617 = vpop.xlane.xlu0 %3616
      %v3618 = vsel %vm3074, %v3438, 0.0
      %3619 = vadd.xlane.f32.xlu0 %v3618
      %v3620 = vpop.xlane.xlu0 %3619
      %v3621 = vsel %vm3074, %v3440, 0.0
      %3622 = vadd.xlane.f32.xlu0 %v3621
      %v3623 = vpop.xlane.xlu0 %3622
      %v3624 = vsel %vm3074, %v3442, 0.0
      %3625 = vadd.xlane.f32.xlu0 %v3624
      %v3626 = vpop.xlane.xlu0 %3625
      %v3627 = vsel %vm3074, %v3444, 0.0
      %3628 = vadd.xlane.f32.xlu0 %v3627
      %v3629 = vpop.xlane.xlu0 %3628
      %v3630 = vsel %vm3074, %v3446, 0.0
      %3631 = vadd.xlane.f32.xlu0 %v3630
      %v3632 = vpop.xlane.xlu0 %3631
      %v3633 = vsel %vm3074, %v3448, 0.0
      %3634 = vadd.xlane.f32.xlu0 %v3633
      %v3635 = vpop.xlane.xlu0 %3634
      %v3636 = vsel %vm3074, %v3450, 0.0
      %3637 = vadd.xlane.f32.xlu0 %v3636
      %v3638 = vpop.xlane.xlu0 %3637
      %v3639 = vsel %vm3074, %v3452, 0.0
      %3640 = vadd.xlane.f32.xlu0 %v3639
      %v3641 = vpop.xlane.xlu0 %3640
      %v3642 = vsel %vm3074, %v3454, 0.0
      %3643 = vadd.xlane.f32.xlu0 %v3642
      %v3644 = vpop.xlane.xlu0 %3643
      %v3645 = vsel %vm3074, %v3456, 0.0
      %3646 = vadd.xlane.f32.xlu0 %v3645
      %v3647 = vpop.xlane.xlu0 %3646
      %v3648 = vsel %vm3074, %v3458, 0.0
      %3649 = vadd.xlane.f32.xlu0 %v3648
      %v3650 = vpop.xlane.xlu0 %3649
      %v3651 = vrcp.pop %v3461
      %v3652 = vmul.f32 1.0, %v3651
      %v3653 = vrcp.pop %v3464
      %v3654 = vmul.f32 1.0, %v3653
      %v3655 = vrcp.pop %v3467
      %v3656 = vmul.f32 1.0, %v3655
      %v3657 = vrcp.pop %v3470
      %v3658 = vmul.f32 1.0, %v3657
      %v3659 = vrcp.pop %v3473
      %v3660 = vmul.f32 1.0, %v3659
      %v3661 = vrcp.pop %v3476
      %v3662 = vmul.f32 1.0, %v3661
      %v3663 = vrcp.pop %v3479
      %v3664 = vmul.f32 1.0, %v3663
      %v3665 = vrcp.pop %v3482
      %v3666 = vmul.f32 1.0, %v3665
      %v3667 = vrcp.pop %v3485
      %v3668 = vmul.f32 1.0, %v3667
      %v3669 = vrcp.pop %v3488
      %v3670 = vmul.f32 1.0, %v3669
      %v3671 = vrcp.pop %v3491
      %v3672 = vmul.f32 1.0, %v3671
      %v3673 = vrcp.pop %v3494
      %v3674 = vmul.f32 1.0, %v3673
      %v3675 = vrcp.pop %v3497
      %v3676 = vmul.f32 1.0, %v3675
      %v3677 = vrcp.pop %v3500
      %v3678 = vmul.f32 1.0, %v3677
      %v3679 = vrcp.pop %v3503
      %v3680 = vmul.f32 1.0, %v3679
      %v3681 = vrcp.pop %v3506
      %v3682 = vmul.f32 1.0, %v3681
      %v3683 = vrcp.pop %v3509
      %v3684 = vmul.f32 1.0, %v3683
      %v3685 = vrcp.pop %v3512
      %v3686 = vmul.f32 1.0, %v3685
      %v3687 = vrcp.pop %v3515
      %v3688 = vmul.f32 1.0, %v3687
      %v3689 = vrcp.pop %v3518
      %v3690 = vmul.f32 1.0, %v3689
      %v3691 = vrcp.pop %v3521
      %v3692 = vmul.f32 1.0, %v3691
      %v3693 = vrcp.pop %v3524
      %v3694 = vmul.f32 1.0, %v3693
      %v3695 = vrcp.pop %v3527
      %v3696 = vmul.f32 1.0, %v3695
      %v3697 = vrcp.pop %v3530
      %v3698 = vmul.f32 1.0, %v3697
      %v3699 = vrcp.pop %v3533
      %v3700 = vmul.f32 1.0, %v3699
      %v3701 = vrcp.pop %v3536
      %v3702 = vmul.f32 1.0, %v3701
      %v3703 = vrcp.pop %v3539
      %v3704 = vmul.f32 1.0, %v3703
      %v3705 = vrcp.pop %v3542
      %v3706 = vmul.f32 1.0, %v3705
      %v3707 = vrcp.pop %v3545
      %v3708 = vmul.f32 1.0, %v3707
      %v3709 = vrcp.pop %v3548
      %v3710 = vmul.f32 1.0, %v3709
      %v3711 = vrcp.pop %v3551
      %v3712 = vmul.f32 1.0, %v3711
      %v3713 = vrcp.pop %v3554
      %v3714 = vmul.f32 1.0, %v3713
      %v3715 = vrcp.pop %v3557
      %v3716 = vmul.f32 1.0, %v3715
      %v3717 = vrcp.pop %v3560
      %v3718 = vmul.f32 1.0, %v3717
      %v3719 = vrcp.pop %v3563
      %v3720 = vmul.f32 1.0, %v3719
      %v3721 = vrcp.pop %v3566
      %v3722 = vmul.f32 1.0, %v3721
      %v3723 = vrcp.pop %v3569
      %v3724 = vmul.f32 1.0, %v3723
      %v3725 = vrcp.pop %v3572
      %v3726 = vmul.f32 1.0, %v3725
      %v3727 = vrcp.pop %v3575
      %v3728 = vmul.f32 1.0, %v3727
      %v3729 = vrcp.pop %v3578
      %v3730 = vmul.f32 1.0, %v3729
      %v3731 = vrcp.pop %v3581
      %v3732 = vmul.f32 1.0, %v3731
      %v3733 = vrcp.pop %v3584
      %v3734 = vmul.f32 1.0, %v3733
      %v3735 = vrcp.pop %v3587
      %v3736 = vmul.f32 1.0, %v3735
      %v3737 = vrcp.pop %v3590
      %v3738 = vmul.f32 1.0, %v3737
      %v3739 = vrcp.pop %v3593
      %v3740 = vmul.f32 1.0, %v3739
      %v3741 = vrcp.pop %v3596
      %v3742 = vmul.f32 1.0, %v3741
      %v3743 = vrcp.pop %v3599
      %v3744 = vmul.f32 1.0, %v3743
      %v3745 = vrcp.pop %v3602
      %v3746 = vmul.f32 1.0, %v3745
      %v3747 = vrcp.pop %v3605
      %v3748 = vmul.f32 1.0, %v3747
      %v3749 = vrcp.pop %v3608
      %v3750 = vmul.f32 1.0, %v3749
      %v3751 = vrcp.pop %v3611
      %v3752 = vmul.f32 1.0, %v3751
      %v3753 = vrcp.pop %v3614
      %v3754 = vmul.f32 1.0, %v3753
      %v3755 = vrcp.pop %v3617
      %v3756 = vmul.f32 1.0, %v3755
      %v3757 = vrcp.pop %v3620
      %v3758 = vmul.f32 1.0, %v3757
      %v3759 = vrcp.pop %v3623
      %v3760 = vmul.f32 1.0, %v3759
      %v3761 = vrcp.pop %v3626
      %v3762 = vmul.f32 1.0, %v3761
      %v3763 = vrcp.pop %v3629
      %v3764 = vmul.f32 1.0, %v3763
      %v3765 = vrcp.pop %v3632
      %v3766 = vmul.f32 1.0, %v3765
      %v3767 = vrcp.pop %v3635
      %v3768 = vmul.f32 1.0, %v3767
      %v3769 = vrcp.pop %v3638
      %v3770 = vmul.f32 1.0, %v3769
      %v3771 = vrcp.pop %v3641
      %v3772 = vmul.f32 1.0, %v3771
      %v3773 = vrcp.pop %v3644
      %v3774 = vmul.f32 1.0, %v3773
      %v3775 = vrcp.pop %v3647
      %v3776 = vmul.f32 1.0, %v3775
      %v3777 = vrcp.pop %v3650
      %v3778 = vmul.f32 1.0, %v3777
      %v3779 = vmul.f32 %v3332, %v3652
      %v3780 = vmul.f32 %v3334, %v3654
      %v3781 = vmul.f32 %v3336, %v3656
      %v3782 = vmul.f32 %v3338, %v3658
      %v3783 = vmul.f32 %v3340, %v3660
      %v3784 = vmul.f32 %v3342, %v3662
      %v3785 = vmul.f32 %v3344, %v3664
      %v3786 = vmul.f32 %v3346, %v3666
      %v3787 = vmul.f32 %v3348, %v3668
      %v3788 = vmul.f32 %v3350, %v3670
      %v3789 = vmul.f32 %v3352, %v3672
      %v3790 = vmul.f32 %v3354, %v3674
      %v3791 = vmul.f32 %v3356, %v3676
      %v3792 = vmul.f32 %v3358, %v3678
      %v3793 = vmul.f32 %v3360, %v3680
      %v3794 = vmul.f32 %v3362, %v3682
      %v3795 = vmul.f32 %v3364, %v3684
      %v3796 = vmul.f32 %v3366, %v3686
      %v3797 = vmul.f32 %v3368, %v3688
      %v3798 = vmul.f32 %v3370, %v3690
      %v3799 = vmul.f32 %v3372, %v3692
      %v3800 = vmul.f32 %v3374, %v3694
      %v3801 = vmul.f32 %v3376, %v3696
      %v3802 = vmul.f32 %v3378, %v3698
      %v3803 = vmul.f32 %v3380, %v3700
      %v3804 = vmul.f32 %v3382, %v3702
      %v3805 = vmul.f32 %v3384, %v3704
      %v3806 = vmul.f32 %v3386, %v3706
      %v3807 = vmul.f32 %v3388, %v3708
      %v3808 = vmul.f32 %v3390, %v3710
      %v3809 = vmul.f32 %v3392, %v3712
      %v3810 = vmul.f32 %v3394, %v3714
      %v3811 = vmul.f32 %v3396, %v3716
      %v3812 = vmul.f32 %v3398, %v3718
      %v3813 = vmul.f32 %v3400, %v3720
      %v3814 = vmul.f32 %v3402, %v3722
      %v3815 = vmul.f32 %v3404, %v3724
      %v3816 = vmul.f32 %v3406, %v3726
      %v3817 = vmul.f32 %v3408, %v3728
      %v3818 = vmul.f32 %v3410, %v3730
      %v3819 = vmul.f32 %v3412, %v3732
      %v3820 = vmul.f32 %v3414, %v3734
      %v3821 = vmul.f32 %v3416, %v3736
      %v3822 = vmul.f32 %v3418, %v3738
      %v3823 = vmul.f32 %v3420, %v3740
      %v3824 = vmul.f32 %v3422, %v3742
      %v3825 = vmul.f32 %v3424, %v3744
      %v3826 = vmul.f32 %v3426, %v3746
      %v3827 = vmul.f32 %v3428, %v3748
      %v3828 = vmul.f32 %v3430, %v3750
      %v3829 = vmul.f32 %v3432, %v3752
      %v3830 = vmul.f32 %v3434, %v3754
      %v3831 = vmul.f32 %v3436, %v3756
      %v3832 = vmul.f32 %v3438, %v3758
      %v3833 = vmul.f32 %v3440, %v3760
      %v3834 = vmul.f32 %v3442, %v3762
      %v3835 = vmul.f32 %v3444, %v3764
      %v3836 = vmul.f32 %v3446, %v3766
      %v3837 = vmul.f32 %v3448, %v3768
      %v3838 = vmul.f32 %v3450, %v3770
      %v3839 = vmul.f32 %v3452, %v3772
      %v3840 = vmul.f32 %v3454, %v3774
      %v3841 = vmul.f32 %v3456, %v3776
      %v3842 = vmul.f32 %v3458, %v3778
      %v3843 = vcombine.low %v3779, %v3781
      %v3845 = vunpack.c.l.s4 1983009808
      %v3846 = vunpack.c.0.s8 %v3845
      %v3847 = vlaneseq
      %v3848 = vshrl.u32 %v3847, 7
      %v3849 = vsub.s32 %v3846, %v3848
      %v3850 = vrot.slane %v3843, %v3849
      %v3851 = vcombine.low %v3780, %v3782
      %v3853 = vunpack.c.l.s4 1983009808
      %v3854 = vunpack.c.0.s8 %v3853
      %v3855 = vlaneseq
      %v3856 = vshrl.u32 %v3855, 7
      %v3857 = vsub.s32 %v3854, %v3856
      %v3858 = vrot.slane %v3851, %v3857
      %v3859 = vcombine.low %v3783, %v3785
      %v3861 = vunpack.c.l.s4 1983009808
      %v3862 = vunpack.c.0.s8 %v3861
      %v3863 = vlaneseq
      %v3864 = vshrl.u32 %v3863, 7
      %v3865 = vsub.s32 %v3862, %v3864
      %v3866 = vrot.slane %v3859, %v3865
      %v3867 = vcombine.low %v3784, %v3786
      %v3869 = vunpack.c.l.s4 1983009808
      %v3870 = vunpack.c.0.s8 %v3869
      %v3871 = vlaneseq
      %v3872 = vshrl.u32 %v3871, 7
      %v3873 = vsub.s32 %v3870, %v3872
      %v3874 = vrot.slane %v3867, %v3873
      %v3875 = vcombine.low %v3850, %v3858
      %v3876 = vcombine.high %v3850, %v3858
      %v3878 = vunpack.c.l.s4 1934713408
      %v3879 = vunpack.c.0.s8 %v3878
      %v3880 = vlaneseq
      %v3881 = vshrl.u32 %v3880, 7
      %v3882 = vsub.s32 %v3879, %v3881
      %v3883 = vrot.slane %v3875, %v3882
      %v3885 = vunpack.c.l.s4 1934713408
      %v3886 = vunpack.c.0.s8 %v3885
      %v3887 = vlaneseq
      %v3888 = vshrl.u32 %v3887, 7
      %v3889 = vsub.s32 %v3886, %v3888
      %v3890 = vrot.slane %v3876, %v3889
      %v3891 = vcombine.low %v3866, %v3874
      %v3892 = vcombine.high %v3866, %v3874
      %v3894 = vunpack.c.l.s4 1934713408
      %v3895 = vunpack.c.0.s8 %v3894
      %v3896 = vlaneseq
      %v3897 = vshrl.u32 %v3896, 7
      %v3898 = vsub.s32 %v3895, %v3897
      %v3899 = vrot.slane %v3891, %v3898
      %v3901 = vunpack.c.l.s4 1934713408
      %v3902 = vunpack.c.0.s8 %v3901
      %v3903 = vlaneseq
      %v3904 = vshrl.u32 %v3903, 7
      %v3905 = vsub.s32 %v3902, %v3904
      %v3906 = vrot.slane %v3892, %v3905
      %v3907 = vcombine.low %v3883, %v3899
      %v3908 = vcombine.high %v3883, %v3899
      %v3909 = vcombine.low %v3890, %v3906
      %v3910 = vcombine.high %v3890, %v3906
      %v3911 = vcombine.low %v3787, %v3789
      %v3913 = vunpack.c.l.s4 1983009808
      %v3914 = vunpack.c.0.s8 %v3913
      %v3915 = vlaneseq
      %v3916 = vshrl.u32 %v3915, 7
      %v3917 = vsub.s32 %v3914, %v3916
      %v3918 = vrot.slane %v3911, %v3917
      %v3919 = vcombine.low %v3788, %v3790
      %v3921 = vunpack.c.l.s4 1983009808
      %v3922 = vunpack.c.0.s8 %v3921
      %v3923 = vlaneseq
      %v3924 = vshrl.u32 %v3923, 7
      %v3925 = vsub.s32 %v3922, %v3924
      %v3926 = vrot.slane %v3919, %v3925
      %v3927 = vcombine.low %v3791, %v3793
      %v3929 = vunpack.c.l.s4 1983009808
      %v3930 = vunpack.c.0.s8 %v3929
      %v3931 = vlaneseq
      %v3932 = vshrl.u32 %v3931, 7
      %v3933 = vsub.s32 %v3930, %v3932
      %v3934 = vrot.slane %v3927, %v3933
      %v3935 = vcombine.low %v3792, %v3794
      %v3937 = vunpack.c.l.s4 1983009808
      %v3938 = vunpack.c.0.s8 %v3937
      %v3939 = vlaneseq
      %v3940 = vshrl.u32 %v3939, 7
      %v3941 = vsub.s32 %v3938, %v3940
      %v3942 = vrot.slane %v3935, %v3941
      %v3943 = vcombine.low %v3918, %v3926
      %v3944 = vcombine.high %v3918, %v3926
      %v3946 = vunpack.c.l.s4 1934713408
      %v3947 = vunpack.c.0.s8 %v3946
      %v3948 = vlaneseq
      %v3949 = vshrl.u32 %v3948, 7
      %v3950 = vsub.s32 %v3947, %v3949
      %v3951 = vrot.slane %v3943, %v3950
      %v3953 = vunpack.c.l.s4 1934713408
      %v3954 = vunpack.c.0.s8 %v3953
      %v3955 = vlaneseq
      %v3956 = vshrl.u32 %v3955, 7
      %v3957 = vsub.s32 %v3954, %v3956
      %v3958 = vrot.slane %v3944, %v3957
      %v3959 = vcombine.low %v3934, %v3942
      %v3960 = vcombine.high %v3934, %v3942
      %v3962 = vunpack.c.l.s4 1934713408
      %v3963 = vunpack.c.0.s8 %v3962
      %v3964 = vlaneseq
      %v3965 = vshrl.u32 %v3964, 7
      %v3966 = vsub.s32 %v3963, %v3965
      %v3967 = vrot.slane %v3959, %v3966
      %v3969 = vunpack.c.l.s4 1934713408
      %v3970 = vunpack.c.0.s8 %v3969
      %v3971 = vlaneseq
      %v3972 = vshrl.u32 %v3971, 7
      %v3973 = vsub.s32 %v3970, %v3972
      %v3974 = vrot.slane %v3960, %v3973
      %v3975 = vcombine.low %v3951, %v3967
      %v3976 = vcombine.high %v3951, %v3967
      %v3977 = vcombine.low %v3958, %v3974
      %v3978 = vcombine.high %v3958, %v3974
      %v3979 = vcombine.low %v3795, %v3797
      %v3981 = vunpack.c.l.s4 1983009808
      %v3982 = vunpack.c.0.s8 %v3981
      %v3983 = vlaneseq
      %v3984 = vshrl.u32 %v3983, 7
      %v3985 = vsub.s32 %v3982, %v3984
      %v3986 = vrot.slane %v3979, %v3985
      %v3987 = vcombine.low %v3796, %v3798
      %v3989 = vunpack.c.l.s4 1983009808
      %v3990 = vunpack.c.0.s8 %v3989
      %v3991 = vlaneseq
      %v3992 = vshrl.u32 %v3991, 7
      %v3993 = vsub.s32 %v3990, %v3992
      %v3994 = vrot.slane %v3987, %v3993
      %v3995 = vcombine.low %v3799, %v3801
      %v3997 = vunpack.c.l.s4 1983009808
      %v3998 = vunpack.c.0.s8 %v3997
      %v3999 = vlaneseq
      %v4000 = vshrl.u32 %v3999, 7
      %v4001 = vsub.s32 %v3998, %v4000
      %v4002 = vrot.slane %v3995, %v4001
      %v4003 = vcombine.low %v3800, %v3802
      %v4005 = vunpack.c.l.s4 1983009808
      %v4006 = vunpack.c.0.s8 %v4005
      %v4007 = vlaneseq
      %v4008 = vshrl.u32 %v4007, 7
      %v4009 = vsub.s32 %v4006, %v4008
      %v4010 = vrot.slane %v4003, %v4009
      %v4011 = vcombine.low %v3986, %v3994
      %v4012 = vcombine.high %v3986, %v3994
      %v4014 = vunpack.c.l.s4 1934713408
      %v4015 = vunpack.c.0.s8 %v4014
      %v4016 = vlaneseq
      %v4017 = vshrl.u32 %v4016, 7
      %v4018 = vsub.s32 %v4015, %v4017
      %v4019 = vrot.slane %v4011, %v4018
      %v4021 = vunpack.c.l.s4 1934713408
      %v4022 = vunpack.c.0.s8 %v4021
      %v4023 = vlaneseq
      %v4024 = vshrl.u32 %v4023, 7
      %v4025 = vsub.s32 %v4022, %v4024
      %v4026 = vrot.slane %v4012, %v4025
      %v4027 = vcombine.low %v4002, %v4010
      %v4028 = vcombine.high %v4002, %v4010
      %v4030 = vunpack.c.l.s4 1934713408
      %v4031 = vunpack.c.0.s8 %v4030
      %v4032 = vlaneseq
      %v4033 = vshrl.u32 %v4032, 7
      %v4034 = vsub.s32 %v4031, %v4033
      %v4035 = vrot.slane %v4027, %v4034
      %v4037 = vunpack.c.l.s4 1934713408
      %v4038 = vunpack.c.0.s8 %v4037
      %v4039 = vlaneseq
      %v4040 = vshrl.u32 %v4039, 7
      %v4041 = vsub.s32 %v4038, %v4040
      %v4042 = vrot.slane %v4028, %v4041
      %v4043 = vcombine.low %v4019, %v4035
      %v4044 = vcombine.high %v4019, %v4035
      %v4045 = vcombine.low %v4026, %v4042
      %v4046 = vcombine.high %v4026, %v4042
      %v4047 = vcombine.low %v3803, %v3805
      %v4049 = vunpack.c.l.s4 1983009808
      %v4050 = vunpack.c.0.s8 %v4049
      %v4051 = vlaneseq
      %v4052 = vshrl.u32 %v4051, 7
      %v4053 = vsub.s32 %v4050, %v4052
      %v4054 = vrot.slane %v4047, %v4053
      %v4055 = vcombine.low %v3804, %v3806
      %v4057 = vunpack.c.l.s4 1983009808
      %v4058 = vunpack.c.0.s8 %v4057
      %v4059 = vlaneseq
      %v4060 = vshrl.u32 %v4059, 7
      %v4061 = vsub.s32 %v4058, %v4060
      %v4062 = vrot.slane %v4055, %v4061
      %v4063 = vcombine.low %v3807, %v3809
      %v4065 = vunpack.c.l.s4 1983009808
      %v4066 = vunpack.c.0.s8 %v4065
      %v4067 = vlaneseq
      %v4068 = vshrl.u32 %v4067, 7
      %v4069 = vsub.s32 %v4066, %v4068
      %v4070 = vrot.slane %v4063, %v4069
      %v4071 = vcombine.low %v3808, %v3810
      %v4073 = vunpack.c.l.s4 1983009808
      %v4074 = vunpack.c.0.s8 %v4073
      %v4075 = vlaneseq
      %v4076 = vshrl.u32 %v4075, 7
      %v4077 = vsub.s32 %v4074, %v4076
      %v4078 = vrot.slane %v4071, %v4077
      %v4079 = vcombine.low %v4054, %v4062
      %v4080 = vcombine.high %v4054, %v4062
      %v4082 = vunpack.c.l.s4 1934713408
      %v4083 = vunpack.c.0.s8 %v4082
      %v4084 = vlaneseq
      %v4085 = vshrl.u32 %v4084, 7
      %v4086 = vsub.s32 %v4083, %v4085
      %v4087 = vrot.slane %v4079, %v4086
      %v4089 = vunpack.c.l.s4 1934713408
      %v4090 = vunpack.c.0.s8 %v4089
      %v4091 = vlaneseq
      %v4092 = vshrl.u32 %v4091, 7
      %v4093 = vsub.s32 %v4090, %v4092
      %v4094 = vrot.slane %v4080, %v4093
      %v4095 = vcombine.low %v4070, %v4078
      %v4096 = vcombine.high %v4070, %v4078
      %v4098 = vunpack.c.l.s4 1934713408
      %v4099 = vunpack.c.0.s8 %v4098
      %v4100 = vlaneseq
      %v4101 = vshrl.u32 %v4100, 7
      %v4102 = vsub.s32 %v4099, %v4101
      %v4103 = vrot.slane %v4095, %v4102
      %v4105 = vunpack.c.l.s4 1934713408
      %v4106 = vunpack.c.0.s8 %v4105
      %v4107 = vlaneseq
      %v4108 = vshrl.u32 %v4107, 7
      %v4109 = vsub.s32 %v4106, %v4108
      %v4110 = vrot.slane %v4096, %v4109
      %v4111 = vcombine.low %v4087, %v4103
      %v4112 = vcombine.high %v4087, %v4103
      %v4113 = vcombine.low %v4094, %v4110
      %v4114 = vcombine.high %v4094, %v4110
      %v4115 = vcombine.low %v3811, %v3813
      %v4117 = vunpack.c.l.s4 1983009808
      %v4118 = vunpack.c.0.s8 %v4117
      %v4119 = vlaneseq
      %v4120 = vshrl.u32 %v4119, 7
      %v4121 = vsub.s32 %v4118, %v4120
      %v4122 = vrot.slane %v4115, %v4121
      %v4123 = vcombine.low %v3812, %v3814
      %v4125 = vunpack.c.l.s4 1983009808
      %v4126 = vunpack.c.0.s8 %v4125
      %v4127 = vlaneseq
      %v4128 = vshrl.u32 %v4127, 7
      %v4129 = vsub.s32 %v4126, %v4128
      %v4130 = vrot.slane %v4123, %v4129
      %v4131 = vcombine.low %v3815, %v3817
      %v4133 = vunpack.c.l.s4 1983009808
      %v4134 = vunpack.c.0.s8 %v4133
      %v4135 = vlaneseq
      %v4136 = vshrl.u32 %v4135, 7
      %v4137 = vsub.s32 %v4134, %v4136
      %v4138 = vrot.slane %v4131, %v4137
      %v4139 = vcombine.low %v3816, %v3818
      %v4141 = vunpack.c.l.s4 1983009808
      %v4142 = vunpack.c.0.s8 %v4141
      %v4143 = vlaneseq
      %v4144 = vshrl.u32 %v4143, 7
      %v4145 = vsub.s32 %v4142, %v4144
      %v4146 = vrot.slane %v4139, %v4145
      %v4147 = vcombine.low %v4122, %v4130
      %v4148 = vcombine.high %v4122, %v4130
      %v4150 = vunpack.c.l.s4 1934713408
      %v4151 = vunpack.c.0.s8 %v4150
      %v4152 = vlaneseq
      %v4153 = vshrl.u32 %v4152, 7
      %v4154 = vsub.s32 %v4151, %v4153
      %v4155 = vrot.slane %v4147, %v4154
      %v4157 = vunpack.c.l.s4 1934713408
      %v4158 = vunpack.c.0.s8 %v4157
      %v4159 = vlaneseq
      %v4160 = vshrl.u32 %v4159, 7
      %v4161 = vsub.s32 %v4158, %v4160
      %v4162 = vrot.slane %v4148, %v4161
      %v4163 = vcombine.low %v4138, %v4146
      %v4164 = vcombine.high %v4138, %v4146
      %v4166 = vunpack.c.l.s4 1934713408
      %v4167 = vunpack.c.0.s8 %v4166
      %v4168 = vlaneseq
      %v4169 = vshrl.u32 %v4168, 7
      %v4170 = vsub.s32 %v4167, %v4169
      %v4171 = vrot.slane %v4163, %v4170
      %v4173 = vunpack.c.l.s4 1934713408
      %v4174 = vunpack.c.0.s8 %v4173
      %v4175 = vlaneseq
      %v4176 = vshrl.u32 %v4175, 7
      %v4177 = vsub.s32 %v4174, %v4176
      %v4178 = vrot.slane %v4164, %v4177
      %v4179 = vcombine.low %v4155, %v4171
      %v4180 = vcombine.high %v4155, %v4171
      %v4181 = vcombine.low %v4162, %v4178
      %v4182 = vcombine.high %v4162, %v4178
      %v4183 = vcombine.low %v3819, %v3821
      %v4185 = vunpack.c.l.s4 1983009808
      %v4186 = vunpack.c.0.s8 %v4185
      %v4187 = vlaneseq
      %v4188 = vshrl.u32 %v4187, 7
      %v4189 = vsub.s32 %v4186, %v4188
      %v4190 = vrot.slane %v4183, %v4189
      %v4191 = vcombine.low %v3820, %v3822
      %v4193 = vunpack.c.l.s4 1983009808
      %v4194 = vunpack.c.0.s8 %v4193
      %v4195 = vlaneseq
      %v4196 = vshrl.u32 %v4195, 7
      %v4197 = vsub.s32 %v4194, %v4196
      %v4198 = vrot.slane %v4191, %v4197
      %v4199 = vcombine.low %v3823, %v3825
      %v4201 = vunpack.c.l.s4 1983009808
      %v4202 = vunpack.c.0.s8 %v4201
      %v4203 = vlaneseq
      %v4204 = vshrl.u32 %v4203, 7
      %v4205 = vsub.s32 %v4202, %v4204
      %v4206 = vrot.slane %v4199, %v4205
      %v4207 = vcombine.low %v3824, %v3826
      %v4209 = vunpack.c.l.s4 1983009808
      %v4210 = vunpack.c.0.s8 %v4209
      %v4211 = vlaneseq
      %v4212 = vshrl.u32 %v4211, 7
      %v4213 = vsub.s32 %v4210, %v4212
      %v4214 = vrot.slane %v4207, %v4213
      %v4215 = vcombine.low %v4190, %v4198
      %v4216 = vcombine.high %v4190, %v4198
      %v4218 = vunpack.c.l.s4 1934713408
      %v4219 = vunpack.c.0.s8 %v4218
      %v4220 = vlaneseq
      %v4221 = vshrl.u32 %v4220, 7
      %v4222 = vsub.s32 %v4219, %v4221
      %v4223 = vrot.slane %v4215, %v4222
      %v4225 = vunpack.c.l.s4 1934713408
      %v4226 = vunpack.c.0.s8 %v4225
      %v4227 = vlaneseq
      %v4228 = vshrl.u32 %v4227, 7
      %v4229 = vsub.s32 %v4226, %v4228
      %v4230 = vrot.slane %v4216, %v4229
      %v4231 = vcombine.low %v4206, %v4214
      %v4232 = vcombine.high %v4206, %v4214
      %v4234 = vunpack.c.l.s4 1934713408
      %v4235 = vunpack.c.0.s8 %v4234
      %v4236 = vlaneseq
      %v4237 = vshrl.u32 %v4236, 7
      %v4238 = vsub.s32 %v4235, %v4237
      %v4239 = vrot.slane %v4231, %v4238
      %v4241 = vunpack.c.l.s4 1934713408
      %v4242 = vunpack.c.0.s8 %v4241
      %v4243 = vlaneseq
      %v4244 = vshrl.u32 %v4243, 7
      %v4245 = vsub.s32 %v4242, %v4244
      %v4246 = vrot.slane %v4232, %v4245
      %v4247 = vcombine.low %v4223, %v4239
      %v4248 = vcombine.high %v4223, %v4239
      %v4249 = vcombine.low %v4230, %v4246
      %v4250 = vcombine.high %v4230, %v4246
      %v4251 = vcombine.low %v3827, %v3829
      %v4253 = vunpack.c.l.s4 1983009808
      %v4254 = vunpack.c.0.s8 %v4253
      %v4255 = vlaneseq
      %v4256 = vshrl.u32 %v4255, 7
      %v4257 = vsub.s32 %v4254, %v4256
      %v4258 = vrot.slane %v4251, %v4257
      %v4259 = vcombine.low %v3828, %v3830
      %v4261 = vunpack.c.l.s4 1983009808
      %v4262 = vunpack.c.0.s8 %v4261
      %v4263 = vlaneseq
      %v4264 = vshrl.u32 %v4263, 7
      %v4265 = vsub.s32 %v4262, %v4264
      %v4266 = vrot.slane %v4259, %v4265
      %v4267 = vcombine.low %v3831, %v3833
      %v4269 = vunpack.c.l.s4 1983009808
      %v4270 = vunpack.c.0.s8 %v4269
      %v4271 = vlaneseq
      %v4272 = vshrl.u32 %v4271, 7
      %v4273 = vsub.s32 %v4270, %v4272
      %v4274 = vrot.slane %v4267, %v4273
      %v4275 = vcombine.low %v3832, %v3834
      %v4277 = vunpack.c.l.s4 1983009808
      %v4278 = vunpack.c.0.s8 %v4277
      %v4279 = vlaneseq
      %v4280 = vshrl.u32 %v4279, 7
      %v4281 = vsub.s32 %v4278, %v4280
      %v4282 = vrot.slane %v4275, %v4281
      %v4283 = vcombine.low %v4258, %v4266
      %v4284 = vcombine.high %v4258, %v4266
      %v4286 = vunpack.c.l.s4 1934713408
      %v4287 = vunpack.c.0.s8 %v4286
      %v4288 = vlaneseq
      %v4289 = vshrl.u32 %v4288, 7
      %v4290 = vsub.s32 %v4287, %v4289
      %v4291 = vrot.slane %v4283, %v4290
      %v4293 = vunpack.c.l.s4 1934713408
      %v4294 = vunpack.c.0.s8 %v4293
      %v4295 = vlaneseq
      %v4296 = vshrl.u32 %v4295, 7
      %v4297 = vsub.s32 %v4294, %v4296
      %v4298 = vrot.slane %v4284, %v4297
      %v4299 = vcombine.low %v4274, %v4282
      %v4300 = vcombine.high %v4274, %v4282
      %v4302 = vunpack.c.l.s4 1934713408
      %v4303 = vunpack.c.0.s8 %v4302
      %v4304 = vlaneseq
      %v4305 = vshrl.u32 %v4304, 7
      %v4306 = vsub.s32 %v4303, %v4305
      %v4307 = vrot.slane %v4299, %v4306
      %v4309 = vunpack.c.l.s4 1934713408
      %v4310 = vunpack.c.0.s8 %v4309
      %v4311 = vlaneseq
      %v4312 = vshrl.u32 %v4311, 7
      %v4313 = vsub.s32 %v4310, %v4312
      %v4314 = vrot.slane %v4300, %v4313
      %v4315 = vcombine.low %v4291, %v4307
      %v4316 = vcombine.high %v4291, %v4307
      %v4317 = vcombine.low %v4298, %v4314
      %v4318 = vcombine.high %v4298, %v4314
      %v4319 = vcombine.low %v3835, %v3837
      %v4321 = vunpack.c.l.s4 1983009808
      %v4322 = vunpack.c.0.s8 %v4321
      %v4323 = vlaneseq
      %v4324 = vshrl.u32 %v4323, 7
      %v4325 = vsub.s32 %v4322, %v4324
      %v4326 = vrot.slane %v4319, %v4325
      %v4327 = vcombine.low %v3836, %v3838
      %v4329 = vunpack.c.l.s4 1983009808
      %v4330 = vunpack.c.0.s8 %v4329
      %v4331 = vlaneseq
      %v4332 = vshrl.u32 %v4331, 7
      %v4333 = vsub.s32 %v4330, %v4332
      %v4334 = vrot.slane %v4327, %v4333
      %v4335 = vcombine.low %v3839, %v3841
      %v4337 = vunpack.c.l.s4 1983009808
      %v4338 = vunpack.c.0.s8 %v4337
      %v4339 = vlaneseq
      %v4340 = vshrl.u32 %v4339, 7
      %v4341 = vsub.s32 %v4338, %v4340
      %v4342 = vrot.slane %v4335, %v4341
      %v4343 = vcombine.low %v3840, %v3842
      %v4345 = vunpack.c.l.s4 1983009808
      %v4346 = vunpack.c.0.s8 %v4345
      %v4347 = vlaneseq
      %v4348 = vshrl.u32 %v4347, 7
      %v4349 = vsub.s32 %v4346, %v4348
      %v4350 = vrot.slane %v4343, %v4349
      %v4351 = vcombine.low %v4326, %v4334
      %v4352 = vcombine.high %v4326, %v4334
      %v4354 = vunpack.c.l.s4 1934713408
      %v4355 = vunpack.c.0.s8 %v4354
      %v4356 = vlaneseq
      %v4357 = vshrl.u32 %v4356, 7
      %v4358 = vsub.s32 %v4355, %v4357
      %v4359 = vrot.slane %v4351, %v4358
      %v4361 = vunpack.c.l.s4 1934713408
      %v4362 = vunpack.c.0.s8 %v4361
      %v4363 = vlaneseq
      %v4364 = vshrl.u32 %v4363, 7
      %v4365 = vsub.s32 %v4362, %v4364
      %v4366 = vrot.slane %v4352, %v4365
      %v4367 = vcombine.low %v4342, %v4350
      %v4368 = vcombine.high %v4342, %v4350
      %v4370 = vunpack.c.l.s4 1934713408
      %v4371 = vunpack.c.0.s8 %v4370
      %v4372 = vlaneseq
      %v4373 = vshrl.u32 %v4372, 7
      %v4374 = vsub.s32 %v4371, %v4373
      %v4375 = vrot.slane %v4367, %v4374
      %v4377 = vunpack.c.l.s4 1934713408
      %v4378 = vunpack.c.0.s8 %v4377
      %v4379 = vlaneseq
      %v4380 = vshrl.u32 %v4379, 7
      %v4381 = vsub.s32 %v4378, %v4380
      %v4382 = vrot.slane %v4368, %v4381
      %v4383 = vcombine.low %v4359, %v4375
      %v4384 = vcombine.high %v4359, %v4375
      %v4385 = vcombine.low %v4366, %v4382
      %v4386 = vcombine.high %v4366, %v4382
      %4395 = vrot.lane.b32.xlu0 %v3908, 16
      %v4396 = vpop.permute.xlu0 %4395
      %4397 = vrot.lane.b32.xlu0 %v3976, 16
      %v4398 = vpop.permute.xlu0 %4397
      %4399 = vrot.lane.b32.xlu0 %v4044, 16
      %v4400 = vpop.permute.xlu0 %4399
      %4401 = vrot.lane.b32.xlu0 %v4112, 16
      %v4402 = vpop.permute.xlu0 %4401
      %4403 = vrot.lane.b32.xlu0 %v4180, 16
      %v4404 = vpop.permute.xlu0 %4403
      %4405 = vrot.lane.b32.xlu0 %v4248, 16
      %v4406 = vpop.permute.xlu0 %4405
      %4407 = vrot.lane.b32.xlu0 %v4316, 16
      %v4408 = vpop.permute.xlu0 %4407
      %4409 = vrot.lane.b32.xlu0 %v4384, 16
      %v4410 = vpop.permute.xlu0 %4409
      %4427 = vrot.lane.b32.xlu0 %v3909, 32
      %v4428 = vpop.permute.xlu0 %4427
      %4429 = vrot.lane.b32.xlu0 %v3977, 32
      %v4430 = vpop.permute.xlu0 %4429
      %4431 = vrot.lane.b32.xlu0 %v4045, 32
      %v4432 = vpop.permute.xlu0 %4431
      %4433 = vrot.lane.b32.xlu0 %v4113, 32
      %v4434 = vpop.permute.xlu0 %4433
      %4435 = vrot.lane.b32.xlu0 %v4181, 32
      %v4436 = vpop.permute.xlu0 %4435
      %4437 = vrot.lane.b32.xlu0 %v4249, 32
      %v4438 = vpop.permute.xlu0 %4437
      %4439 = vrot.lane.b32.xlu0 %v4317, 32
      %v4440 = vpop.permute.xlu0 %4439
      %4441 = vrot.lane.b32.xlu0 %v4385, 32
      %v4442 = vpop.permute.xlu0 %4441
      %4459 = vrot.lane.b32.xlu0 %v3910, 48
      %v4460 = vpop.permute.xlu0 %4459
      %4461 = vrot.lane.b32.xlu0 %v3978, 48
      %v4462 = vpop.permute.xlu0 %4461
      %4463 = vrot.lane.b32.xlu0 %v4046, 48
      %v4464 = vpop.permute.xlu0 %4463
      %4465 = vrot.lane.b32.xlu0 %v4114, 48
      %v4466 = vpop.permute.xlu0 %4465
      %4467 = vrot.lane.b32.xlu0 %v4182, 48
      %v4468 = vpop.permute.xlu0 %4467
      %4469 = vrot.lane.b32.xlu0 %v4250, 48
      %v4470 = vpop.permute.xlu0 %4469
      %4471 = vrot.lane.b32.xlu0 %v4318, 48
      %v4472 = vpop.permute.xlu0 %4471
      %4473 = vrot.lane.b32.xlu0 %v4386, 48
      %v4474 = vpop.permute.xlu0 %4473
      %vm4483 = vcmask 130048
      %v4484 = vsel %vm4483, %v3907, %v4396
      %v4485 = vsel %vm4483, %v3975, %v4398
      %v4486 = vsel %vm4483, %v4043, %v4400
      %v4487 = vsel %vm4483, %v4111, %v4402
      %v4488 = vsel %vm4483, %v4179, %v4404
      %v4489 = vsel %vm4483, %v4247, %v4406
      %v4490 = vsel %vm4483, %v4315, %v4408
      %v4491 = vsel %vm4483, %v4383, %v4410
      %v4492 = vsel %vm768, %v4484, %v4428
      %v4493 = vsel %vm768, %v4485, %v4430
      %v4494 = vsel %vm768, %v4486, %v4432
      %v4495 = vsel %vm768, %v4487, %v4434
      %v4496 = vsel %vm768, %v4488, %v4436
      %v4497 = vsel %vm768, %v4489, %v4438
      %v4498 = vsel %vm768, %v4490, %v4440
      %v4499 = vsel %vm768, %v4491, %v4442
      %vm4500 = vcmask 392192
      %v4501 = vsel %vm4500, %v4492, %v4460
      %v4502 = vsel %vm4500, %v4493, %v4462
      %v4503 = vsel %vm4500, %v4494, %v4464
      %v4504 = vsel %vm4500, %v4495, %v4466
      %v4505 = vsel %vm4500, %v4496, %v4468
      %v4506 = vsel %vm4500, %v4497, %v4470
      %v4507 = vsel %vm4500, %v4498, %v4472
      %v4508 = vsel %vm4500, %v4499, %v4474
      %v4509 = vsel %vm1413, %v4501, 0.0
      %v4510 = vsel %vm1413, %v4502, 0.0
      %v4511 = vadd.f32 %v4509, %v4510
      %v4512 = vsel %vm1413, %v4503, 0.0
      %v4513 = vadd.f32 %v4511, %v4512
      %v4514 = vsel %vm1413, %v4504, 0.0
      %v4515 = vadd.f32 %v4513, %v4514
      %v4516 = vsel %vm1413, %v4505, 0.0
      %v4517 = vadd.f32 %v4515, %v4516
      %v4518 = vsel %vm1413, %v4506, 0.0
      %v4519 = vadd.f32 %v4517, %v4518
      %v4520 = vsel %vm1413, %v4507, 0.0
      %v4521 = vadd.f32 %v4519, %v4520
      %v4522 = vsel %vm1413, %v4508, 0.0
      %v4523 = vadd.f32 %v4521, %v4522
      %v4524 = vrot.slane %v4523, 4
      %v4525 = vadd.f32 %v4523, %v4524
      %v4526 = vrot.slane %v4525, 2
      %v4527 = vadd.f32 %v4525, %v4526
      %v4528 = vrot.slane %v4527, 1
      %v4529 = vadd.f32 %v4527, %v4528
      %4530 = vxpose.xlu0.b32.start [1/16] %v4501, 128
      %4531 = vxpose.xlu0.b32.cont [2/16] %v4502, 128
      %4532 = vxpose.xlu0.b32.cont [3/16] %v4503, 128
      %4533 = vxpose.xlu0.b32.cont [4/16] %v4504, 128
      %4534 = vxpose.xlu0.b32.cont [5/16] %v4505, 128
      %4535 = vxpose.xlu0.b32.cont [6/16] %v4506, 128
      %4536 = vxpose.xlu0.b32.cont [7/16] %v4507, 128
      %4537 = vxpose.xlu0.b32.cont [8/16] %v4508, 128
      %4538 = vxpose.xlu0.b32.cont [9/16] 0.0, 128
      %4539 = vxpose.xlu0.b32.cont [10/16] 0.0, 128
      %4540 = vxpose.xlu0.b32.cont [11/16] 0.0, 128
      %4541 = vxpose.xlu0.b32.cont [12/16] 0.0, 128
      %4542 = vxpose.xlu0.b32.cont [13/16] 0.0, 128
      %4543 = vxpose.xlu0.b32.cont [14/16] 0.0, 128
      %4544 = vxpose.xlu0.b32.cont [15/16] 0.0, 128
      %4545 = vxpose.xlu0.b32.end [16/16] 0.0, 128
      %v4546 = vpop.trf.xlu0
      %v4547 = vpop.trf.xlu0
      %v4548 = vpop.trf.xlu0
      %v4549 = vpop.trf.xlu0
      %v4550 = vpop.trf.xlu0
      %v4551 = vpop.trf.xlu0
      %v4552 = vpop.trf.xlu0
      %v4553 = vpop.trf.xlu0
      %v4554 = vpop.trf.xlu0
      %v4555 = vpop.trf.xlu0
      %v4556 = vpop.trf.xlu0
      %v4557 = vpop.trf.xlu0
      %v4558 = vpop.trf.xlu0
      %v4559 = vpop.trf.xlu0
      %v4560 = vpop.trf.xlu0
      %v4561 = vpop.trf.xlu0
      %v4563 = vsel %vm1413, %v4546, 0
      %v4566 = vsel %vm1413, %v4547, 0
      %v4569 = vsel %vm1413, %v4548, 0
      %v4572 = vsel %vm1413, %v4549, 0
      %v4575 = vsel %vm1413, %v4550, 0
      %v4578 = vsel %vm1413, %v4551, 0
      %v4581 = vsel %vm1413, %v4552, 0
      %v4584 = vsel %vm1413, %v4553, 0
      %4586 = vmatprep.subr.mxu0 0.0
      %4587 = vmatpush1.msra.mxu0 %v1004
      %4588 = vmatprep.subr.mxu0 0.0
      %4589 = vmatpush1.msra.mxu0 %v1009
      %4590 = vmatprep.subr.mxu0 0.0
      %4591 = vmatpush1.msra.mxu0 %v1014
      %4592 = vmatprep.subr.mxu0 0.0
      %4593 = vmatpush1.msra.mxu0 %v1019
      %4594 = vmatprep.subr.mxu0 0.0
      %4595 = vmatpush1.msra.mxu0 %v1024
      %4596 = vmatprep.subr.mxu0 0.0
      %4597 = vmatpush1.msra.mxu0 %v1029
      %4598 = vmatprep.subr.mxu0 0.0
      %4599 = vmatpush1.msra.mxu0 %v1034
      %4600 = vmatprep.subr.mxu0 0.0
      %4601 = vmatpush1.msra.mxu0 %v1039
      %4602 = vmatprep.subr.mxu0 0.0
      %4603 = vmatpush1.msra.mxu0 0.0
      %4604 = vmatprep.subr.mxu0 0.0
      %4605 = vmatpush1.msra.mxu0 0.0
      %4606 = vmatprep.subr.mxu0 0.0
      %4607 = vmatpush1.msra.mxu0 0.0
      %4608 = vmatprep.subr.mxu0 0.0
      %4609 = vmatpush1.msra.mxu0 0.0
      %4610 = vmatprep.subr.mxu0 0.0
      %4611 = vmatpush1.msra.mxu0 0.0
      %4612 = vmatprep.subr.mxu0 0.0
      %4613 = vmatpush1.msra.mxu0 0.0
      %4614 = vmatprep.subr.mxu0 0.0
      %4615 = vmatpush1.msra.mxu0 0.0
      %4616 = vmatprep.subr.mxu0 0.0
      %4617 = vmatpush1.msra.mxu0 0.0
      %4618 = vmatprep.subr.mxu0 0.0
      %4619 = vmatpush1.msra.mxu0 0.0
      %4620 = vmatprep.subr.mxu0 0.0
      %4621 = vmatpush1.msra.mxu0 0.0
      %4622 = vmatprep.subr.mxu0 0.0
      %4623 = vmatpush1.msra.mxu0 0.0
      %4624 = vmatprep.subr.mxu0 0.0
      %4625 = vmatpush1.msra.mxu0 0.0
      %4626 = vmatprep.subr.mxu0 0.0
      %4627 = vmatpush1.msra.mxu0 0.0
      %4628 = vmatprep.subr.mxu0 0.0
      %4629 = vmatpush1.msra.mxu0 0.0
      %4630 = vmatprep.subr.mxu0 0.0
      %4631 = vmatpush1.msra.mxu0 0.0
      %4632 = vmatprep.subr.mxu0 0.0
      %4633 = vmatpush1.msra.mxu0 0.0
      %4634 = vmatprep.subr.mxu0 0.0
      %4635 = vmatpush1.msra.mxu0 0.0
      %4636 = vmatprep.subr.mxu0 0.0
      %4637 = vmatpush1.msra.mxu0 0.0
      %4638 = vmatprep.subr.mxu0 0.0
      %4639 = vmatpush1.msra.mxu0 0.0
      %4640 = vmatprep.subr.mxu0 0.0
      %4641 = vmatpush1.msra.mxu0 0.0
      %4642 = vmatprep.subr.mxu0 0.0
      %4643 = vmatpush1.msra.mxu0 0.0
      %4644 = vmatprep.subr.mxu0 0.0
      %4645 = vmatpush1.msra.mxu0 0.0
      %4646 = vmatprep.subr.mxu0 0.0
      %4647 = vmatpush1.msra.mxu0 0.0
      %4648 = vmatprep.subr.mxu0 0.0
      %4649 = vmatpush1.msra.mxu0 0.0
      %4650 = vmatprep.mubr.f32.mxu0 0.0
      %4651 = vmatmul.mubr.f32.gmra.mrb[0].mxu0 %v4563
      %v4652 = vpop.f32.mrb[0].mxu0
      %v4653 = vadd.f32 0.0, %v4652
      %v4654 = vpop.f32.mrb[0].mxu0
      %4655 = vmatprep.mubr.f32.mxu0 0.0
      %4656 = vmatmul.mubr.f32.gmra.mrb[0].mxu0 %v4566
      %v4657 = vpop.f32.mrb[0].mxu0
      %v4658 = vadd.f32 0.0, %v4657
      %v4659 = vpop.f32.mrb[0].mxu0
      %4660 = vmatprep.mubr.f32.mxu0 0.0
      %4661 = vmatmul.mubr.f32.gmra.mrb[0].mxu0 %v4569
      %v4662 = vpop.f32.mrb[0].mxu0
      %v4663 = vadd.f32 0.0, %v4662
      %v4664 = vpop.f32.mrb[0].mxu0
      %4665 = vmatprep.mubr.f32.mxu0 0.0
      %4666 = vmatmul.mubr.f32.gmra.mrb[0].mxu0 %v4572
      %v4667 = vpop.f32.mrb[0].mxu0
      %v4668 = vadd.f32 0.0, %v4667
      %v4669 = vpop.f32.mrb[0].mxu0
      %4670 = vmatprep.mubr.f32.mxu0 0.0
      %4671 = vmatmul.mubr.f32.gmra.mrb[0].mxu0 %v4575
      %v4672 = vpop.f32.mrb[0].mxu0
      %v4673 = vadd.f32 0.0, %v4672
      %v4674 = vpop.f32.mrb[0].mxu0
      %4675 = vmatprep.mubr.f32.mxu0 0.0
      %4676 = vmatmul.mubr.f32.gmra.mrb[0].mxu0 %v4578
      %v4677 = vpop.f32.mrb[0].mxu0
      %v4678 = vadd.f32 0.0, %v4677
      %v4679 = vpop.f32.mrb[0].mxu0
      %4680 = vmatprep.mubr.f32.mxu0 0.0
      %4681 = vmatmul.mubr.f32.gmra.mrb[0].mxu0 %v4581
      %v4682 = vpop.f32.mrb[0].mxu0
      %v4683 = vadd.f32 0.0, %v4682
      %v4684 = vpop.f32.mrb[0].mxu0
      %4685 = vmatprep.mubr.f32.mxu0 0.0
      %4686 = vmatmul.mubr.f32.gmra.mrb[0].mxu0 %v4584
      %v4687 = vpop.f32.mrb[0].mxu0
      %v4688 = vadd.f32 0.0, %v4687
      %v4689 = vpop.f32.mrb[0].mxu0
      %4690 = vdwg.mxu0
      %v4691 = vadd.f32 %v4529, 1e-05
      %v4692 = vrcp.pop %v4691
      %v4693 = vmul.f32 1.0, %v4692
      %4695 = vbcast.lane.b32.xlu0 %v4693, 256
      %v4696 = vpop.permute.xlu0 %4695
      %s4698 = sor.u32 256, 8
      %4699 = vbcast.lane.b32.xlu0 %v4693, %s4698
      %v4700 = vpop.permute.xlu0 %4699
      %s4702 = sor.u32 256, 16
      %4703 = vbcast.lane.b32.xlu0 %v4693, %s4702
      %v4704 = vpop.permute.xlu0 %4703
      %s4706 = sor.u32 256, 24
      %4707 = vbcast.lane.b32.xlu0 %v4693, %s4706
      %v4708 = vpop.permute.xlu0 %4707
      %s4710 = sor.u32 256, 32
      %4711 = vbcast.lane.b32.xlu0 %v4693, %s4710
      %v4712 = vpop.permute.xlu0 %4711
      %s4714 = sor.u32 256, 40
      %4715 = vbcast.lane.b32.xlu0 %v4693, %s4714
      %v4716 = vpop.permute.xlu0 %4715
      %s4718 = sor.u32 256, 48
      %4719 = vbcast.lane.b32.xlu0 %v4693, %s4718
      %v4720 = vpop.permute.xlu0 %4719
      %s4722 = sor.u32 256, 56
      %4723 = vbcast.lane.b32.xlu0 %v4693, %s4722
      %v4724 = vpop.permute.xlu0 %4723
      %v4725 = vmul.f32 %v4653, %v4696
      %v4726 = vmul.f32 %v4658, %v4700
      %v4727 = vmul.f32 %v4663, %v4704
      %v4728 = vmul.f32 %v4668, %v4708
      %v4729 = vmul.f32 %v4673, %v4712
      %v4730 = vmul.f32 %v4678, %v4716
      %v4731 = vmul.f32 %v4683, %v4720
      %v4732 = vmul.f32 %v4688, %v4724
      %v4733 = vld [vmem:[%s14] sm:$0xff]
      %v4734 = vld [vmem:[%s14 + $0x8] sm:$0xff]
      %v4735 = vld [vmem:[%s14 + $0x10] sm:$0xff]
      %v4736 = vld [vmem:[%s14 + $0x18] sm:$0xff]
      %v4737 = vld [vmem:[%s14 + $0x20] sm:$0xff]
      %v4738 = vld [vmem:[%s14 + $0x28] sm:$0xff]
      %v4739 = vld [vmem:[%s14 + $0x30] sm:$0xff]
      %v4740 = vld [vmem:[%s14 + $0x38] sm:$0xff]
      %v4741 = vmul.f32 %v4725, %v4733
      %v4742 = vmul.f32 %v4726, %v4734
      %v4743 = vmul.f32 %v4727, %v4735
      %v4744 = vmul.f32 %v4728, %v4736
      %v4745 = vmul.f32 %v4729, %v4737
      %v4746 = vmul.f32 %v4730, %v4738
      %v4747 = vmul.f32 %v4731, %v4739
      %v4748 = vmul.f32 %v4732, %v4740
      %v4749 = vld [vmem:[%s13] sm:$0xff]
      %v4750 = vld [vmem:[%s13 + $0x8] sm:$0xff]
      %v4751 = vld [vmem:[%s13 + $0x10] sm:$0xff]
      %v4752 = vld [vmem:[%s13 + $0x18] sm:$0xff]
      %v4754 = vsel %vm768, %v4741, 0
      %v4757 = vsel %vm768, %v4742, 0
      %v4760 = vsel %vm768, %v4743, 0
      %v4763 = vsel %vm768, %v4744, 0
      %v4766 = vsel %vm768, %v4745, 0
      %v4769 = vsel %vm768, %v4746, 0
      %v4772 = vsel %vm768, %v4747, 0
      %v4775 = vsel %vm768, %v4748, 0
      %4777 = vmatprep.subr.mxu0 0.0
      %4778 = vmatpush1.msra.mxu0 %v4749
      %4779 = vmatprep.subr.mxu0 0.0
      %4780 = vmatpush1.msra.mxu0 %v4750
      %4781 = vmatprep.subr.mxu0 0.0
      %4782 = vmatpush1.msra.mxu0 %v4751
      %4783 = vmatprep.subr.mxu0 0.0
      %4784 = vmatpush1.msra.mxu0 %v4752
      %4785 = vmatprep.subr.mxu0 0.0
      %4786 = vmatpush1.msra.mxu0 0.0
      %4787 = vmatprep.subr.mxu0 0.0
      %4788 = vmatpush1.msra.mxu0 0.0
      %4789 = vmatprep.subr.mxu0 0.0
      %4790 = vmatpush1.msra.mxu0 0.0
      %4791 = vmatprep.subr.mxu0 0.0
      %4792 = vmatpush1.msra.mxu0 0.0
      %4793 = vmatprep.subr.mxu0 0.0
      %4794 = vmatpush1.msra.mxu0 0.0
      %4795 = vmatprep.subr.mxu0 0.0
      %4796 = vmatpush1.msra.mxu0 0.0
      %4797 = vmatprep.subr.mxu0 0.0
      %4798 = vmatpush1.msra.mxu0 0.0
      %4799 = vmatprep.subr.mxu0 0.0
      %4800 = vmatpush1.msra.mxu0 0.0
      %4801 = vmatprep.subr.mxu0 0.0
      %4802 = vmatpush1.msra.mxu0 0.0
      %4803 = vmatprep.subr.mxu0 0.0
      %4804 = vmatpush1.msra.mxu0 0.0
      %4805 = vmatprep.subr.mxu0 0.0
      %4806 = vmatpush1.msra.mxu0 0.0
      %4807 = vmatprep.subr.mxu0 0.0
      %4808 = vmatpush1.msra.mxu0 0.0
      %4809 = vmatprep.subr.mxu0 0.0
      %4810 = vmatpush1.msra.mxu0 0.0
      %4811 = vmatprep.subr.mxu0 0.0
      %4812 = vmatpush1.msra.mxu0 0.0
      %4813 = vmatprep.subr.mxu0 0.0
      %4814 = vmatpush1.msra.mxu0 0.0
      %4815 = vmatprep.subr.mxu0 0.0
      %4816 = vmatpush1.msra.mxu0 0.0
      %4817 = vmatprep.subr.mxu0 0.0
      %4818 = vmatpush1.msra.mxu0 0.0
      %4819 = vmatprep.subr.mxu0 0.0
      %4820 = vmatpush1.msra.mxu0 0.0
      %4821 = vmatprep.subr.mxu0 0.0
      %4822 = vmatpush1.msra.mxu0 0.0
      %4823 = vmatprep.subr.mxu0 0.0
      %4824 = vmatpush1.msra.mxu0 0.0
      %4825 = vmatprep.subr.mxu0 0.0
      %4826 = vmatpush1.msra.mxu0 0.0
      %4827 = vmatprep.subr.mxu0 0.0
      %4828 = vmatpush1.msra.mxu0 0.0
      %4829 = vmatprep.subr.mxu0 0.0
      %4830 = vmatpush1.msra.mxu0 0.0
      %4831 = vmatprep.subr.mxu0 0.0
      %4832 = vmatpush1.msra.mxu0 0.0
      %4833 = vmatprep.subr.mxu0 0.0
      %4834 = vmatpush1.msra.mxu0 0.0
      %4835 = vmatprep.subr.mxu0 0.0
      %4836 = vmatpush1.msra.mxu0 0.0
      %4837 = vmatprep.subr.mxu0 0.0
      %4838 = vmatpush1.msra.mxu0 0.0
      %4839 = vmatprep.subr.mxu0 0.0
      %4840 = vmatpush1.msra.mxu0 0.0
      %4841 = vmatprep.mubr.f32.mxu0 0.0
      %4842 = vmatmul.mubr.f32.gmra.mrb[0].mxu0 %v4754
      %v4843 = vpop.f32.mrb[0].mxu0
      %v4844 = vadd.f32 0.0, %v4843
      %v4845 = vpop.f32.mrb[0].mxu0
      %4846 = vmatprep.mubr.f32.mxu0 0.0
      %4847 = vmatmul.mubr.f32.gmra.mrb[0].mxu0 %v4757
      %v4848 = vpop.f32.mrb[0].mxu0
      %v4849 = vadd.f32 0.0, %v4848
      %v4850 = vpop.f32.mrb[0].mxu0
      %4851 = vmatprep.mubr.f32.mxu0 0.0
      %4852 = vmatmul.mubr.f32.gmra.mrb[0].mxu0 %v4760
      %v4853 = vpop.f32.mrb[0].mxu0
      %v4854 = vadd.f32 0.0, %v4853
      %v4855 = vpop.f32.mrb[0].mxu0
      %4856 = vmatprep.mubr.f32.mxu0 0.0
      %4857 = vmatmul.mubr.f32.gmra.mrb[0].mxu0 %v4763
      %v4858 = vpop.f32.mrb[0].mxu0
      %v4859 = vadd.f32 0.0, %v4858
      %v4860 = vpop.f32.mrb[0].mxu0
      %4861 = vmatprep.mubr.f32.mxu0 0.0
      %4862 = vmatmul.mubr.f32.gmra.mrb[0].mxu0 %v4766
      %v4863 = vpop.f32.mrb[0].mxu0
      %v4864 = vadd.f32 0.0, %v4863
      %v4865 = vpop.f32.mrb[0].mxu0
      %4866 = vmatprep.mubr.f32.mxu0 0.0
      %4867 = vmatmul.mubr.f32.gmra.mrb[0].mxu0 %v4769
      %v4868 = vpop.f32.mrb[0].mxu0
      %v4869 = vadd.f32 0.0, %v4868
      %v4870 = vpop.f32.mrb[0].mxu0
      %4871 = vmatprep.mubr.f32.mxu0 0.0
      %4872 = vmatmul.mubr.f32.gmra.mrb[0].mxu0 %v4772
      %v4873 = vpop.f32.mrb[0].mxu0
      %v4874 = vadd.f32 0.0, %v4873
      %v4875 = vpop.f32.mrb[0].mxu0
      %4876 = vmatprep.mubr.f32.mxu0 0.0
      %4877 = vmatmul.mubr.f32.gmra.mrb[0].mxu0 %v4775
      %v4878 = vpop.f32.mrb[0].mxu0
      %v4879 = vadd.f32 0.0, %v4878
      %v4880 = vpop.f32.mrb[0].mxu0
      %4881 = vdwg.mxu0
      %4890 = vrot.lane.b32.xlu0 %v4844, 96
      %v4891 = vpop.permute.xlu0 %4890
      %4892 = vrot.lane.b32.xlu0 %v4849, 96
      %v4893 = vpop.permute.xlu0 %4892
      %4894 = vrot.lane.b32.xlu0 %v4854, 96
      %v4895 = vpop.permute.xlu0 %4894
      %4896 = vrot.lane.b32.xlu0 %v4859, 96
      %v4897 = vpop.permute.xlu0 %4896
      %4898 = vrot.lane.b32.xlu0 %v4864, 96
      %v4899 = vpop.permute.xlu0 %4898
      %4900 = vrot.lane.b32.xlu0 %v4869, 96
      %v4901 = vpop.permute.xlu0 %4900
      %4902 = vrot.lane.b32.xlu0 %v4874, 96
      %v4903 = vpop.permute.xlu0 %4902
      %4904 = vrot.lane.b32.xlu0 %v4879, 96
      %v4905 = vpop.permute.xlu0 %4904
      %v4906 = vsel %vm768, %v4844, 0
      %v4908 = vsel %vm768, %v4849, 0
      %v4910 = vsel %vm768, %v4854, 0
      %v4912 = vsel %vm768, %v4859, 0
      %v4914 = vsel %vm768, %v4864, 0
      %v4916 = vsel %vm768, %v4869, 0
      %v4918 = vsel %vm768, %v4874, 0
      %v4920 = vsel %vm768, %v4879, 0
      %v4922 = vsel %vm768, %v4891, 0
      %v4924 = vsel %vm768, %v4893, 0
      %v4926 = vsel %vm768, %v4895, 0
      %v4928 = vsel %vm768, %v4897, 0
      %v4930 = vsel %vm768, %v4899, 0
      %v4932 = vsel %vm768, %v4901, 0
      %v4934 = vsel %vm768, %v4903, 0
      %v4936 = vsel %vm768, %v4905, 0
      %4938 = vmatprep.subr.mxu0 0.0
      %4939 = vmatpush1.xpose.msra.mxu0 %v4922
      %4940 = vmatprep.subr.mxu0 0.0
      %4941 = vmatpush1.xpose.msra.mxu0 %v4924
      %4942 = vmatprep.subr.mxu0 0.0
      %4943 = vmatpush1.xpose.msra.mxu0 %v4926
      %4944 = vmatprep.subr.mxu0 0.0
      %4945 = vmatpush1.xpose.msra.mxu0 %v4928
      %4946 = vmatprep.subr.mxu0 0.0
      %4947 = vmatpush1.xpose.msra.mxu0 %v4930
      %4948 = vmatprep.subr.mxu0 0.0
      %4949 = vmatpush1.xpose.msra.mxu0 %v4932
      %4950 = vmatprep.subr.mxu0 0.0
      %4951 = vmatpush1.xpose.msra.mxu0 %v4934
      %4952 = vmatprep.subr.mxu0 0.0
      %4953 = vmatpush1.xpose.msra.mxu0 %v4936
      %4954 = vmatprep.subr.mxu0 0.0
      %4955 = vmatpush1.xpose.msra.mxu0 0.0
      %4956 = vmatprep.subr.mxu0 0.0
      %4957 = vmatpush1.xpose.msra.mxu0 0.0
      %4958 = vmatprep.subr.mxu0 0.0
      %4959 = vmatpush1.xpose.msra.mxu0 0.0
      %4960 = vmatprep.subr.mxu0 0.0
      %4961 = vmatpush1.xpose.msra.mxu0 0.0
      %4962 = vmatprep.subr.mxu0 0.0
      %4963 = vmatpush1.xpose.msra.mxu0 0.0
      %4964 = vmatprep.subr.mxu0 0.0
      %4965 = vmatpush1.xpose.msra.mxu0 0.0
      %4966 = vmatprep.subr.mxu0 0.0
      %4967 = vmatpush1.xpose.msra.mxu0 0.0
      %4968 = vmatprep.subr.mxu0 0.0
      %4969 = vmatpush1.xpose.msra.mxu0 0.0
      %4970 = vmatprep.subr.mxu0 0.0
      %4971 = vmatpush1.xpose.msra.mxu0 0.0
      %4972 = vmatprep.subr.mxu0 0.0
      %4973 = vmatpush1.xpose.msra.mxu0 0.0
      %4974 = vmatprep.subr.mxu0 0.0
      %4975 = vmatpush1.xpose.msra.mxu0 0.0
      %4976 = vmatprep.subr.mxu0 0.0
      %4977 = vmatpush1.xpose.msra.mxu0 0.0
      %4978 = vmatprep.subr.mxu0 0.0
      %4979 = vmatpush1.xpose.msra.mxu0 0.0
      %4980 = vmatprep.subr.mxu0 0.0
      %4981 = vmatpush1.xpose.msra.mxu0 0.0
      %4982 = vmatprep.subr.mxu0 0.0
      %4983 = vmatpush1.xpose.msra.mxu0 0.0
      %4984 = vmatprep.subr.mxu0 0.0
      %4985 = vmatpush1.xpose.msra.mxu0 0.0
      %4986 = vmatprep.subr.mxu0 0.0
      %4987 = vmatpush1.xpose.msra.mxu0 0.0
      %4988 = vmatprep.subr.mxu0 0.0
      %4989 = vmatpush1.xpose.msra.mxu0 0.0
      %4990 = vmatprep.subr.mxu0 0.0
      %4991 = vmatpush1.xpose.msra.mxu0 0.0
      %4992 = vmatprep.subr.mxu0 0.0
      %4993 = vmatpush1.xpose.msra.mxu0 0.0
      %4994 = vmatprep.subr.mxu0 0.0
      %4995 = vmatpush1.xpose.msra.mxu0 0.0
      %4996 = vmatprep.subr.mxu0 0.0
      %4997 = vmatpush1.xpose.msra.mxu0 0.0
      %4998 = vmatprep.subr.mxu0 0.0
      %4999 = vmatpush1.xpose.msra.mxu0 0.0
      %5000 = vmatprep.subr.mxu0 0.0
      %5001 = vmatpush1.xpose.msra.mxu0 0.0
      %5002 = vmatprep.mubr.f32.mxu0 0.0
      %5003 = vmatmul.mubr.f32.gmra.mrb[0].mxu0 %v4906
      %v5004 = vpop.f32.mrb[0].mxu0
      %v5005 = vadd.f32 0.0, %v5004
      %v5006 = vpop.f32.mrb[0].mxu0
      %5007 = vmatprep.mubr.f32.mxu0 0.0
      %5008 = vmatmul.mubr.f32.gmra.mrb[0].mxu0 %v4908
      %v5009 = vpop.f32.mrb[0].mxu0
      %v5010 = vadd.f32 0.0, %v5009
      %v5011 = vpop.f32.mrb[0].mxu0
      %5012 = vmatprep.mubr.f32.mxu0 0.0
      %5013 = vmatmul.mubr.f32.gmra.mrb[0].mxu0 %v4910
      %v5014 = vpop.f32.mrb[0].mxu0
      %v5015 = vadd.f32 0.0, %v5014
      %v5016 = vpop.f32.mrb[0].mxu0
      %5017 = vmatprep.mubr.f32.mxu0 0.0
      %5018 = vmatmul.mubr.f32.gmra.mrb[0].mxu0 %v4912
      %v5019 = vpop.f32.mrb[0].mxu0
      %v5020 = vadd.f32 0.0, %v5019
      %v5021 = vpop.f32.mrb[0].mxu0
      %5022 = vmatprep.mubr.f32.mxu0 0.0
      %5023 = vmatmul.mubr.f32.gmra.mrb[0].mxu0 %v4914
      %v5024 = vpop.f32.mrb[0].mxu0
      %v5025 = vadd.f32 0.0, %v5024
      %v5026 = vpop.f32.mrb[0].mxu0
      %5027 = vmatprep.mubr.f32.mxu0 0.0
      %5028 = vmatmul.mubr.f32.gmra.mrb[0].mxu0 %v4916
      %v5029 = vpop.f32.mrb[0].mxu0
      %v5030 = vadd.f32 0.0, %v5029
      %v5031 = vpop.f32.mrb[0].mxu0
      %5032 = vmatprep.mubr.f32.mxu0 0.0
      %5033 = vmatmul.mubr.f32.gmra.mrb[0].mxu0 %v4918
      %v5034 = vpop.f32.mrb[0].mxu0
      %v5035 = vadd.f32 0.0, %v5034
      %v5036 = vpop.f32.mrb[0].mxu0
      %5037 = vmatprep.mubr.f32.mxu0 0.0
      %5038 = vmatmul.mubr.f32.gmra.mrb[0].mxu0 %v4920
      %v5039 = vpop.f32.mrb[0].mxu0
      %v5040 = vadd.f32 0.0, %v5039
      %v5041 = vpop.f32.mrb[0].mxu0
      %5042 = vdwg.mxu0
      %v5043 = vmul.f32 %v5005, 0.35355338
      %v5044 = vmul.f32 %v5010, 0.35355338
      %v5045 = vmul.f32 %v5015, 0.35355338
      %v5046 = vmul.f32 %v5020, 0.35355338
      %v5047 = vmul.f32 %v5025, 0.35355338
      %v5048 = vmul.f32 %v5030, 0.35355338
      %v5049 = vmul.f32 %v5035, 0.35355338
      %v5050 = vmul.f32 %v5040, 0.35355338
      %v5051 = vld [vmem:[%s15] sm:$0xff]
      %v5052 = vld [vmem:[%s15 + $0x8] sm:$0xff]
      %v5053 = vld [vmem:[%s15 + $0x10] sm:$0xff]
      %v5054 = vld [vmem:[%s15 + $0x18] sm:$0xff]
      %v5055 = vld [vmem:[%s15 + $0x20] sm:$0xff]
      %v5056 = vld [vmem:[%s15 + $0x28] sm:$0xff]
      %v5057 = vld [vmem:[%s15 + $0x30] sm:$0xff]
      %v5058 = vld [vmem:[%s15 + $0x38] sm:$0xff]
      %v5059 = vadd.f32 %v5043, %v5051
      %v5060 = vadd.f32 %v5044, %v5052
      %v5061 = vadd.f32 %v5045, %v5053
      %v5062 = vadd.f32 %v5046, %v5054
      %v5063 = vadd.f32 %v5047, %v5055
      %v5064 = vadd.f32 %v5048, %v5056
      %v5065 = vadd.f32 %v5049, %v5057
      %v5066 = vadd.f32 %v5050, %v5058
      %v5067 = vsel %vm1413, %v5059, -inf
      %5068 = vmax.xlane.f32.xlu0 %v5067
      %v5069 = vpop.xlane.xlu0 %5068
      %v5070 = vsel %vm1413, %v5060, -inf
      %5071 = vmax.xlane.f32.xlu0 %v5070
      %v5072 = vpop.xlane.xlu0 %5071
      %v5073 = vsel %vm1413, %v5061, -inf
      %5074 = vmax.xlane.f32.xlu0 %v5073
      %v5075 = vpop.xlane.xlu0 %5074
      %v5076 = vsel %vm1413, %v5062, -inf
      %5077 = vmax.xlane.f32.xlu0 %v5076
      %v5078 = vpop.xlane.xlu0 %5077
      %v5079 = vsel %vm1413, %v5063, -inf
      %5080 = vmax.xlane.f32.xlu0 %v5079
      %v5081 = vpop.xlane.xlu0 %5080
      %v5082 = vsel %vm1413, %v5064, -inf
      %5083 = vmax.xlane.f32.xlu0 %v5082
      %v5084 = vpop.xlane.xlu0 %5083
      %v5085 = vsel %vm1413, %v5065, -inf
      %5086 = vmax.xlane.f32.xlu0 %v5085
      %v5087 = vpop.xlane.xlu0 %5086
      %v5088 = vsel %vm1413, %v5066, -inf
      %5089 = vmax.xlane.f32.xlu0 %v5088
      %v5090 = vpop.xlane.xlu0 %5089
      %v5091 = vsub.f32 %v5059, %v5069
      %v5092 = vsub.f32 %v5060, %v5072
      %v5093 = vsub.f32 %v5061, %v5075
      %v5094 = vsub.f32 %v5062, %v5078
      %v5095 = vsub.f32 %v5063, %v5081
      %v5096 = vsub.f32 %v5064, %v5084
      %v5097 = vsub.f32 %v5065, %v5087
      %v5098 = vsub.f32 %v5066, %v5090
      %v5099 = vmul.f32 %v5091, 1.442695
      %v5100 = vpow.pop %v5099
      %v5101 = vmul.f32 %v5092, 1.442695
      %v5102 = vpow.pop %v5101
      %v5103 = vmul.f32 %v5093, 1.442695
      %v5104 = vpow.pop %v5103
      %v5105 = vmul.f32 %v5094, 1.442695
      %v5106 = vpow.pop %v5105
      %v5107 = vmul.f32 %v5095, 1.442695
      %v5108 = vpow.pop %v5107
      %v5109 = vmul.f32 %v5096, 1.442695
      %v5110 = vpow.pop %v5109
      %v5111 = vmul.f32 %v5097, 1.442695
      %v5112 = vpow.pop %v5111
      %v5113 = vmul.f32 %v5098, 1.442695
      %v5114 = vpow.pop %v5113
      %v5115 = vsel %vm1413, %v5100, 0.0
      %5116 = vadd.xlane.f32.xlu0 %v5115
      %v5117 = vpop.xlane.xlu0 %5116
      %v5118 = vsel %vm1413, %v5102, 0.0
      %5119 = vadd.xlane.f32.xlu0 %v5118
      %v5120 = vpop.xlane.xlu0 %5119
      %v5121 = vsel %vm1413, %v5104, 0.0
      %5122 = vadd.xlane.f32.xlu0 %v5121
      %v5123 = vpop.xlane.xlu0 %5122
      %v5124 = vsel %vm1413, %v5106, 0.0
      %5125 = vadd.xlane.f32.xlu0 %v5124
      %v5126 = vpop.xlane.xlu0 %5125
      %v5127 = vsel %vm1413, %v5108, 0.0
      %5128 = vadd.xlane.f32.xlu0 %v5127
      %v5129 = vpop.xlane.xlu0 %5128
      %v5130 = vsel %vm1413, %v5110, 0.0
      %5131 = vadd.xlane.f32.xlu0 %v5130
      %v5132 = vpop.xlane.xlu0 %5131
      %v5133 = vsel %vm1413, %v5112, 0.0
      %5134 = vadd.xlane.f32.xlu0 %v5133
      %v5135 = vpop.xlane.xlu0 %5134
      %v5136 = vsel %vm1413, %v5114, 0.0
      %5137 = vadd.xlane.f32.xlu0 %v5136
      %v5138 = vpop.xlane.xlu0 %5137
      %v5139 = vrcp.pop %v5117
      %v5140 = vmul.f32 1.0, %v5139
      %v5141 = vrcp.pop %v5120
      %v5142 = vmul.f32 1.0, %v5141
      %v5143 = vrcp.pop %v5123
      %v5144 = vmul.f32 1.0, %v5143
      %v5145 = vrcp.pop %v5126
      %v5146 = vmul.f32 1.0, %v5145
      %v5147 = vrcp.pop %v5129
      %v5148 = vmul.f32 1.0, %v5147
      %v5149 = vrcp.pop %v5132
      %v5150 = vmul.f32 1.0, %v5149
      %v5151 = vrcp.pop %v5135
      %v5152 = vmul.f32 1.0, %v5151
      %v5153 = vrcp.pop %v5138
      %v5154 = vmul.f32 1.0, %v5153
      %v5155 = vmul.f32 %v5100, %v5140
      %v5156 = vmul.f32 %v5102, %v5142
      %v5157 = vmul.f32 %v5104, %v5144
      %v5158 = vmul.f32 %v5106, %v5146
      %v5159 = vmul.f32 %v5108, %v5148
      %v5160 = vmul.f32 %v5110, %v5150
      %v5161 = vmul.f32 %v5112, %v5152
      %v5162 = vmul.f32 %v5114, %v5154
      %5163 = vrot.lane.b32.xlu0 %v4844, 64
      %v5164 = vpop.permute.xlu0 %5163
      %5165 = vrot.lane.b32.xlu0 %v4849, 64
      %v5166 = vpop.permute.xlu0 %5165
      %5167 = vrot.lane.b32.xlu0 %v4854, 64
      %v5168 = vpop.permute.xlu0 %5167
      %5169 = vrot.lane.b32.xlu0 %v4859, 64
      %v5170 = vpop.permute.xlu0 %5169
      %5171 = vrot.lane.b32.xlu0 %v4864, 64
      %v5172 = vpop.permute.xlu0 %5171
      %5173 = vrot.lane.b32.xlu0 %v4869, 64
      %v5174 = vpop.permute.xlu0 %5173
      %5175 = vrot.lane.b32.xlu0 %v4874, 64
      %v5176 = vpop.permute.xlu0 %5175
      %5177 = vrot.lane.b32.xlu0 %v4879, 64
      %v5178 = vpop.permute.xlu0 %5177
      %v5188 = vsel %vm1413, %v5155, 0
      %v5191 = vsel %vm1413, %v5156, 0
      %v5194 = vsel %vm1413, %v5157, 0
      %v5197 = vsel %vm1413, %v5158, 0
      %v5200 = vsel %vm1413, %v5159, 0
      %v5203 = vsel %vm1413, %v5160, 0
      %v5206 = vsel %vm1413, %v5161, 0
      %v5209 = vsel %vm1413, %v5162, 0
      %5211 = vmatprep.subr.mxu0 0.0
      %5212 = vmatpush1.msra.mxu0 %v5164
      %5213 = vmatprep.subr.mxu0 0.0
      %5214 = vmatpush1.msra.mxu0 %v5166
      %5215 = vmatprep.subr.mxu0 0.0
      %5216 = vmatpush1.msra.mxu0 %v5168
      %5217 = vmatprep.subr.mxu0 0.0
      %5218 = vmatpush1.msra.mxu0 %v5170
      %5219 = vmatprep.subr.mxu0 0.0
      %5220 = vmatpush1.msra.mxu0 %v5172
      %5221 = vmatprep.subr.mxu0 0.0
      %5222 = vmatpush1.msra.mxu0 %v5174
      %5223 = vmatprep.subr.mxu0 0.0
      %5224 = vmatpush1.msra.mxu0 %v5176
      %5225 = vmatprep.subr.mxu0 0.0
      %5226 = vmatpush1.msra.mxu0 %v5178
      %5227 = vmatprep.subr.mxu0 0.0
      %5228 = vmatpush1.msra.mxu0 0.0
      %5229 = vmatprep.subr.mxu0 0.0
      %5230 = vmatpush1.msra.mxu0 0.0
      %5231 = vmatprep.subr.mxu0 0.0
      %5232 = vmatpush1.msra.mxu0 0.0
      %5233 = vmatprep.subr.mxu0 0.0
      %5234 = vmatpush1.msra.mxu0 0.0
      %5235 = vmatprep.subr.mxu0 0.0
      %5236 = vmatpush1.msra.mxu0 0.0
      %5237 = vmatprep.subr.mxu0 0.0
      %5238 = vmatpush1.msra.mxu0 0.0
      %5239 = vmatprep.subr.mxu0 0.0
      %5240 = vmatpush1.msra.mxu0 0.0
      %5241 = vmatprep.subr.mxu0 0.0
      %5242 = vmatpush1.msra.mxu0 0.0
      %5243 = vmatprep.subr.mxu0 0.0
      %5244 = vmatpush1.msra.mxu0 0.0
      %5245 = vmatprep.subr.mxu0 0.0
      %5246 = vmatpush1.msra.mxu0 0.0
      %5247 = vmatprep.subr.mxu0 0.0
      %5248 = vmatpush1.msra.mxu0 0.0
      %5249 = vmatprep.subr.mxu0 0.0
      %5250 = vmatpush1.msra.mxu0 0.0
      %5251 = vmatprep.subr.mxu0 0.0
      %5252 = vmatpush1.msra.mxu0 0.0
      %5253 = vmatprep.subr.mxu0 0.0
      %5254 = vmatpush1.msra.mxu0 0.0
      %5255 = vmatprep.subr.mxu0 0.0
      %5256 = vmatpush1.msra.mxu0 0.0
      %5257 = vmatprep.subr.mxu0 0.0
      %5258 = vmatpush1.msra.mxu0 0.0
      %5259 = vmatprep.subr.mxu0 0.0
      %5260 = vmatpush1.msra.mxu0 0.0
      %5261 = vmatprep.subr.mxu0 0.0
      %5262 = vmatpush1.msra.mxu0 0.0
      %5263 = vmatprep.subr.mxu0 0.0
      %5264 = vmatpush1.msra.mxu0 0.0
      %5265 = vmatprep.subr.mxu0 0.0
      %5266 = vmatpush1.msra.mxu0 0.0
      %5267 = vmatprep.subr.mxu0 0.0
      %5268 = vmatpush1.msra.mxu0 0.0
      %5269 = vmatprep.subr.mxu0 0.0
      %5270 = vmatpush1.msra.mxu0 0.0
      %5271 = vmatprep.subr.mxu0 0.0
      %5272 = vmatpush1.msra.mxu0 0.0
      %5273 = vmatprep.subr.mxu0 0.0
      %5274 = vmatpush1.msra.mxu0 0.0
      %5275 = vmatprep.mubr.f32.mxu0 0.0
      %5276 = vmatmul.mubr.f32.gmra.mrb[0].mxu0 %v5188
      %v5277 = vpop.f32.mrb[0].mxu0
      %v5278 = vadd.f32 0.0, %v5277
      %v5279 = vpop.f32.mrb[0].mxu0
      %5280 = vmatprep.mubr.f32.mxu0 0.0
      %5281 = vmatmul.mubr.f32.gmra.mrb[0].mxu0 %v5191
      %v5282 = vpop.f32.mrb[0].mxu0
      %v5283 = vadd.f32 0.0, %v5282
      %v5284 = vpop.f32.mrb[0].mxu0
      %5285 = vmatprep.mubr.f32.mxu0 0.0
      %5286 = vmatmul.mubr.f32.gmra.mrb[0].mxu0 %v5194
      %v5287 = vpop.f32.mrb[0].mxu0
      %v5288 = vadd.f32 0.0, %v5287
      %v5289 = vpop.f32.mrb[0].mxu0
      %5290 = vmatprep.mubr.f32.mxu0 0.0
      %5291 = vmatmul.mubr.f32.gmra.mrb[0].mxu0 %v5197
      %v5292 = vpop.f32.mrb[0].mxu0
      %v5293 = vadd.f32 0.0, %v5292
      %v5294 = vpop.f32.mrb[0].mxu0
      %5295 = vmatprep.mubr.f32.mxu0 0.0
      %5296 = vmatmul.mubr.f32.gmra.mrb[0].mxu0 %v5200
      %v5297 = vpop.f32.mrb[0].mxu0
      %v5298 = vadd.f32 0.0, %v5297
      %v5299 = vpop.f32.mrb[0].mxu0
      %5300 = vmatprep.mubr.f32.mxu0 0.0
      %5301 = vmatmul.mubr.f32.gmra.mrb[0].mxu0 %v5203
      %v5302 = vpop.f32.mrb[0].mxu0
      %v5303 = vadd.f32 0.0, %v5302
      %v5304 = vpop.f32.mrb[0].mxu0
      %5305 = vmatprep.mubr.f32.mxu0 0.0
      %5306 = vmatmul.mubr.f32.gmra.mrb[0].mxu0 %v5206
      %v5307 = vpop.f32.mrb[0].mxu0
      %v5308 = vadd.f32 0.0, %v5307
      %v5309 = vpop.f32.mrb[0].mxu0
      %5310 = vmatprep.mubr.f32.mxu0 0.0
      %5311 = vmatmul.mubr.f32.gmra.mrb[0].mxu0 %v5209
      %v5312 = vpop.f32.mrb[0].mxu0
      %v5313 = vadd.f32 0.0, %v5312
      %v5314 = vpop.f32.mrb[0].mxu0
      %5315 = vdwg.mxu0
      %v5316 = vld [vmem:[%s16] sm:$0xff]
      %v5317 = vld [vmem:[%s16 + $0x8] sm:$0xff]
      %v5318 = vld [vmem:[%s16 + $0x10] sm:$0xff]
      %v5319 = vld [vmem:[%s16 + $0x18] sm:$0xff]
      %v5321 = vsel %vm768, %v5278, 0
      %v5324 = vsel %vm768, %v5283, 0
      %v5327 = vsel %vm768, %v5288, 0
      %v5330 = vsel %vm768, %v5293, 0
      %v5333 = vsel %vm768, %v5298, 0
      %v5336 = vsel %vm768, %v5303, 0
      %v5339 = vsel %vm768, %v5308, 0
      %v5342 = vsel %vm768, %v5313, 0
      %5344 = vmatprep.subr.mxu0 0.0
      %5345 = vmatpush1.msra.mxu0 %v5316
      %5346 = vmatprep.subr.mxu0 0.0
      %5347 = vmatpush1.msra.mxu0 %v5317
      %5348 = vmatprep.subr.mxu0 0.0
      %5349 = vmatpush1.msra.mxu0 %v5318
      %5350 = vmatprep.subr.mxu0 0.0
      %5351 = vmatpush1.msra.mxu0 %v5319
      %5352 = vmatprep.subr.mxu0 0.0
      %5353 = vmatpush1.msra.mxu0 0.0
      %5354 = vmatprep.subr.mxu0 0.0
      %5355 = vmatpush1.msra.mxu0 0.0
      %5356 = vmatprep.subr.mxu0 0.0
      %5357 = vmatpush1.msra.mxu0 0.0
      %5358 = vmatprep.subr.mxu0 0.0
      %5359 = vmatpush1.msra.mxu0 0.0
      %5360 = vmatprep.subr.mxu0 0.0
      %5361 = vmatpush1.msra.mxu0 0.0
      %5362 = vmatprep.subr.mxu0 0.0
      %5363 = vmatpush1.msra.mxu0 0.0
      %5364 = vmatprep.subr.mxu0 0.0
      %5365 = vmatpush1.msra.mxu0 0.0
      %5366 = vmatprep.subr.mxu0 0.0
      %5367 = vmatpush1.msra.mxu0 0.0
      %5368 = vmatprep.subr.mxu0 0.0
      %5369 = vmatpush1.msra.mxu0 0.0
      %5370 = vmatprep.subr.mxu0 0.0
      %5371 = vmatpush1.msra.mxu0 0.0
      %5372 = vmatprep.subr.mxu0 0.0
      %5373 = vmatpush1.msra.mxu0 0.0
      %5374 = vmatprep.subr.mxu0 0.0
      %5375 = vmatpush1.msra.mxu0 0.0
      %5376 = vmatprep.subr.mxu0 0.0
      %5377 = vmatpush1.msra.mxu0 0.0
      %5378 = vmatprep.subr.mxu0 0.0
      %5379 = vmatpush1.msra.mxu0 0.0
      %5380 = vmatprep.subr.mxu0 0.0
      %5381 = vmatpush1.msra.mxu0 0.0
      %5382 = vmatprep.subr.mxu0 0.0
      %5383 = vmatpush1.msra.mxu0 0.0
      %5384 = vmatprep.subr.mxu0 0.0
      %5385 = vmatpush1.msra.mxu0 0.0
      %5386 = vmatprep.subr.mxu0 0.0
      %5387 = vmatpush1.msra.mxu0 0.0
      %5388 = vmatprep.subr.mxu0 0.0
      %5389 = vmatpush1.msra.mxu0 0.0
      %5390 = vmatprep.subr.mxu0 0.0
      %5391 = vmatpush1.msra.mxu0 0.0
      %5392 = vmatprep.subr.mxu0 0.0
      %5393 = vmatpush1.msra.mxu0 0.0
      %5394 = vmatprep.subr.mxu0 0.0
      %5395 = vmatpush1.msra.mxu0 0.0
      %5396 = vmatprep.subr.mxu0 0.0
      %5397 = vmatpush1.msra.mxu0 0.0
      %5398 = vmatprep.subr.mxu0 0.0
      %5399 = vmatpush1.msra.mxu0 0.0
      %5400 = vmatprep.subr.mxu0 0.0
      %5401 = vmatpush1.msra.mxu0 0.0
      %5402 = vmatprep.subr.mxu0 0.0
      %5403 = vmatpush1.msra.mxu0 0.0
      %5404 = vmatprep.subr.mxu0 0.0
      %5405 = vmatpush1.msra.mxu0 0.0
      %5406 = vmatprep.subr.mxu0 0.0
      %5407 = vmatpush1.msra.mxu0 0.0
      %5408 = vmatprep.mubr.f32.mxu0 0.0
      %5409 = vmatmul.mubr.f32.gmra.mrb[0].mxu0 %v5321
      %v5410 = vpop.f32.mrb[0].mxu0
      %v5411 = vadd.f32 0.0, %v5410
      %v5412 = vpop.f32.mrb[0].mxu0
      %5413 = vmatprep.mubr.f32.mxu0 0.0
      %5414 = vmatmul.mubr.f32.gmra.mrb[0].mxu0 %v5324
      %v5415 = vpop.f32.mrb[0].mxu0
      %v5416 = vadd.f32 0.0, %v5415
      %v5417 = vpop.f32.mrb[0].mxu0
      %5418 = vmatprep.mubr.f32.mxu0 0.0
      %5419 = vmatmul.mubr.f32.gmra.mrb[0].mxu0 %v5327
      %v5420 = vpop.f32.mrb[0].mxu0
      %v5421 = vadd.f32 0.0, %v5420
      %v5422 = vpop.f32.mrb[0].mxu0
      %5423 = vmatprep.mubr.f32.mxu0 0.0
      %5424 = vmatmul.mubr.f32.gmra.mrb[0].mxu0 %v5330
      %v5425 = vpop.f32.mrb[0].mxu0
      %v5426 = vadd.f32 0.0, %v5425
      %v5427 = vpop.f32.mrb[0].mxu0
      %5428 = vmatprep.mubr.f32.mxu0 0.0
      %5429 = vmatmul.mubr.f32.gmra.mrb[0].mxu0 %v5333
      %v5430 = vpop.f32.mrb[0].mxu0
      %v5431 = vadd.f32 0.0, %v5430
      %v5432 = vpop.f32.mrb[0].mxu0
      %5433 = vmatprep.mubr.f32.mxu0 0.0
      %5434 = vmatmul.mubr.f32.gmra.mrb[0].mxu0 %v5336
      %v5435 = vpop.f32.mrb[0].mxu0
      %v5436 = vadd.f32 0.0, %v5435
      %v5437 = vpop.f32.mrb[0].mxu0
      %5438 = vmatprep.mubr.f32.mxu0 0.0
      %5439 = vmatmul.mubr.f32.gmra.mrb[0].mxu0 %v5339
      %v5440 = vpop.f32.mrb[0].mxu0
      %v5441 = vadd.f32 0.0, %v5440
      %v5442 = vpop.f32.mrb[0].mxu0
      %5443 = vmatprep.mubr.f32.mxu0 0.0
      %5444 = vmatmul.mubr.f32.gmra.mrb[0].mxu0 %v5342
      %v5445 = vpop.f32.mrb[0].mxu0
      %v5446 = vadd.f32 0.0, %v5445
      %v5447 = vpop.f32.mrb[0].mxu0
      %5448 = vdwg.mxu0
      %v5450 = vsel %vm1413, %v4501, 0
      %v5453 = vsel %vm1413, %v4502, 0
      %v5456 = vsel %vm1413, %v4503, 0
      %v5459 = vsel %vm1413, %v4504, 0
      %v5462 = vsel %vm1413, %v4505, 0
      %v5465 = vsel %vm1413, %v4506, 0
      %v5468 = vsel %vm1413, %v4507, 0
      %v5471 = vsel %vm1413, %v4508, 0
      %5473 = vmatprep.subr.mxu0 0.0
      %5474 = vmatpush1.msra.mxu0 %v5411
      %5475 = vmatprep.subr.mxu0 0.0
      %5476 = vmatpush1.msra.mxu0 %v5416
      %5477 = vmatprep.subr.mxu0 0.0
      %5478 = vmatpush1.msra.mxu0 %v5421
      %5479 = vmatprep.subr.mxu0 0.0
      %5480 = vmatpush1.msra.mxu0 %v5426
      %5481 = vmatprep.subr.mxu0 0.0
      %5482 = vmatpush1.msra.mxu0 %v5431
      %5483 = vmatprep.subr.mxu0 0.0
      %5484 = vmatpush1.msra.mxu0 %v5436
      %5485 = vmatprep.subr.mxu0 0.0
      %5486 = vmatpush1.msra.mxu0 %v5441
      %5487 = vmatprep.subr.mxu0 0.0
      %5488 = vmatpush1.msra.mxu0 %v5446
      %5489 = vmatprep.subr.mxu0 0.0
      %5490 = vmatpush1.msra.mxu0 0.0
      %5491 = vmatprep.subr.mxu0 0.0
      %5492 = vmatpush1.msra.mxu0 0.0
      %5493 = vmatprep.subr.mxu0 0.0
      %5494 = vmatpush1.msra.mxu0 0.0
      %5495 = vmatprep.subr.mxu0 0.0
      %5496 = vmatpush1.msra.mxu0 0.0
      %5497 = vmatprep.subr.mxu0 0.0
      %5498 = vmatpush1.msra.mxu0 0.0
      %5499 = vmatprep.subr.mxu0 0.0
      %5500 = vmatpush1.msra.mxu0 0.0
      %5501 = vmatprep.subr.mxu0 0.0
      %5502 = vmatpush1.msra.mxu0 0.0
      %5503 = vmatprep.subr.mxu0 0.0
      %5504 = vmatpush1.msra.mxu0 0.0
      %5505 = vmatprep.subr.mxu0 0.0
      %5506 = vmatpush1.msra.mxu0 0.0
      %5507 = vmatprep.subr.mxu0 0.0
      %5508 = vmatpush1.msra.mxu0 0.0
      %5509 = vmatprep.subr.mxu0 0.0
      %5510 = vmatpush1.msra.mxu0 0.0
      %5511 = vmatprep.subr.mxu0 0.0
      %5512 = vmatpush1.msra.mxu0 0.0
      %5513 = vmatprep.subr.mxu0 0.0
      %5514 = vmatpush1.msra.mxu0 0.0
      %5515 = vmatprep.subr.mxu0 0.0
      %5516 = vmatpush1.msra.mxu0 0.0
      %5517 = vmatprep.subr.mxu0 0.0
      %5518 = vmatpush1.msra.mxu0 0.0
      %5519 = vmatprep.subr.mxu0 0.0
      %5520 = vmatpush1.msra.mxu0 0.0
      %5521 = vmatprep.subr.mxu0 0.0
      %5522 = vmatpush1.msra.mxu0 0.0
      %5523 = vmatprep.subr.mxu0 0.0
      %5524 = vmatpush1.msra.mxu0 0.0
      %5525 = vmatprep.subr.mxu0 0.0
      %5526 = vmatpush1.msra.mxu0 0.0
      %5527 = vmatprep.subr.mxu0 0.0
      %5528 = vmatpush1.msra.mxu0 0.0
      %5529 = vmatprep.subr.mxu0 0.0
      %5530 = vmatpush1.msra.mxu0 0.0
      %5531 = vmatprep.subr.mxu0 0.0
      %5532 = vmatpush1.msra.mxu0 0.0
      %5533 = vmatprep.subr.mxu0 0.0
      %5534 = vmatpush1.msra.mxu0 0.0
      %5535 = vmatprep.subr.mxu0 0.0
      %5536 = vmatpush1.msra.mxu0 0.0
      %5537 = vmatprep.mubr.f32.mxu0 0.0
      %5538 = vmatmul.mubr.f32.gmra.mrb[0].mxu0 %v5450
      %v5539 = vpop.f32.mrb[0].mxu0
      %v5540 = vadd.f32 0.0, %v5539
      %v5541 = vpop.f32.mrb[0].mxu0
      %5542 = vmatprep.mubr.f32.mxu0 0.0
      %5543 = vmatmul.mubr.f32.gmra.mrb[0].mxu0 %v5453
      %v5544 = vpop.f32.mrb[0].mxu0
      %v5545 = vadd.f32 0.0, %v5544
      %v5546 = vpop.f32.mrb[0].mxu0
      %5547 = vmatprep.mubr.f32.mxu0 0.0
      %5548 = vmatmul.mubr.f32.gmra.mrb[0].mxu0 %v5456
      %v5549 = vpop.f32.mrb[0].mxu0
      %v5550 = vadd.f32 0.0, %v5549
      %v5551 = vpop.f32.mrb[0].mxu0
      %5552 = vmatprep.mubr.f32.mxu0 0.0
      %5553 = vmatmul.mubr.f32.gmra.mrb[0].mxu0 %v5459
      %v5554 = vpop.f32.mrb[0].mxu0
      %v5555 = vadd.f32 0.0, %v5554
      %v5556 = vpop.f32.mrb[0].mxu0
      %5557 = vmatprep.mubr.f32.mxu0 0.0
      %5558 = vmatmul.mubr.f32.gmra.mrb[0].mxu0 %v5462
      %v5559 = vpop.f32.mrb[0].mxu0
      %v5560 = vadd.f32 0.0, %v5559
      %v5561 = vpop.f32.mrb[0].mxu0
      %5562 = vmatprep.mubr.f32.mxu0 0.0
      %5563 = vmatmul.mubr.f32.gmra.mrb[0].mxu0 %v5465
      %v5564 = vpop.f32.mrb[0].mxu0
      %v5565 = vadd.f32 0.0, %v5564
      %v5566 = vpop.f32.mrb[0].mxu0
      %5567 = vmatprep.mubr.f32.mxu0 0.0
      %5568 = vmatmul.mubr.f32.gmra.mrb[0].mxu0 %v5468
      %v5569 = vpop.f32.mrb[0].mxu0
      %v5570 = vadd.f32 0.0, %v5569
      %v5571 = vpop.f32.mrb[0].mxu0
      %5572 = vmatprep.mubr.f32.mxu0 0.0
      %5573 = vmatmul.mubr.f32.gmra.mrb[0].mxu0 %v5471
      %v5574 = vpop.f32.mrb[0].mxu0
      %v5575 = vadd.f32 0.0, %v5574
      %v5576 = vpop.f32.mrb[0].mxu0
      %5577 = vdwg.mxu0
      %v5578 = vadd.f32 %v758, %v5540
      %v5579 = vadd.f32 %v759, %v5545
      %v5580 = vadd.f32 %v760, %v5550
      %v5581 = vadd.f32 %v761, %v5555
      %v5582 = vadd.f32 %v762, %v5560
      %v5583 = vadd.f32 %v763, %v5565
      %v5584 = vadd.f32 %v764, %v5570
      %v5585 = vadd.f32 %v765, %v5575
      %v5586 = vld [vmem:[%s17] sm:$0x1]
      %v5588 = vlaneseq
      %v5589 = vshrl.u32 %v5588, 7
      %v5590 = vsub.s32 0, %v5589
      %v5591 = vrot.slane %v5586, %v5590
      %v5593 = vadd.f32 %v5578, %v5591
      %v5594 = vadd.f32 %v5579, %v5591
      %v5595 = vadd.f32 %v5580, %v5591
      %v5596 = vadd.f32 %v5581, %v5591
      %v5597 = vadd.f32 %v5582, %v5591
      %v5598 = vadd.f32 %v5583, %v5591
      %v5599 = vadd.f32 %v5584, %v5591
      %v5600 = vadd.f32 %v5585, %v5591
      %v5601 = vld [vmem:[%s18] sm:$0x1]
      %v5602 = vld [vmem:[%s19] sm:$0x1]
      %v5603 = vsel %vm768, %v5593, 0.0
      %5604 = vadd.xlane.f32.xlu0 %v5603
      %v5605 = vpop.xlane.xlu0 %5604
      %v5606 = vsel %vm768, %v5594, 0.0
      %5607 = vadd.xlane.f32.xlu0 %v5606
      %v5608 = vpop.xlane.xlu0 %5607
      %v5609 = vsel %vm768, %v5595, 0.0
      %5610 = vadd.xlane.f32.xlu0 %v5609
      %v5611 = vpop.xlane.xlu0 %5610
      %v5612 = vsel %vm768, %v5596, 0.0
      %5613 = vadd.xlane.f32.xlu0 %v5612
      %v5614 = vpop.xlane.xlu0 %5613
      %v5615 = vsel %vm768, %v5597, 0.0
      %5616 = vadd.xlane.f32.xlu0 %v5615
      %v5617 = vpop.xlane.xlu0 %5616
      %v5618 = vsel %vm768, %v5598, 0.0
      %5619 = vadd.xlane.f32.xlu0 %v5618
      %v5620 = vpop.xlane.xlu0 %5619
      %v5621 = vsel %vm768, %v5599, 0.0
      %5622 = vadd.xlane.f32.xlu0 %v5621
      %v5623 = vpop.xlane.xlu0 %5622
      %v5624 = vsel %vm768, %v5600, 0.0
      %5625 = vadd.xlane.f32.xlu0 %v5624
      %v5626 = vpop.xlane.xlu0 %5625
      %v5627 = vmul.f32 %v5605, %v793
      %v5628 = vmul.f32 %v5608, %v793
      %v5629 = vmul.f32 %v5611, %v793
      %v5630 = vmul.f32 %v5614, %v793
      %v5631 = vmul.f32 %v5617, %v793
      %v5632 = vmul.f32 %v5620, %v793
      %v5633 = vmul.f32 %v5623, %v793
      %v5634 = vmul.f32 %v5626, %v793
      %v5635 = vsub.f32 %v5593, %v5627
      %v5636 = vsub.f32 %v5594, %v5628
      %v5637 = vsub.f32 %v5595, %v5629
      %v5638 = vsub.f32 %v5596, %v5630
      %v5639 = vsub.f32 %v5597, %v5631
      %v5640 = vsub.f32 %v5598, %v5632
      %v5641 = vsub.f32 %v5599, %v5633
      %v5642 = vsub.f32 %v5600, %v5634
      %v5643 = vmul.f32 %v5635, %v5635
      %v5644 = vmul.f32 %v5636, %v5636
      %v5645 = vmul.f32 %v5637, %v5637
      %v5646 = vmul.f32 %v5638, %v5638
      %v5647 = vmul.f32 %v5639, %v5639
      %v5648 = vmul.f32 %v5640, %v5640
      %v5649 = vmul.f32 %v5641, %v5641
      %v5650 = vmul.f32 %v5642, %v5642
      %v5651 = vsel %vm768, %v5643, 0.0
      %5652 = vadd.xlane.f32.xlu0 %v5651
      %v5653 = vpop.xlane.xlu0 %5652
      %v5654 = vsel %vm768, %v5644, 0.0
      %5655 = vadd.xlane.f32.xlu0 %v5654
      %v5656 = vpop.xlane.xlu0 %5655
      %v5657 = vsel %vm768, %v5645, 0.0
      %5658 = vadd.xlane.f32.xlu0 %v5657
      %v5659 = vpop.xlane.xlu0 %5658
      %v5660 = vsel %vm768, %v5646, 0.0
      %5661 = vadd.xlane.f32.xlu0 %v5660
      %v5662 = vpop.xlane.xlu0 %5661
      %v5663 = vsel %vm768, %v5647, 0.0
      %5664 = vadd.xlane.f32.xlu0 %v5663
      %v5665 = vpop.xlane.xlu0 %5664
      %v5666 = vsel %vm768, %v5648, 0.0
      %5667 = vadd.xlane.f32.xlu0 %v5666
      %v5668 = vpop.xlane.xlu0 %5667
      %v5669 = vsel %vm768, %v5649, 0.0
      %5670 = vadd.xlane.f32.xlu0 %v5669
      %v5671 = vpop.xlane.xlu0 %5670
      %v5672 = vsel %vm768, %v5650, 0.0
      %5673 = vadd.xlane.f32.xlu0 %v5672
      %v5674 = vpop.xlane.xlu0 %5673
      %v5675 = vmul.f32 %v5653, %v793
      %v5676 = vmul.f32 %v5656, %v793
      %v5677 = vmul.f32 %v5659, %v793
      %v5678 = vmul.f32 %v5662, %v793
      %v5679 = vmul.f32 %v5665, %v793
      %v5680 = vmul.f32 %v5668, %v793
      %v5681 = vmul.f32 %v5671, %v793
      %v5682 = vmul.f32 %v5674, %v793
      %v5683 = vadd.f32 %v5675, 1e-05
      %v5684 = vadd.f32 %v5676, 1e-05
      %v5685 = vadd.f32 %v5677, 1e-05
      %v5686 = vadd.f32 %v5678, 1e-05
      %v5687 = vadd.f32 %v5679, 1e-05
      %v5688 = vadd.f32 %v5680, 1e-05
      %v5689 = vadd.f32 %v5681, 1e-05
      %v5690 = vadd.f32 %v5682, 1e-05
      %v5691 = vrsqrt.pop %v5683
      %v5692 = vrsqrt.pop %v5684
      %v5693 = vrsqrt.pop %v5685
      %v5694 = vrsqrt.pop %v5686
      %v5695 = vrsqrt.pop %v5687
      %v5696 = vrsqrt.pop %v5688
      %v5697 = vrsqrt.pop %v5689
      %v5698 = vrsqrt.pop %v5690
      %v5699 = vmul.f32 %v5635, %v5691
      %v5700 = vmul.f32 %v5636, %v5692
      %v5701 = vmul.f32 %v5637, %v5693
      %v5702 = vmul.f32 %v5638, %v5694
      %v5703 = vmul.f32 %v5639, %v5695
      %v5704 = vmul.f32 %v5640, %v5696
      %v5705 = vmul.f32 %v5641, %v5697
      %v5706 = vmul.f32 %v5642, %v5698
      %v5708 = vlaneseq
      %v5709 = vshrl.u32 %v5708, 7
      %v5710 = vsub.s32 0, %v5709
      %v5711 = vrot.slane %v5601, %v5710
      %v5713 = vmul.f32 %v5699, %v5711
      %v5714 = vmul.f32 %v5700, %v5711
      %v5715 = vmul.f32 %v5701, %v5711
      %v5716 = vmul.f32 %v5702, %v5711
      %v5717 = vmul.f32 %v5703, %v5711
      %v5718 = vmul.f32 %v5704, %v5711
      %v5719 = vmul.f32 %v5705, %v5711
      %v5720 = vmul.f32 %v5706, %v5711
      %v5722 = vlaneseq
      %v5723 = vshrl.u32 %v5722, 7
      %v5724 = vsub.s32 0, %v5723
      %v5725 = vrot.slane %v5602, %v5724
      %v5727 = vadd.f32 %v5713, %v5725
      %v5728 = vadd.f32 %v5714, %v5725
      %v5729 = vadd.f32 %v5715, %v5725
      %v5730 = vadd.f32 %v5716, %v5725
      %v5731 = vadd.f32 %v5717, %v5725
      %v5732 = vadd.f32 %v5718, %v5725
      %v5733 = vadd.f32 %v5719, %v5725
      %v5734 = vadd.f32 %v5720, %v5725
      %v5735 = vld [vmem:[%s20] sm:$0xff]
      %v5736 = vld [vmem:[%s20 + $0x8] sm:$0xff]
      %v5737 = vld [vmem:[%s20 + $0x10] sm:$0xff]
      %v5738 = vld [vmem:[%s20 + $0x18] sm:$0xff]
      %v5739 = vld [vmem:[%s21] sm:$0x1]
      %v5741 = vlaneseq
      %v5742 = vshrl.u32 %v5741, 7
      %v5743 = vsub.s32 0, %v5742
      %v5744 = vrot.slane %v5739, %v5743
      %v5747 = vsel %vm768, %v5727, 0
      %v5750 = vsel %vm768, %v5728, 0
      %v5753 = vsel %vm768, %v5729, 0
      %v5756 = vsel %vm768, %v5730, 0
      %v5759 = vsel %vm768, %v5731, 0
      %v5762 = vsel %vm768, %v5732, 0
      %v5765 = vsel %vm768, %v5733, 0
      %v5768 = vsel %vm768, %v5734, 0
      %5770 = vmatprep.subr.mxu0 0.0
      %5771 = vmatpush1.msra.mxu0 %v5735
      %5772 = vmatprep.subr.mxu0 0.0
      %5773 = vmatpush1.msra.mxu0 %v5736
      %5774 = vmatprep.subr.mxu0 0.0
      %5775 = vmatpush1.msra.mxu0 %v5737
      %5776 = vmatprep.subr.mxu0 0.0
      %5777 = vmatpush1.msra.mxu0 %v5738
      %5778 = vmatprep.subr.mxu0 0.0
      %5779 = vmatpush1.msra.mxu0 0.0
      %5780 = vmatprep.subr.mxu0 0.0
      %5781 = vmatpush1.msra.mxu0 0.0
      %5782 = vmatprep.subr.mxu0 0.0
      %5783 = vmatpush1.msra.mxu0 0.0
      %5784 = vmatprep.subr.mxu0 0.0
      %5785 = vmatpush1.msra.mxu0 0.0
      %5786 = vmatprep.subr.mxu0 0.0
      %5787 = vmatpush1.msra.mxu0 0.0
      %5788 = vmatprep.subr.mxu0 0.0
      %5789 = vmatpush1.msra.mxu0 0.0
      %5790 = vmatprep.subr.mxu0 0.0
      %5791 = vmatpush1.msra.mxu0 0.0
      %5792 = vmatprep.subr.mxu0 0.0
      %5793 = vmatpush1.msra.mxu0 0.0
      %5794 = vmatprep.subr.mxu0 0.0
      %5795 = vmatpush1.msra.mxu0 0.0
      %5796 = vmatprep.subr.mxu0 0.0
      %5797 = vmatpush1.msra.mxu0 0.0
      %5798 = vmatprep.subr.mxu0 0.0
      %5799 = vmatpush1.msra.mxu0 0.0
      %5800 = vmatprep.subr.mxu0 0.0
      %5801 = vmatpush1.msra.mxu0 0.0
      %5802 = vmatprep.subr.mxu0 0.0
      %5803 = vmatpush1.msra.mxu0 0.0
      %5804 = vmatprep.subr.mxu0 0.0
      %5805 = vmatpush1.msra.mxu0 0.0
      %5806 = vmatprep.subr.mxu0 0.0
      %5807 = vmatpush1.msra.mxu0 0.0
      %5808 = vmatprep.subr.mxu0 0.0
      %5809 = vmatpush1.msra.mxu0 0.0
      %5810 = vmatprep.subr.mxu0 0.0
      %5811 = vmatpush1.msra.mxu0 0.0
      %5812 = vmatprep.subr.mxu0 0.0
      %5813 = vmatpush1.msra.mxu0 0.0
      %5814 = vmatprep.subr.mxu0 0.0
      %5815 = vmatpush1.msra.mxu0 0.0
      %5816 = vmatprep.subr.mxu0 0.0
      %5817 = vmatpush1.msra.mxu0 0.0
      %5818 = vmatprep.subr.mxu0 0.0
      %5819 = vmatpush1.msra.mxu0 0.0
      %5820 = vmatprep.subr.mxu0 0.0
      %5821 = vmatpush1.msra.mxu0 0.0
      %5822 = vmatprep.subr.mxu0 0.0
      %5823 = vmatpush1.msra.mxu0 0.0
      %5824 = vmatprep.subr.mxu0 0.0
      %5825 = vmatpush1.msra.mxu0 0.0
      %5826 = vmatprep.subr.mxu0 0.0
      %5827 = vmatpush1.msra.mxu0 0.0
      %5828 = vmatprep.subr.mxu0 0.0
      %5829 = vmatpush1.msra.mxu0 0.0
      %5830 = vmatprep.subr.mxu0 0.0
      %5831 = vmatpush1.msra.mxu0 0.0
      %5832 = vmatprep.subr.mxu0 0.0
      %5833 = vmatpush1.msra.mxu0 0.0
      %5834 = vmatprep.mubr.f32.mxu0 0.0
      %5835 = vmatmul.mubr.f32.gmra.mrb[0].mxu0 %v5747
      %v5836 = vpop.f32.mrb[0].mxu0
      %v5837 = vadd.f32 %v5744, %v5836
      %v5838 = vpop.f32.mrb[0].mxu0
      %5839 = vmatprep.mubr.f32.mxu0 0.0
      %5840 = vmatmul.mubr.f32.gmra.mrb[0].mxu0 %v5750
      %v5841 = vpop.f32.mrb[0].mxu0
      %v5842 = vadd.f32 %v5744, %v5841
      %v5843 = vpop.f32.mrb[0].mxu0
      %5844 = vmatprep.mubr.f32.mxu0 0.0
      %5845 = vmatmul.mubr.f32.gmra.mrb[0].mxu0 %v5753
      %v5846 = vpop.f32.mrb[0].mxu0
      %v5847 = vadd.f32 %v5744, %v5846
      %v5848 = vpop.f32.mrb[0].mxu0
      %5849 = vmatprep.mubr.f32.mxu0 0.0
      %5850 = vmatmul.mubr.f32.gmra.mrb[0].mxu0 %v5756
      %v5851 = vpop.f32.mrb[0].mxu0
      %v5852 = vadd.f32 %v5744, %v5851
      %v5853 = vpop.f32.mrb[0].mxu0
      %5854 = vmatprep.mubr.f32.mxu0 0.0
      %5855 = vmatmul.mubr.f32.gmra.mrb[0].mxu0 %v5759
      %v5856 = vpop.f32.mrb[0].mxu0
      %v5857 = vadd.f32 %v5744, %v5856
      %v5858 = vpop.f32.mrb[0].mxu0
      %5859 = vmatprep.mubr.f32.mxu0 0.0
      %5860 = vmatmul.mubr.f32.gmra.mrb[0].mxu0 %v5762
      %v5861 = vpop.f32.mrb[0].mxu0
      %v5862 = vadd.f32 %v5744, %v5861
      %v5863 = vpop.f32.mrb[0].mxu0
      %5864 = vmatprep.mubr.f32.mxu0 0.0
      %5865 = vmatmul.mubr.f32.gmra.mrb[0].mxu0 %v5765
      %v5866 = vpop.f32.mrb[0].mxu0
      %v5867 = vadd.f32 %v5744, %v5866
      %v5868 = vpop.f32.mrb[0].mxu0
      %5869 = vmatprep.mubr.f32.mxu0 0.0
      %5870 = vmatmul.mubr.f32.gmra.mrb[0].mxu0 %v5768
      %v5871 = vpop.f32.mrb[0].mxu0
      %v5872 = vadd.f32 %v5744, %v5871
      %v5873 = vpop.f32.mrb[0].mxu0
      %5874 = vdwg.mxu0
      %v5875 = vmul.f32 %v5837, 0.5
      %v5876 = vmul.f32 %v5842, 0.5
      %v5877 = vmul.f32 %v5847, 0.5
      %v5878 = vmul.f32 %v5852, 0.5
      %v5879 = vmul.f32 %v5857, 0.5
      %v5880 = vmul.f32 %v5862, 0.5
      %v5881 = vmul.f32 %v5867, 0.5
      %v5882 = vmul.f32 %v5872, 0.5
      %v5883 = vmul.f32 %v5837, 0.70710677
      %v5884 = vmul.f32 %v5842, 0.70710677
      %v5885 = vmul.f32 %v5847, 0.70710677
      %v5886 = vmul.f32 %v5852, 0.70710677
      %v5887 = vmul.f32 %v5857, 0.70710677
      %v5888 = vmul.f32 %v5862, 0.70710677
      %v5889 = vmul.f32 %v5867, 0.70710677
      %v5890 = vmul.f32 %v5872, 0.70710677
      %vm5891 = vcmp.ge.f32.partialorder %v5883, 0.0
      %vm5892 = vcmp.ge.f32.partialorder %v5884, 0.0
      %vm5893 = vcmp.ge.f32.partialorder %v5885, 0.0
      %vm5894 = vcmp.ge.f32.partialorder %v5886, 0.0
      %vm5895 = vcmp.ge.f32.partialorder %v5887, 0.0
      %vm5896 = vcmp.ge.f32.partialorder %v5888, 0.0
      %vm5897 = vcmp.ge.f32.partialorder %v5889, 0.0
      %vm5898 = vcmp.ge.f32.partialorder %v5890, 0.0
      %v5899 = vsel %vm5891, 1.0, -1.0
      %v5900 = vsel %vm5892, 1.0, -1.0
      %v5901 = vsel %vm5893, 1.0, -1.0
      %v5902 = vsel %vm5894, 1.0, -1.0
      %v5903 = vsel %vm5895, 1.0, -1.0
      %v5904 = vsel %vm5896, 1.0, -1.0
      %v5905 = vsel %vm5897, 1.0, -1.0
      %v5906 = vsel %vm5898, 1.0, -1.0
      %v5907 = vand.u32 2147483647, %v5883
      %v5908 = vand.u32 2147483647, %v5884
      %v5909 = vand.u32 2147483647, %v5885
      %v5910 = vand.u32 2147483647, %v5886
      %v5911 = vand.u32 2147483647, %v5887
      %v5912 = vand.u32 2147483647, %v5888
      %v5913 = vand.u32 2147483647, %v5889
      %v5914 = vand.u32 2147483647, %v5890
      %v5915 = vmul.f32 %v5907, 0.3275911
      %v5916 = vmul.f32 %v5908, 0.3275911
      %v5917 = vmul.f32 %v5909, 0.3275911
      %v5918 = vmul.f32 %v5910, 0.3275911
      %v5919 = vmul.f32 %v5911, 0.3275911
      %v5920 = vmul.f32 %v5912, 0.3275911
      %v5921 = vmul.f32 %v5913, 0.3275911
      %v5922 = vmul.f32 %v5914, 0.3275911
      %v5923 = vadd.f32 %v5915, 1.0
      %v5924 = vadd.f32 %v5916, 1.0
      %v5925 = vadd.f32 %v5917, 1.0
      %v5926 = vadd.f32 %v5918, 1.0
      %v5927 = vadd.f32 %v5919, 1.0
      %v5928 = vadd.f32 %v5920, 1.0
      %v5929 = vadd.f32 %v5921, 1.0
      %v5930 = vadd.f32 %v5922, 1.0
      %v5931 = vrcp.pop %v5923
      %v5932 = vmul.f32 1.0, %v5931
      %v5933 = vrcp.pop %v5924
      %v5934 = vmul.f32 1.0, %v5933
      %v5935 = vrcp.pop %v5925
      %v5936 = vmul.f32 1.0, %v5935
      %v5937 = vrcp.pop %v5926
      %v5938 = vmul.f32 1.0, %v5937
      %v5939 = vrcp.pop %v5927
      %v5940 = vmul.f32 1.0, %v5939
      %v5941 = vrcp.pop %v5928
      %v5942 = vmul.f32 1.0, %v5941
      %v5943 = vrcp.pop %v5929
      %v5944 = vmul.f32 1.0, %v5943
      %v5945 = vrcp.pop %v5930
      %v5946 = vmul.f32 1.0, %v5945
      %v5947 = vmul.f32 %v5932, 1.0614054
      %v5948 = vmul.f32 %v5934, 1.0614054
      %v5949 = vmul.f32 %v5936, 1.0614054
      %v5950 = vmul.f32 %v5938, 1.0614054
      %v5951 = vmul.f32 %v5940, 1.0614054
      %v5952 = vmul.f32 %v5942, 1.0614054
      %v5953 = vmul.f32 %v5944, 1.0614054
      %v5954 = vmul.f32 %v5946, 1.0614054
      %v5955 = vadd.f32 %v5947, -1.4531521
      %v5956 = vadd.f32 %v5948, -1.4531521
      %v5957 = vadd.f32 %v5949, -1.4531521
      %v5958 = vadd.f32 %v5950, -1.4531521
      %v5959 = vadd.f32 %v5951, -1.4531521
      %v5960 = vadd.f32 %v5952, -1.4531521
      %v5961 = vadd.f32 %v5953, -1.4531521
      %v5962 = vadd.f32 %v5954, -1.4531521
      %v5963 = vmul.f32 %v5955, %v5932
      %v5964 = vmul.f32 %v5956, %v5934
      %v5965 = vmul.f32 %v5957, %v5936
      %v5966 = vmul.f32 %v5958, %v5938
      %v5967 = vmul.f32 %v5959, %v5940
      %v5968 = vmul.f32 %v5960, %v5942
      %v5969 = vmul.f32 %v5961, %v5944
      %v5970 = vmul.f32 %v5962, %v5946
      %v5971 = vadd.f32 %v5963, 1.4214138
      %v5972 = vadd.f32 %v5964, 1.4214138
      %v5973 = vadd.f32 %v5965, 1.4214138
      %v5974 = vadd.f32 %v5966, 1.4214138
      %v5975 = vadd.f32 %v5967, 1.4214138
      %v5976 = vadd.f32 %v5968, 1.4214138
      %v5977 = vadd.f32 %v5969, 1.4214138
      %v5978 = vadd.f32 %v5970, 1.4214138
      %v5979 = vmul.f32 %v5971, %v5932
      %v5980 = vmul.f32 %v5972, %v5934
      %v5981 = vmul.f32 %v5973, %v5936
      %v5982 = vmul.f32 %v5974, %v5938
      %v5983 = vmul.f32 %v5975, %v5940
      %v5984 = vmul.f32 %v5976, %v5942
      %v5985 = vmul.f32 %v5977, %v5944
      %v5986 = vmul.f32 %v5978, %v5946
      %v5987 = vadd.f32 %v5979, -0.28449672
      %v5988 = vadd.f32 %v5980, -0.28449672
      %v5989 = vadd.f32 %v5981, -0.28449672
      %v5990 = vadd.f32 %v5982, -0.28449672
      %v5991 = vadd.f32 %v5983, -0.28449672
      %v5992 = vadd.f32 %v5984, -0.28449672
      %v5993 = vadd.f32 %v5985, -0.28449672
      %v5994 = vadd.f32 %v5986, -0.28449672
      %v5995 = vmul.f32 %v5987, %v5932
      %v5996 = vmul.f32 %v5988, %v5934
      %v5997 = vmul.f32 %v5989, %v5936
      %v5998 = vmul.f32 %v5990, %v5938
      %v5999 = vmul.f32 %v5991, %v5940
      %v6000 = vmul.f32 %v5992, %v5942
      %v6001 = vmul.f32 %v5993, %v5944
      %v6002 = vmul.f32 %v5994, %v5946
      %v6003 = vadd.f32 %v5995, 0.2548296
      %v6004 = vadd.f32 %v5996, 0.2548296
      %v6005 = vadd.f32 %v5997, 0.2548296
      %v6006 = vadd.f32 %v5998, 0.2548296
      %v6007 = vadd.f32 %v5999, 0.2548296
      %v6008 = vadd.f32 %v6000, 0.2548296
      %v6009 = vadd.f32 %v6001, 0.2548296
      %v6010 = vadd.f32 %v6002, 0.2548296
      %v6011 = vmul.f32 %v6003, %v5932
      %v6012 = vmul.f32 %v6004, %v5934
      %v6013 = vmul.f32 %v6005, %v5936
      %v6014 = vmul.f32 %v6006, %v5938
      %v6015 = vmul.f32 %v6007, %v5940
      %v6016 = vmul.f32 %v6008, %v5942
      %v6017 = vmul.f32 %v6009, %v5944
      %v6018 = vmul.f32 %v6010, %v5946
      %v6019 = vsub.f32 0.0, %v5907
      %v6020 = vsub.f32 0.0, %v5908
      %v6021 = vsub.f32 0.0, %v5909
      %v6022 = vsub.f32 0.0, %v5910
      %v6023 = vsub.f32 0.0, %v5911
      %v6024 = vsub.f32 0.0, %v5912
      %v6025 = vsub.f32 0.0, %v5913
      %v6026 = vsub.f32 0.0, %v5914
      %v6027 = vmul.f32 %v6019, %v5907
      %v6028 = vmul.f32 %v6020, %v5908
      %v6029 = vmul.f32 %v6021, %v5909
      %v6030 = vmul.f32 %v6022, %v5910
      %v6031 = vmul.f32 %v6023, %v5911
      %v6032 = vmul.f32 %v6024, %v5912
      %v6033 = vmul.f32 %v6025, %v5913
      %v6034 = vmul.f32 %v6026, %v5914
      %v6035 = vmul.f32 %v6027, 1.442695
      %v6036 = vpow.pop %v6035
      %v6037 = vmul.f32 %v6028, 1.442695
      %v6038 = vpow.pop %v6037
      %v6039 = vmul.f32 %v6029, 1.442695
      %v6040 = vpow.pop %v6039
      %v6041 = vmul.f32 %v6030, 1.442695
      %v6042 = vpow.pop %v6041
      %v6043 = vmul.f32 %v6031, 1.442695
      %v6044 = vpow.pop %v6043
      %v6045 = vmul.f32 %v6032, 1.442695
      %v6046 = vpow.pop %v6045
      %v6047 = vmul.f32 %v6033, 1.442695
      %v6048 = vpow.pop %v6047
      %v6049 = vmul.f32 %v6034, 1.442695
      %v6050 = vpow.pop %v6049
      %v6051 = vmul.f32 %v6011, %v6036
      %v6052 = vmul.f32 %v6012, %v6038
      %v6053 = vmul.f32 %v6013, %v6040
      %v6054 = vmul.f32 %v6014, %v6042
      %v6055 = vmul.f32 %v6015, %v6044
      %v6056 = vmul.f32 %v6016, %v6046
      %v6057 = vmul.f32 %v6017, %v6048
      %v6058 = vmul.f32 %v6018, %v6050
      %v6059 = vsub.f32 1.0, %v6051
      %v6060 = vsub.f32 1.0, %v6052
      %v6061 = vsub.f32 1.0, %v6053
      %v6062 = vsub.f32 1.0, %v6054
      %v6063 = vsub.f32 1.0, %v6055
      %v6064 = vsub.f32 1.0, %v6056
      %v6065 = vsub.f32 1.0, %v6057
      %v6066 = vsub.f32 1.0, %v6058
      %v6067 = vmul.f32 %v5899, %v6059
      %v6068 = vmul.f32 %v5900, %v6060
      %v6069 = vmul.f32 %v5901, %v6061
      %v6070 = vmul.f32 %v5902, %v6062
      %v6071 = vmul.f32 %v5903, %v6063
      %v6072 = vmul.f32 %v5904, %v6064
      %v6073 = vmul.f32 %v5905, %v6065
      %v6074 = vmul.f32 %v5906, %v6066
      %v6075 = vadd.f32 %v6067, 1.0
      %v6076 = vadd.f32 %v6068, 1.0
      %v6077 = vadd.f32 %v6069, 1.0
      %v6078 = vadd.f32 %v6070, 1.0
      %v6079 = vadd.f32 %v6071, 1.0
      %v6080 = vadd.f32 %v6072, 1.0
      %v6081 = vadd.f32 %v6073, 1.0
      %v6082 = vadd.f32 %v6074, 1.0
      %v6083 = vmul.f32 %v5875, %v6075
      %v6084 = vmul.f32 %v5876, %v6076
      %v6085 = vmul.f32 %v5877, %v6077
      %v6086 = vmul.f32 %v5878, %v6078
      %v6087 = vmul.f32 %v5879, %v6079
      %v6088 = vmul.f32 %v5880, %v6080
      %v6089 = vmul.f32 %v5881, %v6081
      %v6090 = vmul.f32 %v5882, %v6082
      %v6091 = vld [vmem:[%s22] sm:$0xff]
      %v6092 = vld [vmem:[%s22 + $0x8] sm:$0xff]
      %v6093 = vld [vmem:[%s22 + $0x10] sm:$0xff]
      %v6094 = vld [vmem:[%s22 + $0x18] sm:$0xff]
      %v6095 = vld [vmem:[%s22 + $0x20] sm:$0xff]
      %v6096 = vld [vmem:[%s22 + $0x28] sm:$0xff]
      %v6097 = vld [vmem:[%s22 + $0x30] sm:$0xff]
      %v6098 = vld [vmem:[%s22 + $0x38] sm:$0xff]
      %v6099 = vld [vmem:[%s22 + $0x40] sm:$0xff]
      %v6100 = vld [vmem:[%s22 + $0x48] sm:$0xff]
      %v6101 = vld [vmem:[%s22 + $0x50] sm:$0xff]
      %v6102 = vld [vmem:[%s22 + $0x58] sm:$0xff]
      %v6103 = vld [vmem:[%s22 + $0x60] sm:$0xff]
      %v6104 = vld [vmem:[%s22 + $0x68] sm:$0xff]
      %v6105 = vld [vmem:[%s22 + $0x70] sm:$0xff]
      %v6106 = vld [vmem:[%s22 + $0x78] sm:$0xff]
      %v6107 = vld [vmem:[%s23] sm:$0x1]
      %v6109 = vlaneseq
      %v6110 = vshrl.u32 %v6109, 7
      %v6111 = vsub.s32 0, %v6110
      %v6112 = vrot.slane %v6107, %v6111
      %6114 = vmatprep.subr.mxu0 0.0
      %6115 = vmatpush1.msra.mxu0 %v6091
      %6116 = vmatprep.subr.mxu0 0.0
      %6117 = vmatpush1.msra.mxu0 %v6092
      %6118 = vmatprep.subr.mxu0 0.0
      %6119 = vmatpush1.msra.mxu0 %v6093
      %6120 = vmatprep.subr.mxu0 0.0
      %6121 = vmatpush1.msra.mxu0 %v6094
      %6122 = vmatprep.subr.mxu0 0.0
      %6123 = vmatpush1.msra.mxu0 %v6095
      %6124 = vmatprep.subr.mxu0 0.0
      %6125 = vmatpush1.msra.mxu0 %v6096
      %6126 = vmatprep.subr.mxu0 0.0
      %6127 = vmatpush1.msra.mxu0 %v6097
      %6128 = vmatprep.subr.mxu0 0.0
      %6129 = vmatpush1.msra.mxu0 %v6098
      %6130 = vmatprep.subr.mxu0 0.0
      %6131 = vmatpush1.msra.mxu0 %v6099
      %6132 = vmatprep.subr.mxu0 0.0
      %6133 = vmatpush1.msra.mxu0 %v6100
      %6134 = vmatprep.subr.mxu0 0.0
      %6135 = vmatpush1.msra.mxu0 %v6101
      %6136 = vmatprep.subr.mxu0 0.0
      %6137 = vmatpush1.msra.mxu0 %v6102
      %6138 = vmatprep.subr.mxu0 0.0
      %6139 = vmatpush1.msra.mxu0 %v6103
      %6140 = vmatprep.subr.mxu0 0.0
      %6141 = vmatpush1.msra.mxu0 %v6104
      %6142 = vmatprep.subr.mxu0 0.0
      %6143 = vmatpush1.msra.mxu0 %v6105
      %6144 = vmatprep.subr.mxu0 0.0
      %6145 = vmatpush1.msra.mxu0 %v6106
      %6146 = vmatprep.subr.mxu0 0.0
      %6147 = vmatpush1.msra.mxu0 0.0
      %6148 = vmatprep.subr.mxu0 0.0
      %6149 = vmatpush1.msra.mxu0 0.0
      %6150 = vmatprep.subr.mxu0 0.0
      %6151 = vmatpush1.msra.mxu0 0.0
      %6152 = vmatprep.subr.mxu0 0.0
      %6153 = vmatpush1.msra.mxu0 0.0
      %6154 = vmatprep.subr.mxu0 0.0
      %6155 = vmatpush1.msra.mxu0 0.0
      %6156 = vmatprep.subr.mxu0 0.0
      %6157 = vmatpush1.msra.mxu0 0.0
      %6158 = vmatprep.subr.mxu0 0.0
      %6159 = vmatpush1.msra.mxu0 0.0
      %6160 = vmatprep.subr.mxu0 0.0
      %6161 = vmatpush1.msra.mxu0 0.0
      %6162 = vmatprep.subr.mxu0 0.0
      %6163 = vmatpush1.msra.mxu0 0.0
      %6164 = vmatprep.subr.mxu0 0.0
      %6165 = vmatpush1.msra.mxu0 0.0
      %6166 = vmatprep.subr.mxu0 0.0
      %6167 = vmatpush1.msra.mxu0 0.0
      %6168 = vmatprep.subr.mxu0 0.0
      %6169 = vmatpush1.msra.mxu0 0.0
      %6170 = vmatprep.subr.mxu0 0.0
      %6171 = vmatpush1.msra.mxu0 0.0
      %6172 = vmatprep.subr.mxu0 0.0
      %6173 = vmatpush1.msra.mxu0 0.0
      %6174 = vmatprep.subr.mxu0 0.0
      %6175 = vmatpush1.msra.mxu0 0.0
      %6176 = vmatprep.subr.mxu0 0.0
      %6177 = vmatpush1.msra.mxu0 0.0
      %6178 = vmatprep.mubr.f32.mxu0 0.0
      %6179 = vmatmul.mubr.f32.gmra.mrb[0].mxu0 %v6083
      %v6180 = vpop.f32.mrb[0].mxu0
      %v6181 = vadd.f32 %v6112, %v6180
      %v6182 = vpop.f32.mrb[0].mxu0
      %6183 = vmatprep.mubr.f32.mxu0 0.0
      %6184 = vmatmul.mubr.f32.gmra.mrb[0].mxu0 %v6084
      %v6185 = vpop.f32.mrb[0].mxu0
      %v6186 = vadd.f32 %v6112, %v6185
      %v6187 = vpop.f32.mrb[0].mxu0
      %6188 = vmatprep.mubr.f32.mxu0 0.0
      %6189 = vmatmul.mubr.f32.gmra.mrb[0].mxu0 %v6085
      %v6190 = vpop.f32.mrb[0].mxu0
      %v6191 = vadd.f32 %v6112, %v6190
      %v6192 = vpop.f32.mrb[0].mxu0
      %6193 = vmatprep.mubr.f32.mxu0 0.0
      %6194 = vmatmul.mubr.f32.gmra.mrb[0].mxu0 %v6086
      %v6195 = vpop.f32.mrb[0].mxu0
      %v6196 = vadd.f32 %v6112, %v6195
      %v6197 = vpop.f32.mrb[0].mxu0
      %6198 = vmatprep.mubr.f32.mxu0 0.0
      %6199 = vmatmul.mubr.f32.gmra.mrb[0].mxu0 %v6087
      %v6200 = vpop.f32.mrb[0].mxu0
      %v6201 = vadd.f32 %v6112, %v6200
      %v6202 = vpop.f32.mrb[0].mxu0
      %6203 = vmatprep.mubr.f32.mxu0 0.0
      %6204 = vmatmul.mubr.f32.gmra.mrb[0].mxu0 %v6088
      %v6205 = vpop.f32.mrb[0].mxu0
      %v6206 = vadd.f32 %v6112, %v6205
      %v6207 = vpop.f32.mrb[0].mxu0
      %6208 = vmatprep.mubr.f32.mxu0 0.0
      %6209 = vmatmul.mubr.f32.gmra.mrb[0].mxu0 %v6089
      %v6210 = vpop.f32.mrb[0].mxu0
      %v6211 = vadd.f32 %v6112, %v6210
      %v6212 = vpop.f32.mrb[0].mxu0
      %6213 = vmatprep.mubr.f32.mxu0 0.0
      %6214 = vmatmul.mubr.f32.gmra.mrb[0].mxu0 %v6090
      %v6215 = vpop.f32.mrb[0].mxu0
      %v6216 = vadd.f32 %v6112, %v6215
      %v6217 = vpop.f32.mrb[0].mxu0
      %6218 = vdwg.mxu0
      %v6219 = vadd.f32 %v6181, %v5593
      %v6220 = vadd.f32 %v6186, %v5594
      %v6221 = vadd.f32 %v6191, %v5595
      %v6222 = vadd.f32 %v6196, %v5596
      %v6223 = vadd.f32 %v6201, %v5597
      %v6224 = vadd.f32 %v6206, %v5598
      %v6225 = vadd.f32 %v6211, %v5599
      %v6226 = vadd.f32 %v6216, %v5600
      %6227 = vst.msk [vmem:[%s757] sm:$0xff] %vm768, %v6219
      %6228 = vst.msk [vmem:[%s757 + $0x8] sm:$0xff] %vm768, %v6220
      %6229 = vst.msk [vmem:[%s757 + $0x10] sm:$0xff] %vm768, %v6221
      %6230 = vst.msk [vmem:[%s757 + $0x18] sm:$0xff] %vm768, %v6222
      %6231 = vst.msk [vmem:[%s757 + $0x20] sm:$0xff] %vm768, %v6223
      %6232 = vst.msk [vmem:[%s757 + $0x28] sm:$0xff] %vm768, %v6224
      %6233 = vst.msk [vmem:[%s757 + $0x30] sm:$0xff] %vm768, %v6225
      %6234 = vst.msk [vmem:[%s757 + $0x38] sm:$0xff] %vm768, %v6226
      %p6235 = scmp.lt.s32.totalorder %s35, 1
      %s6236 = scalar_select %p6235, %s35, 1
      %s6237 = smul.addr %s6236, 8
      %s6238 = smul.addr %s6237, 8
      %s6239 = scalar_lea.vmem %s24, %s6238
      // Predicated region
      $region117: #{tpu_custom_call.1} parent=115 // pred_check
        %p6240 = pneg %p567
      $region118: #{tpu_custom_call.1} parent=115 // pred_check_branch
        %6242 = sbr.rel (%p6240) target = $region120
      $region119: #{tpu_custom_call.1} parent=115 // pred_region
        _
      $region120: #{tpu_custom_call.1} parent=115 // pred_fallthru
        _
    $region116: #{tpu_custom_call.1} parent=5 // pred_fallthru
      _
    %p6243 = scmp.le.s32.totalorder 2, %s30
    // Predicated region
    $region121: #{tpu_custom_call.1} parent=5 // pred_check
      %p6244 = pneg %p6243
    $region122: #{tpu_custom_call.1} parent=5 // pred_check_branch
      %6246 = sbr.rel (%p6244) target = $region124
    $region123: #{tpu_custom_call.1} parent=5 // pred_region
      %s6247 = ssub.s32 %s30, 2
      // Predicated region
      $region125: #{tpu_custom_call.1} parent=123 // pred_check
        %p6248 = pneg %p573
      $region126: #{tpu_custom_call.1} parent=123 // pred_check_branch
        %6250 = sbr.rel (%p6248) target = $region128
      $region127: #{tpu_custom_call.1} parent=123 // pred_region
        %p6251 = scmp.lt.s32.totalorder %s36, 1
        %s6252 = scalar_select %p6251, %s36, 1
        %s6253 = smul.addr %s6252, 8
        %s6254 = smul.addr %s6253, 8
        %s6255 = scalar_lea.vmem %s24, %s6254
      $region128: #{tpu_custom_call.1} parent=123 // pred_fallthru
        _
    $region124: #{tpu_custom_call.1} parent=5 // pred_fallthru
      _
  $region6: #{tpu_custom_call.1} parent=0 // loop_footer
    %s34 = sadd.s32 1, %s30
  $region7: #{tpu_custom_call.1} parent=0 // loop_footer_branch
    %29 = sbr.rel target = $region3
  $region8: #{tpu_custom_call.1} parent=0 // loop_exit
    _

</llo_original>
